<compile_context>
chip_gen: v6e
topology: v6e:2x2x1
jax: 0.10.0
libtpu: 0.0.40
codegen_flags: <defaults>
</compile_context>

<pallas_src>
import functools

import jax
import jax.numpy as jnp
from jax.experimental import pallas as pl
from jax.experimental.pallas import tpu as pltpu


LANE = 128  # TPU lane width; channel dims are zero-padded to a multiple of this


def _round_up(x, m):
    return (x + m - 1) // m * m


def _pad_axis(a, axis, size):
    if a.shape[axis] == size:
        return a
    pad = [(0, 0)] * a.ndim
    pad[axis] = (0, size - a.shape[axis])
    return jnp.pad(a, pad)


# -----------------------------------------------------------------------------
# In-kernel helpers
# -----------------------------------------------------------------------------
def _zero_border(pad_ref, H, W):
    """Zero the 1-pixel frame of a (H+2, W+2, C) VMEM pad buffer.

    Border-only (not full buffer) and done every grid step: the interior is
    fully overwritten each step, and per-step zeroing stays correct when the
    parallel batch axis is sharded across TensorCores (per-core scratch).
    """
    C = pad_ref.shape[-1]
    row = jnp.zeros((1, W + 2, C), pad_ref.dtype)
    col = jnp.zeros((H + 2, 1, C), pad_ref.dtype)
    pad_ref[0:1, :, :] = row
    pad_ref[H + 1:H + 2, :, :] = row
    pad_ref[:, 0:1, :] = col
    pad_ref[:, W + 1:W + 2, :] = col


def _conv3x3_from_pad(pad_ref, w_ref, H, W, C, Cout):
    """3x3 conv (stride 1) from a zero-padded VMEM buffer.

    9 per-tap bf16 matmuls accumulating in f32 (no im2col materialization).
    pad_ref: (H+2, W+2, C) f32 VMEM,  w_ref: (9*C, Cout) bf16.
    Returns (H*W, Cout) f32 (bias not added).
    """
    acc = jnp.zeros((H * W, Cout), jnp.float32)
    for t in range(9):
        dy, dx = divmod(t, 3)
        win = pad_ref[dy:dy + H, dx:dx + W, :].reshape(H * W, C)
        acc = acc + jnp.dot(win.astype(jnp.bfloat16),
                            w_ref[t * C:(t + 1) * C, :],
                            preferred_element_type=jnp.float32)
    return acc


# -----------------------------------------------------------------------------
# Pallas kernels
# -----------------------------------------------------------------------------
def _fused_spade_kernel(x_ref, seg_ref, w_sh_ref, b_sh_ref, w_gb_ref, b_gb_ref,
                        nw_ref, nb_ref, o_ref,
                        seg_pad_ref, act_pad_ref,
                        *, H, W, Cin, C, eps, slope):
    """One whole SPADE block for one batch element.

    x_ref   : (1, H, W, C)      feature map to normalize (C = padded nfilt)
    seg_ref : (1, H, W, Cin)    resized + channel-padded segmentation map
    w_sh    : (9*Cin, C) bf16,  b_sh: (1, C) f32        shared conv (per-tap layout)
    w_gb    : (9*C, 2C) bf16,   b_gb: (1, 2C) f32       gamma|beta conv, concatenated
    nw/nb   : (1, C) f32                                InstanceNorm affine params
    scratch : seg_pad (H+2, W+2, Cin) f32, act_pad (H+2, W+2, C) f32
    """
    f32 = jnp.float32

    # ---- shared 3x3 conv on the segmap + LeakyReLU(0.2) ---------------------
    _zero_border(seg_pad_ref, H, W)
    seg_pad_ref[1:H + 1, 1:W + 1, :] = seg_ref[0].astype(f32)
    a = _conv3x3_from_pad(seg_pad_ref, w_sh_ref, H, W, Cin, C) + b_sh_ref[...]
    a = jnp.where(a >= 0, a, a * slope)

    # ---- fused gamma|beta 3x3 conv (Cout = 2C) ------------------------------
    _zero_border(act_pad_ref, H, W)
    act_pad_ref[1:H + 1, 1:W + 1, :] = a.reshape(H, W, C)
    gb = _conv3x3_from_pad(act_pad_ref, w_gb_ref, H, W, C, 2 * C) + b_gb_ref[...]
    gamma = gb[:, 0:C]
    beta = gb[:, C:2 * C]

    # ---- InstanceNorm2d(affine), two-pass f32 stats, + SPADE modulation -----
    x = x_ref[0].astype(f32).reshape(H * W, C)
    mean = jnp.mean(x, axis=0, keepdims=True)          # (1, C)
    xc = x - mean
    var = jnp.mean(xc * xc, axis=0, keepdims=True)     # biased, like IN2d
    xn = xc * jax.lax.rsqrt(var + eps)
    xn = xn * nw_ref[...] + nb_ref[...]
    out = xn * (1.0 + gamma) + beta
    o_ref[0] = out.reshape(H, W, C).astype(o_ref.dtype)


def _leaky_conv3x3_kernel(x_ref, w_ref, b_ref, o_ref, pad_ref,
                          *, H, W, C, Cout, slope):
    """self.last: LeakyReLU(0.2) then 3x3 conv (stride 1, pad 1)."""
    f32 = jnp.float32
    x = x_ref[0].astype(f32)
    x = jnp.where(x >= 0, x, x * slope)   # leaky(0) == 0, so zero padding after
    _zero_border(pad_ref, H, W)           # the activation is equivalent.
    pad_ref[1:H + 1, 1:W + 1, :] = x
    out = _conv3x3_from_pad(pad_ref, w_ref, H, W, C, Cout) + b_ref[...]
    o_ref[0] = out.reshape(H, W, Cout).astype(o_ref.dtype)


# -----------------------------------------------------------------------------
# Wrappers around pallas_call
# -----------------------------------------------------------------------------
def fused_spade(x_nhwc, seg_nhwc, p, *, eps=1e-5, slope=0.2):
    """Whole SPADE block (conv-shared + leaky, gamma/beta conv, IN + modulation)."""
    N, H, W, C = x_nhwc.shape
    Cin = seg_nhwc.shape[-1]

    kernel = functools.partial(_fused_spade_kernel, H=H, W=W, Cin=Cin, C=C,
                               eps=eps, slope=slope)
    return pl.pallas_call(
        kernel,
        out_shape=jax.ShapeDtypeStruct((N, H, W, C), x_nhwc.dtype),
        grid_spec=pltpu.PrefetchScalarGridSpec(
            num_scalar_prefetch=0,
            grid=(N,),
            in_specs=[
                pl.BlockSpec((1, H, W, C), lambda n: (n, 0, 0, 0)),
                pl.BlockSpec((1, H, W, Cin), lambda n: (n, 0, 0, 0)),
                pl.BlockSpec((9 * Cin, C), lambda n: (0, 0)),
                pl.BlockSpec((1, C), lambda n: (0, 0)),
                pl.BlockSpec((9 * C, 2 * C), lambda n: (0, 0)),
                pl.BlockSpec((1, 2 * C), lambda n: (0, 0)),
                pl.BlockSpec((1, C), lambda n: (0, 0)),
                pl.BlockSpec((1, C), lambda n: (0, 0)),
            ],
            out_specs=pl.BlockSpec((1, H, W, C), lambda n: (n, 0, 0, 0)),
            scratch_shapes=[
                pltpu.VMEM((H + 2, W + 2, Cin), jnp.float32),
                pltpu.VMEM((H + 2, W + 2, C), jnp.float32),
            ],
        ),
        compiler_params=pltpu.CompilerParams(dimension_semantics=("parallel",)),
    )(x_nhwc, seg_nhwc, p["w_sh"], p["b_sh"], p["w_gb"], p["b_gb"],
      p["nw"], p["nb"])


def leaky_conv3x3(x_nhwc, w, b, *, slope=0.2):
    """LeakyReLU(0.2) followed by a 3x3 conv (stride 1, pad 1)."""
    N, H, W, C = x_nhwc.shape
    Cout = w.shape[-1]

    kernel = functools.partial(_leaky_conv3x3_kernel, H=H, W=W, C=C, Cout=Cout,
                               slope=slope)
    return pl.pallas_call(
        kernel,
        out_shape=jax.ShapeDtypeStruct((N, H, W, Cout), x_nhwc.dtype),
        grid_spec=pltpu.PrefetchScalarGridSpec(
            num_scalar_prefetch=0,
            grid=(N,),
            in_specs=[
                pl.BlockSpec((1, H, W, C), lambda n: (n, 0, 0, 0)),
                pl.BlockSpec((9 * C, Cout), lambda n: (0, 0)),
                pl.BlockSpec((1, Cout), lambda n: (0, 0)),
            ],
            out_specs=pl.BlockSpec((1, H, W, Cout), lambda n: (n, 0, 0, 0)),
            scratch_shapes=[pltpu.VMEM((H + 2, W + 2, C), jnp.float32)],
        ),
        compiler_params=pltpu.CompilerParams(dimension_semantics=("parallel",)),
    )(x_nhwc, w, b)


# -----------------------------------------------------------------------------
# Parameter preparation (once, outside the per-forward path)
# -----------------------------------------------------------------------------
def prepare_params(params):
    """Pad channels to the 128-lane width, fuse gamma/beta weights along Cout,
    reshape to the per-tap (9*Cin, Cout) layout and cast matmul weights to bf16.
    Biases / norm params stay f32 (added in the f32 epilogue)."""
    prepared = {}
    for i in (1, 2, 3):
        p = params[f"spade{i}"]
        cin, nf = p["w_shared"].shape[2], p["w_shared"].shape[3]
        cin_p, nf_p = _round_up(cin, LANE), _round_up(nf, LANE)
        w_sh = _pad_axis(_pad_axis(p["w_shared"], 2, cin_p), 3, nf_p)
        w_g = _pad_axis(_pad_axis(p["w_gamma"], 2, nf_p), 3, nf_p)
        w_b = _pad_axis(_pad_axis(p["w_beta"], 2, nf_p), 3, nf_p)
        prepared[f"spade{i}"] = dict(
            w_sh=w_sh.reshape(9 * cin_p, nf_p).astype(jnp.bfloat16),
            b_sh=_pad_axis(p["b_shared"], 0, nf_p).reshape(1, nf_p),
            w_gb=jnp.concatenate([w_g.reshape(9 * nf_p, nf_p),
                                  w_b.reshape(9 * nf_p, nf_p)],
                                 axis=1).astype(jnp.bfloat16),
            b_gb=jnp.concatenate([_pad_axis(p["b_gamma"], 0, nf_p),
                                  _pad_axis(p["b_beta"], 0, nf_p)]
                                 ).reshape(1, 2 * nf_p),
            nw=_pad_axis(p["norm_w"], 0, nf_p).reshape(1, nf_p),
            nb=_pad_axis(p["norm_b"], 0, nf_p).reshape(1, nf_p),
        )
    nf = params["w_last"].shape[2]
    nf_p = _round_up(nf, LANE)
    w_last = _pad_axis(_pad_axis(params["w_last"], 2, nf_p), 3, nf_p)
    prepared["w_last"] = w_last.reshape(9 * nf_p, nf_p).astype(jnp.bfloat16)
    prepared["b_last"] = _pad_axis(params["b_last"], 0, nf_p).reshape(1, nf_p)
    return prepared


# -----------------------------------------------------------------------------
# Glue (plain JAX)
# -----------------------------------------------------------------------------
def nearest_resize_nhwc(x, H, W):
    """F.interpolate(..., mode='nearest') semantics: src = floor(dst * in/out)."""
    n, h, w, c = x.shape
    if (h, w) == (H, W):
        return x
    rows = (jnp.arange(H) * h // H).astype(jnp.int32)
    cols = (jnp.arange(W) * w // W).astype(jnp.int32)
    return x[:, rows][:, :, cols]


def multi_spade3_forward(x_nchw, l1_nchw, l2_nchw, l3_nchw, prepared, *, nfilt):
    to_nhwc = lambda t: jnp.transpose(t, (0, 2, 3, 1))
    x = to_nhwc(x_nchw)
    _, H, W, _ = x.shape
    nf_p = prepared["w_last"].shape[1]
    x = _pad_axis(x, 3, nf_p)                       # lane-dense channel padding
    for i, lab in enumerate((l1_nchw, l2_nchw, l3_nchw)):
        p = prepared[f"spade{i + 1}"]
        cin_p = p["w_sh"].shape[0] // 9
        seg = nearest_resize_nhwc(to_nhwc(lab), H, W)
        seg = _pad_axis(seg, 3, cin_p)
        x = fused_spade(x, seg, p)
    out = leaky_conv3x3(x, prepared["w_last"], prepared["b_last"], slope=0.2)
    out = out[..., :nfilt]                          # drop padded channels
    return jnp.transpose(out, (0, 3, 1, 2))         # back to NCHW


# -----------------------------------------------------------------------------
# Pure-JAX reference (for a correctness check against the fused kernels)
# -----------------------------------------------------------------------------
def _ref_conv3x3(x, w, b):
    y = jax.lax.conv_general_dilated(
        x, w, window_strides=(1, 1), padding=((1, 1), (1, 1)),
        dimension_numbers=("NHWC", "HWIO", "NHWC"))
    return y + b.reshape(1, 1, 1, -1)


def _ref_spade(x, seg, p, eps=1e-5):
    mean = jnp.mean(x, axis=(1, 2), keepdims=True)
    var = jnp.mean(jnp.square(x - mean), axis=(1, 2), keepdims=True)
    xn = (x - mean) * jax.lax.rsqrt(var + eps)
    xn = xn * p["norm_w"].reshape(1, 1, 1, -1) + p["norm_b"].reshape(1, 1, 1, -1)
    a = _ref_conv3x3(seg, p["w_shared"], p["b_shared"])
    a = jnp.where(a >= 0, a, 0.2 * a)
    gamma = _ref_conv3x3(a, p["w_gamma"], p["b_gamma"])
    beta = _ref_conv3x3(a, p["w_beta"], p["b_beta"])
    return xn * (1.0 + gamma) + beta


def reference_forward(x_nchw, l1, l2, l3, params):
    to_nhwc = lambda t: jnp.transpose(t, (0, 2, 3, 1))
    x = to_nhwc(x_nchw)
    _, H, W, _ = x.shape
    for i, lab in enumerate((l1, l2, l3)):
        seg = nearest_resize_nhwc(to_nhwc(lab), H, W)
        x = _ref_spade(x, seg, params[f"spade{i + 1}"])
    x = jnp.where(x >= 0, x, 0.2 * x)
    out = _ref_conv3x3(x, params["w_last"], params["b_last"])
    return jnp.transpose(out, (0, 3, 1, 2))


# -----------------------------------------------------------------------------
# Deterministic parameter init
# -----------------------------------------------------------------------------
def _conv_params(key, cin, cout, scale=0.05):
    kw, kb = jax.random.split(key)
    w = scale * jax.random.normal(kw, (3, 3, cin, cout), jnp.float32)
    b = scale * jax.random.normal(kb, (cout,), jnp.float32)
    return w, b


def make_params(key, ch1, ch2, ch3, nfilt):
    keys = jax.random.split(key, 16)
    params = {}
    for i, cin in enumerate((ch1, ch2, ch3)):
        k0, k1, k2, k3 = keys[4 * i: 4 * i + 4]
        ws, bs = _conv_params(k0, cin, nfilt)
        wg, bg = _conv_params(k1, nfilt, nfilt)
        wb, bb = _conv_params(k2, nfilt, nfilt)
        nw = 1.0 + 0.05 * jax.random.normal(k3, (nfilt,), jnp.float32)
        nb = 0.05 * jax.random.normal(jax.random.fold_in(k3, 1), (nfilt,), jnp.float32)
        params[f"spade{i + 1}"] = dict(w_shared=ws, b_shared=bs,
                                       w_gamma=wg, b_gamma=bg,
                                       w_beta=wb, b_beta=bb,
                                       norm_w=nw, norm_b=nb)
    wl, bl = _conv_params(keys[12], nfilt, nfilt)
    params["w_last"] = wl
    params["b_last"] = bl
    return params


# -----------------------------------------------------------------------------
if __name__ == "__main__":
    key = jax.random.PRNGKey(0)
    k_x, k_l1, k_l2, k_l3, k_p = jax.random.split(key, 5)

    N, H, W = 2, 16, 16
    ch1, ch2, ch3, nfilt = 4, 8, 16, 32

    x = jax.random.normal(k_x, (N, nfilt, H, W), jnp.float32)       # NCHW, like PyTorch
    label1 = jax.random.normal(k_l1, (N, ch1, H, W), jnp.float32)
    label2 = jax.random.normal(k_l2, (N, ch2, 8, 8), jnp.float32)   # nearest upsample
    label3 = jax.random.normal(k_l3, (N, ch3, 32, 32), jnp.float32) # nearest downsample

    params = make_params(k_p, ch1, ch2, ch3, nfilt)
    prepared = prepare_params(params)          # once, outside the hot path

    fwd = jax.jit(functools.partial(multi_spade3_forward, nfilt=nfilt))
    out = fwd(x, label1, label2, label3, prepared)
    jax.block_until_ready(out)

    assert out.shape == (N, nfilt, H, W), out.shape
    assert bool(jnp.all(jnp.isfinite(out)))

    # --- per-SPADE-block check (bf16 MXU inputs vs f32 lax.conv reference) ---
    to_nhwc = lambda t: jnp.transpose(t, (0, 2, 3, 1))
    nf_p = prepared["w_last"].shape[1]
    xb = to_nhwc(x)
    for i, lab in enumerate((label1, label2, label3)):
        seg = nearest_resize_nhwc(to_nhwc(lab), H, W)
        ref_b = _ref_spade(xb, seg, params[f"spade{i + 1}"])
        p = prepared[f"spade{i + 1}"]
        cin_p = p["w_sh"].shape[0] // 9
        ker_b = fused_spade(_pad_axis(xb, 3, nf_p),
                            _pad_axis(seg, 3, cin_p), p)[..., :nfilt]
        e = float(jnp.max(jnp.abs(ker_b - ref_b)))
        s = float(jnp.max(jnp.abs(ref_b))) + 1e-6
        assert e / s < 2e-2, (i, e, s)
        xb = ref_b                               # chain the reference input

    # --- end-to-end check (bf16 matmul inputs -> lenient tolerance) ----------
    ref = jax.jit(reference_forward)(x, label1, label2, label3, params)
    err = float(jnp.max(jnp.abs(out - ref)))
    scale = float(jnp.max(jnp.abs(ref))) + 1e-6
    assert err / scale < 5e-2, (err, scale)

    print("KERNEL_OK")
</pallas_src>

<mosaic_0001>
module attributes {stable_mosaic.version = 11 : i64} {
  func.func @_fused_spade_kernel(%arg0: i32, %arg1: memref<1x16x16x128xf32, #tpu.memory_space<vmem>>, %arg2: memref<1x16x16x128xf32, #tpu.memory_space<vmem>>, %arg3: memref<1152x128xbf16, #tpu.memory_space<vmem>>, %arg4: memref<1x128xf32, #tpu.memory_space<vmem>>, %arg5: memref<1152x256xbf16, #tpu.memory_space<vmem>>, %arg6: memref<1x256xf32, #tpu.memory_space<vmem>>, %arg7: memref<1x128xf32, #tpu.memory_space<vmem>>, %arg8: memref<1x128xf32, #tpu.memory_space<vmem>>, %arg9: memref<1x16x16x128xf32, #tpu.memory_space<vmem>>, %arg10: memref<18x18x128xf32, #tpu.memory_space<vmem>>, %arg11: memref<18x18x128xf32, #tpu.memory_space<vmem>>) attributes {dimension_semantics = [#tpu.dimension_semantics<parallel>], iteration_bounds = array<i64: 2>, scalar_prefetch = 0 : i64, scratch_operands = 2 : i64, tpu.core_type = #tpu.core_type<tc>, window_params = [{transform_indices = @transform_0, window_bounds = array<i64: 1, 16, 16, 128>}, {transform_indices = @transform_1, window_bounds = array<i64: 1, 16, 16, 128>}, {pipeline_mode = #tpu.pipeline_mode<synchronous>, transform_indices = @transform_2, window_bounds = array<i64: 1152, 128>}, {pipeline_mode = #tpu.pipeline_mode<synchronous>, transform_indices = @transform_3, window_bounds = array<i64: 1, 128>}, {pipeline_mode = #tpu.pipeline_mode<synchronous>, transform_indices = @transform_4, window_bounds = array<i64: 1152, 256>}, {pipeline_mode = #tpu.pipeline_mode<synchronous>, transform_indices = @transform_5, window_bounds = array<i64: 1, 256>}, {pipeline_mode = #tpu.pipeline_mode<synchronous>, transform_indices = @transform_6, window_bounds = array<i64: 1, 128>}, {pipeline_mode = #tpu.pipeline_mode<synchronous>, transform_indices = @transform_7, window_bounds = array<i64: 1, 128>}, {transform_indices = @transform_8, window_bounds = array<i64: 1, 16, 16, 128>}]} {
    %cst = arith.constant 0.000000e+00 : f32
    %0 = vector.broadcast %cst : f32 to vector<1x18x128xf32>
    %cst_0 = arith.constant 0.000000e+00 : f32
    %1 = vector.broadcast %cst_0 : f32 to vector<18x1x128xf32>
    %c0 = arith.constant 0 : index
    %c0_1 = arith.constant 0 : index
    %c0_2 = arith.constant 0 : index
    %2 = vector.load %arg10[%c0, %c0_1, %c0_2] : memref<18x18x128xf32, #tpu.memory_space<vmem>>, vector<1x18x128xf32>
    tpu.vector_store %arg10[%c0, %c0_1, %c0_2], %0 {strides = array<i32>} : memref<18x18x128xf32, #tpu.memory_space<vmem>>, vector<1x18x128xf32>,
    %c17 = arith.constant 17 : index
    %c0_3 = arith.constant 0 : index
    %c0_4 = arith.constant 0 : index
    %3 = vector.load %arg10[%c17, %c0_3, %c0_4] : memref<18x18x128xf32, #tpu.memory_space<vmem>>, vector<1x18x128xf32>
    tpu.vector_store %arg10[%c17, %c0_3, %c0_4], %0 {strides = array<i32>} : memref<18x18x128xf32, #tpu.memory_space<vmem>>, vector<1x18x128xf32>,
    %c0_5 = arith.constant 0 : index
    %c0_6 = arith.constant 0 : index
    %c0_7 = arith.constant 0 : index
    %4 = vector.load %arg10[%c0_5, %c0_6, %c0_7] : memref<18x18x128xf32, #tpu.memory_space<vmem>>, vector<18x1x128xf32>
    tpu.vector_store %arg10[%c0_5, %c0_6, %c0_7], %1 {strides = array<i32>} : memref<18x18x128xf32, #tpu.memory_space<vmem>>, vector<18x1x128xf32>,
    %c0_8 = arith.constant 0 : index
    %c17_9 = arith.constant 17 : index
    %c0_10 = arith.constant 0 : index
    %5 = vector.load %arg10[%c0_8, %c17_9, %c0_10] : memref<18x18x128xf32, #tpu.memory_space<vmem>>, vector<18x1x128xf32>
    tpu.vector_store %arg10[%c0_8, %c17_9, %c0_10], %1 {strides = array<i32>} : memref<18x18x128xf32, #tpu.memory_space<vmem>>, vector<18x1x128xf32>,
    %c0_11 = arith.constant 0 : index
    %c0_12 = arith.constant 0 : index
    %c0_13 = arith.constant 0 : index
    %c0_14 = arith.constant 0 : index
    %6 = vector.load %arg2[%c0_11, %c0_12, %c0_13, %c0_14] : memref<1x16x16x128xf32, #tpu.memory_space<vmem>>, vector<1x16x16x128xf32>
    %7 = vector.shape_cast %6 : vector<1x16x16x128xf32> to vector<16x16x128xf32>
    %c1 = arith.constant 1 : index
    %c1_15 = arith.constant 1 : index
    %c0_16 = arith.constant 0 : index
    %8 = vector.load %arg10[%c1, %c1_15, %c0_16] : memref<18x18x128xf32, #tpu.memory_space<vmem>>, vector<16x16x128xf32>
    tpu.vector_store %arg10[%c1, %c1_15, %c0_16], %7 {strides = array<i32>} : memref<18x18x128xf32, #tpu.memory_space<vmem>>, vector<16x16x128xf32>,
    %cst_17 = arith.constant 0.000000e+00 : f32
    %9 = vector.broadcast %cst_17 : f32 to vector<256x128xf32>
    %c0_18 = arith.constant 0 : index
    %c0_19 = arith.constant 0 : index
    %c0_20 = arith.constant 0 : index
    %10 = vector.load %arg10[%c0_18, %c0_19, %c0_20] : memref<18x18x128xf32, #tpu.memory_space<vmem>>, vector<16x16x128xf32>
    %11 = vector.shape_cast %10 : vector<16x16x128xf32> to vector<256x128xf32>
    %12 = arith.truncf %11 : vector<256x128xf32> to vector<256x128xbf16>
    %c0_21 = arith.constant 0 : index
    %c0_22 = arith.constant 0 : index
    %13 = vector.load %arg3[%c0_21, %c0_22] : memref<1152x128xbf16, #tpu.memory_space<vmem>>, vector<128x128xbf16>
    %cst_23 = arith.constant dense<0.000000e+00> : vector<256x128xf32>
    %14 = tpu.matmul %12, %13, %cst_23 {dimension_numbers = #tpu.dot_dimension_numbers<[1], [0], [0], [1], [0, 0, 1, 1], [], []>} : vector<256x128xbf16>, vector<128x128xbf16>, vector<256x128xf32> -> vector<256x128xf32>
    %15 = arith.addf %9, %14 : vector<256x128xf32>
    %c0_24 = arith.constant 0 : index
    %c1_25 = arith.constant 1 : index
    %c0_26 = arith.constant 0 : index
    %16 = vector.load %arg10[%c0_24, %c1_25, %c0_26] : memref<18x18x128xf32, #tpu.memory_space<vmem>>, vector<16x16x128xf32>
    %17 = vector.shape_cast %16 : vector<16x16x128xf32> to vector<256x128xf32>
    %18 = arith.truncf %17 : vector<256x128xf32> to vector<256x128xbf16>
    %c128 = arith.constant 128 : index
    %c0_27 = arith.constant 0 : index
    %19 = vector.load %arg3[%c128, %c0_27] : memref<1152x128xbf16, #tpu.memory_space<vmem>>, vector<128x128xbf16>
    %cst_28 = arith.constant dense<0.000000e+00> : vector<256x128xf32>
    %20 = tpu.matmul %18, %19, %cst_28 {dimension_numbers = #tpu.dot_dimension_numbers<[1], [0], [0], [1], [0, 0, 1, 1], [], []>} : vector<256x128xbf16>, vector<128x128xbf16>, vector<256x128xf32> -> vector<256x128xf32>
    %21 = arith.addf %15, %20 : vector<256x128xf32>
    %c0_29 = arith.constant 0 : index
    %c2 = arith.constant 2 : index
    %c0_30 = arith.constant 0 : index
    %22 = vector.load %arg10[%c0_29, %c2, %c0_30] : memref<18x18x128xf32, #tpu.memory_space<vmem>>, vector<16x16x128xf32>
    %23 = vector.shape_cast %22 : vector<16x16x128xf32> to vector<256x128xf32>
    %24 = arith.truncf %23 : vector<256x128xf32> to vector<256x128xbf16>
    %c256 = arith.constant 256 : index
    %c0_31 = arith.constant 0 : index
    %25 = vector.load %arg3[%c256, %c0_31] : memref<1152x128xbf16, #tpu.memory_space<vmem>>, vector<128x128xbf16>
    %cst_32 = arith.constant dense<0.000000e+00> : vector<256x128xf32>
    %26 = tpu.matmul %24, %25, %cst_32 {dimension_numbers = #tpu.dot_dimension_numbers<[1], [0], [0], [1], [0, 0, 1, 1], [], []>} : vector<256x128xbf16>, vector<128x128xbf16>, vector<256x128xf32> -> vector<256x128xf32>
    %27 = arith.addf %21, %26 : vector<256x128xf32>
    %c1_33 = arith.constant 1 : index
    %c0_34 = arith.constant 0 : index
    %c0_35 = arith.constant 0 : index
    %28 = vector.load %arg10[%c1_33, %c0_34, %c0_35] : memref<18x18x128xf32, #tpu.memory_space<vmem>>, vector<16x16x128xf32>
    %29 = vector.shape_cast %28 : vector<16x16x128xf32> to vector<256x128xf32>
    %30 = arith.truncf %29 : vector<256x128xf32> to vector<256x128xbf16>
    %c384 = arith.constant 384 : index
    %c0_36 = arith.constant 0 : index
    %31 = vector.load %arg3[%c384, %c0_36] : memref<1152x128xbf16, #tpu.memory_space<vmem>>, vector<128x128xbf16>
    %cst_37 = arith.constant dense<0.000000e+00> : vector<256x128xf32>
    %32 = tpu.matmul %30, %31, %cst_37 {dimension_numbers = #tpu.dot_dimension_numbers<[1], [0], [0], [1], [0, 0, 1, 1], [], []>} : vector<256x128xbf16>, vector<128x128xbf16>, vector<256x128xf32> -> vector<256x128xf32>
    %33 = arith.addf %27, %32 : vector<256x128xf32>
    %c1_38 = arith.constant 1 : index
    %c1_39 = arith.constant 1 : index
    %c0_40 = arith.constant 0 : index
    %34 = vector.load %arg10[%c1_38, %c1_39, %c0_40] : memref<18x18x128xf32, #tpu.memory_space<vmem>>, vector<16x16x128xf32>
    %35 = vector.shape_cast %34 : vector<16x16x128xf32> to vector<256x128xf32>
    %36 = arith.truncf %35 : vector<256x128xf32> to vector<256x128xbf16>
    %c512 = arith.constant 512 : index
    %c0_41 = arith.constant 0 : index
    %37 = vector.load %arg3[%c512, %c0_41] : memref<1152x128xbf16, #tpu.memory_space<vmem>>, vector<128x128xbf16>
    %cst_42 = arith.constant dense<0.000000e+00> : vector<256x128xf32>
    %38 = tpu.matmul %36, %37, %cst_42 {dimension_numbers = #tpu.dot_dimension_numbers<[1], [0], [0], [1], [0, 0, 1, 1], [], []>} : vector<256x128xbf16>, vector<128x128xbf16>, vector<256x128xf32> -> vector<256x128xf32>
    %39 = arith.addf %33, %38 : vector<256x128xf32>
    %c1_43 = arith.constant 1 : index
    %c2_44 = arith.constant 2 : index
    %c0_45 = arith.constant 0 : index
    %40 = vector.load %arg10[%c1_43, %c2_44, %c0_45] : memref<18x18x128xf32, #tpu.memory_space<vmem>>, vector<16x16x128xf32>
    %41 = vector.shape_cast %40 : vector<16x16x128xf32> to vector<256x128xf32>
    %42 = arith.truncf %41 : vector<256x128xf32> to vector<256x128xbf16>
    %c640 = arith.constant 640 : index
    %c0_46 = arith.constant 0 : index
    %43 = vector.load %arg3[%c640, %c0_46] : memref<1152x128xbf16, #tpu.memory_space<vmem>>, vector<128x128xbf16>
    %cst_47 = arith.constant dense<0.000000e+00> : vector<256x128xf32>
    %44 = tpu.matmul %42, %43, %cst_47 {dimension_numbers = #tpu.dot_dimension_numbers<[1], [0], [0], [1], [0, 0, 1, 1], [], []>} : vector<256x128xbf16>, vector<128x128xbf16>, vector<256x128xf32> -> vector<256x128xf32>
    %45 = arith.addf %39, %44 : vector<256x128xf32>
    %c2_48 = arith.constant 2 : index
    %c0_49 = arith.constant 0 : index
    %c0_50 = arith.constant 0 : index
    %46 = vector.load %arg10[%c2_48, %c0_49, %c0_50] : memref<18x18x128xf32, #tpu.memory_space<vmem>>, vector<16x16x128xf32>
    %47 = vector.shape_cast %46 : vector<16x16x128xf32> to vector<256x128xf32>
    %48 = arith.truncf %47 : vector<256x128xf32> to vector<256x128xbf16>
    %c768 = arith.constant 768 : index
    %c0_51 = arith.constant 0 : index
    %49 = vector.load %arg3[%c768, %c0_51] : memref<1152x128xbf16, #tpu.memory_space<vmem>>, vector<128x128xbf16>
    %cst_52 = arith.constant dense<0.000000e+00> : vector<256x128xf32>
    %50 = tpu.matmul %48, %49, %cst_52 {dimension_numbers = #tpu.dot_dimension_numbers<[1], [0], [0], [1], [0, 0, 1, 1], [], []>} : vector<256x128xbf16>, vector<128x128xbf16>, vector<256x128xf32> -> vector<256x128xf32>
    %51 = arith.addf %45, %50 : vector<256x128xf32>
    %c2_53 = arith.constant 2 : index
    %c1_54 = arith.constant 1 : index
    %c0_55 = arith.constant 0 : index
    %52 = vector.load %arg10[%c2_53, %c1_54, %c0_55] : memref<18x18x128xf32, #tpu.memory_space<vmem>>, vector<16x16x128xf32>
    %53 = vector.shape_cast %52 : vector<16x16x128xf32> to vector<256x128xf32>
    %54 = arith.truncf %53 : vector<256x128xf32> to vector<256x128xbf16>
    %c896 = arith.constant 896 : index
    %c0_56 = arith.constant 0 : index
    %55 = vector.load %arg3[%c896, %c0_56] : memref<1152x128xbf16, #tpu.memory_space<vmem>>, vector<128x128xbf16>
    %cst_57 = arith.constant dense<0.000000e+00> : vector<256x128xf32>
    %56 = tpu.matmul %54, %55, %cst_57 {dimension_numbers = #tpu.dot_dimension_numbers<[1], [0], [0], [1], [0, 0, 1, 1], [], []>} : vector<256x128xbf16>, vector<128x128xbf16>, vector<256x128xf32> -> vector<256x128xf32>
    %57 = arith.addf %51, %56 : vector<256x128xf32>
    %c2_58 = arith.constant 2 : index
    %c2_59 = arith.constant 2 : index
    %c0_60 = arith.constant 0 : index
    %58 = vector.load %arg10[%c2_58, %c2_59, %c0_60] : memref<18x18x128xf32, #tpu.memory_space<vmem>>, vector<16x16x128xf32>
    %59 = vector.shape_cast %58 : vector<16x16x128xf32> to vector<256x128xf32>
    %60 = arith.truncf %59 : vector<256x128xf32> to vector<256x128xbf16>
    %c1024 = arith.constant 1024 : index
    %c0_61 = arith.constant 0 : index
    %61 = vector.load %arg3[%c1024, %c0_61] : memref<1152x128xbf16, #tpu.memory_space<vmem>>, vector<128x128xbf16>
    %cst_62 = arith.constant dense<0.000000e+00> : vector<256x128xf32>
    %62 = tpu.matmul %60, %61, %cst_62 {dimension_numbers = #tpu.dot_dimension_numbers<[1], [0], [0], [1], [0, 0, 1, 1], [], []>} : vector<256x128xbf16>, vector<128x128xbf16>, vector<256x128xf32> -> vector<256x128xf32>
    %63 = arith.addf %57, %62 : vector<256x128xf32>
    %c0_63 = arith.constant 0 : index
    %c0_64 = arith.constant 0 : index
    %64 = vector.load %arg4[%c0_63, %c0_64] : memref<1x128xf32, #tpu.memory_space<vmem>>, vector<1x128xf32>
    %65 = vector.broadcast %64 : vector<1x128xf32> to vector<256x128xf32>
    %66 = arith.addf %63, %65 : vector<256x128xf32>
    %cst_65 = arith.constant 0.000000e+00 : f32
    %67 = vector.broadcast %cst_65 : f32 to vector<256x128xf32>
    %68 = arith.cmpf oge, %66, %67 : vector<256x128xf32>
    %cst_66 = arith.constant 2.000000e-01 : f32
    %69 = vector.broadcast %cst_66 : f32 to vector<256x128xf32>
    %70 = arith.mulf %66, %69 : vector<256x128xf32>
    %71 = arith.select %68, %66, %70 : vector<256x128xi1>, vector<256x128xf32>
    %cst_67 = arith.constant 0.000000e+00 : f32
    %72 = vector.broadcast %cst_67 : f32 to vector<1x18x128xf32>
    %cst_68 = arith.constant 0.000000e+00 : f32
    %73 = vector.broadcast %cst_68 : f32 to vector<18x1x128xf32>
    %c0_69 = arith.constant 0 : index
    %c0_70 = arith.constant 0 : index
    %c0_71 = arith.constant 0 : index
    %74 = vector.load %arg11[%c0_69, %c0_70, %c0_71] : memref<18x18x128xf32, #tpu.memory_space<vmem>>, vector<1x18x128xf32>
    tpu.vector_store %arg11[%c0_69, %c0_70, %c0_71], %72 {strides = array<i32>} : memref<18x18x128xf32, #tpu.memory_space<vmem>>, vector<1x18x128xf32>,
    %c17_72 = arith.constant 17 : index
    %c0_73 = arith.constant 0 : index
    %c0_74 = arith.constant 0 : index
    %75 = vector.load %arg11[%c17_72, %c0_73, %c0_74] : memref<18x18x128xf32, #tpu.memory_space<vmem>>, vector<1x18x128xf32>
    tpu.vector_store %arg11[%c17_72, %c0_73, %c0_74], %72 {strides = array<i32>} : memref<18x18x128xf32, #tpu.memory_space<vmem>>, vector<1x18x128xf32>,
    %c0_75 = arith.constant 0 : index
    %c0_76 = arith.constant 0 : index
    %c0_77 = arith.constant 0 : index
    %76 = vector.load %arg11[%c0_75, %c0_76, %c0_77] : memref<18x18x128xf32, #tpu.memory_space<vmem>>, vector<18x1x128xf32>
    tpu.vector_store %arg11[%c0_75, %c0_76, %c0_77], %73 {strides = array<i32>} : memref<18x18x128xf32, #tpu.memory_space<vmem>>, vector<18x1x128xf32>,
    %c0_78 = arith.constant 0 : index
    %c17_79 = arith.constant 17 : index
    %c0_80 = arith.constant 0 : index
    %77 = vector.load %arg11[%c0_78, %c17_79, %c0_80] : memref<18x18x128xf32, #tpu.memory_space<vmem>>, vector<18x1x128xf32>
    tpu.vector_store %arg11[%c0_78, %c17_79, %c0_80], %73 {strides = array<i32>} : memref<18x18x128xf32, #tpu.memory_space<vmem>>, vector<18x1x128xf32>,
    %78 = vector.shape_cast %71 : vector<256x128xf32> to vector<16x16x128xf32>
    %c1_81 = arith.constant 1 : index
    %c1_82 = arith.constant 1 : index
    %c0_83 = arith.constant 0 : index
    %79 = vector.load %arg11[%c1_81, %c1_82, %c0_83] : memref<18x18x128xf32, #tpu.memory_space<vmem>>, vector<16x16x128xf32>
    tpu.vector_store %arg11[%c1_81, %c1_82, %c0_83], %78 {strides = array<i32>} : memref<18x18x128xf32, #tpu.memory_space<vmem>>, vector<16x16x128xf32>,
    %cst_84 = arith.constant 0.000000e+00 : f32
    %80 = vector.broadcast %cst_84 : f32 to vector<256x256xf32>
    %c0_85 = arith.constant 0 : index
    %c0_86 = arith.constant 0 : index
    %c0_87 = arith.constant 0 : index
    %81 = vector.load %arg11[%c0_85, %c0_86, %c0_87] : memref<18x18x128xf32, #tpu.memory_space<vmem>>, vector<16x16x128xf32>
    %82 = vector.shape_cast %81 : vector<16x16x128xf32> to vector<256x128xf32>
    %83 = arith.truncf %82 : vector<256x128xf32> to vector<256x128xbf16>
    %c0_88 = arith.constant 0 : index
    %c0_89 = arith.constant 0 : index
    %84 = vector.load %arg5[%c0_88, %c0_89] : memref<1152x256xbf16, #tpu.memory_space<vmem>>, vector<128x256xbf16>
    %cst_90 = arith.constant dense<0.000000e+00> : vector<256x256xf32>
    %85 = tpu.matmul %83, %84, %cst_90 {dimension_numbers = #tpu.dot_dimension_numbers<[1], [0], [0], [1], [0, 0, 1, 1], [], []>} : vector<256x128xbf16>, vector<128x256xbf16>, vector<256x256xf32> -> vector<256x256xf32>
    %86 = arith.addf %80, %85 : vector<256x256xf32>
    %c0_91 = arith.constant 0 : index
    %c1_92 = arith.constant 1 : index
    %c0_93 = arith.constant 0 : index
    %87 = vector.load %arg11[%c0_91, %c1_92, %c0_93] : memref<18x18x128xf32, #tpu.memory_space<vmem>>, vector<16x16x128xf32>
    %88 = vector.shape_cast %87 : vector<16x16x128xf32> to vector<256x128xf32>
    %89 = arith.truncf %88 : vector<256x128xf32> to vector<256x128xbf16>
    %c128_94 = arith.constant 128 : index
    %c0_95 = arith.constant 0 : index
    %90 = vector.load %arg5[%c128_94, %c0_95] : memref<1152x256xbf16, #tpu.memory_space<vmem>>, vector<128x256xbf16>
    %cst_96 = arith.constant dense<0.000000e+00> : vector<256x256xf32>
    %91 = tpu.matmul %89, %90, %cst_96 {dimension_numbers = #tpu.dot_dimension_numbers<[1], [0], [0], [1], [0, 0, 1, 1], [], []>} : vector<256x128xbf16>, vector<128x256xbf16>, vector<256x256xf32> -> vector<256x256xf32>
    %92 = arith.addf %86, %91 : vector<256x256xf32>
    %c0_97 = arith.constant 0 : index
    %c2_98 = arith.constant 2 : index
    %c0_99 = arith.constant 0 : index
    %93 = vector.load %arg11[%c0_97, %c2_98, %c0_99] : memref<18x18x128xf32, #tpu.memory_space<vmem>>, vector<16x16x128xf32>
    %94 = vector.shape_cast %93 : vector<16x16x128xf32> to vector<256x128xf32>
    %95 = arith.truncf %94 : vector<256x128xf32> to vector<256x128xbf16>
    %c256_100 = arith.constant 256 : index
    %c0_101 = arith.constant 0 : index
    %96 = vector.load %arg5[%c256_100, %c0_101] : memref<1152x256xbf16, #tpu.memory_space<vmem>>, vector<128x256xbf16>
    %cst_102 = arith.constant dense<0.000000e+00> : vector<256x256xf32>
    %97 = tpu.matmul %95, %96, %cst_102 {dimension_numbers = #tpu.dot_dimension_numbers<[1], [0], [0], [1], [0, 0, 1, 1], [], []>} : vector<256x128xbf16>, vector<128x256xbf16>, vector<256x256xf32> -> vector<256x256xf32>
    %98 = arith.addf %92, %97 : vector<256x256xf32>
    %c1_103 = arith.constant 1 : index
    %c0_104 = arith.constant 0 : index
    %c0_105 = arith.constant 0 : index
    %99 = vector.load %arg11[%c1_103, %c0_104, %c0_105] : memref<18x18x128xf32, #tpu.memory_space<vmem>>, vector<16x16x128xf32>
    %100 = vector.shape_cast %99 : vector<16x16x128xf32> to vector<256x128xf32>
    %101 = arith.truncf %100 : vector<256x128xf32> to vector<256x128xbf16>
    %c384_106 = arith.constant 384 : index
    %c0_107 = arith.constant 0 : index
    %102 = vector.load %arg5[%c384_106, %c0_107] : memref<1152x256xbf16, #tpu.memory_space<vmem>>, vector<128x256xbf16>
    %cst_108 = arith.constant dense<0.000000e+00> : vector<256x256xf32>
    %103 = tpu.matmul %101, %102, %cst_108 {dimension_numbers = #tpu.dot_dimension_numbers<[1], [0], [0], [1], [0, 0, 1, 1], [], []>} : vector<256x128xbf16>, vector<128x256xbf16>, vector<256x256xf32> -> vector<256x256xf32>
    %104 = arith.addf %98, %103 : vector<256x256xf32>
    %c1_109 = arith.constant 1 : index
    %c1_110 = arith.constant 1 : index
    %c0_111 = arith.constant 0 : index
    %105 = vector.load %arg11[%c1_109, %c1_110, %c0_111] : memref<18x18x128xf32, #tpu.memory_space<vmem>>, vector<16x16x128xf32>
    %106 = vector.shape_cast %105 : vector<16x16x128xf32> to vector<256x128xf32>
    %107 = arith.truncf %106 : vector<256x128xf32> to vector<256x128xbf16>
    %c512_112 = arith.constant 512 : index
    %c0_113 = arith.constant 0 : index
    %108 = vector.load %arg5[%c512_112, %c0_113] : memref<1152x256xbf16, #tpu.memory_space<vmem>>, vector<128x256xbf16>
    %cst_114 = arith.constant dense<0.000000e+00> : vector<256x256xf32>
    %109 = tpu.matmul %107, %108, %cst_114 {dimension_numbers = #tpu.dot_dimension_numbers<[1], [0], [0], [1], [0, 0, 1, 1], [], []>} : vector<256x128xbf16>, vector<128x256xbf16>, vector<256x256xf32> -> vector<256x256xf32>
    %110 = arith.addf %104, %109 : vector<256x256xf32>
    %c1_115 = arith.constant 1 : index
    %c2_116 = arith.constant 2 : index
    %c0_117 = arith.constant 0 : index
    %111 = vector.load %arg11[%c1_115, %c2_116, %c0_117] : memref<18x18x128xf32, #tpu.memory_space<vmem>>, vector<16x16x128xf32>
    %112 = vector.shape_cast %111 : vector<16x16x128xf32> to vector<256x128xf32>
    %113 = arith.truncf %112 : vector<256x128xf32> to vector<256x128xbf16>
    %c640_118 = arith.constant 640 : index
    %c0_119 = arith.constant 0 : index
    %114 = vector.load %arg5[%c640_118, %c0_119] : memref<1152x256xbf16, #tpu.memory_space<vmem>>, vector<128x256xbf16>
    %cst_120 = arith.constant dense<0.000000e+00> : vector<256x256xf32>
    %115 = tpu.matmul %113, %114, %cst_120 {dimension_numbers = #tpu.dot_dimension_numbers<[1], [0], [0], [1], [0, 0, 1, 1], [], []>} : vector<256x128xbf16>, vector<128x256xbf16>, vector<256x256xf32> -> vector<256x256xf32>
    %116 = arith.addf %110, %115 : vector<256x256xf32>
    %c2_121 = arith.constant 2 : index
    %c0_122 = arith.constant 0 : index
    %c0_123 = arith.constant 0 : index
    %117 = vector.load %arg11[%c2_121, %c0_122, %c0_123] : memref<18x18x128xf32, #tpu.memory_space<vmem>>, vector<16x16x128xf32>
    %118 = vector.shape_cast %117 : vector<16x16x128xf32> to vector<256x128xf32>
    %119 = arith.truncf %118 : vector<256x128xf32> to vector<256x128xbf16>
    %c768_124 = arith.constant 768 : index
    %c0_125 = arith.constant 0 : index
    %120 = vector.load %arg5[%c768_124, %c0_125] : memref<1152x256xbf16, #tpu.memory_space<vmem>>, vector<128x256xbf16>
    %cst_126 = arith.constant dense<0.000000e+00> : vector<256x256xf32>
    %121 = tpu.matmul %119, %120, %cst_126 {dimension_numbers = #tpu.dot_dimension_numbers<[1], [0], [0], [1], [0, 0, 1, 1], [], []>} : vector<256x128xbf16>, vector<128x256xbf16>, vector<256x256xf32> -> vector<256x256xf32>
    %122 = arith.addf %116, %121 : vector<256x256xf32>
    %c2_127 = arith.constant 2 : index
    %c1_128 = arith.constant 1 : index
    %c0_129 = arith.constant 0 : index
    %123 = vector.load %arg11[%c2_127, %c1_128, %c0_129] : memref<18x18x128xf32, #tpu.memory_space<vmem>>, vector<16x16x128xf32>
    %124 = vector.shape_cast %123 : vector<16x16x128xf32> to vector<256x128xf32>
    %125 = arith.truncf %124 : vector<256x128xf32> to vector<256x128xbf16>
    %c896_130 = arith.constant 896 : index
    %c0_131 = arith.constant 0 : index
    %126 = vector.load %arg5[%c896_130, %c0_131] : memref<1152x256xbf16, #tpu.memory_space<vmem>>, vector<128x256xbf16>
    %cst_132 = arith.constant dense<0.000000e+00> : vector<256x256xf32>
    %127 = tpu.matmul %125, %126, %cst_132 {dimension_numbers = #tpu.dot_dimension_numbers<[1], [0], [0], [1], [0, 0, 1, 1], [], []>} : vector<256x128xbf16>, vector<128x256xbf16>, vector<256x256xf32> -> vector<256x256xf32>
    %128 = arith.addf %122, %127 : vector<256x256xf32>
    %c2_133 = arith.constant 2 : index
    %c2_134 = arith.constant 2 : index
    %c0_135 = arith.constant 0 : index
    %129 = vector.load %arg11[%c2_133, %c2_134, %c0_135] : memref<18x18x128xf32, #tpu.memory_space<vmem>>, vector<16x16x128xf32>
    %130 = vector.shape_cast %129 : vector<16x16x128xf32> to vector<256x128xf32>
    %131 = arith.truncf %130 : vector<256x128xf32> to vector<256x128xbf16>
    %c1024_136 = arith.constant 1024 : index
    %c0_137 = arith.constant 0 : index
    %132 = vector.load %arg5[%c1024_136, %c0_137] : memref<1152x256xbf16, #tpu.memory_space<vmem>>, vector<128x256xbf16>
    %cst_138 = arith.constant dense<0.000000e+00> : vector<256x256xf32>
    %133 = tpu.matmul %131, %132, %cst_138 {dimension_numbers = #tpu.dot_dimension_numbers<[1], [0], [0], [1], [0, 0, 1, 1], [], []>} : vector<256x128xbf16>, vector<128x256xbf16>, vector<256x256xf32> -> vector<256x256xf32>
    %134 = arith.addf %128, %133 : vector<256x256xf32>
    %c0_139 = arith.constant 0 : index
    %c0_140 = arith.constant 0 : index
    %135 = vector.load %arg6[%c0_139, %c0_140] : memref<1x256xf32, #tpu.memory_space<vmem>>, vector<1x256xf32>
    %136 = vector.broadcast %135 : vector<1x256xf32> to vector<256x256xf32>
    %137 = arith.addf %134, %136 : vector<256x256xf32>
    %138 = vector.extract_strided_slice %137 {offsets = [0, 0], sizes = [256, 128], strides = [1, 1]} : vector<256x256xf32> to vector<256x128xf32>
    %139 = vector.extract_strided_slice %137 {offsets = [0, 128], sizes = [256, 128], strides = [1, 1]} : vector<256x256xf32> to vector<256x128xf32>
    %c0_141 = arith.constant 0 : index
    %c0_142 = arith.constant 0 : index
    %c0_143 = arith.constant 0 : index
    %c0_144 = arith.constant 0 : index
    %140 = vector.load %arg1[%c0_141, %c0_142, %c0_143, %c0_144] : memref<1x16x16x128xf32, #tpu.memory_space<vmem>>, vector<1x16x16x128xf32>
    %141 = vector.shape_cast %140 : vector<1x16x16x128xf32> to vector<16x16x128xf32>
    %142 = vector.shape_cast %141 : vector<16x16x128xf32> to vector<256x128xf32>
    %cst_145 = arith.constant dense<0.000000e+00> : vector<128xf32>
    %143 = vector.multi_reduction <add>, %142, %cst_145 [0] : vector<256x128xf32> to vector<128xf32>
    %144 = vector.shape_cast %143 : vector<128xf32> to vector<1x128xf32>
    %cst_146 = arith.constant 2.560000e+02 : f32
    %145 = vector.broadcast %cst_146 : f32 to vector<1x128xf32>
    %146 = arith.divf %144, %145 : vector<1x128xf32>
    %147 = vector.broadcast %146 : vector<1x128xf32> to vector<256x128xf32>
    %148 = arith.subf %142, %147 : vector<256x128xf32>
    %149 = arith.mulf %148, %148 : vector<256x128xf32>
    %cst_147 = arith.constant dense<0.000000e+00> : vector<128xf32>
    %150 = vector.multi_reduction <add>, %149, %cst_147 [0] : vector<256x128xf32> to vector<128xf32>
    %151 = vector.shape_cast %150 : vector<128xf32> to vector<1x128xf32>
    %cst_148 = arith.constant 2.560000e+02 : f32
    %152 = vector.broadcast %cst_148 : f32 to vector<1x128xf32>
    %153 = arith.divf %151, %152 : vector<1x128xf32>
    %cst_149 = arith.constant 9.99999974E-6 : f32
    %154 = vector.broadcast %cst_149 : f32 to vector<1x128xf32>
    %155 = arith.addf %153, %154 : vector<1x128xf32>
    %156 = math.rsqrt %155 : vector<1x128xf32>
    %157 = vector.broadcast %156 : vector<1x128xf32> to vector<256x128xf32>
    %158 = arith.mulf %148, %157 : vector<256x128xf32>
    %c0_150 = arith.constant 0 : index
    %c0_151 = arith.constant 0 : index
    %159 = vector.load %arg7[%c0_150, %c0_151] : memref<1x128xf32, #tpu.memory_space<vmem>>, vector<1x128xf32>
    %160 = vector.broadcast %159 : vector<1x128xf32> to vector<256x128xf32>
    %161 = arith.mulf %158, %160 : vector<256x128xf32>
    %c0_152 = arith.constant 0 : index
    %c0_153 = arith.constant 0 : index
    %162 = vector.load %arg8[%c0_152, %c0_153] : memref<1x128xf32, #tpu.memory_space<vmem>>, vector<1x128xf32>
    %163 = vector.broadcast %162 : vector<1x128xf32> to vector<256x128xf32>
    %164 = arith.addf %161, %163 : vector<256x128xf32>
    %cst_154 = arith.constant 1.000000e+00 : f32
    %165 = vector.broadcast %cst_154 : f32 to vector<256x128xf32>
    %166 = arith.addf %165, %138 : vector<256x128xf32>
    %167 = arith.mulf %164, %166 : vector<256x128xf32>
    %168 = arith.addf %167, %139 : vector<256x128xf32>
    %169 = vector.shape_cast %168 : vector<256x128xf32> to vector<16x16x128xf32>
    %c0_155 = arith.constant 0 : index
    %c0_156 = arith.constant 0 : index
    %c0_157 = arith.constant 0 : index
    %c0_158 = arith.constant 0 : index
    %170 = vector.load %arg9[%c0_155, %c0_156, %c0_157, %c0_158] : memref<1x16x16x128xf32, #tpu.memory_space<vmem>>, vector<1x16x16x128xf32>
    %171 = vector.shape_cast %170 : vector<1x16x16x128xf32> to vector<16x16x128xf32>
    %172 = vector.shape_cast %169 : vector<16x16x128xf32> to vector<1x16x16x128xf32>
    tpu.vector_store %arg9[%c0_155, %c0_156, %c0_157, %c0_158], %172 {strides = array<i32>} : memref<1x16x16x128xf32, #tpu.memory_space<vmem>>, vector<1x16x16x128xf32>,
    return
  }
  func.func @transform_0(%arg0: i32) -> (i32, i32, i32, i32) {
    %c0_i32 = arith.constant 0 : i32
    %c0_i32_0 = arith.constant 0 : i32
    %c0_i32_1 = arith.constant 0 : i32
    %c0_i32_2 = arith.constant 0 : i32
    return %arg0, %c0_i32, %c0_i32_0, %c0_i32_1 : i32, i32, i32, i32
  }
  func.func @transform_1(%arg0: i32) -> (i32, i32, i32, i32) {
    %c0_i32 = arith.constant 0 : i32
    %c0_i32_0 = arith.constant 0 : i32
    %c0_i32_1 = arith.constant 0 : i32
    %c0_i32_2 = arith.constant 0 : i32
    return %arg0, %c0_i32, %c0_i32_0, %c0_i32_1 : i32, i32, i32, i32
  }
  func.func @transform_2(%arg0: i32) -> (i32, i32) {
    %c0_i32 = arith.constant 0 : i32
    %c0_i32_0 = arith.constant 0 : i32
    %c0_i32_1 = arith.constant 0 : i32
    return %c0_i32, %c0_i32_0 : i32, i32
  }
  func.func @transform_3(%arg0: i32) -> (i32, i32) {
    %c0_i32 = arith.constant 0 : i32
    %c0_i32_0 = arith.constant 0 : i32
    %c0_i32_1 = arith.constant 0 : i32
    return %c0_i32, %c0_i32_0 : i32, i32
  }
  func.func @transform_4(%arg0: i32) -> (i32, i32) {
    %c0_i32 = arith.constant 0 : i32
    %c0_i32_0 = arith.constant 0 : i32
    %c0_i32_1 = arith.constant 0 : i32
    return %c0_i32, %c0_i32_0 : i32, i32
  }
  func.func @transform_5(%arg0: i32) -> (i32, i32) {
    %c0_i32 = arith.constant 0 : i32
    %c0_i32_0 = arith.constant 0 : i32
    %c0_i32_1 = arith.constant 0 : i32
    return %c0_i32, %c0_i32_0 : i32, i32
  }
  func.func @transform_6(%arg0: i32) -> (i32, i32) {
    %c0_i32 = arith.constant 0 : i32
    %c0_i32_0 = arith.constant 0 : i32
    %c0_i32_1 = arith.constant 0 : i32
    return %c0_i32, %c0_i32_0 : i32, i32
  }
  func.func @transform_7(%arg0: i32) -> (i32, i32) {
    %c0_i32 = arith.constant 0 : i32
    %c0_i32_0 = arith.constant 0 : i32
    %c0_i32_1 = arith.constant 0 : i32
    return %c0_i32, %c0_i32_0 : i32, i32
  }
  func.func @transform_8(%arg0: i32) -> (i32, i32, i32, i32) {
    %c0_i32 = arith.constant 0 : i32
    %c0_i32_0 = arith.constant 0 : i32
    %c0_i32_1 = arith.constant 0 : i32
    %c0_i32_2 = arith.constant 0 : i32
    return %arg0, %c0_i32, %c0_i32_0, %c0_i32_1 : i32, i32, i32, i32
  }
}

module attributes {stable_mosaic.version = 11 : i64} {
  func.func @_leaky_conv3x3_kernel(%arg0: i32, %arg1: memref<1x16x16x128xf32, #tpu.memory_space<vmem>>, %arg2: memref<1152x128xbf16, #tpu.memory_space<vmem>>, %arg3: memref<1x128xf32, #tpu.memory_space<vmem>>, %arg4: memref<1x16x16x128xf32, #tpu.memory_space<vmem>>, %arg5: memref<18x18x128xf32, #tpu.memory_space<vmem>>) attributes {dimension_semantics = [#tpu.dimension_semantics<parallel>], iteration_bounds = array<i64: 2>, scalar_prefetch = 0 : i64, scratch_operands = 1 : i64, tpu.core_type = #tpu.core_type<tc>, window_params = [{transform_indices = @transform_0, window_bounds = array<i64: 1, 16, 16, 128>}, {pipeline_mode = #tpu.pipeline_mode<synchronous>, transform_indices = @transform_1, window_bounds = array<i64: 1152, 128>}, {pipeline_mode = #tpu.pipeline_mode<synchronous>, transform_indices = @transform_2, window_bounds = array<i64: 1, 128>}, {transform_indices = @transform_3, window_bounds = array<i64: 1, 16, 16, 128>}]} {
    %c0 = arith.constant 0 : index
    %c0_0 = arith.constant 0 : index
    %c0_1 = arith.constant 0 : index
    %c0_2 = arith.constant 0 : index
    %0 = vector.load %arg1[%c0, %c0_0, %c0_1, %c0_2] : memref<1x16x16x128xf32, #tpu.memory_space<vmem>>, vector<1x16x16x128xf32>
    %1 = vector.shape_cast %0 : vector<1x16x16x128xf32> to vector<16x16x128xf32>
    %cst = arith.constant 0.000000e+00 : f32
    %2 = vector.broadcast %cst : f32 to vector<16x16x128xf32>
    %3 = arith.cmpf oge, %1, %2 : vector<16x16x128xf32>
    %cst_3 = arith.constant 2.000000e-01 : f32
    %4 = vector.broadcast %cst_3 : f32 to vector<16x16x128xf32>
    %5 = arith.mulf %1, %4 : vector<16x16x128xf32>
    %6 = arith.select %3, %1, %5 : vector<16x16x128xi1>, vector<16x16x128xf32>
    %cst_4 = arith.constant 0.000000e+00 : f32
    %7 = vector.broadcast %cst_4 : f32 to vector<1x18x128xf32>
    %cst_5 = arith.constant 0.000000e+00 : f32
    %8 = vector.broadcast %cst_5 : f32 to vector<18x1x128xf32>
    %c0_6 = arith.constant 0 : index
    %c0_7 = arith.constant 0 : index
    %c0_8 = arith.constant 0 : index
    %9 = vector.load %arg5[%c0_6, %c0_7, %c0_8] : memref<18x18x128xf32, #tpu.memory_space<vmem>>, vector<1x18x128xf32>
    tpu.vector_store %arg5[%c0_6, %c0_7, %c0_8], %7 {strides = array<i32>} : memref<18x18x128xf32, #tpu.memory_space<vmem>>, vector<1x18x128xf32>,
    %c17 = arith.constant 17 : index
    %c0_9 = arith.constant 0 : index
    %c0_10 = arith.constant 0 : index
    %10 = vector.load %arg5[%c17, %c0_9, %c0_10] : memref<18x18x128xf32, #tpu.memory_space<vmem>>, vector<1x18x128xf32>
    tpu.vector_store %arg5[%c17, %c0_9, %c0_10], %7 {strides = array<i32>} : memref<18x18x128xf32, #tpu.memory_space<vmem>>, vector<1x18x128xf32>,
    %c0_11 = arith.constant 0 : index
    %c0_12 = arith.constant 0 : index
    %c0_13 = arith.constant 0 : index
    %11 = vector.load %arg5[%c0_11, %c0_12, %c0_13] : memref<18x18x128xf32, #tpu.memory_space<vmem>>, vector<18x1x128xf32>
    tpu.vector_store %arg5[%c0_11, %c0_12, %c0_13], %8 {strides = array<i32>} : memref<18x18x128xf32, #tpu.memory_space<vmem>>, vector<18x1x128xf32>,
    %c0_14 = arith.constant 0 : index
    %c17_15 = arith.constant 17 : index
    %c0_16 = arith.constant 0 : index
    %12 = vector.load %arg5[%c0_14, %c17_15, %c0_16] : memref<18x18x128xf32, #tpu.memory_space<vmem>>, vector<18x1x128xf32>
    tpu.vector_store %arg5[%c0_14, %c17_15, %c0_16], %8 {strides = array<i32>} : memref<18x18x128xf32, #tpu.memory_space<vmem>>, vector<18x1x128xf32>,
    %c1 = arith.constant 1 : index
    %c1_17 = arith.constant 1 : index
    %c0_18 = arith.constant 0 : index
    %13 = vector.load %arg5[%c1, %c1_17, %c0_18] : memref<18x18x128xf32, #tpu.memory_space<vmem>>, vector<16x16x128xf32>
    tpu.vector_store %arg5[%c1, %c1_17, %c0_18], %6 {strides = array<i32>} : memref<18x18x128xf32, #tpu.memory_space<vmem>>, vector<16x16x128xf32>,
    %cst_19 = arith.constant 0.000000e+00 : f32
    %14 = vector.broadcast %cst_19 : f32 to vector<256x128xf32>
    %c0_20 = arith.constant 0 : index
    %c0_21 = arith.constant 0 : index
    %c0_22 = arith.constant 0 : index
    %15 = vector.load %arg5[%c0_20, %c0_21, %c0_22] : memref<18x18x128xf32, #tpu.memory_space<vmem>>, vector<16x16x128xf32>
    %16 = vector.shape_cast %15 : vector<16x16x128xf32> to vector<256x128xf32>
    %17 = arith.truncf %16 : vector<256x128xf32> to vector<256x128xbf16>
    %c0_23 = arith.constant 0 : index
    %c0_24 = arith.constant 0 : index
    %18 = vector.load %arg2[%c0_23, %c0_24] : memref<1152x128xbf16, #tpu.memory_space<vmem>>, vector<128x128xbf16>
    %cst_25 = arith.constant dense<0.000000e+00> : vector<256x128xf32>
    %19 = tpu.matmul %17, %18, %cst_25 {dimension_numbers = #tpu.dot_dimension_numbers<[1], [0], [0], [1], [0, 0, 1, 1], [], []>} : vector<256x128xbf16>, vector<128x128xbf16>, vector<256x128xf32> -> vector<256x128xf32>
    %20 = arith.addf %14, %19 : vector<256x128xf32>
    %c0_26 = arith.constant 0 : index
    %c1_27 = arith.constant 1 : index
    %c0_28 = arith.constant 0 : index
    %21 = vector.load %arg5[%c0_26, %c1_27, %c0_28] : memref<18x18x128xf32, #tpu.memory_space<vmem>>, vector<16x16x128xf32>
    %22 = vector.shape_cast %21 : vector<16x16x128xf32> to vector<256x128xf32>
    %23 = arith.truncf %22 : vector<256x128xf32> to vector<256x128xbf16>
    %c128 = arith.constant 128 : index
    %c0_29 = arith.constant 0 : index
    %24 = vector.load %arg2[%c128, %c0_29] : memref<1152x128xbf16, #tpu.memory_space<vmem>>, vector<128x128xbf16>
    %cst_30 = arith.constant dense<0.000000e+00> : vector<256x128xf32>
    %25 = tpu.matmul %23, %24, %cst_30 {dimension_numbers = #tpu.dot_dimension_numbers<[1], [0], [0], [1], [0, 0, 1, 1], [], []>} : vector<256x128xbf16>, vector<128x128xbf16>, vector<256x128xf32> -> vector<256x128xf32>
    %26 = arith.addf %20, %25 : vector<256x128xf32>
    %c0_31 = arith.constant 0 : index
    %c2 = arith.constant 2 : index
    %c0_32 = arith.constant 0 : index
    %27 = vector.load %arg5[%c0_31, %c2, %c0_32] : memref<18x18x128xf32, #tpu.memory_space<vmem>>, vector<16x16x128xf32>
    %28 = vector.shape_cast %27 : vector<16x16x128xf32> to vector<256x128xf32>
    %29 = arith.truncf %28 : vector<256x128xf32> to vector<256x128xbf16>
    %c256 = arith.constant 256 : index
    %c0_33 = arith.constant 0 : index
    %30 = vector.load %arg2[%c256, %c0_33] : memref<1152x128xbf16, #tpu.memory_space<vmem>>, vector<128x128xbf16>
    %cst_34 = arith.constant dense<0.000000e+00> : vector<256x128xf32>
    %31 = tpu.matmul %29, %30, %cst_34 {dimension_numbers = #tpu.dot_dimension_numbers<[1], [0], [0], [1], [0, 0, 1, 1], [], []>} : vector<256x128xbf16>, vector<128x128xbf16>, vector<256x128xf32> -> vector<256x128xf32>
    %32 = arith.addf %26, %31 : vector<256x128xf32>
    %c1_35 = arith.constant 1 : index
    %c0_36 = arith.constant 0 : index
    %c0_37 = arith.constant 0 : index
    %33 = vector.load %arg5[%c1_35, %c0_36, %c0_37] : memref<18x18x128xf32, #tpu.memory_space<vmem>>, vector<16x16x128xf32>
    %34 = vector.shape_cast %33 : vector<16x16x128xf32> to vector<256x128xf32>
    %35 = arith.truncf %34 : vector<256x128xf32> to vector<256x128xbf16>
    %c384 = arith.constant 384 : index
    %c0_38 = arith.constant 0 : index
    %36 = vector.load %arg2[%c384, %c0_38] : memref<1152x128xbf16, #tpu.memory_space<vmem>>, vector<128x128xbf16>
    %cst_39 = arith.constant dense<0.000000e+00> : vector<256x128xf32>
    %37 = tpu.matmul %35, %36, %cst_39 {dimension_numbers = #tpu.dot_dimension_numbers<[1], [0], [0], [1], [0, 0, 1, 1], [], []>} : vector<256x128xbf16>, vector<128x128xbf16>, vector<256x128xf32> -> vector<256x128xf32>
    %38 = arith.addf %32, %37 : vector<256x128xf32>
    %c1_40 = arith.constant 1 : index
    %c1_41 = arith.constant 1 : index
    %c0_42 = arith.constant 0 : index
    %39 = vector.load %arg5[%c1_40, %c1_41, %c0_42] : memref<18x18x128xf32, #tpu.memory_space<vmem>>, vector<16x16x128xf32>
    %40 = vector.shape_cast %39 : vector<16x16x128xf32> to vector<256x128xf32>
    %41 = arith.truncf %40 : vector<256x128xf32> to vector<256x128xbf16>
    %c512 = arith.constant 512 : index
    %c0_43 = arith.constant 0 : index
    %42 = vector.load %arg2[%c512, %c0_43] : memref<1152x128xbf16, #tpu.memory_space<vmem>>, vector<128x128xbf16>
    %cst_44 = arith.constant dense<0.000000e+00> : vector<256x128xf32>
    %43 = tpu.matmul %41, %42, %cst_44 {dimension_numbers = #tpu.dot_dimension_numbers<[1], [0], [0], [1], [0, 0, 1, 1], [], []>} : vector<256x128xbf16>, vector<128x128xbf16>, vector<256x128xf32> -> vector<256x128xf32>
    %44 = arith.addf %38, %43 : vector<256x128xf32>
    %c1_45 = arith.constant 1 : index
    %c2_46 = arith.constant 2 : index
    %c0_47 = arith.constant 0 : index
    %45 = vector.load %arg5[%c1_45, %c2_46, %c0_47] : memref<18x18x128xf32, #tpu.memory_space<vmem>>, vector<16x16x128xf32>
    %46 = vector.shape_cast %45 : vector<16x16x128xf32> to vector<256x128xf32>
    %47 = arith.truncf %46 : vector<256x128xf32> to vector<256x128xbf16>
    %c640 = arith.constant 640 : index
    %c0_48 = arith.constant 0 : index
    %48 = vector.load %arg2[%c640, %c0_48] : memref<1152x128xbf16, #tpu.memory_space<vmem>>, vector<128x128xbf16>
    %cst_49 = arith.constant dense<0.000000e+00> : vector<256x128xf32>
    %49 = tpu.matmul %47, %48, %cst_49 {dimension_numbers = #tpu.dot_dimension_numbers<[1], [0], [0], [1], [0, 0, 1, 1], [], []>} : vector<256x128xbf16>, vector<128x128xbf16>, vector<256x128xf32> -> vector<256x128xf32>
    %50 = arith.addf %44, %49 : vector<256x128xf32>
    %c2_50 = arith.constant 2 : index
    %c0_51 = arith.constant 0 : index
    %c0_52 = arith.constant 0 : index
    %51 = vector.load %arg5[%c2_50, %c0_51, %c0_52] : memref<18x18x128xf32, #tpu.memory_space<vmem>>, vector<16x16x128xf32>
    %52 = vector.shape_cast %51 : vector<16x16x128xf32> to vector<256x128xf32>
    %53 = arith.truncf %52 : vector<256x128xf32> to vector<256x128xbf16>
    %c768 = arith.constant 768 : index
    %c0_53 = arith.constant 0 : index
    %54 = vector.load %arg2[%c768, %c0_53] : memref<1152x128xbf16, #tpu.memory_space<vmem>>, vector<128x128xbf16>
    %cst_54 = arith.constant dense<0.000000e+00> : vector<256x128xf32>
    %55 = tpu.matmul %53, %54, %cst_54 {dimension_numbers = #tpu.dot_dimension_numbers<[1], [0], [0], [1], [0, 0, 1, 1], [], []>} : vector<256x128xbf16>, vector<128x128xbf16>, vector<256x128xf32> -> vector<256x128xf32>
    %56 = arith.addf %50, %55 : vector<256x128xf32>
    %c2_55 = arith.constant 2 : index
    %c1_56 = arith.constant 1 : index
    %c0_57 = arith.constant 0 : index
    %57 = vector.load %arg5[%c2_55, %c1_56, %c0_57] : memref<18x18x128xf32, #tpu.memory_space<vmem>>, vector<16x16x128xf32>
    %58 = vector.shape_cast %57 : vector<16x16x128xf32> to vector<256x128xf32>
    %59 = arith.truncf %58 : vector<256x128xf32> to vector<256x128xbf16>
    %c896 = arith.constant 896 : index
    %c0_58 = arith.constant 0 : index
    %60 = vector.load %arg2[%c896, %c0_58] : memref<1152x128xbf16, #tpu.memory_space<vmem>>, vector<128x128xbf16>
    %cst_59 = arith.constant dense<0.000000e+00> : vector<256x128xf32>
    %61 = tpu.matmul %59, %60, %cst_59 {dimension_numbers = #tpu.dot_dimension_numbers<[1], [0], [0], [1], [0, 0, 1, 1], [], []>} : vector<256x128xbf16>, vector<128x128xbf16>, vector<256x128xf32> -> vector<256x128xf32>
    %62 = arith.addf %56, %61 : vector<256x128xf32>
    %c2_60 = arith.constant 2 : index
    %c2_61 = arith.constant 2 : index
    %c0_62 = arith.constant 0 : index
    %63 = vector.load %arg5[%c2_60, %c2_61, %c0_62] : memref<18x18x128xf32, #tpu.memory_space<vmem>>, vector<16x16x128xf32>
    %64 = vector.shape_cast %63 : vector<16x16x128xf32> to vector<256x128xf32>
    %65 = arith.truncf %64 : vector<256x128xf32> to vector<256x128xbf16>
    %c1024 = arith.constant 1024 : index
    %c0_63 = arith.constant 0 : index
    %66 = vector.load %arg2[%c1024, %c0_63] : memref<1152x128xbf16, #tpu.memory_space<vmem>>, vector<128x128xbf16>
    %cst_64 = arith.constant dense<0.000000e+00> : vector<256x128xf32>
    %67 = tpu.matmul %65, %66, %cst_64 {dimension_numbers = #tpu.dot_dimension_numbers<[1], [0], [0], [1], [0, 0, 1, 1], [], []>} : vector<256x128xbf16>, vector<128x128xbf16>, vector<256x128xf32> -> vector<256x128xf32>
    %68 = arith.addf %62, %67 : vector<256x128xf32>
    %c0_65 = arith.constant 0 : index
    %c0_66 = arith.constant 0 : index
    %69 = vector.load %arg3[%c0_65, %c0_66] : memref<1x128xf32, #tpu.memory_space<vmem>>, vector<1x128xf32>
    %70 = vector.broadcast %69 : vector<1x128xf32> to vector<256x128xf32>
    %71 = arith.addf %68, %70 : vector<256x128xf32>
    %72 = vector.shape_cast %71 : vector<256x128xf32> to vector<16x16x128xf32>
    %c0_67 = arith.constant 0 : index
    %c0_68 = arith.constant 0 : index
    %c0_69 = arith.constant 0 : index
    %c0_70 = arith.constant 0 : index
    %73 = vector.load %arg4[%c0_67, %c0_68, %c0_69, %c0_70] : memref<1x16x16x128xf32, #tpu.memory_space<vmem>>, vector<1x16x16x128xf32>
    %74 = vector.shape_cast %73 : vector<1x16x16x128xf32> to vector<16x16x128xf32>
    %75 = vector.shape_cast %72 : vector<16x16x128xf32> to vector<1x16x16x128xf32>
    tpu.vector_store %arg4[%c0_67, %c0_68, %c0_69, %c0_70], %75 {strides = array<i32>} : memref<1x16x16x128xf32, #tpu.memory_space<vmem>>, vector<1x16x16x128xf32>,
    return
  }
  func.func @transform_0(%arg0: i32) -> (i32, i32, i32, i32) {
    %c0_i32 = arith.constant 0 : i32
    %c0_i32_0 = arith.constant 0 : i32
    %c0_i32_1 = arith.constant 0 : i32
    %c0_i32_2 = arith.constant 0 : i32
    return %arg0, %c0_i32, %c0_i32_0, %c0_i32_1 : i32, i32, i32, i32
  }
  func.func @transform_1(%arg0: i32) -> (i32, i32) {
    %c0_i32 = arith.constant 0 : i32
    %c0_i32_0 = arith.constant 0 : i32
    %c0_i32_1 = arith.constant 0 : i32
    return %c0_i32, %c0_i32_0 : i32, i32
  }
  func.func @transform_2(%arg0: i32) -> (i32, i32) {
    %c0_i32 = arith.constant 0 : i32
    %c0_i32_0 = arith.constant 0 : i32
    %c0_i32_1 = arith.constant 0 : i32
    return %c0_i32, %c0_i32_0 : i32, i32
  }
  func.func @transform_3(%arg0: i32) -> (i32, i32, i32, i32) {
    %c0_i32 = arith.constant 0 : i32
    %c0_i32_0 = arith.constant 0 : i32
    %c0_i32_1 = arith.constant 0 : i32
    %c0_i32_2 = arith.constant 0 : i32
    return %arg0, %c0_i32, %c0_i32_0, %c0_i32_1 : i32, i32, i32, i32
  }
}

</mosaic_0001>

<llo_original>
// kernel: multi_spade3_forward.7
$region0: #{multi_spade3_forward.7}
  #allocation0 [shape = 'u32[]', space=smem, size = 0x4, offset = 0x4, fixed_abs, tag = 'smem constant byte address 0x4 - core index']
  #allocation1 [shape = 'u32[144,128]{1,0:T(1,128)}', space=vmem, size = 0x12000, scoped, tag = 'internal scratch']
  #allocation2 [shape = 'f32[18,18,128]{2,1,0:T(8,128)}', space=vmem, size = 0x36000, scoped, tag = 'scratch operand']
  %s0 = inlined_call_operand.vmem [shape: f32[2,16,16,128], index: 0, kind: input, shape index: {}]
  %s1 = inlined_call_operand.vmem [shape: bf16[1152,128], index: 1, kind: input, shape index: {}]
  %s2 = inlined_call_operand.vmem [shape: f32[1,128], index: 2, kind: input, shape index: {}]
  %s3 = inlined_call_operand.vmem [shape: f32[2,16,16,128], index: 3, kind: output, shape index: {}]
  %s4 = sld [smem:[#allocation0]]
  $region45: #{multi_spade3_forward.7} parent=0
    _
  %s6 = ssub.s32 1, %s4
  %s7 = scalar_select 0, %s6, %s4
  loop: start=0, step=1, limit=4
  $region2: #{multi_spade3_forward.7} parent=0 // loop_pre_header
    _
  $region3: #{multi_spade3_forward.7} parent=0 // loop_header
    %s9 = sphi 0, %s13
    %p10 = scmp.ge.s32.totalorder %s9, 4
    %s19 = sphi 0, %s21
    %s22 = sphi 0, %s19
    %s23 = sphi 0, %s22
    %s39 = sphi 0, %s23
    %s43 = sphi 0, %s43
    %s45 = sphi 0, %s43
    %s46 = sphi 0, %s45
    %s60 = sphi 0, %s46
    %s64 = sphi 0, %s64
    %s66 = sphi 0, %s64
    %s67 = sphi 0, %s66
    %s81 = sphi 0, %s67
    %s87 = sphi 0, %s89
    %s90 = sphi 0, %s87
    %s91 = sphi 0, %s90
    %s107 = sphi 0, %s91
  $region4: #{multi_spade3_forward.7} parent=0 // loop_header_branch
    %12 = sbr.rel (%p10) target = $region8
  $region5: #{multi_spade3_forward.7} parent=0 // loop_body
    %s14 = ssub.s32 %s9, 1
    %s15 = ssub.s32 %s9, 2
    %s16 = sadd.s32 %s9, 1
    %s17 = ssub.s32 %s9, %s16
    %p18 = scmp.eq.s32.totalorder %s17, 0
    %s20 = sadd.s32 %s19, 1
    %s21 = scalar_select %p18, %s19, %s20
    %p24 = pneg %p18
    %p25 = scmp.eq.s32.totalorder %s9, 1
    %p26 = por %p24, %p25
    %p27 = scmp.ne.s32.totalorder %s19, %s22
    %p28 = scmp.eq.s32.totalorder %s9, 0
    %p29 = por %p27, %p28
    %p30 = scmp.ne.s32.totalorder %s19, %s22
    %p31 = scmp.eq.s32.totalorder %s14, 1
    %p32 = por %p30, %p31
    %p33 = scmp.ne.s32.totalorder %s22, %s23
    %p34 = scmp.eq.s32.totalorder %s14, 0
    %p35 = por %p33, %p34
    %p36 = scmp.ne.s32.totalorder %s22, %s23
    %p37 = scmp.eq.s32.totalorder %s15, 1
    %p38 = por %p36, %p37
    %p40 = scmp.ne.s32.totalorder %s23, %s39
    %p41 = scmp.eq.s32.totalorder %s15, 0
    %p42 = por %p40, %p41
    %s44 = sadd.s32 %s43, 1
    %p47 = scmp.eq.s32.totalorder %s9, 1
    %p48 = scmp.ne.s32.totalorder %s43, %s45
    %p49 = scmp.eq.s32.totalorder %s9, 0
    %p50 = por %p48, %p49
    %p51 = scmp.ne.s32.totalorder %s43, %s45
    %p52 = scmp.eq.s32.totalorder %s14, 1
    %p53 = por %p51, %p52
    %p54 = scmp.ne.s32.totalorder %s45, %s46
    %p55 = scmp.eq.s32.totalorder %s14, 0
    %p56 = por %p54, %p55
    %p57 = scmp.ne.s32.totalorder %s45, %s46
    %p58 = scmp.eq.s32.totalorder %s15, 1
    %p59 = por %p57, %p58
    %p61 = scmp.ne.s32.totalorder %s46, %s60
    %p62 = scmp.eq.s32.totalorder %s15, 0
    %p63 = por %p61, %p62
    %s65 = sadd.s32 %s64, 1
    %p68 = scmp.eq.s32.totalorder %s9, 1
    %p69 = scmp.ne.s32.totalorder %s64, %s66
    %p70 = scmp.eq.s32.totalorder %s9, 0
    %p71 = por %p69, %p70
    %p72 = scmp.ne.s32.totalorder %s64, %s66
    %p73 = scmp.eq.s32.totalorder %s14, 1
    %p74 = por %p72, %p73
    %p75 = scmp.ne.s32.totalorder %s66, %s67
    %p76 = scmp.eq.s32.totalorder %s14, 0
    %p77 = por %p75, %p76
    %p78 = scmp.ne.s32.totalorder %s66, %s67
    %p79 = scmp.eq.s32.totalorder %s15, 1
    %p80 = por %p78, %p79
    %p82 = scmp.ne.s32.totalorder %s67, %s81
    %p83 = scmp.eq.s32.totalorder %s15, 0
    %p84 = por %p82, %p83
    %s85 = ssub.s32 %s9, %s16
    %p86 = scmp.eq.s32.totalorder %s85, 0
    %s88 = sadd.s32 %s87, 1
    %s89 = scalar_select %p86, %s87, %s88
    %p92 = pneg %p86
    %p93 = scmp.eq.s32.totalorder %s9, 1
    %p94 = por %p92, %p93
    %p95 = scmp.ne.s32.totalorder %s87, %s90
    %p96 = scmp.eq.s32.totalorder %s9, 0
    %p97 = por %p95, %p96
    %p98 = scmp.ne.s32.totalorder %s87, %s90
    %p99 = scmp.eq.s32.totalorder %s14, 1
    %p100 = por %p98, %p99
    %p101 = scmp.ne.s32.totalorder %s90, %s91
    %p102 = scmp.eq.s32.totalorder %s14, 0
    %p103 = por %p101, %p102
    %p104 = scmp.ne.s32.totalorder %s90, %s91
    %p105 = scmp.eq.s32.totalorder %s15, 1
    %p106 = por %p104, %p105
    %p108 = scmp.ne.s32.totalorder %s91, %s107
    %p109 = scmp.eq.s32.totalorder %s15, 0
    %p110 = por %p108, %p109
    %p111 = scmp.le.s32.totalorder 1, %s9
    %p112 = scmp.lt.s32.totalorder %s9, 3
    %p113 = pnand %p111, %p112
    %p114 = pneg %p113
    // Predicated region
    $region9: #{multi_spade3_forward.7} parent=5 // pred_check
      _
    $region10: #{multi_spade3_forward.7} parent=5 // pred_check_branch
      %116 = sbr.rel (%p113) target = $region12
    $region11: #{multi_spade3_forward.7} parent=5 // pred_region
      %s117 = ssub.s32 %s9, 1
      // Predicated region
      $region13: #{multi_spade3_forward.7} parent=11 // pred_check
        %p118 = pneg %p56
      $region14: #{multi_spade3_forward.7} parent=11 // pred_check_branch
        %120 = sbr.rel (%p118) target = $region16
      $region15: #{multi_spade3_forward.7} parent=11 // pred_region
        _
      $region16: #{multi_spade3_forward.7} parent=11 // pred_fallthru
        _
      // Predicated region
      $region17: #{multi_spade3_forward.7} parent=11 // pred_check
        %p121 = pneg %p77
      $region18: #{multi_spade3_forward.7} parent=11 // pred_check_branch
        %123 = sbr.rel (%p121) target = $region20
      $region19: #{multi_spade3_forward.7} parent=11 // pred_region
        _
      $region20: #{multi_spade3_forward.7} parent=11 // pred_fallthru
        _
    $region12: #{multi_spade3_forward.7} parent=5 // pred_fallthru
      _
    %p124 = scmp.lt.s32.totalorder %s9, 2
    // Predicated region
    $region21: #{multi_spade3_forward.7} parent=5 // pred_check
      %p125 = pneg %p124
    $region22: #{multi_spade3_forward.7} parent=5 // pred_check_branch
      %127 = sbr.rel (%p125) target = $region24
    $region23: #{multi_spade3_forward.7} parent=5 // pred_region
      // Predicated region
      $region25: #{multi_spade3_forward.7} parent=23 // pred_check
        %p128 = pneg %p29
      $region26: #{multi_spade3_forward.7} parent=23 // pred_check_branch
        %130 = sbr.rel (%p128) target = $region28
      $region27: #{multi_spade3_forward.7} parent=23 // pred_region
        %p131 = scmp.lt.s32.totalorder %s9, 1
        %s132 = scalar_select %p131, %s9, 1
        %s133 = smul.addr %s132, 32
        %s134 = smul.addr %s133, 8
        %s135 = scalar_lea.vmem %s0, %s134
      $region28: #{multi_spade3_forward.7} parent=23 // pred_fallthru
        _
    $region24: #{multi_spade3_forward.7} parent=5 // pred_fallthru
      _
    %p136 = scmp.le.s32.totalorder 1, %s9
    %p137 = scmp.lt.s32.totalorder %s9, 3
    %p138 = pnand %p136, %p137
    %p139 = pneg %p138
    // Predicated region
    $region29: #{multi_spade3_forward.7} parent=5 // pred_check
      _
    $region30: #{multi_spade3_forward.7} parent=5 // pred_check_branch
      %141 = sbr.rel (%p138) target = $region32
    $region31: #{multi_spade3_forward.7} parent=5 // pred_region
      %s142 = ssub.s32 %s9, 1
      %p143 = scmp.lt.s32.totalorder %s14, 1
      %s144 = scalar_select %p143, %s14, 1
      %s145 = smul.addr %s144, 32
      %s146 = smul.addr %s145, 8
      %s147 = scalar_lea.vmem %s0, %s146
      %p148 = pneg %p35
      %p149 = pneg %p32
      %p150 = pneg %p56
      %p151 = pneg %p53
      %p152 = pneg %p77
      %p153 = pneg %p74
      %p154 = pneg %p103
      %p155 = pneg %p100
      %p156 = scmp.lt.s32.totalorder %s14, 1
      %s157 = scalar_select %p156, %s14, 1
      %s158 = smul.addr %s157, 32
      %s159 = smul.addr %s158, 8
      %s160 = scalar_lea.vmem %s3, %s159
      %p161 = scmp.lt.s32.totalorder %s14, 1
      %s162 = scalar_select %p161, %s14, 1
      %s163 = smul.addr %s162, 32
      %s164 = smul.addr %s163, 8
      %s165 = scalar_lea.vmem %s0, %s164
      %p166 = scmp.lt.s32.totalorder %s14, 1
      %s167 = scalar_select %p166, %s14, 1
      %s168 = smul.addr %s167, 32
      %s169 = smul.addr %s168, 8
      %s170 = scalar_lea.vmem %s3, %s169
      %v172 = vld [vmem:[%s165] sm:$0xff]
      %v173 = vld [vmem:[%s165 + $0x8] sm:$0xff]
      %v174 = vld [vmem:[%s165 + $0x10] sm:$0xff]
      %v175 = vld [vmem:[%s165 + $0x18] sm:$0xff]
      %v176 = vld [vmem:[%s165 + $0x20] sm:$0xff]
      %v177 = vld [vmem:[%s165 + $0x28] sm:$0xff]
      %v178 = vld [vmem:[%s165 + $0x30] sm:$0xff]
      %v179 = vld [vmem:[%s165 + $0x38] sm:$0xff]
      %v180 = vld [vmem:[%s165 + $0x40] sm:$0xff]
      %v181 = vld [vmem:[%s165 + $0x48] sm:$0xff]
      %v182 = vld [vmem:[%s165 + $0x50] sm:$0xff]
      %v183 = vld [vmem:[%s165 + $0x58] sm:$0xff]
      %v184 = vld [vmem:[%s165 + $0x60] sm:$0xff]
      %v185 = vld [vmem:[%s165 + $0x68] sm:$0xff]
      %v186 = vld [vmem:[%s165 + $0x70] sm:$0xff]
      %v187 = vld [vmem:[%s165 + $0x78] sm:$0xff]
      %v188 = vld [vmem:[%s165 + $0x80] sm:$0xff]
      %v189 = vld [vmem:[%s165 + $0x88] sm:$0xff]
      %v190 = vld [vmem:[%s165 + $0x90] sm:$0xff]
      %v191 = vld [vmem:[%s165 + $0x98] sm:$0xff]
      %v192 = vld [vmem:[%s165 + $0xa0] sm:$0xff]
      %v193 = vld [vmem:[%s165 + $0xa8] sm:$0xff]
      %v194 = vld [vmem:[%s165 + $0xb0] sm:$0xff]
      %v195 = vld [vmem:[%s165 + $0xb8] sm:$0xff]
      %v196 = vld [vmem:[%s165 + $0xc0] sm:$0xff]
      %v197 = vld [vmem:[%s165 + $0xc8] sm:$0xff]
      %v198 = vld [vmem:[%s165 + $0xd0] sm:$0xff]
      %v199 = vld [vmem:[%s165 + $0xd8] sm:$0xff]
      %v200 = vld [vmem:[%s165 + $0xe0] sm:$0xff]
      %v201 = vld [vmem:[%s165 + $0xe8] sm:$0xff]
      %v202 = vld [vmem:[%s165 + $0xf0] sm:$0xff]
      %v203 = vld [vmem:[%s165 + $0xf8] sm:$0xff]
      %vm204 = vcmp.ge.f32.partialorder %v172, 0.0
      %vm205 = vcmp.ge.f32.partialorder %v173, 0.0
      %vm206 = vcmp.ge.f32.partialorder %v174, 0.0
      %vm207 = vcmp.ge.f32.partialorder %v175, 0.0
      %vm208 = vcmp.ge.f32.partialorder %v176, 0.0
      %vm209 = vcmp.ge.f32.partialorder %v177, 0.0
      %vm210 = vcmp.ge.f32.partialorder %v178, 0.0
      %vm211 = vcmp.ge.f32.partialorder %v179, 0.0
      %vm212 = vcmp.ge.f32.partialorder %v180, 0.0
      %vm213 = vcmp.ge.f32.partialorder %v181, 0.0
      %vm214 = vcmp.ge.f32.partialorder %v182, 0.0
      %vm215 = vcmp.ge.f32.partialorder %v183, 0.0
      %vm216 = vcmp.ge.f32.partialorder %v184, 0.0
      %vm217 = vcmp.ge.f32.partialorder %v185, 0.0
      %vm218 = vcmp.ge.f32.partialorder %v186, 0.0
      %vm219 = vcmp.ge.f32.partialorder %v187, 0.0
      %vm220 = vcmp.ge.f32.partialorder %v188, 0.0
      %vm221 = vcmp.ge.f32.partialorder %v189, 0.0
      %vm222 = vcmp.ge.f32.partialorder %v190, 0.0
      %vm223 = vcmp.ge.f32.partialorder %v191, 0.0
      %vm224 = vcmp.ge.f32.partialorder %v192, 0.0
      %vm225 = vcmp.ge.f32.partialorder %v193, 0.0
      %vm226 = vcmp.ge.f32.partialorder %v194, 0.0
      %vm227 = vcmp.ge.f32.partialorder %v195, 0.0
      %vm228 = vcmp.ge.f32.partialorder %v196, 0.0
      %vm229 = vcmp.ge.f32.partialorder %v197, 0.0
      %vm230 = vcmp.ge.f32.partialorder %v198, 0.0
      %vm231 = vcmp.ge.f32.partialorder %v199, 0.0
      %vm232 = vcmp.ge.f32.partialorder %v200, 0.0
      %vm233 = vcmp.ge.f32.partialorder %v201, 0.0
      %vm234 = vcmp.ge.f32.partialorder %v202, 0.0
      %vm235 = vcmp.ge.f32.partialorder %v203, 0.0
      %v236 = vmul.f32 %v172, 0.2
      %v237 = vmul.f32 %v173, 0.2
      %v238 = vmul.f32 %v174, 0.2
      %v239 = vmul.f32 %v175, 0.2
      %v240 = vmul.f32 %v176, 0.2
      %v241 = vmul.f32 %v177, 0.2
      %v242 = vmul.f32 %v178, 0.2
      %v243 = vmul.f32 %v179, 0.2
      %v244 = vmul.f32 %v180, 0.2
      %v245 = vmul.f32 %v181, 0.2
      %v246 = vmul.f32 %v182, 0.2
      %v247 = vmul.f32 %v183, 0.2
      %v248 = vmul.f32 %v184, 0.2
      %v249 = vmul.f32 %v185, 0.2
      %v250 = vmul.f32 %v186, 0.2
      %v251 = vmul.f32 %v187, 0.2
      %v252 = vmul.f32 %v188, 0.2
      %v253 = vmul.f32 %v189, 0.2
      %v254 = vmul.f32 %v190, 0.2
      %v255 = vmul.f32 %v191, 0.2
      %v256 = vmul.f32 %v192, 0.2
      %v257 = vmul.f32 %v193, 0.2
      %v258 = vmul.f32 %v194, 0.2
      %v259 = vmul.f32 %v195, 0.2
      %v260 = vmul.f32 %v196, 0.2
      %v261 = vmul.f32 %v197, 0.2
      %v262 = vmul.f32 %v198, 0.2
      %v263 = vmul.f32 %v199, 0.2
      %v264 = vmul.f32 %v200, 0.2
      %v265 = vmul.f32 %v201, 0.2
      %v266 = vmul.f32 %v202, 0.2
      %v267 = vmul.f32 %v203, 0.2
      %v268 = vsel %vm204, %v172, %v236
      %v269 = vsel %vm205, %v173, %v237
      %v270 = vsel %vm206, %v174, %v238
      %v271 = vsel %vm207, %v175, %v239
      %v272 = vsel %vm208, %v176, %v240
      %v273 = vsel %vm209, %v177, %v241
      %v274 = vsel %vm210, %v178, %v242
      %v275 = vsel %vm211, %v179, %v243
      %v276 = vsel %vm212, %v180, %v244
      %v277 = vsel %vm213, %v181, %v245
      %v278 = vsel %vm214, %v182, %v246
      %v279 = vsel %vm215, %v183, %v247
      %v280 = vsel %vm216, %v184, %v248
      %v281 = vsel %vm217, %v185, %v249
      %v282 = vsel %vm218, %v186, %v250
      %v283 = vsel %vm219, %v187, %v251
      %v284 = vsel %vm220, %v188, %v252
      %v285 = vsel %vm221, %v189, %v253
      %v286 = vsel %vm222, %v190, %v254
      %v287 = vsel %vm223, %v191, %v255
      %v288 = vsel %vm224, %v192, %v256
      %v289 = vsel %vm225, %v193, %v257
      %v290 = vsel %vm226, %v194, %v258
      %v291 = vsel %vm227, %v195, %v259
      %v292 = vsel %vm228, %v196, %v260
      %v293 = vsel %vm229, %v197, %v261
      %v294 = vsel %vm230, %v198, %v262
      %v295 = vsel %vm231, %v199, %v263
      %v296 = vsel %vm232, %v200, %v264
      %v297 = vsel %vm233, %v201, %v265
      %v298 = vsel %vm234, %v202, %v266
      %v299 = vsel %vm235, %v203, %v267
      %300 = vst [vmem:[#allocation2] sm:$0xff] 0.0
      %301 = vst [vmem:[#allocation2 + $0x8] sm:$0xff] 0.0
      %302 = vst [vmem:[#allocation2 + $0x10] sm:$0x3] 0.0
      %s303 = scalar_lea.vmem [#allocation2], 408
      %304 = vst [vmem:[%s303] sm:$0xff] 0.0
      %305 = vst [vmem:[%s303 + $0x8] sm:$0xff] 0.0
      %306 = vst [vmem:[%s303 + $0x10] sm:$0x3] 0.0
      %307 = vst [vmem:[#allocation2] sm:$0x1] 0.0
      %308 = vst [vmem:[#allocation2 + $0x18] sm:$0x1] 0.0
      %309 = vst [vmem:[#allocation2 + $0x30] sm:$0x1] 0.0
      %310 = vst [vmem:[#allocation2 + $0x48] sm:$0x1] 0.0
      %311 = vst [vmem:[#allocation2 + $0x60] sm:$0x1] 0.0
      %312 = vst [vmem:[#allocation2 + $0x78] sm:$0x1] 0.0
      %313 = vst [vmem:[#allocation2 + $0x90] sm:$0x1] 0.0
      %314 = vst [vmem:[#allocation2 + $0xa8] sm:$0x1] 0.0
      %315 = vst [vmem:[#allocation2 + $0xc0] sm:$0x1] 0.0
      %316 = vst [vmem:[#allocation2 + $0xd8] sm:$0x1] 0.0
      %317 = vst [vmem:[#allocation2 + $0xf0] sm:$0x1] 0.0
      %318 = vst [vmem:[#allocation2 + $0x108] sm:$0x1] 0.0
      %319 = vst [vmem:[#allocation2 + $0x120] sm:$0x1] 0.0
      %320 = vst [vmem:[#allocation2 + $0x138] sm:$0x1] 0.0
      %321 = vst [vmem:[#allocation2 + $0x150] sm:$0x1] 0.0
      %322 = vst [vmem:[#allocation2 + $0x168] sm:$0x1] 0.0
      %323 = vst [vmem:[#allocation2 + $0x180] sm:$0x1] 0.0
      %324 = vst [vmem:[#allocation2 + $0x198] sm:$0x1] 0.0
      %325 = vst [vmem:[#allocation2 + $0x11] sm:$0x1] 0.0
      %326 = vst [vmem:[#allocation2 + $0x29] sm:$0x1] 0.0
      %327 = vst [vmem:[#allocation2 + $0x41] sm:$0x1] 0.0
      %328 = vst [vmem:[#allocation2 + $0x59] sm:$0x1] 0.0
      %329 = vst [vmem:[#allocation2 + $0x71] sm:$0x1] 0.0
      %330 = vst [vmem:[#allocation2 + $0x89] sm:$0x1] 0.0
      %331 = vst [vmem:[#allocation2 + $0xa1] sm:$0x1] 0.0
      %332 = vst [vmem:[#allocation2 + $0xb9] sm:$0x1] 0.0
      %333 = vst [vmem:[#allocation2 + $0xd1] sm:$0x1] 0.0
      %334 = vst [vmem:[#allocation2 + $0xe9] sm:$0x1] 0.0
      %335 = vst [vmem:[#allocation2 + $0x101] sm:$0x1] 0.0
      %336 = vst [vmem:[#allocation2 + $0x119] sm:$0x1] 0.0
      %337 = vst [vmem:[#allocation2 + $0x131] sm:$0x1] 0.0
      %338 = vst [vmem:[#allocation2 + $0x149] sm:$0x1] 0.0
      %339 = vst [vmem:[#allocation2 + $0x161] sm:$0x1] 0.0
      %340 = vst [vmem:[#allocation2 + $0x179] sm:$0x1] 0.0
      %341 = vst [vmem:[#allocation2 + $0x191] sm:$0x1] 0.0
      %342 = vst [vmem:[#allocation2 + $0x1a9] sm:$0x1] 0.0
      %s343 = scalar_lea.vmem [#allocation2], 24
      %344 = vst [vmem:[%s343 + $0x1] sm:$0xff] %v268
      %345 = vst [vmem:[%s343 + $0x9] sm:$0xff] %v269
      %346 = vst [vmem:[%s343 + $0x19] sm:$0xff] %v270
      %347 = vst [vmem:[%s343 + $0x21] sm:$0xff] %v271
      %348 = vst [vmem:[%s343 + $0x31] sm:$0xff] %v272
      %349 = vst [vmem:[%s343 + $0x39] sm:$0xff] %v273
      %350 = vst [vmem:[%s343 + $0x49] sm:$0xff] %v274
      %351 = vst [vmem:[%s343 + $0x51] sm:$0xff] %v275
      %352 = vst [vmem:[%s343 + $0x61] sm:$0xff] %v276
      %353 = vst [vmem:[%s343 + $0x69] sm:$0xff] %v277
      %354 = vst [vmem:[%s343 + $0x79] sm:$0xff] %v278
      %355 = vst [vmem:[%s343 + $0x81] sm:$0xff] %v279
      %356 = vst [vmem:[%s343 + $0x91] sm:$0xff] %v280
      %357 = vst [vmem:[%s343 + $0x99] sm:$0xff] %v281
      %358 = vst [vmem:[%s343 + $0xa9] sm:$0xff] %v282
      %359 = vst [vmem:[%s343 + $0xb1] sm:$0xff] %v283
      %360 = vst [vmem:[%s343 + $0xc1] sm:$0xff] %v284
      %361 = vst [vmem:[%s343 + $0xc9] sm:$0xff] %v285
      %362 = vst [vmem:[%s343 + $0xd9] sm:$0xff] %v286
      %363 = vst [vmem:[%s343 + $0xe1] sm:$0xff] %v287
      %364 = vst [vmem:[%s343 + $0xf1] sm:$0xff] %v288
      %365 = vst [vmem:[%s343 + $0xf9] sm:$0xff] %v289
      %366 = vst [vmem:[%s343 + $0x109] sm:$0xff] %v290
      %367 = vst [vmem:[%s343 + $0x111] sm:$0xff] %v291
      %368 = vst [vmem:[%s343 + $0x121] sm:$0xff] %v292
      %369 = vst [vmem:[%s343 + $0x129] sm:$0xff] %v293
      %370 = vst [vmem:[%s343 + $0x139] sm:$0xff] %v294
      %371 = vst [vmem:[%s343 + $0x141] sm:$0xff] %v295
      %372 = vst [vmem:[%s343 + $0x151] sm:$0xff] %v296
      %373 = vst [vmem:[%s343 + $0x159] sm:$0xff] %v297
      %374 = vst [vmem:[%s343 + $0x169] sm:$0xff] %v298
      %375 = vst [vmem:[%s343 + $0x171] sm:$0xff] %v299
      %v376 = vld [vmem:[#allocation2] sm:$0xff]
      %v377 = vld [vmem:[#allocation2 + $0x8] sm:$0xff]
      %v378 = vld [vmem:[#allocation2 + $0x18] sm:$0xff]
      %v379 = vld [vmem:[#allocation2 + $0x20] sm:$0xff]
      %v380 = vld [vmem:[#allocation2 + $0x30] sm:$0xff]
      %v381 = vld [vmem:[#allocation2 + $0x38] sm:$0xff]
      %v382 = vld [vmem:[#allocation2 + $0x48] sm:$0xff]
      %v383 = vld [vmem:[#allocation2 + $0x50] sm:$0xff]
      %v384 = vld [vmem:[#allocation2 + $0x60] sm:$0xff]
      %v385 = vld [vmem:[#allocation2 + $0x68] sm:$0xff]
      %v386 = vld [vmem:[#allocation2 + $0x78] sm:$0xff]
      %v387 = vld [vmem:[#allocation2 + $0x80] sm:$0xff]
      %v388 = vld [vmem:[#allocation2 + $0x90] sm:$0xff]
      %v389 = vld [vmem:[#allocation2 + $0x98] sm:$0xff]
      %v390 = vld [vmem:[#allocation2 + $0xa8] sm:$0xff]
      %v391 = vld [vmem:[#allocation2 + $0xb0] sm:$0xff]
      %v392 = vld [vmem:[#allocation2 + $0xc0] sm:$0xff]
      %v393 = vld [vmem:[#allocation2 + $0xc8] sm:$0xff]
      %v394 = vld [vmem:[#allocation2 + $0xd8] sm:$0xff]
      %v395 = vld [vmem:[#allocation2 + $0xe0] sm:$0xff]
      %v396 = vld [vmem:[#allocation2 + $0xf0] sm:$0xff]
      %v397 = vld [vmem:[#allocation2 + $0xf8] sm:$0xff]
      %v398 = vld [vmem:[#allocation2 + $0x108] sm:$0xff]
      %v399 = vld [vmem:[#allocation2 + $0x110] sm:$0xff]
      %v400 = vld [vmem:[#allocation2 + $0x120] sm:$0xff]
      %v401 = vld [vmem:[#allocation2 + $0x128] sm:$0xff]
      %v402 = vld [vmem:[#allocation2 + $0x138] sm:$0xff]
      %v403 = vld [vmem:[#allocation2 + $0x140] sm:$0xff]
      %v404 = vld [vmem:[#allocation2 + $0x150] sm:$0xff]
      %v405 = vld [vmem:[#allocation2 + $0x158] sm:$0xff]
      %v406 = vld [vmem:[#allocation2 + $0x168] sm:$0xff]
      %v407 = vld [vmem:[#allocation2 + $0x170] sm:$0xff]
      %v408 = vpack.c.bf16 %v377, %v376
      %v409 = vpack.c.bf16 %v379, %v378
      %v410 = vpack.c.bf16 %v381, %v380
      %v411 = vpack.c.bf16 %v383, %v382
      %v412 = vpack.c.bf16 %v385, %v384
      %v413 = vpack.c.bf16 %v387, %v386
      %v414 = vpack.c.bf16 %v389, %v388
      %v415 = vpack.c.bf16 %v391, %v390
      %v416 = vpack.c.bf16 %v393, %v392
      %v417 = vpack.c.bf16 %v395, %v394
      %v418 = vpack.c.bf16 %v397, %v396
      %v419 = vpack.c.bf16 %v399, %v398
      %v420 = vpack.c.bf16 %v401, %v400
      %v421 = vpack.c.bf16 %v403, %v402
      %v422 = vpack.c.bf16 %v405, %v404
      %v423 = vpack.c.bf16 %v407, %v406
      %v424 = vld [vmem:[%s1] sm:$0xf]
      %v425 = vld [vmem:[%s1 + $0x4] sm:$0xf]
      %v426 = vld [vmem:[%s1 + $0x8] sm:$0xf]
      %v427 = vld [vmem:[%s1 + $0xc] sm:$0xf]
      %v428 = vld [vmem:[%s1 + $0x10] sm:$0xf]
      %v429 = vld [vmem:[%s1 + $0x14] sm:$0xf]
      %v430 = vld [vmem:[%s1 + $0x18] sm:$0xf]
      %v431 = vld [vmem:[%s1 + $0x1c] sm:$0xf]
      %v432 = vld [vmem:[%s1 + $0x20] sm:$0xf]
      %v433 = vld [vmem:[%s1 + $0x24] sm:$0xf]
      %v434 = vld [vmem:[%s1 + $0x28] sm:$0xf]
      %v435 = vld [vmem:[%s1 + $0x2c] sm:$0xf]
      %v436 = vld [vmem:[%s1 + $0x30] sm:$0xf]
      %v437 = vld [vmem:[%s1 + $0x34] sm:$0xf]
      %v438 = vld [vmem:[%s1 + $0x38] sm:$0xf]
      %v439 = vld [vmem:[%s1 + $0x3c] sm:$0xf]
      %v440 = vld [vmem:[#allocation2 + $0x1] sm:$0xff]
      %v441 = vld [vmem:[#allocation2 + $0x9] sm:$0xff]
      %v442 = vld [vmem:[#allocation2 + $0x19] sm:$0xff]
      %v443 = vld [vmem:[#allocation2 + $0x21] sm:$0xff]
      %v444 = vld [vmem:[#allocation2 + $0x31] sm:$0xff]
      %v445 = vld [vmem:[#allocation2 + $0x39] sm:$0xff]
      %v446 = vld [vmem:[#allocation2 + $0x49] sm:$0xff]
      %v447 = vld [vmem:[#allocation2 + $0x51] sm:$0xff]
      %v448 = vld [vmem:[#allocation2 + $0x61] sm:$0xff]
      %v449 = vld [vmem:[#allocation2 + $0x69] sm:$0xff]
      %v450 = vld [vmem:[#allocation2 + $0x79] sm:$0xff]
      %v451 = vld [vmem:[#allocation2 + $0x81] sm:$0xff]
      %v452 = vld [vmem:[#allocation2 + $0x91] sm:$0xff]
      %v453 = vld [vmem:[#allocation2 + $0x99] sm:$0xff]
      %v454 = vld [vmem:[#allocation2 + $0xa9] sm:$0xff]
      %v455 = vld [vmem:[#allocation2 + $0xb1] sm:$0xff]
      %v456 = vld [vmem:[#allocation2 + $0xc1] sm:$0xff]
      %v457 = vld [vmem:[#allocation2 + $0xc9] sm:$0xff]
      %v458 = vld [vmem:[#allocation2 + $0xd9] sm:$0xff]
      %v459 = vld [vmem:[#allocation2 + $0xe1] sm:$0xff]
      %v460 = vld [vmem:[#allocation2 + $0xf1] sm:$0xff]
      %v461 = vld [vmem:[#allocation2 + $0xf9] sm:$0xff]
      %v462 = vld [vmem:[#allocation2 + $0x109] sm:$0xff]
      %v463 = vld [vmem:[#allocation2 + $0x111] sm:$0xff]
      %v464 = vld [vmem:[#allocation2 + $0x121] sm:$0xff]
      %v465 = vld [vmem:[#allocation2 + $0x129] sm:$0xff]
      %v466 = vld [vmem:[#allocation2 + $0x139] sm:$0xff]
      %v467 = vld [vmem:[#allocation2 + $0x141] sm:$0xff]
      %v468 = vld [vmem:[#allocation2 + $0x151] sm:$0xff]
      %v469 = vld [vmem:[#allocation2 + $0x159] sm:$0xff]
      %v470 = vld [vmem:[#allocation2 + $0x169] sm:$0xff]
      %v471 = vld [vmem:[#allocation2 + $0x171] sm:$0xff]
      %v472 = vpack.c.bf16 %v441, %v440
      %v473 = vpack.c.bf16 %v443, %v442
      %v474 = vpack.c.bf16 %v445, %v444
      %v475 = vpack.c.bf16 %v447, %v446
      %v476 = vpack.c.bf16 %v449, %v448
      %v477 = vpack.c.bf16 %v451, %v450
      %v478 = vpack.c.bf16 %v453, %v452
      %v479 = vpack.c.bf16 %v455, %v454
      %v480 = vpack.c.bf16 %v457, %v456
      %v481 = vpack.c.bf16 %v459, %v458
      %v482 = vpack.c.bf16 %v461, %v460
      %v483 = vpack.c.bf16 %v463, %v462
      %v484 = vpack.c.bf16 %v465, %v464
      %v485 = vpack.c.bf16 %v467, %v466
      %v486 = vpack.c.bf16 %v469, %v468
      %v487 = vpack.c.bf16 %v471, %v470
      %v488 = vld [vmem:[%s1 + $0x40] sm:$0xf]
      %v489 = vld [vmem:[%s1 + $0x44] sm:$0xf]
      %v490 = vld [vmem:[%s1 + $0x48] sm:$0xf]
      %v491 = vld [vmem:[%s1 + $0x4c] sm:$0xf]
      %v492 = vld [vmem:[%s1 + $0x50] sm:$0xf]
      %v493 = vld [vmem:[%s1 + $0x54] sm:$0xf]
      %v494 = vld [vmem:[%s1 + $0x58] sm:$0xf]
      %v495 = vld [vmem:[%s1 + $0x5c] sm:$0xf]
      %v496 = vld [vmem:[%s1 + $0x60] sm:$0xf]
      %v497 = vld [vmem:[%s1 + $0x64] sm:$0xf]
      %v498 = vld [vmem:[%s1 + $0x68] sm:$0xf]
      %v499 = vld [vmem:[%s1 + $0x6c] sm:$0xf]
      %v500 = vld [vmem:[%s1 + $0x70] sm:$0xf]
      %v501 = vld [vmem:[%s1 + $0x74] sm:$0xf]
      %v502 = vld [vmem:[%s1 + $0x78] sm:$0xf]
      %v503 = vld [vmem:[%s1 + $0x7c] sm:$0xf]
      %v520 = vunpack.c.l.b16 %v488
      %v521 = vunpack.c.l.b16 %v489
      %v522 = vunpack.c.l.b16 %v490
      %v523 = vunpack.c.l.b16 %v491
      %v524 = vunpack.c.l.b16 %v492
      %v525 = vunpack.c.l.b16 %v493
      %v526 = vunpack.c.l.b16 %v494
      %v527 = vunpack.c.l.b16 %v495
      %v528 = vunpack.c.l.b16 %v496
      %v529 = vunpack.c.l.b16 %v497
      %v530 = vunpack.c.l.b16 %v498
      %v531 = vunpack.c.l.b16 %v499
      %v532 = vunpack.c.l.b16 %v500
      %v533 = vunpack.c.l.b16 %v501
      %v534 = vunpack.c.l.b16 %v502
      %v535 = vunpack.c.l.b16 %v503
      %v536 = vpack.c.b16 %v521, %v520
      %v537 = vpack.c.b16 %v523, %v522
      %v538 = vpack.c.b16 %v525, %v524
      %v539 = vpack.c.b16 %v527, %v526
      %v540 = vpack.c.b16 %v529, %v528
      %v541 = vpack.c.b16 %v531, %v530
      %v542 = vpack.c.b16 %v533, %v532
      %v543 = vpack.c.b16 %v535, %v534
      %552 = vmatprep.subr.bf16.mxu0 0
      %553 = vmatpush1.bf16.msra.mxu0 %v543
      %554 = vmatprep.subr.bf16.mxu0 0
      %555 = vmatpush1.bf16.msra.mxu0 %v542
      %556 = vmatprep.subr.bf16.mxu0 0
      %557 = vmatpush1.bf16.msra.mxu0 %v541
      %558 = vmatprep.subr.bf16.mxu0 0
      %559 = vmatpush1.bf16.msra.mxu0 %v540
      %560 = vmatprep.subr.bf16.mxu0 0
      %561 = vmatpush1.bf16.msra.mxu0 %v539
      %562 = vmatprep.subr.bf16.mxu0 0
      %563 = vmatpush1.bf16.msra.mxu0 %v538
      %564 = vmatprep.subr.bf16.mxu0 0
      %565 = vmatpush1.bf16.msra.mxu0 %v537
      %566 = vmatprep.subr.bf16.mxu0 0
      %567 = vmatpush1.bf16.msra.mxu0 %v536
      %568 = vmatprep.subr.bf16.mxu0 0
      %569 = vmatpush2.bf16.msra.mxu0 0
      %570 = vmatprep.subr.bf16.mxu0 0
      %571 = vmatpush2.bf16.msra.mxu0 0
      %572 = vmatprep.subr.bf16.mxu0 0
      %573 = vmatpush2.bf16.msra.mxu0 0
      %574 = vmatprep.subr.bf16.mxu0 0
      %575 = vmatpush2.bf16.msra.mxu0 0
      %576 = vmatprep.subr.bf16.mxu0 0
      %577 = vmatpush2.bf16.msra.mxu0 0
      %578 = vmatprep.subr.bf16.mxu0 0
      %579 = vmatpush2.bf16.msra.mxu0 0
      %580 = vmatprep.subr.bf16.mxu0 0
      %581 = vmatpush2.bf16.msra.mxu0 0
      %582 = vmatprep.subr.bf16.mxu0 0
      %583 = vmatpush2.bf16.msra.mxu0 0
      %584 = vmatprep.mubr.bf16.mxu0 0
      %585 = vmatmul.mubr.bf16.gmra.mxu0 %v472
      %v586 = vpop.f32.mrf.mxu0
      %v587 = vadd.f32 0.0, %v586
      %v588 = vpop.f32.mrf.mxu0
      %v589 = vpop.f32.mrf.mxu0
      %v590 = vadd.f32 0.0, %v589
      %v591 = vpop.f32.mrf.mxu0
      %592 = vmatprep.mubr.bf16.mxu0 0
      %593 = vmatmul.mubr.bf16.gmra.mxu0 %v473
      %v594 = vpop.f32.mrf.mxu0
      %v595 = vadd.f32 0.0, %v594
      %v596 = vpop.f32.mrf.mxu0
      %v597 = vpop.f32.mrf.mxu0
      %v598 = vadd.f32 0.0, %v597
      %v599 = vpop.f32.mrf.mxu0
      %600 = vmatprep.mubr.bf16.mxu0 0
      %601 = vmatmul.mubr.bf16.gmra.mxu0 %v474
      %v602 = vpop.f32.mrf.mxu0
      %v603 = vadd.f32 0.0, %v602
      %v604 = vpop.f32.mrf.mxu0
      %v605 = vpop.f32.mrf.mxu0
      %v606 = vadd.f32 0.0, %v605
      %v607 = vpop.f32.mrf.mxu0
      %608 = vmatprep.mubr.bf16.mxu0 0
      %609 = vmatmul.mubr.bf16.gmra.mxu0 %v475
      %v610 = vpop.f32.mrf.mxu0
      %v611 = vadd.f32 0.0, %v610
      %v612 = vpop.f32.mrf.mxu0
      %v613 = vpop.f32.mrf.mxu0
      %v614 = vadd.f32 0.0, %v613
      %v615 = vpop.f32.mrf.mxu0
      %616 = vmatprep.mubr.bf16.mxu0 0
      %617 = vmatmul.mubr.bf16.gmra.mxu0 %v476
      %v618 = vpop.f32.mrf.mxu0
      %v619 = vadd.f32 0.0, %v618
      %v620 = vpop.f32.mrf.mxu0
      %v621 = vpop.f32.mrf.mxu0
      %v622 = vadd.f32 0.0, %v621
      %v623 = vpop.f32.mrf.mxu0
      %624 = vmatprep.mubr.bf16.mxu0 0
      %625 = vmatmul.mubr.bf16.gmra.mxu0 %v477
      %v626 = vpop.f32.mrf.mxu0
      %v627 = vadd.f32 0.0, %v626
      %v628 = vpop.f32.mrf.mxu0
      %v629 = vpop.f32.mrf.mxu0
      %v630 = vadd.f32 0.0, %v629
      %v631 = vpop.f32.mrf.mxu0
      %632 = vmatprep.mubr.bf16.mxu0 0
      %633 = vmatmul.mubr.bf16.gmra.mxu0 %v478
      %v634 = vpop.f32.mrf.mxu0
      %v635 = vadd.f32 0.0, %v634
      %v636 = vpop.f32.mrf.mxu0
      %v637 = vpop.f32.mrf.mxu0
      %v638 = vadd.f32 0.0, %v637
      %v639 = vpop.f32.mrf.mxu0
      %640 = vmatprep.mubr.bf16.mxu0 0
      %641 = vmatmul.mubr.bf16.gmra.mxu0 %v479
      %v642 = vpop.f32.mrf.mxu0
      %v643 = vadd.f32 0.0, %v642
      %v644 = vpop.f32.mrf.mxu0
      %v645 = vpop.f32.mrf.mxu0
      %v646 = vadd.f32 0.0, %v645
      %v647 = vpop.f32.mrf.mxu0
      %648 = vmatprep.mubr.bf16.mxu0 0
      %649 = vmatmul.mubr.bf16.gmra.mxu0 %v480
      %v650 = vpop.f32.mrf.mxu0
      %v651 = vadd.f32 0.0, %v650
      %v652 = vpop.f32.mrf.mxu0
      %v653 = vpop.f32.mrf.mxu0
      %v654 = vadd.f32 0.0, %v653
      %v655 = vpop.f32.mrf.mxu0
      %656 = vmatprep.mubr.bf16.mxu0 0
      %657 = vmatmul.mubr.bf16.gmra.mxu0 %v481
      %v658 = vpop.f32.mrf.mxu0
      %v659 = vadd.f32 0.0, %v658
      %v660 = vpop.f32.mrf.mxu0
      %v661 = vpop.f32.mrf.mxu0
      %v662 = vadd.f32 0.0, %v661
      %v663 = vpop.f32.mrf.mxu0
      %664 = vmatprep.mubr.bf16.mxu0 0
      %665 = vmatmul.mubr.bf16.gmra.mxu0 %v482
      %v666 = vpop.f32.mrf.mxu0
      %v667 = vadd.f32 0.0, %v666
      %v668 = vpop.f32.mrf.mxu0
      %v669 = vpop.f32.mrf.mxu0
      %v670 = vadd.f32 0.0, %v669
      %v671 = vpop.f32.mrf.mxu0
      %672 = vmatprep.mubr.bf16.mxu0 0
      %673 = vmatmul.mubr.bf16.gmra.mxu0 %v483
      %v674 = vpop.f32.mrf.mxu0
      %v675 = vadd.f32 0.0, %v674
      %v676 = vpop.f32.mrf.mxu0
      %v677 = vpop.f32.mrf.mxu0
      %v678 = vadd.f32 0.0, %v677
      %v679 = vpop.f32.mrf.mxu0
      %680 = vmatprep.mubr.bf16.mxu0 0
      %681 = vmatmul.mubr.bf16.gmra.mxu0 %v484
      %v682 = vpop.f32.mrf.mxu0
      %v683 = vadd.f32 0.0, %v682
      %v684 = vpop.f32.mrf.mxu0
      %v685 = vpop.f32.mrf.mxu0
      %v686 = vadd.f32 0.0, %v685
      %v687 = vpop.f32.mrf.mxu0
      %688 = vmatprep.mubr.bf16.mxu0 0
      %689 = vmatmul.mubr.bf16.gmra.mxu0 %v485
      %v690 = vpop.f32.mrf.mxu0
      %v691 = vadd.f32 0.0, %v690
      %v692 = vpop.f32.mrf.mxu0
      %v693 = vpop.f32.mrf.mxu0
      %v694 = vadd.f32 0.0, %v693
      %v695 = vpop.f32.mrf.mxu0
      %696 = vmatprep.mubr.bf16.mxu0 0
      %697 = vmatmul.mubr.bf16.gmra.mxu0 %v486
      %v698 = vpop.f32.mrf.mxu0
      %v699 = vadd.f32 0.0, %v698
      %v700 = vpop.f32.mrf.mxu0
      %v701 = vpop.f32.mrf.mxu0
      %v702 = vadd.f32 0.0, %v701
      %v703 = vpop.f32.mrf.mxu0
      %704 = vmatprep.mubr.bf16.mxu0 0
      %705 = vmatmul.mubr.bf16.gmra.mxu0 %v487
      %v706 = vpop.f32.mrf.mxu0
      %v707 = vadd.f32 0.0, %v706
      %v708 = vpop.f32.mrf.mxu0
      %v709 = vpop.f32.mrf.mxu0
      %v710 = vadd.f32 0.0, %v709
      %v711 = vpop.f32.mrf.mxu0
      %712 = vdwg.mxu0
      %v729 = vunpack.c.l.b16 %v424
      %v730 = vunpack.c.l.b16 %v425
      %v731 = vunpack.c.l.b16 %v426
      %v732 = vunpack.c.l.b16 %v427
      %v733 = vunpack.c.l.b16 %v428
      %v734 = vunpack.c.l.b16 %v429
      %v735 = vunpack.c.l.b16 %v430
      %v736 = vunpack.c.l.b16 %v431
      %v737 = vunpack.c.l.b16 %v432
      %v738 = vunpack.c.l.b16 %v433
      %v739 = vunpack.c.l.b16 %v434
      %v740 = vunpack.c.l.b16 %v435
      %v741 = vunpack.c.l.b16 %v436
      %v742 = vunpack.c.l.b16 %v437
      %v743 = vunpack.c.l.b16 %v438
      %v744 = vunpack.c.l.b16 %v439
      %v745 = vpack.c.b16 %v730, %v729
      %v746 = vpack.c.b16 %v732, %v731
      %v747 = vpack.c.b16 %v734, %v733
      %v748 = vpack.c.b16 %v736, %v735
      %v749 = vpack.c.b16 %v738, %v737
      %v750 = vpack.c.b16 %v740, %v739
      %v751 = vpack.c.b16 %v742, %v741
      %v752 = vpack.c.b16 %v744, %v743
      %761 = vmatprep.subr.bf16.mxu0 0
      %762 = vmatpush1.bf16.msra.mxu0 %v752
      %763 = vmatprep.subr.bf16.mxu0 0
      %764 = vmatpush1.bf16.msra.mxu0 %v751
      %765 = vmatprep.subr.bf16.mxu0 0
      %766 = vmatpush1.bf16.msra.mxu0 %v750
      %767 = vmatprep.subr.bf16.mxu0 0
      %768 = vmatpush1.bf16.msra.mxu0 %v749
      %769 = vmatprep.subr.bf16.mxu0 0
      %770 = vmatpush1.bf16.msra.mxu0 %v748
      %771 = vmatprep.subr.bf16.mxu0 0
      %772 = vmatpush1.bf16.msra.mxu0 %v747
      %773 = vmatprep.subr.bf16.mxu0 0
      %774 = vmatpush1.bf16.msra.mxu0 %v746
      %775 = vmatprep.subr.bf16.mxu0 0
      %776 = vmatpush1.bf16.msra.mxu0 %v745
      %777 = vmatprep.subr.bf16.mxu0 0
      %778 = vmatpush2.bf16.msra.mxu0 0
      %779 = vmatprep.subr.bf16.mxu0 0
      %780 = vmatpush2.bf16.msra.mxu0 0
      %781 = vmatprep.subr.bf16.mxu0 0
      %782 = vmatpush2.bf16.msra.mxu0 0
      %783 = vmatprep.subr.bf16.mxu0 0
      %784 = vmatpush2.bf16.msra.mxu0 0
      %785 = vmatprep.subr.bf16.mxu0 0
      %786 = vmatpush2.bf16.msra.mxu0 0
      %787 = vmatprep.subr.bf16.mxu0 0
      %788 = vmatpush2.bf16.msra.mxu0 0
      %789 = vmatprep.subr.bf16.mxu0 0
      %790 = vmatpush2.bf16.msra.mxu0 0
      %791 = vmatprep.subr.bf16.mxu0 0
      %792 = vmatpush2.bf16.msra.mxu0 0
      %793 = vmatprep.mubr.bf16.mxu0 0
      %794 = vmatmul.mubr.bf16.gmra.mxu0 %v408
      %v795 = vpop.f32.mrf.mxu0
      %v796 = vadd.f32 %v587, %v795
      %v797 = vpop.f32.mrf.mxu0
      %v798 = vpop.f32.mrf.mxu0
      %v799 = vadd.f32 %v590, %v798
      %v800 = vpop.f32.mrf.mxu0
      %801 = vmatprep.mubr.bf16.mxu0 0
      %802 = vmatmul.mubr.bf16.gmra.mxu0 %v409
      %v803 = vpop.f32.mrf.mxu0
      %v804 = vadd.f32 %v595, %v803
      %v805 = vpop.f32.mrf.mxu0
      %v806 = vpop.f32.mrf.mxu0
      %v807 = vadd.f32 %v598, %v806
      %v808 = vpop.f32.mrf.mxu0
      %809 = vmatprep.mubr.bf16.mxu0 0
      %810 = vmatmul.mubr.bf16.gmra.mxu0 %v410
      %v811 = vpop.f32.mrf.mxu0
      %v812 = vadd.f32 %v603, %v811
      %v813 = vpop.f32.mrf.mxu0
      %v814 = vpop.f32.mrf.mxu0
      %v815 = vadd.f32 %v606, %v814
      %v816 = vpop.f32.mrf.mxu0
      %817 = vmatprep.mubr.bf16.mxu0 0
      %818 = vmatmul.mubr.bf16.gmra.mxu0 %v411
      %v819 = vpop.f32.mrf.mxu0
      %v820 = vadd.f32 %v611, %v819
      %v821 = vpop.f32.mrf.mxu0
      %v822 = vpop.f32.mrf.mxu0
      %v823 = vadd.f32 %v614, %v822
      %v824 = vpop.f32.mrf.mxu0
      %825 = vmatprep.mubr.bf16.mxu0 0
      %826 = vmatmul.mubr.bf16.gmra.mxu0 %v412
      %v827 = vpop.f32.mrf.mxu0
      %v828 = vadd.f32 %v619, %v827
      %v829 = vpop.f32.mrf.mxu0
      %v830 = vpop.f32.mrf.mxu0
      %v831 = vadd.f32 %v622, %v830
      %v832 = vpop.f32.mrf.mxu0
      %833 = vmatprep.mubr.bf16.mxu0 0
      %834 = vmatmul.mubr.bf16.gmra.mxu0 %v413
      %v835 = vpop.f32.mrf.mxu0
      %v836 = vadd.f32 %v627, %v835
      %v837 = vpop.f32.mrf.mxu0
      %v838 = vpop.f32.mrf.mxu0
      %v839 = vadd.f32 %v630, %v838
      %v840 = vpop.f32.mrf.mxu0
      %841 = vmatprep.mubr.bf16.mxu0 0
      %842 = vmatmul.mubr.bf16.gmra.mxu0 %v414
      %v843 = vpop.f32.mrf.mxu0
      %v844 = vadd.f32 %v635, %v843
      %v845 = vpop.f32.mrf.mxu0
      %v846 = vpop.f32.mrf.mxu0
      %v847 = vadd.f32 %v638, %v846
      %v848 = vpop.f32.mrf.mxu0
      %849 = vmatprep.mubr.bf16.mxu0 0
      %850 = vmatmul.mubr.bf16.gmra.mxu0 %v415
      %v851 = vpop.f32.mrf.mxu0
      %v852 = vadd.f32 %v643, %v851
      %v853 = vpop.f32.mrf.mxu0
      %v854 = vpop.f32.mrf.mxu0
      %v855 = vadd.f32 %v646, %v854
      %v856 = vpop.f32.mrf.mxu0
      %857 = vmatprep.mubr.bf16.mxu0 0
      %858 = vmatmul.mubr.bf16.gmra.mxu0 %v416
      %v859 = vpop.f32.mrf.mxu0
      %v860 = vadd.f32 %v651, %v859
      %v861 = vpop.f32.mrf.mxu0
      %v862 = vpop.f32.mrf.mxu0
      %v863 = vadd.f32 %v654, %v862
      %v864 = vpop.f32.mrf.mxu0
      %865 = vmatprep.mubr.bf16.mxu0 0
      %866 = vmatmul.mubr.bf16.gmra.mxu0 %v417
      %v867 = vpop.f32.mrf.mxu0
      %v868 = vadd.f32 %v659, %v867
      %v869 = vpop.f32.mrf.mxu0
      %v870 = vpop.f32.mrf.mxu0
      %v871 = vadd.f32 %v662, %v870
      %v872 = vpop.f32.mrf.mxu0
      %873 = vmatprep.mubr.bf16.mxu0 0
      %874 = vmatmul.mubr.bf16.gmra.mxu0 %v418
      %v875 = vpop.f32.mrf.mxu0
      %v876 = vadd.f32 %v667, %v875
      %v877 = vpop.f32.mrf.mxu0
      %v878 = vpop.f32.mrf.mxu0
      %v879 = vadd.f32 %v670, %v878
      %v880 = vpop.f32.mrf.mxu0
      %881 = vmatprep.mubr.bf16.mxu0 0
      %882 = vmatmul.mubr.bf16.gmra.mxu0 %v419
      %v883 = vpop.f32.mrf.mxu0
      %v884 = vadd.f32 %v675, %v883
      %v885 = vpop.f32.mrf.mxu0
      %v886 = vpop.f32.mrf.mxu0
      %v887 = vadd.f32 %v678, %v886
      %v888 = vpop.f32.mrf.mxu0
      %889 = vmatprep.mubr.bf16.mxu0 0
      %890 = vmatmul.mubr.bf16.gmra.mxu0 %v420
      %v891 = vpop.f32.mrf.mxu0
      %v892 = vadd.f32 %v683, %v891
      %v893 = vpop.f32.mrf.mxu0
      %v894 = vpop.f32.mrf.mxu0
      %v895 = vadd.f32 %v686, %v894
      %v896 = vpop.f32.mrf.mxu0
      %897 = vmatprep.mubr.bf16.mxu0 0
      %898 = vmatmul.mubr.bf16.gmra.mxu0 %v421
      %v899 = vpop.f32.mrf.mxu0
      %v900 = vadd.f32 %v691, %v899
      %v901 = vpop.f32.mrf.mxu0
      %v902 = vpop.f32.mrf.mxu0
      %v903 = vadd.f32 %v694, %v902
      %v904 = vpop.f32.mrf.mxu0
      %905 = vmatprep.mubr.bf16.mxu0 0
      %906 = vmatmul.mubr.bf16.gmra.mxu0 %v422
      %v907 = vpop.f32.mrf.mxu0
      %v908 = vadd.f32 %v699, %v907
      %v909 = vpop.f32.mrf.mxu0
      %v910 = vpop.f32.mrf.mxu0
      %v911 = vadd.f32 %v702, %v910
      %v912 = vpop.f32.mrf.mxu0
      %913 = vmatprep.mubr.bf16.mxu0 0
      %914 = vmatmul.mubr.bf16.gmra.mxu0 %v423
      %v915 = vpop.f32.mrf.mxu0
      %v916 = vadd.f32 %v707, %v915
      %v917 = vpop.f32.mrf.mxu0
      %v918 = vpop.f32.mrf.mxu0
      %v919 = vadd.f32 %v710, %v918
      %v920 = vpop.f32.mrf.mxu0
      %921 = vdwg.mxu0
      %v922 = vld [vmem:[#allocation2 + $0x2] sm:$0xff]
      %v923 = vld [vmem:[#allocation2 + $0xa] sm:$0xff]
      %v924 = vld [vmem:[#allocation2 + $0x1a] sm:$0xff]
      %v925 = vld [vmem:[#allocation2 + $0x22] sm:$0xff]
      %v926 = vld [vmem:[#allocation2 + $0x32] sm:$0xff]
      %v927 = vld [vmem:[#allocation2 + $0x3a] sm:$0xff]
      %v928 = vld [vmem:[#allocation2 + $0x4a] sm:$0xff]
      %v929 = vld [vmem:[#allocation2 + $0x52] sm:$0xff]
      %v930 = vld [vmem:[#allocation2 + $0x62] sm:$0xff]
      %v931 = vld [vmem:[#allocation2 + $0x6a] sm:$0xff]
      %v932 = vld [vmem:[#allocation2 + $0x7a] sm:$0xff]
      %v933 = vld [vmem:[#allocation2 + $0x82] sm:$0xff]
      %v934 = vld [vmem:[#allocation2 + $0x92] sm:$0xff]
      %v935 = vld [vmem:[#allocation2 + $0x9a] sm:$0xff]
      %v936 = vld [vmem:[#allocation2 + $0xaa] sm:$0xff]
      %v937 = vld [vmem:[#allocation2 + $0xb2] sm:$0xff]
      %v938 = vld [vmem:[#allocation2 + $0xc2] sm:$0xff]
      %v939 = vld [vmem:[#allocation2 + $0xca] sm:$0xff]
      %v940 = vld [vmem:[#allocation2 + $0xda] sm:$0xff]
      %v941 = vld [vmem:[#allocation2 + $0xe2] sm:$0xff]
      %v942 = vld [vmem:[#allocation2 + $0xf2] sm:$0xff]
      %v943 = vld [vmem:[#allocation2 + $0xfa] sm:$0xff]
      %v944 = vld [vmem:[#allocation2 + $0x10a] sm:$0xff]
      %v945 = vld [vmem:[#allocation2 + $0x112] sm:$0xff]
      %v946 = vld [vmem:[#allocation2 + $0x122] sm:$0xff]
      %v947 = vld [vmem:[#allocation2 + $0x12a] sm:$0xff]
      %v948 = vld [vmem:[#allocation2 + $0x13a] sm:$0xff]
      %v949 = vld [vmem:[#allocation2 + $0x142] sm:$0xff]
      %v950 = vld [vmem:[#allocation2 + $0x152] sm:$0xff]
      %v951 = vld [vmem:[#allocation2 + $0x15a] sm:$0xff]
      %v952 = vld [vmem:[#allocation2 + $0x16a] sm:$0xff]
      %v953 = vld [vmem:[#allocation2 + $0x172] sm:$0xff]
      %v954 = vpack.c.bf16 %v923, %v922
      %v955 = vpack.c.bf16 %v925, %v924
      %v956 = vpack.c.bf16 %v927, %v926
      %v957 = vpack.c.bf16 %v929, %v928
      %v958 = vpack.c.bf16 %v931, %v930
      %v959 = vpack.c.bf16 %v933, %v932
      %v960 = vpack.c.bf16 %v935, %v934
      %v961 = vpack.c.bf16 %v937, %v936
      %v962 = vpack.c.bf16 %v939, %v938
      %v963 = vpack.c.bf16 %v941, %v940
      %v964 = vpack.c.bf16 %v943, %v942
      %v965 = vpack.c.bf16 %v945, %v944
      %v966 = vpack.c.bf16 %v947, %v946
      %v967 = vpack.c.bf16 %v949, %v948
      %v968 = vpack.c.bf16 %v951, %v950
      %v969 = vpack.c.bf16 %v953, %v952
      %v970 = vld [vmem:[%s1 + $0x80] sm:$0xf]
      %v971 = vld [vmem:[%s1 + $0x84] sm:$0xf]
      %v972 = vld [vmem:[%s1 + $0x88] sm:$0xf]
      %v973 = vld [vmem:[%s1 + $0x8c] sm:$0xf]
      %v974 = vld [vmem:[%s1 + $0x90] sm:$0xf]
      %v975 = vld [vmem:[%s1 + $0x94] sm:$0xf]
      %v976 = vld [vmem:[%s1 + $0x98] sm:$0xf]
      %v977 = vld [vmem:[%s1 + $0x9c] sm:$0xf]
      %v978 = vld [vmem:[%s1 + $0xa0] sm:$0xf]
      %v979 = vld [vmem:[%s1 + $0xa4] sm:$0xf]
      %v980 = vld [vmem:[%s1 + $0xa8] sm:$0xf]
      %v981 = vld [vmem:[%s1 + $0xac] sm:$0xf]
      %v982 = vld [vmem:[%s1 + $0xb0] sm:$0xf]
      %v983 = vld [vmem:[%s1 + $0xb4] sm:$0xf]
      %v984 = vld [vmem:[%s1 + $0xb8] sm:$0xf]
      %v985 = vld [vmem:[%s1 + $0xbc] sm:$0xf]
      %v1002 = vunpack.c.l.b16 %v970
      %v1003 = vunpack.c.l.b16 %v971
      %v1004 = vunpack.c.l.b16 %v972
      %v1005 = vunpack.c.l.b16 %v973
      %v1006 = vunpack.c.l.b16 %v974
      %v1007 = vunpack.c.l.b16 %v975
      %v1008 = vunpack.c.l.b16 %v976
      %v1009 = vunpack.c.l.b16 %v977
      %v1010 = vunpack.c.l.b16 %v978
      %v1011 = vunpack.c.l.b16 %v979
      %v1012 = vunpack.c.l.b16 %v980
      %v1013 = vunpack.c.l.b16 %v981
      %v1014 = vunpack.c.l.b16 %v982
      %v1015 = vunpack.c.l.b16 %v983
      %v1016 = vunpack.c.l.b16 %v984
      %v1017 = vunpack.c.l.b16 %v985
      %v1018 = vpack.c.b16 %v1003, %v1002
      %v1019 = vpack.c.b16 %v1005, %v1004
      %v1020 = vpack.c.b16 %v1007, %v1006
      %v1021 = vpack.c.b16 %v1009, %v1008
      %v1022 = vpack.c.b16 %v1011, %v1010
      %v1023 = vpack.c.b16 %v1013, %v1012
      %v1024 = vpack.c.b16 %v1015, %v1014
      %v1025 = vpack.c.b16 %v1017, %v1016
      %1034 = vmatprep.subr.bf16.mxu0 0
      %1035 = vmatpush1.bf16.msra.mxu0 %v1025
      %1036 = vmatprep.subr.bf16.mxu0 0
      %1037 = vmatpush1.bf16.msra.mxu0 %v1024
      %1038 = vmatprep.subr.bf16.mxu0 0
      %1039 = vmatpush1.bf16.msra.mxu0 %v1023
      %1040 = vmatprep.subr.bf16.mxu0 0
      %1041 = vmatpush1.bf16.msra.mxu0 %v1022
      %1042 = vmatprep.subr.bf16.mxu0 0
      %1043 = vmatpush1.bf16.msra.mxu0 %v1021
      %1044 = vmatprep.subr.bf16.mxu0 0
      %1045 = vmatpush1.bf16.msra.mxu0 %v1020
      %1046 = vmatprep.subr.bf16.mxu0 0
      %1047 = vmatpush1.bf16.msra.mxu0 %v1019
      %1048 = vmatprep.subr.bf16.mxu0 0
      %1049 = vmatpush1.bf16.msra.mxu0 %v1018
      %1050 = vmatprep.subr.bf16.mxu0 0
      %1051 = vmatpush2.bf16.msra.mxu0 0
      %1052 = vmatprep.subr.bf16.mxu0 0
      %1053 = vmatpush2.bf16.msra.mxu0 0
      %1054 = vmatprep.subr.bf16.mxu0 0
      %1055 = vmatpush2.bf16.msra.mxu0 0
      %1056 = vmatprep.subr.bf16.mxu0 0
      %1057 = vmatpush2.bf16.msra.mxu0 0
      %1058 = vmatprep.subr.bf16.mxu0 0
      %1059 = vmatpush2.bf16.msra.mxu0 0
      %1060 = vmatprep.subr.bf16.mxu0 0
      %1061 = vmatpush2.bf16.msra.mxu0 0
      %1062 = vmatprep.subr.bf16.mxu0 0
      %1063 = vmatpush2.bf16.msra.mxu0 0
      %1064 = vmatprep.subr.bf16.mxu0 0
      %1065 = vmatpush2.bf16.msra.mxu0 0
      %1066 = vmatprep.mubr.bf16.mxu0 0
      %1067 = vmatmul.mubr.bf16.gmra.mxu0 %v954
      %v1068 = vpop.f32.mrf.mxu0
      %v1069 = vadd.f32 0.0, %v1068
      %v1070 = vpop.f32.mrf.mxu0
      %v1071 = vpop.f32.mrf.mxu0
      %v1072 = vadd.f32 0.0, %v1071
      %v1073 = vpop.f32.mrf.mxu0
      %1074 = vmatprep.mubr.bf16.mxu0 0
      %1075 = vmatmul.mubr.bf16.gmra.mxu0 %v955
      %v1076 = vpop.f32.mrf.mxu0
      %v1077 = vadd.f32 0.0, %v1076
      %v1078 = vpop.f32.mrf.mxu0
      %v1079 = vpop.f32.mrf.mxu0
      %v1080 = vadd.f32 0.0, %v1079
      %v1081 = vpop.f32.mrf.mxu0
      %1082 = vmatprep.mubr.bf16.mxu0 0
      %1083 = vmatmul.mubr.bf16.gmra.mxu0 %v956
      %v1084 = vpop.f32.mrf.mxu0
      %v1085 = vadd.f32 0.0, %v1084
      %v1086 = vpop.f32.mrf.mxu0
      %v1087 = vpop.f32.mrf.mxu0
      %v1088 = vadd.f32 0.0, %v1087
      %v1089 = vpop.f32.mrf.mxu0
      %1090 = vmatprep.mubr.bf16.mxu0 0
      %1091 = vmatmul.mubr.bf16.gmra.mxu0 %v957
      %v1092 = vpop.f32.mrf.mxu0
      %v1093 = vadd.f32 0.0, %v1092
      %v1094 = vpop.f32.mrf.mxu0
      %v1095 = vpop.f32.mrf.mxu0
      %v1096 = vadd.f32 0.0, %v1095
      %v1097 = vpop.f32.mrf.mxu0
      %1098 = vmatprep.mubr.bf16.mxu0 0
      %1099 = vmatmul.mubr.bf16.gmra.mxu0 %v958
      %v1100 = vpop.f32.mrf.mxu0
      %v1101 = vadd.f32 0.0, %v1100
      %v1102 = vpop.f32.mrf.mxu0
      %v1103 = vpop.f32.mrf.mxu0
      %v1104 = vadd.f32 0.0, %v1103
      %v1105 = vpop.f32.mrf.mxu0
      %1106 = vmatprep.mubr.bf16.mxu0 0
      %1107 = vmatmul.mubr.bf16.gmra.mxu0 %v959
      %v1108 = vpop.f32.mrf.mxu0
      %v1109 = vadd.f32 0.0, %v1108
      %v1110 = vpop.f32.mrf.mxu0
      %v1111 = vpop.f32.mrf.mxu0
      %v1112 = vadd.f32 0.0, %v1111
      %v1113 = vpop.f32.mrf.mxu0
      %1114 = vmatprep.mubr.bf16.mxu0 0
      %1115 = vmatmul.mubr.bf16.gmra.mxu0 %v960
      %v1116 = vpop.f32.mrf.mxu0
      %v1117 = vadd.f32 0.0, %v1116
      %v1118 = vpop.f32.mrf.mxu0
      %v1119 = vpop.f32.mrf.mxu0
      %v1120 = vadd.f32 0.0, %v1119
      %v1121 = vpop.f32.mrf.mxu0
      %1122 = vmatprep.mubr.bf16.mxu0 0
      %1123 = vmatmul.mubr.bf16.gmra.mxu0 %v961
      %v1124 = vpop.f32.mrf.mxu0
      %v1125 = vadd.f32 0.0, %v1124
      %v1126 = vpop.f32.mrf.mxu0
      %v1127 = vpop.f32.mrf.mxu0
      %v1128 = vadd.f32 0.0, %v1127
      %v1129 = vpop.f32.mrf.mxu0
      %1130 = vmatprep.mubr.bf16.mxu0 0
      %1131 = vmatmul.mubr.bf16.gmra.mxu0 %v962
      %v1132 = vpop.f32.mrf.mxu0
      %v1133 = vadd.f32 0.0, %v1132
      %v1134 = vpop.f32.mrf.mxu0
      %v1135 = vpop.f32.mrf.mxu0
      %v1136 = vadd.f32 0.0, %v1135
      %v1137 = vpop.f32.mrf.mxu0
      %1138 = vmatprep.mubr.bf16.mxu0 0
      %1139 = vmatmul.mubr.bf16.gmra.mxu0 %v963
      %v1140 = vpop.f32.mrf.mxu0
      %v1141 = vadd.f32 0.0, %v1140
      %v1142 = vpop.f32.mrf.mxu0
      %v1143 = vpop.f32.mrf.mxu0
      %v1144 = vadd.f32 0.0, %v1143
      %v1145 = vpop.f32.mrf.mxu0
      %1146 = vmatprep.mubr.bf16.mxu0 0
      %1147 = vmatmul.mubr.bf16.gmra.mxu0 %v964
      %v1148 = vpop.f32.mrf.mxu0
      %v1149 = vadd.f32 0.0, %v1148
      %v1150 = vpop.f32.mrf.mxu0
      %v1151 = vpop.f32.mrf.mxu0
      %v1152 = vadd.f32 0.0, %v1151
      %v1153 = vpop.f32.mrf.mxu0
      %1154 = vmatprep.mubr.bf16.mxu0 0
      %1155 = vmatmul.mubr.bf16.gmra.mxu0 %v965
      %v1156 = vpop.f32.mrf.mxu0
      %v1157 = vadd.f32 0.0, %v1156
      %v1158 = vpop.f32.mrf.mxu0
      %v1159 = vpop.f32.mrf.mxu0
      %v1160 = vadd.f32 0.0, %v1159
      %v1161 = vpop.f32.mrf.mxu0
      %1162 = vmatprep.mubr.bf16.mxu0 0
      %1163 = vmatmul.mubr.bf16.gmra.mxu0 %v966
      %v1164 = vpop.f32.mrf.mxu0
      %v1165 = vadd.f32 0.0, %v1164
      %v1166 = vpop.f32.mrf.mxu0
      %v1167 = vpop.f32.mrf.mxu0
      %v1168 = vadd.f32 0.0, %v1167
      %v1169 = vpop.f32.mrf.mxu0
      %1170 = vmatprep.mubr.bf16.mxu0 0
      %1171 = vmatmul.mubr.bf16.gmra.mxu0 %v967
      %v1172 = vpop.f32.mrf.mxu0
      %v1173 = vadd.f32 0.0, %v1172
      %v1174 = vpop.f32.mrf.mxu0
      %v1175 = vpop.f32.mrf.mxu0
      %v1176 = vadd.f32 0.0, %v1175
      %v1177 = vpop.f32.mrf.mxu0
      %1178 = vmatprep.mubr.bf16.mxu0 0
      %1179 = vmatmul.mubr.bf16.gmra.mxu0 %v968
      %v1180 = vpop.f32.mrf.mxu0
      %v1181 = vadd.f32 0.0, %v1180
      %v1182 = vpop.f32.mrf.mxu0
      %v1183 = vpop.f32.mrf.mxu0
      %v1184 = vadd.f32 0.0, %v1183
      %v1185 = vpop.f32.mrf.mxu0
      %1186 = vmatprep.mubr.bf16.mxu0 0
      %1187 = vmatmul.mubr.bf16.gmra.mxu0 %v969
      %v1188 = vpop.f32.mrf.mxu0
      %v1189 = vadd.f32 0.0, %v1188
      %v1190 = vpop.f32.mrf.mxu0
      %v1191 = vpop.f32.mrf.mxu0
      %v1192 = vadd.f32 0.0, %v1191
      %v1193 = vpop.f32.mrf.mxu0
      %1194 = vdwg.mxu0
      %v1195 = vadd.f32 %v796, %v1069
      %v1196 = vadd.f32 %v799, %v1072
      %v1197 = vadd.f32 %v804, %v1077
      %v1198 = vadd.f32 %v807, %v1080
      %v1199 = vadd.f32 %v812, %v1085
      %v1200 = vadd.f32 %v815, %v1088
      %v1201 = vadd.f32 %v820, %v1093
      %v1202 = vadd.f32 %v823, %v1096
      %v1203 = vadd.f32 %v828, %v1101
      %v1204 = vadd.f32 %v831, %v1104
      %v1205 = vadd.f32 %v836, %v1109
      %v1206 = vadd.f32 %v839, %v1112
      %v1207 = vadd.f32 %v844, %v1117
      %v1208 = vadd.f32 %v847, %v1120
      %v1209 = vadd.f32 %v852, %v1125
      %v1210 = vadd.f32 %v855, %v1128
      %v1211 = vadd.f32 %v860, %v1133
      %v1212 = vadd.f32 %v863, %v1136
      %v1213 = vadd.f32 %v868, %v1141
      %v1214 = vadd.f32 %v871, %v1144
      %v1215 = vadd.f32 %v876, %v1149
      %v1216 = vadd.f32 %v879, %v1152
      %v1217 = vadd.f32 %v884, %v1157
      %v1218 = vadd.f32 %v887, %v1160
      %v1219 = vadd.f32 %v892, %v1165
      %v1220 = vadd.f32 %v895, %v1168
      %v1221 = vadd.f32 %v900, %v1173
      %v1222 = vadd.f32 %v903, %v1176
      %v1223 = vadd.f32 %v908, %v1181
      %v1224 = vadd.f32 %v911, %v1184
      %v1225 = vadd.f32 %v916, %v1189
      %v1226 = vadd.f32 %v919, %v1192
      %v1227 = vld [vmem:[%s343] sm:$0xff]
      %v1228 = vld [vmem:[%s343 + $0x8] sm:$0xff]
      %v1229 = vld [vmem:[%s343 + $0x18] sm:$0xff]
      %v1230 = vld [vmem:[%s343 + $0x20] sm:$0xff]
      %v1231 = vld [vmem:[%s343 + $0x30] sm:$0xff]
      %v1232 = vld [vmem:[%s343 + $0x38] sm:$0xff]
      %v1233 = vld [vmem:[%s343 + $0x48] sm:$0xff]
      %v1234 = vld [vmem:[%s343 + $0x50] sm:$0xff]
      %v1235 = vld [vmem:[%s343 + $0x60] sm:$0xff]
      %v1236 = vld [vmem:[%s343 + $0x68] sm:$0xff]
      %v1237 = vld [vmem:[%s343 + $0x78] sm:$0xff]
      %v1238 = vld [vmem:[%s343 + $0x80] sm:$0xff]
      %v1239 = vld [vmem:[%s343 + $0x90] sm:$0xff]
      %v1240 = vld [vmem:[%s343 + $0x98] sm:$0xff]
      %v1241 = vld [vmem:[%s343 + $0xa8] sm:$0xff]
      %v1242 = vld [vmem:[%s343 + $0xb0] sm:$0xff]
      %v1243 = vld [vmem:[%s343 + $0xc0] sm:$0xff]
      %v1244 = vld [vmem:[%s343 + $0xc8] sm:$0xff]
      %v1245 = vld [vmem:[%s343 + $0xd8] sm:$0xff]
      %v1246 = vld [vmem:[%s343 + $0xe0] sm:$0xff]
      %v1247 = vld [vmem:[%s343 + $0xf0] sm:$0xff]
      %v1248 = vld [vmem:[%s343 + $0xf8] sm:$0xff]
      %v1249 = vld [vmem:[%s343 + $0x108] sm:$0xff]
      %v1250 = vld [vmem:[%s343 + $0x110] sm:$0xff]
      %v1251 = vld [vmem:[%s343 + $0x120] sm:$0xff]
      %v1252 = vld [vmem:[%s343 + $0x128] sm:$0xff]
      %v1253 = vld [vmem:[%s343 + $0x138] sm:$0xff]
      %v1254 = vld [vmem:[%s343 + $0x140] sm:$0xff]
      %v1255 = vld [vmem:[%s343 + $0x150] sm:$0xff]
      %v1256 = vld [vmem:[%s343 + $0x158] sm:$0xff]
      %v1257 = vld [vmem:[%s343 + $0x168] sm:$0xff]
      %v1258 = vld [vmem:[%s343 + $0x170] sm:$0xff]
      %v1259 = vpack.c.bf16 %v1228, %v1227
      %v1260 = vpack.c.bf16 %v1230, %v1229
      %v1261 = vpack.c.bf16 %v1232, %v1231
      %v1262 = vpack.c.bf16 %v1234, %v1233
      %v1263 = vpack.c.bf16 %v1236, %v1235
      %v1264 = vpack.c.bf16 %v1238, %v1237
      %v1265 = vpack.c.bf16 %v1240, %v1239
      %v1266 = vpack.c.bf16 %v1242, %v1241
      %v1267 = vpack.c.bf16 %v1244, %v1243
      %v1268 = vpack.c.bf16 %v1246, %v1245
      %v1269 = vpack.c.bf16 %v1248, %v1247
      %v1270 = vpack.c.bf16 %v1250, %v1249
      %v1271 = vpack.c.bf16 %v1252, %v1251
      %v1272 = vpack.c.bf16 %v1254, %v1253
      %v1273 = vpack.c.bf16 %v1256, %v1255
      %v1274 = vpack.c.bf16 %v1258, %v1257
      %v1275 = vld [vmem:[%s1 + $0xc0] sm:$0xf]
      %v1276 = vld [vmem:[%s1 + $0xc4] sm:$0xf]
      %v1277 = vld [vmem:[%s1 + $0xc8] sm:$0xf]
      %v1278 = vld [vmem:[%s1 + $0xcc] sm:$0xf]
      %v1279 = vld [vmem:[%s1 + $0xd0] sm:$0xf]
      %v1280 = vld [vmem:[%s1 + $0xd4] sm:$0xf]
      %v1281 = vld [vmem:[%s1 + $0xd8] sm:$0xf]
      %v1282 = vld [vmem:[%s1 + $0xdc] sm:$0xf]
      %v1283 = vld [vmem:[%s1 + $0xe0] sm:$0xf]
      %v1284 = vld [vmem:[%s1 + $0xe4] sm:$0xf]
      %v1285 = vld [vmem:[%s1 + $0xe8] sm:$0xf]
      %v1286 = vld [vmem:[%s1 + $0xec] sm:$0xf]
      %v1287 = vld [vmem:[%s1 + $0xf0] sm:$0xf]
      %v1288 = vld [vmem:[%s1 + $0xf4] sm:$0xf]
      %v1289 = vld [vmem:[%s1 + $0xf8] sm:$0xf]
      %v1290 = vld [vmem:[%s1 + $0xfc] sm:$0xf]
      %v1307 = vunpack.c.l.b16 %v1275
      %v1308 = vunpack.c.l.b16 %v1276
      %v1309 = vunpack.c.l.b16 %v1277
      %v1310 = vunpack.c.l.b16 %v1278
      %v1311 = vunpack.c.l.b16 %v1279
      %v1312 = vunpack.c.l.b16 %v1280
      %v1313 = vunpack.c.l.b16 %v1281
      %v1314 = vunpack.c.l.b16 %v1282
      %v1315 = vunpack.c.l.b16 %v1283
      %v1316 = vunpack.c.l.b16 %v1284
      %v1317 = vunpack.c.l.b16 %v1285
      %v1318 = vunpack.c.l.b16 %v1286
      %v1319 = vunpack.c.l.b16 %v1287
      %v1320 = vunpack.c.l.b16 %v1288
      %v1321 = vunpack.c.l.b16 %v1289
      %v1322 = vunpack.c.l.b16 %v1290
      %v1323 = vpack.c.b16 %v1308, %v1307
      %v1324 = vpack.c.b16 %v1310, %v1309
      %v1325 = vpack.c.b16 %v1312, %v1311
      %v1326 = vpack.c.b16 %v1314, %v1313
      %v1327 = vpack.c.b16 %v1316, %v1315
      %v1328 = vpack.c.b16 %v1318, %v1317
      %v1329 = vpack.c.b16 %v1320, %v1319
      %v1330 = vpack.c.b16 %v1322, %v1321
      %1339 = vmatprep.subr.bf16.mxu0 0
      %1340 = vmatpush1.bf16.msra.mxu0 %v1330
      %1341 = vmatprep.subr.bf16.mxu0 0
      %1342 = vmatpush1.bf16.msra.mxu0 %v1329
      %1343 = vmatprep.subr.bf16.mxu0 0
      %1344 = vmatpush1.bf16.msra.mxu0 %v1328
      %1345 = vmatprep.subr.bf16.mxu0 0
      %1346 = vmatpush1.bf16.msra.mxu0 %v1327
      %1347 = vmatprep.subr.bf16.mxu0 0
      %1348 = vmatpush1.bf16.msra.mxu0 %v1326
      %1349 = vmatprep.subr.bf16.mxu0 0
      %1350 = vmatpush1.bf16.msra.mxu0 %v1325
      %1351 = vmatprep.subr.bf16.mxu0 0
      %1352 = vmatpush1.bf16.msra.mxu0 %v1324
      %1353 = vmatprep.subr.bf16.mxu0 0
      %1354 = vmatpush1.bf16.msra.mxu0 %v1323
      %1355 = vmatprep.subr.bf16.mxu0 0
      %1356 = vmatpush2.bf16.msra.mxu0 0
      %1357 = vmatprep.subr.bf16.mxu0 0
      %1358 = vmatpush2.bf16.msra.mxu0 0
      %1359 = vmatprep.subr.bf16.mxu0 0
      %1360 = vmatpush2.bf16.msra.mxu0 0
      %1361 = vmatprep.subr.bf16.mxu0 0
      %1362 = vmatpush2.bf16.msra.mxu0 0
      %1363 = vmatprep.subr.bf16.mxu0 0
      %1364 = vmatpush2.bf16.msra.mxu0 0
      %1365 = vmatprep.subr.bf16.mxu0 0
      %1366 = vmatpush2.bf16.msra.mxu0 0
      %1367 = vmatprep.subr.bf16.mxu0 0
      %1368 = vmatpush2.bf16.msra.mxu0 0
      %1369 = vmatprep.subr.bf16.mxu0 0
      %1370 = vmatpush2.bf16.msra.mxu0 0
      %1371 = vmatprep.mubr.bf16.mxu0 0
      %1372 = vmatmul.mubr.bf16.gmra.mxu0 %v1259
      %v1373 = vpop.f32.mrf.mxu0
      %v1374 = vadd.f32 0.0, %v1373
      %v1375 = vpop.f32.mrf.mxu0
      %v1376 = vpop.f32.mrf.mxu0
      %v1377 = vadd.f32 0.0, %v1376
      %v1378 = vpop.f32.mrf.mxu0
      %1379 = vmatprep.mubr.bf16.mxu0 0
      %1380 = vmatmul.mubr.bf16.gmra.mxu0 %v1260
      %v1381 = vpop.f32.mrf.mxu0
      %v1382 = vadd.f32 0.0, %v1381
      %v1383 = vpop.f32.mrf.mxu0
      %v1384 = vpop.f32.mrf.mxu0
      %v1385 = vadd.f32 0.0, %v1384
      %v1386 = vpop.f32.mrf.mxu0
      %1387 = vmatprep.mubr.bf16.mxu0 0
      %1388 = vmatmul.mubr.bf16.gmra.mxu0 %v1261
      %v1389 = vpop.f32.mrf.mxu0
      %v1390 = vadd.f32 0.0, %v1389
      %v1391 = vpop.f32.mrf.mxu0
      %v1392 = vpop.f32.mrf.mxu0
      %v1393 = vadd.f32 0.0, %v1392
      %v1394 = vpop.f32.mrf.mxu0
      %1395 = vmatprep.mubr.bf16.mxu0 0
      %1396 = vmatmul.mubr.bf16.gmra.mxu0 %v1262
      %v1397 = vpop.f32.mrf.mxu0
      %v1398 = vadd.f32 0.0, %v1397
      %v1399 = vpop.f32.mrf.mxu0
      %v1400 = vpop.f32.mrf.mxu0
      %v1401 = vadd.f32 0.0, %v1400
      %v1402 = vpop.f32.mrf.mxu0
      %1403 = vmatprep.mubr.bf16.mxu0 0
      %1404 = vmatmul.mubr.bf16.gmra.mxu0 %v1263
      %v1405 = vpop.f32.mrf.mxu0
      %v1406 = vadd.f32 0.0, %v1405
      %v1407 = vpop.f32.mrf.mxu0
      %v1408 = vpop.f32.mrf.mxu0
      %v1409 = vadd.f32 0.0, %v1408
      %v1410 = vpop.f32.mrf.mxu0
      %1411 = vmatprep.mubr.bf16.mxu0 0
      %1412 = vmatmul.mubr.bf16.gmra.mxu0 %v1264
      %v1413 = vpop.f32.mrf.mxu0
      %v1414 = vadd.f32 0.0, %v1413
      %v1415 = vpop.f32.mrf.mxu0
      %v1416 = vpop.f32.mrf.mxu0
      %v1417 = vadd.f32 0.0, %v1416
      %v1418 = vpop.f32.mrf.mxu0
      %1419 = vmatprep.mubr.bf16.mxu0 0
      %1420 = vmatmul.mubr.bf16.gmra.mxu0 %v1265
      %v1421 = vpop.f32.mrf.mxu0
      %v1422 = vadd.f32 0.0, %v1421
      %v1423 = vpop.f32.mrf.mxu0
      %v1424 = vpop.f32.mrf.mxu0
      %v1425 = vadd.f32 0.0, %v1424
      %v1426 = vpop.f32.mrf.mxu0
      %1427 = vmatprep.mubr.bf16.mxu0 0
      %1428 = vmatmul.mubr.bf16.gmra.mxu0 %v1266
      %v1429 = vpop.f32.mrf.mxu0
      %v1430 = vadd.f32 0.0, %v1429
      %v1431 = vpop.f32.mrf.mxu0
      %v1432 = vpop.f32.mrf.mxu0
      %v1433 = vadd.f32 0.0, %v1432
      %v1434 = vpop.f32.mrf.mxu0
      %1435 = vmatprep.mubr.bf16.mxu0 0
      %1436 = vmatmul.mubr.bf16.gmra.mxu0 %v1267
      %v1437 = vpop.f32.mrf.mxu0
      %v1438 = vadd.f32 0.0, %v1437
      %v1439 = vpop.f32.mrf.mxu0
      %v1440 = vpop.f32.mrf.mxu0
      %v1441 = vadd.f32 0.0, %v1440
      %v1442 = vpop.f32.mrf.mxu0
      %1443 = vmatprep.mubr.bf16.mxu0 0
      %1444 = vmatmul.mubr.bf16.gmra.mxu0 %v1268
      %v1445 = vpop.f32.mrf.mxu0
      %v1446 = vadd.f32 0.0, %v1445
      %v1447 = vpop.f32.mrf.mxu0
      %v1448 = vpop.f32.mrf.mxu0
      %v1449 = vadd.f32 0.0, %v1448
      %v1450 = vpop.f32.mrf.mxu0
      %1451 = vmatprep.mubr.bf16.mxu0 0
      %1452 = vmatmul.mubr.bf16.gmra.mxu0 %v1269
      %v1453 = vpop.f32.mrf.mxu0
      %v1454 = vadd.f32 0.0, %v1453
      %v1455 = vpop.f32.mrf.mxu0
      %v1456 = vpop.f32.mrf.mxu0
      %v1457 = vadd.f32 0.0, %v1456
      %v1458 = vpop.f32.mrf.mxu0
      %1459 = vmatprep.mubr.bf16.mxu0 0
      %1460 = vmatmul.mubr.bf16.gmra.mxu0 %v1270
      %v1461 = vpop.f32.mrf.mxu0
      %v1462 = vadd.f32 0.0, %v1461
      %v1463 = vpop.f32.mrf.mxu0
      %v1464 = vpop.f32.mrf.mxu0
      %v1465 = vadd.f32 0.0, %v1464
      %v1466 = vpop.f32.mrf.mxu0
      %1467 = vmatprep.mubr.bf16.mxu0 0
      %1468 = vmatmul.mubr.bf16.gmra.mxu0 %v1271
      %v1469 = vpop.f32.mrf.mxu0
      %v1470 = vadd.f32 0.0, %v1469
      %v1471 = vpop.f32.mrf.mxu0
      %v1472 = vpop.f32.mrf.mxu0
      %v1473 = vadd.f32 0.0, %v1472
      %v1474 = vpop.f32.mrf.mxu0
      %1475 = vmatprep.mubr.bf16.mxu0 0
      %1476 = vmatmul.mubr.bf16.gmra.mxu0 %v1272
      %v1477 = vpop.f32.mrf.mxu0
      %v1478 = vadd.f32 0.0, %v1477
      %v1479 = vpop.f32.mrf.mxu0
      %v1480 = vpop.f32.mrf.mxu0
      %v1481 = vadd.f32 0.0, %v1480
      %v1482 = vpop.f32.mrf.mxu0
      %1483 = vmatprep.mubr.bf16.mxu0 0
      %1484 = vmatmul.mubr.bf16.gmra.mxu0 %v1273
      %v1485 = vpop.f32.mrf.mxu0
      %v1486 = vadd.f32 0.0, %v1485
      %v1487 = vpop.f32.mrf.mxu0
      %v1488 = vpop.f32.mrf.mxu0
      %v1489 = vadd.f32 0.0, %v1488
      %v1490 = vpop.f32.mrf.mxu0
      %1491 = vmatprep.mubr.bf16.mxu0 0
      %1492 = vmatmul.mubr.bf16.gmra.mxu0 %v1274
      %v1493 = vpop.f32.mrf.mxu0
      %v1494 = vadd.f32 0.0, %v1493
      %v1495 = vpop.f32.mrf.mxu0
      %v1496 = vpop.f32.mrf.mxu0
      %v1497 = vadd.f32 0.0, %v1496
      %v1498 = vpop.f32.mrf.mxu0
      %1499 = vdwg.mxu0
      %v1500 = vadd.f32 %v1195, %v1374
      %v1501 = vadd.f32 %v1196, %v1377
      %v1502 = vadd.f32 %v1197, %v1382
      %v1503 = vadd.f32 %v1198, %v1385
      %v1504 = vadd.f32 %v1199, %v1390
      %v1505 = vadd.f32 %v1200, %v1393
      %v1506 = vadd.f32 %v1201, %v1398
      %v1507 = vadd.f32 %v1202, %v1401
      %v1508 = vadd.f32 %v1203, %v1406
      %v1509 = vadd.f32 %v1204, %v1409
      %v1510 = vadd.f32 %v1205, %v1414
      %v1511 = vadd.f32 %v1206, %v1417
      %v1512 = vadd.f32 %v1207, %v1422
      %v1513 = vadd.f32 %v1208, %v1425
      %v1514 = vadd.f32 %v1209, %v1430
      %v1515 = vadd.f32 %v1210, %v1433
      %v1516 = vadd.f32 %v1211, %v1438
      %v1517 = vadd.f32 %v1212, %v1441
      %v1518 = vadd.f32 %v1213, %v1446
      %v1519 = vadd.f32 %v1214, %v1449
      %v1520 = vadd.f32 %v1215, %v1454
      %v1521 = vadd.f32 %v1216, %v1457
      %v1522 = vadd.f32 %v1217, %v1462
      %v1523 = vadd.f32 %v1218, %v1465
      %v1524 = vadd.f32 %v1219, %v1470
      %v1525 = vadd.f32 %v1220, %v1473
      %v1526 = vadd.f32 %v1221, %v1478
      %v1527 = vadd.f32 %v1222, %v1481
      %v1528 = vadd.f32 %v1223, %v1486
      %v1529 = vadd.f32 %v1224, %v1489
      %v1530 = vadd.f32 %v1225, %v1494
      %v1531 = vadd.f32 %v1226, %v1497
      %v1532 = vld [vmem:[%s343 + $0x1] sm:$0xff]
      %v1533 = vld [vmem:[%s343 + $0x9] sm:$0xff]
      %v1534 = vld [vmem:[%s343 + $0x19] sm:$0xff]
      %v1535 = vld [vmem:[%s343 + $0x21] sm:$0xff]
      %v1536 = vld [vmem:[%s343 + $0x31] sm:$0xff]
      %v1537 = vld [vmem:[%s343 + $0x39] sm:$0xff]
      %v1538 = vld [vmem:[%s343 + $0x49] sm:$0xff]
      %v1539 = vld [vmem:[%s343 + $0x51] sm:$0xff]
      %v1540 = vld [vmem:[%s343 + $0x61] sm:$0xff]
      %v1541 = vld [vmem:[%s343 + $0x69] sm:$0xff]
      %v1542 = vld [vmem:[%s343 + $0x79] sm:$0xff]
      %v1543 = vld [vmem:[%s343 + $0x81] sm:$0xff]
      %v1544 = vld [vmem:[%s343 + $0x91] sm:$0xff]
      %v1545 = vld [vmem:[%s343 + $0x99] sm:$0xff]
      %v1546 = vld [vmem:[%s343 + $0xa9] sm:$0xff]
      %v1547 = vld [vmem:[%s343 + $0xb1] sm:$0xff]
      %v1548 = vld [vmem:[%s343 + $0xc1] sm:$0xff]
      %v1549 = vld [vmem:[%s343 + $0xc9] sm:$0xff]
      %v1550 = vld [vmem:[%s343 + $0xd9] sm:$0xff]
      %v1551 = vld [vmem:[%s343 + $0xe1] sm:$0xff]
      %v1552 = vld [vmem:[%s343 + $0xf1] sm:$0xff]
      %v1553 = vld [vmem:[%s343 + $0xf9] sm:$0xff]
      %v1554 = vld [vmem:[%s343 + $0x109] sm:$0xff]
      %v1555 = vld [vmem:[%s343 + $0x111] sm:$0xff]
      %v1556 = vld [vmem:[%s343 + $0x121] sm:$0xff]
      %v1557 = vld [vmem:[%s343 + $0x129] sm:$0xff]
      %v1558 = vld [vmem:[%s343 + $0x139] sm:$0xff]
      %v1559 = vld [vmem:[%s343 + $0x141] sm:$0xff]
      %v1560 = vld [vmem:[%s343 + $0x151] sm:$0xff]
      %v1561 = vld [vmem:[%s343 + $0x159] sm:$0xff]
      %v1562 = vld [vmem:[%s343 + $0x169] sm:$0xff]
      %v1563 = vld [vmem:[%s343 + $0x171] sm:$0xff]
      %v1564 = vpack.c.bf16 %v1533, %v1532
      %v1565 = vpack.c.bf16 %v1535, %v1534
      %v1566 = vpack.c.bf16 %v1537, %v1536
      %v1567 = vpack.c.bf16 %v1539, %v1538
      %v1568 = vpack.c.bf16 %v1541, %v1540
      %v1569 = vpack.c.bf16 %v1543, %v1542
      %v1570 = vpack.c.bf16 %v1545, %v1544
      %v1571 = vpack.c.bf16 %v1547, %v1546
      %v1572 = vpack.c.bf16 %v1549, %v1548
      %v1573 = vpack.c.bf16 %v1551, %v1550
      %v1574 = vpack.c.bf16 %v1553, %v1552
      %v1575 = vpack.c.bf16 %v1555, %v1554
      %v1576 = vpack.c.bf16 %v1557, %v1556
      %v1577 = vpack.c.bf16 %v1559, %v1558
      %v1578 = vpack.c.bf16 %v1561, %v1560
      %v1579 = vpack.c.bf16 %v1563, %v1562
      %v1580 = vld [vmem:[%s1 + $0x100] sm:$0xf]
      %v1581 = vld [vmem:[%s1 + $0x104] sm:$0xf]
      %v1582 = vld [vmem:[%s1 + $0x108] sm:$0xf]
      %v1583 = vld [vmem:[%s1 + $0x10c] sm:$0xf]
      %v1584 = vld [vmem:[%s1 + $0x110] sm:$0xf]
      %v1585 = vld [vmem:[%s1 + $0x114] sm:$0xf]
      %v1586 = vld [vmem:[%s1 + $0x118] sm:$0xf]
      %v1587 = vld [vmem:[%s1 + $0x11c] sm:$0xf]
      %v1588 = vld [vmem:[%s1 + $0x120] sm:$0xf]
      %v1589 = vld [vmem:[%s1 + $0x124] sm:$0xf]
      %v1590 = vld [vmem:[%s1 + $0x128] sm:$0xf]
      %v1591 = vld [vmem:[%s1 + $0x12c] sm:$0xf]
      %v1592 = vld [vmem:[%s1 + $0x130] sm:$0xf]
      %v1593 = vld [vmem:[%s1 + $0x134] sm:$0xf]
      %v1594 = vld [vmem:[%s1 + $0x138] sm:$0xf]
      %v1595 = vld [vmem:[%s1 + $0x13c] sm:$0xf]
      %v1612 = vunpack.c.l.b16 %v1580
      %v1613 = vunpack.c.l.b16 %v1581
      %v1614 = vunpack.c.l.b16 %v1582
      %v1615 = vunpack.c.l.b16 %v1583
      %v1616 = vunpack.c.l.b16 %v1584
      %v1617 = vunpack.c.l.b16 %v1585
      %v1618 = vunpack.c.l.b16 %v1586
      %v1619 = vunpack.c.l.b16 %v1587
      %v1620 = vunpack.c.l.b16 %v1588
      %v1621 = vunpack.c.l.b16 %v1589
      %v1622 = vunpack.c.l.b16 %v1590
      %v1623 = vunpack.c.l.b16 %v1591
      %v1624 = vunpack.c.l.b16 %v1592
      %v1625 = vunpack.c.l.b16 %v1593
      %v1626 = vunpack.c.l.b16 %v1594
      %v1627 = vunpack.c.l.b16 %v1595
      %v1628 = vpack.c.b16 %v1613, %v1612
      %v1629 = vpack.c.b16 %v1615, %v1614
      %v1630 = vpack.c.b16 %v1617, %v1616
      %v1631 = vpack.c.b16 %v1619, %v1618
      %v1632 = vpack.c.b16 %v1621, %v1620
      %v1633 = vpack.c.b16 %v1623, %v1622
      %v1634 = vpack.c.b16 %v1625, %v1624
      %v1635 = vpack.c.b16 %v1627, %v1626
      %1644 = vmatprep.subr.bf16.mxu0 0
      %1645 = vmatpush1.bf16.msra.mxu0 %v1635
      %1646 = vmatprep.subr.bf16.mxu0 0
      %1647 = vmatpush1.bf16.msra.mxu0 %v1634
      %1648 = vmatprep.subr.bf16.mxu0 0
      %1649 = vmatpush1.bf16.msra.mxu0 %v1633
      %1650 = vmatprep.subr.bf16.mxu0 0
      %1651 = vmatpush1.bf16.msra.mxu0 %v1632
      %1652 = vmatprep.subr.bf16.mxu0 0
      %1653 = vmatpush1.bf16.msra.mxu0 %v1631
      %1654 = vmatprep.subr.bf16.mxu0 0
      %1655 = vmatpush1.bf16.msra.mxu0 %v1630
      %1656 = vmatprep.subr.bf16.mxu0 0
      %1657 = vmatpush1.bf16.msra.mxu0 %v1629
      %1658 = vmatprep.subr.bf16.mxu0 0
      %1659 = vmatpush1.bf16.msra.mxu0 %v1628
      %1660 = vmatprep.subr.bf16.mxu0 0
      %1661 = vmatpush2.bf16.msra.mxu0 0
      %1662 = vmatprep.subr.bf16.mxu0 0
      %1663 = vmatpush2.bf16.msra.mxu0 0
      %1664 = vmatprep.subr.bf16.mxu0 0
      %1665 = vmatpush2.bf16.msra.mxu0 0
      %1666 = vmatprep.subr.bf16.mxu0 0
      %1667 = vmatpush2.bf16.msra.mxu0 0
      %1668 = vmatprep.subr.bf16.mxu0 0
      %1669 = vmatpush2.bf16.msra.mxu0 0
      %1670 = vmatprep.subr.bf16.mxu0 0
      %1671 = vmatpush2.bf16.msra.mxu0 0
      %1672 = vmatprep.subr.bf16.mxu0 0
      %1673 = vmatpush2.bf16.msra.mxu0 0
      %1674 = vmatprep.subr.bf16.mxu0 0
      %1675 = vmatpush2.bf16.msra.mxu0 0
      %1676 = vmatprep.mubr.bf16.mxu0 0
      %1677 = vmatmul.mubr.bf16.gmra.mxu0 %v1564
      %v1678 = vpop.f32.mrf.mxu0
      %v1679 = vadd.f32 0.0, %v1678
      %v1680 = vpop.f32.mrf.mxu0
      %v1681 = vpop.f32.mrf.mxu0
      %v1682 = vadd.f32 0.0, %v1681
      %v1683 = vpop.f32.mrf.mxu0
      %1684 = vmatprep.mubr.bf16.mxu0 0
      %1685 = vmatmul.mubr.bf16.gmra.mxu0 %v1565
      %v1686 = vpop.f32.mrf.mxu0
      %v1687 = vadd.f32 0.0, %v1686
      %v1688 = vpop.f32.mrf.mxu0
      %v1689 = vpop.f32.mrf.mxu0
      %v1690 = vadd.f32 0.0, %v1689
      %v1691 = vpop.f32.mrf.mxu0
      %1692 = vmatprep.mubr.bf16.mxu0 0
      %1693 = vmatmul.mubr.bf16.gmra.mxu0 %v1566
      %v1694 = vpop.f32.mrf.mxu0
      %v1695 = vadd.f32 0.0, %v1694
      %v1696 = vpop.f32.mrf.mxu0
      %v1697 = vpop.f32.mrf.mxu0
      %v1698 = vadd.f32 0.0, %v1697
      %v1699 = vpop.f32.mrf.mxu0
      %1700 = vmatprep.mubr.bf16.mxu0 0
      %1701 = vmatmul.mubr.bf16.gmra.mxu0 %v1567
      %v1702 = vpop.f32.mrf.mxu0
      %v1703 = vadd.f32 0.0, %v1702
      %v1704 = vpop.f32.mrf.mxu0
      %v1705 = vpop.f32.mrf.mxu0
      %v1706 = vadd.f32 0.0, %v1705
      %v1707 = vpop.f32.mrf.mxu0
      %1708 = vmatprep.mubr.bf16.mxu0 0
      %1709 = vmatmul.mubr.bf16.gmra.mxu0 %v1568
      %v1710 = vpop.f32.mrf.mxu0
      %v1711 = vadd.f32 0.0, %v1710
      %v1712 = vpop.f32.mrf.mxu0
      %v1713 = vpop.f32.mrf.mxu0
      %v1714 = vadd.f32 0.0, %v1713
      %v1715 = vpop.f32.mrf.mxu0
      %1716 = vmatprep.mubr.bf16.mxu0 0
      %1717 = vmatmul.mubr.bf16.gmra.mxu0 %v1569
      %v1718 = vpop.f32.mrf.mxu0
      %v1719 = vadd.f32 0.0, %v1718
      %v1720 = vpop.f32.mrf.mxu0
      %v1721 = vpop.f32.mrf.mxu0
      %v1722 = vadd.f32 0.0, %v1721
      %v1723 = vpop.f32.mrf.mxu0
      %1724 = vmatprep.mubr.bf16.mxu0 0
      %1725 = vmatmul.mubr.bf16.gmra.mxu0 %v1570
      %v1726 = vpop.f32.mrf.mxu0
      %v1727 = vadd.f32 0.0, %v1726
      %v1728 = vpop.f32.mrf.mxu0
      %v1729 = vpop.f32.mrf.mxu0
      %v1730 = vadd.f32 0.0, %v1729
      %v1731 = vpop.f32.mrf.mxu0
      %1732 = vmatprep.mubr.bf16.mxu0 0
      %1733 = vmatmul.mubr.bf16.gmra.mxu0 %v1571
      %v1734 = vpop.f32.mrf.mxu0
      %v1735 = vadd.f32 0.0, %v1734
      %v1736 = vpop.f32.mrf.mxu0
      %v1737 = vpop.f32.mrf.mxu0
      %v1738 = vadd.f32 0.0, %v1737
      %v1739 = vpop.f32.mrf.mxu0
      %1740 = vmatprep.mubr.bf16.mxu0 0
      %1741 = vmatmul.mubr.bf16.gmra.mxu0 %v1572
      %v1742 = vpop.f32.mrf.mxu0
      %v1743 = vadd.f32 0.0, %v1742
      %v1744 = vpop.f32.mrf.mxu0
      %v1745 = vpop.f32.mrf.mxu0
      %v1746 = vadd.f32 0.0, %v1745
      %v1747 = vpop.f32.mrf.mxu0
      %1748 = vmatprep.mubr.bf16.mxu0 0
      %1749 = vmatmul.mubr.bf16.gmra.mxu0 %v1573
      %v1750 = vpop.f32.mrf.mxu0
      %v1751 = vadd.f32 0.0, %v1750
      %v1752 = vpop.f32.mrf.mxu0
      %v1753 = vpop.f32.mrf.mxu0
      %v1754 = vadd.f32 0.0, %v1753
      %v1755 = vpop.f32.mrf.mxu0
      %1756 = vmatprep.mubr.bf16.mxu0 0
      %1757 = vmatmul.mubr.bf16.gmra.mxu0 %v1574
      %v1758 = vpop.f32.mrf.mxu0
      %v1759 = vadd.f32 0.0, %v1758
      %v1760 = vpop.f32.mrf.mxu0
      %v1761 = vpop.f32.mrf.mxu0
      %v1762 = vadd.f32 0.0, %v1761
      %v1763 = vpop.f32.mrf.mxu0
      %1764 = vmatprep.mubr.bf16.mxu0 0
      %1765 = vmatmul.mubr.bf16.gmra.mxu0 %v1575
      %v1766 = vpop.f32.mrf.mxu0
      %v1767 = vadd.f32 0.0, %v1766
      %v1768 = vpop.f32.mrf.mxu0
      %v1769 = vpop.f32.mrf.mxu0
      %v1770 = vadd.f32 0.0, %v1769
      %v1771 = vpop.f32.mrf.mxu0
      %1772 = vmatprep.mubr.bf16.mxu0 0
      %1773 = vmatmul.mubr.bf16.gmra.mxu0 %v1576
      %v1774 = vpop.f32.mrf.mxu0
      %v1775 = vadd.f32 0.0, %v1774
      %v1776 = vpop.f32.mrf.mxu0
      %v1777 = vpop.f32.mrf.mxu0
      %v1778 = vadd.f32 0.0, %v1777
      %v1779 = vpop.f32.mrf.mxu0
      %1780 = vmatprep.mubr.bf16.mxu0 0
      %1781 = vmatmul.mubr.bf16.gmra.mxu0 %v1577
      %v1782 = vpop.f32.mrf.mxu0
      %v1783 = vadd.f32 0.0, %v1782
      %v1784 = vpop.f32.mrf.mxu0
      %v1785 = vpop.f32.mrf.mxu0
      %v1786 = vadd.f32 0.0, %v1785
      %v1787 = vpop.f32.mrf.mxu0
      %1788 = vmatprep.mubr.bf16.mxu0 0
      %1789 = vmatmul.mubr.bf16.gmra.mxu0 %v1578
      %v1790 = vpop.f32.mrf.mxu0
      %v1791 = vadd.f32 0.0, %v1790
      %v1792 = vpop.f32.mrf.mxu0
      %v1793 = vpop.f32.mrf.mxu0
      %v1794 = vadd.f32 0.0, %v1793
      %v1795 = vpop.f32.mrf.mxu0
      %1796 = vmatprep.mubr.bf16.mxu0 0
      %1797 = vmatmul.mubr.bf16.gmra.mxu0 %v1579
      %v1798 = vpop.f32.mrf.mxu0
      %v1799 = vadd.f32 0.0, %v1798
      %v1800 = vpop.f32.mrf.mxu0
      %v1801 = vpop.f32.mrf.mxu0
      %v1802 = vadd.f32 0.0, %v1801
      %v1803 = vpop.f32.mrf.mxu0
      %1804 = vdwg.mxu0
      %v1805 = vadd.f32 %v1500, %v1679
      %v1806 = vadd.f32 %v1501, %v1682
      %v1807 = vadd.f32 %v1502, %v1687
      %v1808 = vadd.f32 %v1503, %v1690
      %v1809 = vadd.f32 %v1504, %v1695
      %v1810 = vadd.f32 %v1505, %v1698
      %v1811 = vadd.f32 %v1506, %v1703
      %v1812 = vadd.f32 %v1507, %v1706
      %v1813 = vadd.f32 %v1508, %v1711
      %v1814 = vadd.f32 %v1509, %v1714
      %v1815 = vadd.f32 %v1510, %v1719
      %v1816 = vadd.f32 %v1511, %v1722
      %v1817 = vadd.f32 %v1512, %v1727
      %v1818 = vadd.f32 %v1513, %v1730
      %v1819 = vadd.f32 %v1514, %v1735
      %v1820 = vadd.f32 %v1515, %v1738
      %v1821 = vadd.f32 %v1516, %v1743
      %v1822 = vadd.f32 %v1517, %v1746
      %v1823 = vadd.f32 %v1518, %v1751
      %v1824 = vadd.f32 %v1519, %v1754
      %v1825 = vadd.f32 %v1520, %v1759
      %v1826 = vadd.f32 %v1521, %v1762
      %v1827 = vadd.f32 %v1522, %v1767
      %v1828 = vadd.f32 %v1523, %v1770
      %v1829 = vadd.f32 %v1524, %v1775
      %v1830 = vadd.f32 %v1525, %v1778
      %v1831 = vadd.f32 %v1526, %v1783
      %v1832 = vadd.f32 %v1527, %v1786
      %v1833 = vadd.f32 %v1528, %v1791
      %v1834 = vadd.f32 %v1529, %v1794
      %v1835 = vadd.f32 %v1530, %v1799
      %v1836 = vadd.f32 %v1531, %v1802
      %v1837 = vld [vmem:[%s343 + $0x2] sm:$0xff]
      %v1838 = vld [vmem:[%s343 + $0xa] sm:$0xff]
      %v1839 = vld [vmem:[%s343 + $0x1a] sm:$0xff]
      %v1840 = vld [vmem:[%s343 + $0x22] sm:$0xff]
      %v1841 = vld [vmem:[%s343 + $0x32] sm:$0xff]
      %v1842 = vld [vmem:[%s343 + $0x3a] sm:$0xff]
      %v1843 = vld [vmem:[%s343 + $0x4a] sm:$0xff]
      %v1844 = vld [vmem:[%s343 + $0x52] sm:$0xff]
      %v1845 = vld [vmem:[%s343 + $0x62] sm:$0xff]
      %v1846 = vld [vmem:[%s343 + $0x6a] sm:$0xff]
      %v1847 = vld [vmem:[%s343 + $0x7a] sm:$0xff]
      %v1848 = vld [vmem:[%s343 + $0x82] sm:$0xff]
      %v1849 = vld [vmem:[%s343 + $0x92] sm:$0xff]
      %v1850 = vld [vmem:[%s343 + $0x9a] sm:$0xff]
      %v1851 = vld [vmem:[%s343 + $0xaa] sm:$0xff]
      %v1852 = vld [vmem:[%s343 + $0xb2] sm:$0xff]
      %v1853 = vld [vmem:[%s343 + $0xc2] sm:$0xff]
      %v1854 = vld [vmem:[%s343 + $0xca] sm:$0xff]
      %v1855 = vld [vmem:[%s343 + $0xda] sm:$0xff]
      %v1856 = vld [vmem:[%s343 + $0xe2] sm:$0xff]
      %v1857 = vld [vmem:[%s343 + $0xf2] sm:$0xff]
      %v1858 = vld [vmem:[%s343 + $0xfa] sm:$0xff]
      %v1859 = vld [vmem:[%s343 + $0x10a] sm:$0xff]
      %v1860 = vld [vmem:[%s343 + $0x112] sm:$0xff]
      %v1861 = vld [vmem:[%s343 + $0x122] sm:$0xff]
      %v1862 = vld [vmem:[%s343 + $0x12a] sm:$0xff]
      %v1863 = vld [vmem:[%s343 + $0x13a] sm:$0xff]
      %v1864 = vld [vmem:[%s343 + $0x142] sm:$0xff]
      %v1865 = vld [vmem:[%s343 + $0x152] sm:$0xff]
      %v1866 = vld [vmem:[%s343 + $0x15a] sm:$0xff]
      %v1867 = vld [vmem:[%s343 + $0x16a] sm:$0xff]
      %v1868 = vld [vmem:[%s343 + $0x172] sm:$0xff]
      %v1869 = vpack.c.bf16 %v1838, %v1837
      %v1870 = vpack.c.bf16 %v1840, %v1839
      %v1871 = vpack.c.bf16 %v1842, %v1841
      %v1872 = vpack.c.bf16 %v1844, %v1843
      %v1873 = vpack.c.bf16 %v1846, %v1845
      %v1874 = vpack.c.bf16 %v1848, %v1847
      %v1875 = vpack.c.bf16 %v1850, %v1849
      %v1876 = vpack.c.bf16 %v1852, %v1851
      %v1877 = vpack.c.bf16 %v1854, %v1853
      %v1878 = vpack.c.bf16 %v1856, %v1855
      %v1879 = vpack.c.bf16 %v1858, %v1857
      %v1880 = vpack.c.bf16 %v1860, %v1859
      %v1881 = vpack.c.bf16 %v1862, %v1861
      %v1882 = vpack.c.bf16 %v1864, %v1863
      %v1883 = vpack.c.bf16 %v1866, %v1865
      %v1884 = vpack.c.bf16 %v1868, %v1867
      %v1885 = vld [vmem:[%s1 + $0x140] sm:$0xf]
      %v1886 = vld [vmem:[%s1 + $0x144] sm:$0xf]
      %v1887 = vld [vmem:[%s1 + $0x148] sm:$0xf]
      %v1888 = vld [vmem:[%s1 + $0x14c] sm:$0xf]
      %v1889 = vld [vmem:[%s1 + $0x150] sm:$0xf]
      %v1890 = vld [vmem:[%s1 + $0x154] sm:$0xf]
      %v1891 = vld [vmem:[%s1 + $0x158] sm:$0xf]
      %v1892 = vld [vmem:[%s1 + $0x15c] sm:$0xf]
      %v1893 = vld [vmem:[%s1 + $0x160] sm:$0xf]
      %v1894 = vld [vmem:[%s1 + $0x164] sm:$0xf]
      %v1895 = vld [vmem:[%s1 + $0x168] sm:$0xf]
      %v1896 = vld [vmem:[%s1 + $0x16c] sm:$0xf]
      %v1897 = vld [vmem:[%s1 + $0x170] sm:$0xf]
      %v1898 = vld [vmem:[%s1 + $0x174] sm:$0xf]
      %v1899 = vld [vmem:[%s1 + $0x178] sm:$0xf]
      %v1900 = vld [vmem:[%s1 + $0x17c] sm:$0xf]
      %v1917 = vunpack.c.l.b16 %v1885
      %v1918 = vunpack.c.l.b16 %v1886
      %v1919 = vunpack.c.l.b16 %v1887
      %v1920 = vunpack.c.l.b16 %v1888
      %v1921 = vunpack.c.l.b16 %v1889
      %v1922 = vunpack.c.l.b16 %v1890
      %v1923 = vunpack.c.l.b16 %v1891
      %v1924 = vunpack.c.l.b16 %v1892
      %v1925 = vunpack.c.l.b16 %v1893
      %v1926 = vunpack.c.l.b16 %v1894
      %v1927 = vunpack.c.l.b16 %v1895
      %v1928 = vunpack.c.l.b16 %v1896
      %v1929 = vunpack.c.l.b16 %v1897
      %v1930 = vunpack.c.l.b16 %v1898
      %v1931 = vunpack.c.l.b16 %v1899
      %v1932 = vunpack.c.l.b16 %v1900
      %v1933 = vpack.c.b16 %v1918, %v1917
      %v1934 = vpack.c.b16 %v1920, %v1919
      %v1935 = vpack.c.b16 %v1922, %v1921
      %v1936 = vpack.c.b16 %v1924, %v1923
      %v1937 = vpack.c.b16 %v1926, %v1925
      %v1938 = vpack.c.b16 %v1928, %v1927
      %v1939 = vpack.c.b16 %v1930, %v1929
      %v1940 = vpack.c.b16 %v1932, %v1931
      %1949 = vmatprep.subr.bf16.mxu0 0
      %1950 = vmatpush1.bf16.msra.mxu0 %v1940
      %1951 = vmatprep.subr.bf16.mxu0 0
      %1952 = vmatpush1.bf16.msra.mxu0 %v1939
      %1953 = vmatprep.subr.bf16.mxu0 0
      %1954 = vmatpush1.bf16.msra.mxu0 %v1938
      %1955 = vmatprep.subr.bf16.mxu0 0
      %1956 = vmatpush1.bf16.msra.mxu0 %v1937
      %1957 = vmatprep.subr.bf16.mxu0 0
      %1958 = vmatpush1.bf16.msra.mxu0 %v1936
      %1959 = vmatprep.subr.bf16.mxu0 0
      %1960 = vmatpush1.bf16.msra.mxu0 %v1935
      %1961 = vmatprep.subr.bf16.mxu0 0
      %1962 = vmatpush1.bf16.msra.mxu0 %v1934
      %1963 = vmatprep.subr.bf16.mxu0 0
      %1964 = vmatpush1.bf16.msra.mxu0 %v1933
      %1965 = vmatprep.subr.bf16.mxu0 0
      %1966 = vmatpush2.bf16.msra.mxu0 0
      %1967 = vmatprep.subr.bf16.mxu0 0
      %1968 = vmatpush2.bf16.msra.mxu0 0
      %1969 = vmatprep.subr.bf16.mxu0 0
      %1970 = vmatpush2.bf16.msra.mxu0 0
      %1971 = vmatprep.subr.bf16.mxu0 0
      %1972 = vmatpush2.bf16.msra.mxu0 0
      %1973 = vmatprep.subr.bf16.mxu0 0
      %1974 = vmatpush2.bf16.msra.mxu0 0
      %1975 = vmatprep.subr.bf16.mxu0 0
      %1976 = vmatpush2.bf16.msra.mxu0 0
      %1977 = vmatprep.subr.bf16.mxu0 0
      %1978 = vmatpush2.bf16.msra.mxu0 0
      %1979 = vmatprep.subr.bf16.mxu0 0
      %1980 = vmatpush2.bf16.msra.mxu0 0
      %1981 = vmatprep.mubr.bf16.mxu0 0
      %1982 = vmatmul.mubr.bf16.gmra.mxu0 %v1869
      %v1983 = vpop.f32.mrf.mxu0
      %v1984 = vadd.f32 0.0, %v1983
      %v1985 = vpop.f32.mrf.mxu0
      %v1986 = vpop.f32.mrf.mxu0
      %v1987 = vadd.f32 0.0, %v1986
      %v1988 = vpop.f32.mrf.mxu0
      %1989 = vmatprep.mubr.bf16.mxu0 0
      %1990 = vmatmul.mubr.bf16.gmra.mxu0 %v1870
      %v1991 = vpop.f32.mrf.mxu0
      %v1992 = vadd.f32 0.0, %v1991
      %v1993 = vpop.f32.mrf.mxu0
      %v1994 = vpop.f32.mrf.mxu0
      %v1995 = vadd.f32 0.0, %v1994
      %v1996 = vpop.f32.mrf.mxu0
      %1997 = vmatprep.mubr.bf16.mxu0 0
      %1998 = vmatmul.mubr.bf16.gmra.mxu0 %v1871
      %v1999 = vpop.f32.mrf.mxu0
      %v2000 = vadd.f32 0.0, %v1999
      %v2001 = vpop.f32.mrf.mxu0
      %v2002 = vpop.f32.mrf.mxu0
      %v2003 = vadd.f32 0.0, %v2002
      %v2004 = vpop.f32.mrf.mxu0
      %2005 = vmatprep.mubr.bf16.mxu0 0
      %2006 = vmatmul.mubr.bf16.gmra.mxu0 %v1872
      %v2007 = vpop.f32.mrf.mxu0
      %v2008 = vadd.f32 0.0, %v2007
      %v2009 = vpop.f32.mrf.mxu0
      %v2010 = vpop.f32.mrf.mxu0
      %v2011 = vadd.f32 0.0, %v2010
      %v2012 = vpop.f32.mrf.mxu0
      %2013 = vmatprep.mubr.bf16.mxu0 0
      %2014 = vmatmul.mubr.bf16.gmra.mxu0 %v1873
      %v2015 = vpop.f32.mrf.mxu0
      %v2016 = vadd.f32 0.0, %v2015
      %v2017 = vpop.f32.mrf.mxu0
      %v2018 = vpop.f32.mrf.mxu0
      %v2019 = vadd.f32 0.0, %v2018
      %v2020 = vpop.f32.mrf.mxu0
      %2021 = vmatprep.mubr.bf16.mxu0 0
      %2022 = vmatmul.mubr.bf16.gmra.mxu0 %v1874
      %v2023 = vpop.f32.mrf.mxu0
      %v2024 = vadd.f32 0.0, %v2023
      %v2025 = vpop.f32.mrf.mxu0
      %v2026 = vpop.f32.mrf.mxu0
      %v2027 = vadd.f32 0.0, %v2026
      %v2028 = vpop.f32.mrf.mxu0
      %2029 = vmatprep.mubr.bf16.mxu0 0
      %2030 = vmatmul.mubr.bf16.gmra.mxu0 %v1875
      %v2031 = vpop.f32.mrf.mxu0
      %v2032 = vadd.f32 0.0, %v2031
      %v2033 = vpop.f32.mrf.mxu0
      %v2034 = vpop.f32.mrf.mxu0
      %v2035 = vadd.f32 0.0, %v2034
      %v2036 = vpop.f32.mrf.mxu0
      %2037 = vmatprep.mubr.bf16.mxu0 0
      %2038 = vmatmul.mubr.bf16.gmra.mxu0 %v1876
      %v2039 = vpop.f32.mrf.mxu0
      %v2040 = vadd.f32 0.0, %v2039
      %v2041 = vpop.f32.mrf.mxu0
      %v2042 = vpop.f32.mrf.mxu0
      %v2043 = vadd.f32 0.0, %v2042
      %v2044 = vpop.f32.mrf.mxu0
      %2045 = vmatprep.mubr.bf16.mxu0 0
      %2046 = vmatmul.mubr.bf16.gmra.mxu0 %v1877
      %v2047 = vpop.f32.mrf.mxu0
      %v2048 = vadd.f32 0.0, %v2047
      %v2049 = vpop.f32.mrf.mxu0
      %v2050 = vpop.f32.mrf.mxu0
      %v2051 = vadd.f32 0.0, %v2050
      %v2052 = vpop.f32.mrf.mxu0
      %2053 = vmatprep.mubr.bf16.mxu0 0
      %2054 = vmatmul.mubr.bf16.gmra.mxu0 %v1878
      %v2055 = vpop.f32.mrf.mxu0
      %v2056 = vadd.f32 0.0, %v2055
      %v2057 = vpop.f32.mrf.mxu0
      %v2058 = vpop.f32.mrf.mxu0
      %v2059 = vadd.f32 0.0, %v2058
      %v2060 = vpop.f32.mrf.mxu0
      %2061 = vmatprep.mubr.bf16.mxu0 0
      %2062 = vmatmul.mubr.bf16.gmra.mxu0 %v1879
      %v2063 = vpop.f32.mrf.mxu0
      %v2064 = vadd.f32 0.0, %v2063
      %v2065 = vpop.f32.mrf.mxu0
      %v2066 = vpop.f32.mrf.mxu0
      %v2067 = vadd.f32 0.0, %v2066
      %v2068 = vpop.f32.mrf.mxu0
      %2069 = vmatprep.mubr.bf16.mxu0 0
      %2070 = vmatmul.mubr.bf16.gmra.mxu0 %v1880
      %v2071 = vpop.f32.mrf.mxu0
      %v2072 = vadd.f32 0.0, %v2071
      %v2073 = vpop.f32.mrf.mxu0
      %v2074 = vpop.f32.mrf.mxu0
      %v2075 = vadd.f32 0.0, %v2074
      %v2076 = vpop.f32.mrf.mxu0
      %2077 = vmatprep.mubr.bf16.mxu0 0
      %2078 = vmatmul.mubr.bf16.gmra.mxu0 %v1881
      %v2079 = vpop.f32.mrf.mxu0
      %v2080 = vadd.f32 0.0, %v2079
      %v2081 = vpop.f32.mrf.mxu0
      %v2082 = vpop.f32.mrf.mxu0
      %v2083 = vadd.f32 0.0, %v2082
      %v2084 = vpop.f32.mrf.mxu0
      %2085 = vmatprep.mubr.bf16.mxu0 0
      %2086 = vmatmul.mubr.bf16.gmra.mxu0 %v1882
      %v2087 = vpop.f32.mrf.mxu0
      %v2088 = vadd.f32 0.0, %v2087
      %v2089 = vpop.f32.mrf.mxu0
      %v2090 = vpop.f32.mrf.mxu0
      %v2091 = vadd.f32 0.0, %v2090
      %v2092 = vpop.f32.mrf.mxu0
      %2093 = vmatprep.mubr.bf16.mxu0 0
      %2094 = vmatmul.mubr.bf16.gmra.mxu0 %v1883
      %v2095 = vpop.f32.mrf.mxu0
      %v2096 = vadd.f32 0.0, %v2095
      %v2097 = vpop.f32.mrf.mxu0
      %v2098 = vpop.f32.mrf.mxu0
      %v2099 = vadd.f32 0.0, %v2098
      %v2100 = vpop.f32.mrf.mxu0
      %2101 = vmatprep.mubr.bf16.mxu0 0
      %2102 = vmatmul.mubr.bf16.gmra.mxu0 %v1884
      %v2103 = vpop.f32.mrf.mxu0
      %v2104 = vadd.f32 0.0, %v2103
      %v2105 = vpop.f32.mrf.mxu0
      %v2106 = vpop.f32.mrf.mxu0
      %v2107 = vadd.f32 0.0, %v2106
      %v2108 = vpop.f32.mrf.mxu0
      %2109 = vdwg.mxu0
      %v2110 = vadd.f32 %v1805, %v1984
      %v2111 = vadd.f32 %v1806, %v1987
      %v2112 = vadd.f32 %v1807, %v1992
      %v2113 = vadd.f32 %v1808, %v1995
      %v2114 = vadd.f32 %v1809, %v2000
      %v2115 = vadd.f32 %v1810, %v2003
      %v2116 = vadd.f32 %v1811, %v2008
      %v2117 = vadd.f32 %v1812, %v2011
      %v2118 = vadd.f32 %v1813, %v2016
      %v2119 = vadd.f32 %v1814, %v2019
      %v2120 = vadd.f32 %v1815, %v2024
      %v2121 = vadd.f32 %v1816, %v2027
      %v2122 = vadd.f32 %v1817, %v2032
      %v2123 = vadd.f32 %v1818, %v2035
      %v2124 = vadd.f32 %v1819, %v2040
      %v2125 = vadd.f32 %v1820, %v2043
      %v2126 = vadd.f32 %v1821, %v2048
      %v2127 = vadd.f32 %v1822, %v2051
      %v2128 = vadd.f32 %v1823, %v2056
      %v2129 = vadd.f32 %v1824, %v2059
      %v2130 = vadd.f32 %v1825, %v2064
      %v2131 = vadd.f32 %v1826, %v2067
      %v2132 = vadd.f32 %v1827, %v2072
      %v2133 = vadd.f32 %v1828, %v2075
      %v2134 = vadd.f32 %v1829, %v2080
      %v2135 = vadd.f32 %v1830, %v2083
      %v2136 = vadd.f32 %v1831, %v2088
      %v2137 = vadd.f32 %v1832, %v2091
      %v2138 = vadd.f32 %v1833, %v2096
      %v2139 = vadd.f32 %v1834, %v2099
      %v2140 = vadd.f32 %v1835, %v2104
      %v2141 = vadd.f32 %v1836, %v2107
      %s2142 = scalar_lea.vmem [#allocation2], 48
      %v2143 = vld [vmem:[%s2142] sm:$0xff]
      %v2144 = vld [vmem:[%s2142 + $0x8] sm:$0xff]
      %v2145 = vld [vmem:[%s2142 + $0x18] sm:$0xff]
      %v2146 = vld [vmem:[%s2142 + $0x20] sm:$0xff]
      %v2147 = vld [vmem:[%s2142 + $0x30] sm:$0xff]
      %v2148 = vld [vmem:[%s2142 + $0x38] sm:$0xff]
      %v2149 = vld [vmem:[%s2142 + $0x48] sm:$0xff]
      %v2150 = vld [vmem:[%s2142 + $0x50] sm:$0xff]
      %v2151 = vld [vmem:[%s2142 + $0x60] sm:$0xff]
      %v2152 = vld [vmem:[%s2142 + $0x68] sm:$0xff]
      %v2153 = vld [vmem:[%s2142 + $0x78] sm:$0xff]
      %v2154 = vld [vmem:[%s2142 + $0x80] sm:$0xff]
      %v2155 = vld [vmem:[%s2142 + $0x90] sm:$0xff]
      %v2156 = vld [vmem:[%s2142 + $0x98] sm:$0xff]
      %v2157 = vld [vmem:[%s2142 + $0xa8] sm:$0xff]
      %v2158 = vld [vmem:[%s2142 + $0xb0] sm:$0xff]
      %v2159 = vld [vmem:[%s2142 + $0xc0] sm:$0xff]
      %v2160 = vld [vmem:[%s2142 + $0xc8] sm:$0xff]
      %v2161 = vld [vmem:[%s2142 + $0xd8] sm:$0xff]
      %v2162 = vld [vmem:[%s2142 + $0xe0] sm:$0xff]
      %v2163 = vld [vmem:[%s2142 + $0xf0] sm:$0xff]
      %v2164 = vld [vmem:[%s2142 + $0xf8] sm:$0xff]
      %v2165 = vld [vmem:[%s2142 + $0x108] sm:$0xff]
      %v2166 = vld [vmem:[%s2142 + $0x110] sm:$0xff]
      %v2167 = vld [vmem:[%s2142 + $0x120] sm:$0xff]
      %v2168 = vld [vmem:[%s2142 + $0x128] sm:$0xff]
      %v2169 = vld [vmem:[%s2142 + $0x138] sm:$0xff]
      %v2170 = vld [vmem:[%s2142 + $0x140] sm:$0xff]
      %v2171 = vld [vmem:[%s2142 + $0x150] sm:$0xff]
      %v2172 = vld [vmem:[%s2142 + $0x158] sm:$0xff]
      %v2173 = vld [vmem:[%s2142 + $0x168] sm:$0xff]
      %v2174 = vld [vmem:[%s2142 + $0x170] sm:$0xff]
      %v2175 = vpack.c.bf16 %v2144, %v2143
      %v2176 = vpack.c.bf16 %v2146, %v2145
      %v2177 = vpack.c.bf16 %v2148, %v2147
      %v2178 = vpack.c.bf16 %v2150, %v2149
      %v2179 = vpack.c.bf16 %v2152, %v2151
      %v2180 = vpack.c.bf16 %v2154, %v2153
      %v2181 = vpack.c.bf16 %v2156, %v2155
      %v2182 = vpack.c.bf16 %v2158, %v2157
      %v2183 = vpack.c.bf16 %v2160, %v2159
      %v2184 = vpack.c.bf16 %v2162, %v2161
      %v2185 = vpack.c.bf16 %v2164, %v2163
      %v2186 = vpack.c.bf16 %v2166, %v2165
      %v2187 = vpack.c.bf16 %v2168, %v2167
      %v2188 = vpack.c.bf16 %v2170, %v2169
      %v2189 = vpack.c.bf16 %v2172, %v2171
      %v2190 = vpack.c.bf16 %v2174, %v2173
      %v2191 = vld [vmem:[%s1 + $0x180] sm:$0xf]
      %v2192 = vld [vmem:[%s1 + $0x184] sm:$0xf]
      %v2193 = vld [vmem:[%s1 + $0x188] sm:$0xf]
      %v2194 = vld [vmem:[%s1 + $0x18c] sm:$0xf]
      %v2195 = vld [vmem:[%s1 + $0x190] sm:$0xf]
      %v2196 = vld [vmem:[%s1 + $0x194] sm:$0xf]
      %v2197 = vld [vmem:[%s1 + $0x198] sm:$0xf]
      %v2198 = vld [vmem:[%s1 + $0x19c] sm:$0xf]
      %v2199 = vld [vmem:[%s1 + $0x1a0] sm:$0xf]
      %v2200 = vld [vmem:[%s1 + $0x1a4] sm:$0xf]
      %v2201 = vld [vmem:[%s1 + $0x1a8] sm:$0xf]
      %v2202 = vld [vmem:[%s1 + $0x1ac] sm:$0xf]
      %v2203 = vld [vmem:[%s1 + $0x1b0] sm:$0xf]
      %v2204 = vld [vmem:[%s1 + $0x1b4] sm:$0xf]
      %v2205 = vld [vmem:[%s1 + $0x1b8] sm:$0xf]
      %v2206 = vld [vmem:[%s1 + $0x1bc] sm:$0xf]
      %v2223 = vunpack.c.l.b16 %v2191
      %v2224 = vunpack.c.l.b16 %v2192
      %v2225 = vunpack.c.l.b16 %v2193
      %v2226 = vunpack.c.l.b16 %v2194
      %v2227 = vunpack.c.l.b16 %v2195
      %v2228 = vunpack.c.l.b16 %v2196
      %v2229 = vunpack.c.l.b16 %v2197
      %v2230 = vunpack.c.l.b16 %v2198
      %v2231 = vunpack.c.l.b16 %v2199
      %v2232 = vunpack.c.l.b16 %v2200
      %v2233 = vunpack.c.l.b16 %v2201
      %v2234 = vunpack.c.l.b16 %v2202
      %v2235 = vunpack.c.l.b16 %v2203
      %v2236 = vunpack.c.l.b16 %v2204
      %v2237 = vunpack.c.l.b16 %v2205
      %v2238 = vunpack.c.l.b16 %v2206
      %v2239 = vpack.c.b16 %v2224, %v2223
      %v2240 = vpack.c.b16 %v2226, %v2225
      %v2241 = vpack.c.b16 %v2228, %v2227
      %v2242 = vpack.c.b16 %v2230, %v2229
      %v2243 = vpack.c.b16 %v2232, %v2231
      %v2244 = vpack.c.b16 %v2234, %v2233
      %v2245 = vpack.c.b16 %v2236, %v2235
      %v2246 = vpack.c.b16 %v2238, %v2237
      %2255 = vmatprep.subr.bf16.mxu0 0
      %2256 = vmatpush1.bf16.msra.mxu0 %v2246
      %2257 = vmatprep.subr.bf16.mxu0 0
      %2258 = vmatpush1.bf16.msra.mxu0 %v2245
      %2259 = vmatprep.subr.bf16.mxu0 0
      %2260 = vmatpush1.bf16.msra.mxu0 %v2244
      %2261 = vmatprep.subr.bf16.mxu0 0
      %2262 = vmatpush1.bf16.msra.mxu0 %v2243
      %2263 = vmatprep.subr.bf16.mxu0 0
      %2264 = vmatpush1.bf16.msra.mxu0 %v2242
      %2265 = vmatprep.subr.bf16.mxu0 0
      %2266 = vmatpush1.bf16.msra.mxu0 %v2241
      %2267 = vmatprep.subr.bf16.mxu0 0
      %2268 = vmatpush1.bf16.msra.mxu0 %v2240
      %2269 = vmatprep.subr.bf16.mxu0 0
      %2270 = vmatpush1.bf16.msra.mxu0 %v2239
      %2271 = vmatprep.subr.bf16.mxu0 0
      %2272 = vmatpush2.bf16.msra.mxu0 0
      %2273 = vmatprep.subr.bf16.mxu0 0
      %2274 = vmatpush2.bf16.msra.mxu0 0
      %2275 = vmatprep.subr.bf16.mxu0 0
      %2276 = vmatpush2.bf16.msra.mxu0 0
      %2277 = vmatprep.subr.bf16.mxu0 0
      %2278 = vmatpush2.bf16.msra.mxu0 0
      %2279 = vmatprep.subr.bf16.mxu0 0
      %2280 = vmatpush2.bf16.msra.mxu0 0
      %2281 = vmatprep.subr.bf16.mxu0 0
      %2282 = vmatpush2.bf16.msra.mxu0 0
      %2283 = vmatprep.subr.bf16.mxu0 0
      %2284 = vmatpush2.bf16.msra.mxu0 0
      %2285 = vmatprep.subr.bf16.mxu0 0
      %2286 = vmatpush2.bf16.msra.mxu0 0
      %2287 = vmatprep.mubr.bf16.mxu0 0
      %2288 = vmatmul.mubr.bf16.gmra.mxu0 %v2175
      %v2289 = vpop.f32.mrf.mxu0
      %v2290 = vadd.f32 0.0, %v2289
      %v2291 = vpop.f32.mrf.mxu0
      %v2292 = vpop.f32.mrf.mxu0
      %v2293 = vadd.f32 0.0, %v2292
      %v2294 = vpop.f32.mrf.mxu0
      %2295 = vmatprep.mubr.bf16.mxu0 0
      %2296 = vmatmul.mubr.bf16.gmra.mxu0 %v2176
      %v2297 = vpop.f32.mrf.mxu0
      %v2298 = vadd.f32 0.0, %v2297
      %v2299 = vpop.f32.mrf.mxu0
      %v2300 = vpop.f32.mrf.mxu0
      %v2301 = vadd.f32 0.0, %v2300
      %v2302 = vpop.f32.mrf.mxu0
      %2303 = vmatprep.mubr.bf16.mxu0 0
      %2304 = vmatmul.mubr.bf16.gmra.mxu0 %v2177
      %v2305 = vpop.f32.mrf.mxu0
      %v2306 = vadd.f32 0.0, %v2305
      %v2307 = vpop.f32.mrf.mxu0
      %v2308 = vpop.f32.mrf.mxu0
      %v2309 = vadd.f32 0.0, %v2308
      %v2310 = vpop.f32.mrf.mxu0
      %2311 = vmatprep.mubr.bf16.mxu0 0
      %2312 = vmatmul.mubr.bf16.gmra.mxu0 %v2178
      %v2313 = vpop.f32.mrf.mxu0
      %v2314 = vadd.f32 0.0, %v2313
      %v2315 = vpop.f32.mrf.mxu0
      %v2316 = vpop.f32.mrf.mxu0
      %v2317 = vadd.f32 0.0, %v2316
      %v2318 = vpop.f32.mrf.mxu0
      %2319 = vmatprep.mubr.bf16.mxu0 0
      %2320 = vmatmul.mubr.bf16.gmra.mxu0 %v2179
      %v2321 = vpop.f32.mrf.mxu0
      %v2322 = vadd.f32 0.0, %v2321
      %v2323 = vpop.f32.mrf.mxu0
      %v2324 = vpop.f32.mrf.mxu0
      %v2325 = vadd.f32 0.0, %v2324
      %v2326 = vpop.f32.mrf.mxu0
      %2327 = vmatprep.mubr.bf16.mxu0 0
      %2328 = vmatmul.mubr.bf16.gmra.mxu0 %v2180
      %v2329 = vpop.f32.mrf.mxu0
      %v2330 = vadd.f32 0.0, %v2329
      %v2331 = vpop.f32.mrf.mxu0
      %v2332 = vpop.f32.mrf.mxu0
      %v2333 = vadd.f32 0.0, %v2332
      %v2334 = vpop.f32.mrf.mxu0
      %2335 = vmatprep.mubr.bf16.mxu0 0
      %2336 = vmatmul.mubr.bf16.gmra.mxu0 %v2181
      %v2337 = vpop.f32.mrf.mxu0
      %v2338 = vadd.f32 0.0, %v2337
      %v2339 = vpop.f32.mrf.mxu0
      %v2340 = vpop.f32.mrf.mxu0
      %v2341 = vadd.f32 0.0, %v2340
      %v2342 = vpop.f32.mrf.mxu0
      %2343 = vmatprep.mubr.bf16.mxu0 0
      %2344 = vmatmul.mubr.bf16.gmra.mxu0 %v2182
      %v2345 = vpop.f32.mrf.mxu0
      %v2346 = vadd.f32 0.0, %v2345
      %v2347 = vpop.f32.mrf.mxu0
      %v2348 = vpop.f32.mrf.mxu0
      %v2349 = vadd.f32 0.0, %v2348
      %v2350 = vpop.f32.mrf.mxu0
      %2351 = vmatprep.mubr.bf16.mxu0 0
      %2352 = vmatmul.mubr.bf16.gmra.mxu0 %v2183
      %v2353 = vpop.f32.mrf.mxu0
      %v2354 = vadd.f32 0.0, %v2353
      %v2355 = vpop.f32.mrf.mxu0
      %v2356 = vpop.f32.mrf.mxu0
      %v2357 = vadd.f32 0.0, %v2356
      %v2358 = vpop.f32.mrf.mxu0
      %2359 = vmatprep.mubr.bf16.mxu0 0
      %2360 = vmatmul.mubr.bf16.gmra.mxu0 %v2184
      %v2361 = vpop.f32.mrf.mxu0
      %v2362 = vadd.f32 0.0, %v2361
      %v2363 = vpop.f32.mrf.mxu0
      %v2364 = vpop.f32.mrf.mxu0
      %v2365 = vadd.f32 0.0, %v2364
      %v2366 = vpop.f32.mrf.mxu0
      %2367 = vmatprep.mubr.bf16.mxu0 0
      %2368 = vmatmul.mubr.bf16.gmra.mxu0 %v2185
      %v2369 = vpop.f32.mrf.mxu0
      %v2370 = vadd.f32 0.0, %v2369
      %v2371 = vpop.f32.mrf.mxu0
      %v2372 = vpop.f32.mrf.mxu0
      %v2373 = vadd.f32 0.0, %v2372
      %v2374 = vpop.f32.mrf.mxu0
      %2375 = vmatprep.mubr.bf16.mxu0 0
      %2376 = vmatmul.mubr.bf16.gmra.mxu0 %v2186
      %v2377 = vpop.f32.mrf.mxu0
      %v2378 = vadd.f32 0.0, %v2377
      %v2379 = vpop.f32.mrf.mxu0
      %v2380 = vpop.f32.mrf.mxu0
      %v2381 = vadd.f32 0.0, %v2380
      %v2382 = vpop.f32.mrf.mxu0
      %2383 = vmatprep.mubr.bf16.mxu0 0
      %2384 = vmatmul.mubr.bf16.gmra.mxu0 %v2187
      %v2385 = vpop.f32.mrf.mxu0
      %v2386 = vadd.f32 0.0, %v2385
      %v2387 = vpop.f32.mrf.mxu0
      %v2388 = vpop.f32.mrf.mxu0
      %v2389 = vadd.f32 0.0, %v2388
      %v2390 = vpop.f32.mrf.mxu0
      %2391 = vmatprep.mubr.bf16.mxu0 0
      %2392 = vmatmul.mubr.bf16.gmra.mxu0 %v2188
      %v2393 = vpop.f32.mrf.mxu0
      %v2394 = vadd.f32 0.0, %v2393
      %v2395 = vpop.f32.mrf.mxu0
      %v2396 = vpop.f32.mrf.mxu0
      %v2397 = vadd.f32 0.0, %v2396
      %v2398 = vpop.f32.mrf.mxu0
      %2399 = vmatprep.mubr.bf16.mxu0 0
      %2400 = vmatmul.mubr.bf16.gmra.mxu0 %v2189
      %v2401 = vpop.f32.mrf.mxu0
      %v2402 = vadd.f32 0.0, %v2401
      %v2403 = vpop.f32.mrf.mxu0
      %v2404 = vpop.f32.mrf.mxu0
      %v2405 = vadd.f32 0.0, %v2404
      %v2406 = vpop.f32.mrf.mxu0
      %2407 = vmatprep.mubr.bf16.mxu0 0
      %2408 = vmatmul.mubr.bf16.gmra.mxu0 %v2190
      %v2409 = vpop.f32.mrf.mxu0
      %v2410 = vadd.f32 0.0, %v2409
      %v2411 = vpop.f32.mrf.mxu0
      %v2412 = vpop.f32.mrf.mxu0
      %v2413 = vadd.f32 0.0, %v2412
      %v2414 = vpop.f32.mrf.mxu0
      %2415 = vdwg.mxu0
      %v2416 = vadd.f32 %v2110, %v2290
      %v2417 = vadd.f32 %v2111, %v2293
      %v2418 = vadd.f32 %v2112, %v2298
      %v2419 = vadd.f32 %v2113, %v2301
      %v2420 = vadd.f32 %v2114, %v2306
      %v2421 = vadd.f32 %v2115, %v2309
      %v2422 = vadd.f32 %v2116, %v2314
      %v2423 = vadd.f32 %v2117, %v2317
      %v2424 = vadd.f32 %v2118, %v2322
      %v2425 = vadd.f32 %v2119, %v2325
      %v2426 = vadd.f32 %v2120, %v2330
      %v2427 = vadd.f32 %v2121, %v2333
      %v2428 = vadd.f32 %v2122, %v2338
      %v2429 = vadd.f32 %v2123, %v2341
      %v2430 = vadd.f32 %v2124, %v2346
      %v2431 = vadd.f32 %v2125, %v2349
      %v2432 = vadd.f32 %v2126, %v2354
      %v2433 = vadd.f32 %v2127, %v2357
      %v2434 = vadd.f32 %v2128, %v2362
      %v2435 = vadd.f32 %v2129, %v2365
      %v2436 = vadd.f32 %v2130, %v2370
      %v2437 = vadd.f32 %v2131, %v2373
      %v2438 = vadd.f32 %v2132, %v2378
      %v2439 = vadd.f32 %v2133, %v2381
      %v2440 = vadd.f32 %v2134, %v2386
      %v2441 = vadd.f32 %v2135, %v2389
      %v2442 = vadd.f32 %v2136, %v2394
      %v2443 = vadd.f32 %v2137, %v2397
      %v2444 = vadd.f32 %v2138, %v2402
      %v2445 = vadd.f32 %v2139, %v2405
      %v2446 = vadd.f32 %v2140, %v2410
      %v2447 = vadd.f32 %v2141, %v2413
      %v2448 = vld [vmem:[%s2142 + $0x1] sm:$0xff]
      %v2449 = vld [vmem:[%s2142 + $0x9] sm:$0xff]
      %v2450 = vld [vmem:[%s2142 + $0x19] sm:$0xff]
      %v2451 = vld [vmem:[%s2142 + $0x21] sm:$0xff]
      %v2452 = vld [vmem:[%s2142 + $0x31] sm:$0xff]
      %v2453 = vld [vmem:[%s2142 + $0x39] sm:$0xff]
      %v2454 = vld [vmem:[%s2142 + $0x49] sm:$0xff]
      %v2455 = vld [vmem:[%s2142 + $0x51] sm:$0xff]
      %v2456 = vld [vmem:[%s2142 + $0x61] sm:$0xff]
      %v2457 = vld [vmem:[%s2142 + $0x69] sm:$0xff]
      %v2458 = vld [vmem:[%s2142 + $0x79] sm:$0xff]
      %v2459 = vld [vmem:[%s2142 + $0x81] sm:$0xff]
      %v2460 = vld [vmem:[%s2142 + $0x91] sm:$0xff]
      %v2461 = vld [vmem:[%s2142 + $0x99] sm:$0xff]
      %v2462 = vld [vmem:[%s2142 + $0xa9] sm:$0xff]
      %v2463 = vld [vmem:[%s2142 + $0xb1] sm:$0xff]
      %v2464 = vld [vmem:[%s2142 + $0xc1] sm:$0xff]
      %v2465 = vld [vmem:[%s2142 + $0xc9] sm:$0xff]
      %v2466 = vld [vmem:[%s2142 + $0xd9] sm:$0xff]
      %v2467 = vld [vmem:[%s2142 + $0xe1] sm:$0xff]
      %v2468 = vld [vmem:[%s2142 + $0xf1] sm:$0xff]
      %v2469 = vld [vmem:[%s2142 + $0xf9] sm:$0xff]
      %v2470 = vld [vmem:[%s2142 + $0x109] sm:$0xff]
      %v2471 = vld [vmem:[%s2142 + $0x111] sm:$0xff]
      %v2472 = vld [vmem:[%s2142 + $0x121] sm:$0xff]
      %v2473 = vld [vmem:[%s2142 + $0x129] sm:$0xff]
      %v2474 = vld [vmem:[%s2142 + $0x139] sm:$0xff]
      %v2475 = vld [vmem:[%s2142 + $0x141] sm:$0xff]
      %v2476 = vld [vmem:[%s2142 + $0x151] sm:$0xff]
      %v2477 = vld [vmem:[%s2142 + $0x159] sm:$0xff]
      %v2478 = vld [vmem:[%s2142 + $0x169] sm:$0xff]
      %v2479 = vld [vmem:[%s2142 + $0x171] sm:$0xff]
      %v2480 = vpack.c.bf16 %v2449, %v2448
      %v2481 = vpack.c.bf16 %v2451, %v2450
      %v2482 = vpack.c.bf16 %v2453, %v2452
      %v2483 = vpack.c.bf16 %v2455, %v2454
      %v2484 = vpack.c.bf16 %v2457, %v2456
      %v2485 = vpack.c.bf16 %v2459, %v2458
      %v2486 = vpack.c.bf16 %v2461, %v2460
      %v2487 = vpack.c.bf16 %v2463, %v2462
      %v2488 = vpack.c.bf16 %v2465, %v2464
      %v2489 = vpack.c.bf16 %v2467, %v2466
      %v2490 = vpack.c.bf16 %v2469, %v2468
      %v2491 = vpack.c.bf16 %v2471, %v2470
      %v2492 = vpack.c.bf16 %v2473, %v2472
      %v2493 = vpack.c.bf16 %v2475, %v2474
      %v2494 = vpack.c.bf16 %v2477, %v2476
      %v2495 = vpack.c.bf16 %v2479, %v2478
      %v2496 = vld [vmem:[%s1 + $0x1c0] sm:$0xf]
      %v2497 = vld [vmem:[%s1 + $0x1c4] sm:$0xf]
      %v2498 = vld [vmem:[%s1 + $0x1c8] sm:$0xf]
      %v2499 = vld [vmem:[%s1 + $0x1cc] sm:$0xf]
      %v2500 = vld [vmem:[%s1 + $0x1d0] sm:$0xf]
      %v2501 = vld [vmem:[%s1 + $0x1d4] sm:$0xf]
      %v2502 = vld [vmem:[%s1 + $0x1d8] sm:$0xf]
      %v2503 = vld [vmem:[%s1 + $0x1dc] sm:$0xf]
      %v2504 = vld [vmem:[%s1 + $0x1e0] sm:$0xf]
      %v2505 = vld [vmem:[%s1 + $0x1e4] sm:$0xf]
      %v2506 = vld [vmem:[%s1 + $0x1e8] sm:$0xf]
      %v2507 = vld [vmem:[%s1 + $0x1ec] sm:$0xf]
      %v2508 = vld [vmem:[%s1 + $0x1f0] sm:$0xf]
      %v2509 = vld [vmem:[%s1 + $0x1f4] sm:$0xf]
      %v2510 = vld [vmem:[%s1 + $0x1f8] sm:$0xf]
      %v2511 = vld [vmem:[%s1 + $0x1fc] sm:$0xf]
      %v2528 = vunpack.c.l.b16 %v2496
      %v2529 = vunpack.c.l.b16 %v2497
      %v2530 = vunpack.c.l.b16 %v2498
      %v2531 = vunpack.c.l.b16 %v2499
      %v2532 = vunpack.c.l.b16 %v2500
      %v2533 = vunpack.c.l.b16 %v2501
      %v2534 = vunpack.c.l.b16 %v2502
      %v2535 = vunpack.c.l.b16 %v2503
      %v2536 = vunpack.c.l.b16 %v2504
      %v2537 = vunpack.c.l.b16 %v2505
      %v2538 = vunpack.c.l.b16 %v2506
      %v2539 = vunpack.c.l.b16 %v2507
      %v2540 = vunpack.c.l.b16 %v2508
      %v2541 = vunpack.c.l.b16 %v2509
      %v2542 = vunpack.c.l.b16 %v2510
      %v2543 = vunpack.c.l.b16 %v2511
      %v2544 = vpack.c.b16 %v2529, %v2528
      %v2545 = vpack.c.b16 %v2531, %v2530
      %v2546 = vpack.c.b16 %v2533, %v2532
      %v2547 = vpack.c.b16 %v2535, %v2534
      %v2548 = vpack.c.b16 %v2537, %v2536
      %v2549 = vpack.c.b16 %v2539, %v2538
      %v2550 = vpack.c.b16 %v2541, %v2540
      %v2551 = vpack.c.b16 %v2543, %v2542
      %2560 = vmatprep.subr.bf16.mxu0 0
      %2561 = vmatpush1.bf16.msra.mxu0 %v2551
      %2562 = vmatprep.subr.bf16.mxu0 0
      %2563 = vmatpush1.bf16.msra.mxu0 %v2550
      %2564 = vmatprep.subr.bf16.mxu0 0
      %2565 = vmatpush1.bf16.msra.mxu0 %v2549
      %2566 = vmatprep.subr.bf16.mxu0 0
      %2567 = vmatpush1.bf16.msra.mxu0 %v2548
      %2568 = vmatprep.subr.bf16.mxu0 0
      %2569 = vmatpush1.bf16.msra.mxu0 %v2547
      %2570 = vmatprep.subr.bf16.mxu0 0
      %2571 = vmatpush1.bf16.msra.mxu0 %v2546
      %2572 = vmatprep.subr.bf16.mxu0 0
      %2573 = vmatpush1.bf16.msra.mxu0 %v2545
      %2574 = vmatprep.subr.bf16.mxu0 0
      %2575 = vmatpush1.bf16.msra.mxu0 %v2544
      %2576 = vmatprep.subr.bf16.mxu0 0
      %2577 = vmatpush2.bf16.msra.mxu0 0
      %2578 = vmatprep.subr.bf16.mxu0 0
      %2579 = vmatpush2.bf16.msra.mxu0 0
      %2580 = vmatprep.subr.bf16.mxu0 0
      %2581 = vmatpush2.bf16.msra.mxu0 0
      %2582 = vmatprep.subr.bf16.mxu0 0
      %2583 = vmatpush2.bf16.msra.mxu0 0
      %2584 = vmatprep.subr.bf16.mxu0 0
      %2585 = vmatpush2.bf16.msra.mxu0 0
      %2586 = vmatprep.subr.bf16.mxu0 0
      %2587 = vmatpush2.bf16.msra.mxu0 0
      %2588 = vmatprep.subr.bf16.mxu0 0
      %2589 = vmatpush2.bf16.msra.mxu0 0
      %2590 = vmatprep.subr.bf16.mxu0 0
      %2591 = vmatpush2.bf16.msra.mxu0 0
      %2592 = vmatprep.mubr.bf16.mxu0 0
      %2593 = vmatmul.mubr.bf16.gmra.mxu0 %v2480
      %v2594 = vpop.f32.mrf.mxu0
      %v2595 = vadd.f32 0.0, %v2594
      %v2596 = vpop.f32.mrf.mxu0
      %v2597 = vpop.f32.mrf.mxu0
      %v2598 = vadd.f32 0.0, %v2597
      %v2599 = vpop.f32.mrf.mxu0
      %2600 = vmatprep.mubr.bf16.mxu0 0
      %2601 = vmatmul.mubr.bf16.gmra.mxu0 %v2481
      %v2602 = vpop.f32.mrf.mxu0
      %v2603 = vadd.f32 0.0, %v2602
      %v2604 = vpop.f32.mrf.mxu0
      %v2605 = vpop.f32.mrf.mxu0
      %v2606 = vadd.f32 0.0, %v2605
      %v2607 = vpop.f32.mrf.mxu0
      %2608 = vmatprep.mubr.bf16.mxu0 0
      %2609 = vmatmul.mubr.bf16.gmra.mxu0 %v2482
      %v2610 = vpop.f32.mrf.mxu0
      %v2611 = vadd.f32 0.0, %v2610
      %v2612 = vpop.f32.mrf.mxu0
      %v2613 = vpop.f32.mrf.mxu0
      %v2614 = vadd.f32 0.0, %v2613
      %v2615 = vpop.f32.mrf.mxu0
      %2616 = vmatprep.mubr.bf16.mxu0 0
      %2617 = vmatmul.mubr.bf16.gmra.mxu0 %v2483
      %v2618 = vpop.f32.mrf.mxu0
      %v2619 = vadd.f32 0.0, %v2618
      %v2620 = vpop.f32.mrf.mxu0
      %v2621 = vpop.f32.mrf.mxu0
      %v2622 = vadd.f32 0.0, %v2621
      %v2623 = vpop.f32.mrf.mxu0
      %2624 = vmatprep.mubr.bf16.mxu0 0
      %2625 = vmatmul.mubr.bf16.gmra.mxu0 %v2484
      %v2626 = vpop.f32.mrf.mxu0
      %v2627 = vadd.f32 0.0, %v2626
      %v2628 = vpop.f32.mrf.mxu0
      %v2629 = vpop.f32.mrf.mxu0
      %v2630 = vadd.f32 0.0, %v2629
      %v2631 = vpop.f32.mrf.mxu0
      %2632 = vmatprep.mubr.bf16.mxu0 0
      %2633 = vmatmul.mubr.bf16.gmra.mxu0 %v2485
      %v2634 = vpop.f32.mrf.mxu0
      %v2635 = vadd.f32 0.0, %v2634
      %v2636 = vpop.f32.mrf.mxu0
      %v2637 = vpop.f32.mrf.mxu0
      %v2638 = vadd.f32 0.0, %v2637
      %v2639 = vpop.f32.mrf.mxu0
      %2640 = vmatprep.mubr.bf16.mxu0 0
      %2641 = vmatmul.mubr.bf16.gmra.mxu0 %v2486
      %v2642 = vpop.f32.mrf.mxu0
      %v2643 = vadd.f32 0.0, %v2642
      %v2644 = vpop.f32.mrf.mxu0
      %v2645 = vpop.f32.mrf.mxu0
      %v2646 = vadd.f32 0.0, %v2645
      %v2647 = vpop.f32.mrf.mxu0
      %2648 = vmatprep.mubr.bf16.mxu0 0
      %2649 = vmatmul.mubr.bf16.gmra.mxu0 %v2487
      %v2650 = vpop.f32.mrf.mxu0
      %v2651 = vadd.f32 0.0, %v2650
      %v2652 = vpop.f32.mrf.mxu0
      %v2653 = vpop.f32.mrf.mxu0
      %v2654 = vadd.f32 0.0, %v2653
      %v2655 = vpop.f32.mrf.mxu0
      %2656 = vmatprep.mubr.bf16.mxu0 0
      %2657 = vmatmul.mubr.bf16.gmra.mxu0 %v2488
      %v2658 = vpop.f32.mrf.mxu0
      %v2659 = vadd.f32 0.0, %v2658
      %v2660 = vpop.f32.mrf.mxu0
      %v2661 = vpop.f32.mrf.mxu0
      %v2662 = vadd.f32 0.0, %v2661
      %v2663 = vpop.f32.mrf.mxu0
      %2664 = vmatprep.mubr.bf16.mxu0 0
      %2665 = vmatmul.mubr.bf16.gmra.mxu0 %v2489
      %v2666 = vpop.f32.mrf.mxu0
      %v2667 = vadd.f32 0.0, %v2666
      %v2668 = vpop.f32.mrf.mxu0
      %v2669 = vpop.f32.mrf.mxu0
      %v2670 = vadd.f32 0.0, %v2669
      %v2671 = vpop.f32.mrf.mxu0
      %2672 = vmatprep.mubr.bf16.mxu0 0
      %2673 = vmatmul.mubr.bf16.gmra.mxu0 %v2490
      %v2674 = vpop.f32.mrf.mxu0
      %v2675 = vadd.f32 0.0, %v2674
      %v2676 = vpop.f32.mrf.mxu0
      %v2677 = vpop.f32.mrf.mxu0
      %v2678 = vadd.f32 0.0, %v2677
      %v2679 = vpop.f32.mrf.mxu0
      %2680 = vmatprep.mubr.bf16.mxu0 0
      %2681 = vmatmul.mubr.bf16.gmra.mxu0 %v2491
      %v2682 = vpop.f32.mrf.mxu0
      %v2683 = vadd.f32 0.0, %v2682
      %v2684 = vpop.f32.mrf.mxu0
      %v2685 = vpop.f32.mrf.mxu0
      %v2686 = vadd.f32 0.0, %v2685
      %v2687 = vpop.f32.mrf.mxu0
      %2688 = vmatprep.mubr.bf16.mxu0 0
      %2689 = vmatmul.mubr.bf16.gmra.mxu0 %v2492
      %v2690 = vpop.f32.mrf.mxu0
      %v2691 = vadd.f32 0.0, %v2690
      %v2692 = vpop.f32.mrf.mxu0
      %v2693 = vpop.f32.mrf.mxu0
      %v2694 = vadd.f32 0.0, %v2693
      %v2695 = vpop.f32.mrf.mxu0
      %2696 = vmatprep.mubr.bf16.mxu0 0
      %2697 = vmatmul.mubr.bf16.gmra.mxu0 %v2493
      %v2698 = vpop.f32.mrf.mxu0
      %v2699 = vadd.f32 0.0, %v2698
      %v2700 = vpop.f32.mrf.mxu0
      %v2701 = vpop.f32.mrf.mxu0
      %v2702 = vadd.f32 0.0, %v2701
      %v2703 = vpop.f32.mrf.mxu0
      %2704 = vmatprep.mubr.bf16.mxu0 0
      %2705 = vmatmul.mubr.bf16.gmra.mxu0 %v2494
      %v2706 = vpop.f32.mrf.mxu0
      %v2707 = vadd.f32 0.0, %v2706
      %v2708 = vpop.f32.mrf.mxu0
      %v2709 = vpop.f32.mrf.mxu0
      %v2710 = vadd.f32 0.0, %v2709
      %v2711 = vpop.f32.mrf.mxu0
      %2712 = vmatprep.mubr.bf16.mxu0 0
      %2713 = vmatmul.mubr.bf16.gmra.mxu0 %v2495
      %v2714 = vpop.f32.mrf.mxu0
      %v2715 = vadd.f32 0.0, %v2714
      %v2716 = vpop.f32.mrf.mxu0
      %v2717 = vpop.f32.mrf.mxu0
      %v2718 = vadd.f32 0.0, %v2717
      %v2719 = vpop.f32.mrf.mxu0
      %2720 = vdwg.mxu0
      %v2721 = vadd.f32 %v2416, %v2595
      %v2722 = vadd.f32 %v2417, %v2598
      %v2723 = vadd.f32 %v2418, %v2603
      %v2724 = vadd.f32 %v2419, %v2606
      %v2725 = vadd.f32 %v2420, %v2611
      %v2726 = vadd.f32 %v2421, %v2614
      %v2727 = vadd.f32 %v2422, %v2619
      %v2728 = vadd.f32 %v2423, %v2622
      %v2729 = vadd.f32 %v2424, %v2627
      %v2730 = vadd.f32 %v2425, %v2630
      %v2731 = vadd.f32 %v2426, %v2635
      %v2732 = vadd.f32 %v2427, %v2638
      %v2733 = vadd.f32 %v2428, %v2643
      %v2734 = vadd.f32 %v2429, %v2646
      %v2735 = vadd.f32 %v2430, %v2651
      %v2736 = vadd.f32 %v2431, %v2654
      %v2737 = vadd.f32 %v2432, %v2659
      %v2738 = vadd.f32 %v2433, %v2662
      %v2739 = vadd.f32 %v2434, %v2667
      %v2740 = vadd.f32 %v2435, %v2670
      %v2741 = vadd.f32 %v2436, %v2675
      %v2742 = vadd.f32 %v2437, %v2678
      %v2743 = vadd.f32 %v2438, %v2683
      %v2744 = vadd.f32 %v2439, %v2686
      %v2745 = vadd.f32 %v2440, %v2691
      %v2746 = vadd.f32 %v2441, %v2694
      %v2747 = vadd.f32 %v2442, %v2699
      %v2748 = vadd.f32 %v2443, %v2702
      %v2749 = vadd.f32 %v2444, %v2707
      %v2750 = vadd.f32 %v2445, %v2710
      %v2751 = vadd.f32 %v2446, %v2715
      %v2752 = vadd.f32 %v2447, %v2718
      %v2753 = vld [vmem:[%s2142 + $0x2] sm:$0xff]
      %v2754 = vld [vmem:[%s2142 + $0xa] sm:$0xff]
      %v2755 = vld [vmem:[%s2142 + $0x1a] sm:$0xff]
      %v2756 = vld [vmem:[%s2142 + $0x22] sm:$0xff]
      %v2757 = vld [vmem:[%s2142 + $0x32] sm:$0xff]
      %v2758 = vld [vmem:[%s2142 + $0x3a] sm:$0xff]
      %v2759 = vld [vmem:[%s2142 + $0x4a] sm:$0xff]
      %v2760 = vld [vmem:[%s2142 + $0x52] sm:$0xff]
      %v2761 = vld [vmem:[%s2142 + $0x62] sm:$0xff]
      %v2762 = vld [vmem:[%s2142 + $0x6a] sm:$0xff]
      %v2763 = vld [vmem:[%s2142 + $0x7a] sm:$0xff]
      %v2764 = vld [vmem:[%s2142 + $0x82] sm:$0xff]
      %v2765 = vld [vmem:[%s2142 + $0x92] sm:$0xff]
      %v2766 = vld [vmem:[%s2142 + $0x9a] sm:$0xff]
      %v2767 = vld [vmem:[%s2142 + $0xaa] sm:$0xff]
      %v2768 = vld [vmem:[%s2142 + $0xb2] sm:$0xff]
      %v2769 = vld [vmem:[%s2142 + $0xc2] sm:$0xff]
      %v2770 = vld [vmem:[%s2142 + $0xca] sm:$0xff]
      %v2771 = vld [vmem:[%s2142 + $0xda] sm:$0xff]
      %v2772 = vld [vmem:[%s2142 + $0xe2] sm:$0xff]
      %v2773 = vld [vmem:[%s2142 + $0xf2] sm:$0xff]
      %v2774 = vld [vmem:[%s2142 + $0xfa] sm:$0xff]
      %v2775 = vld [vmem:[%s2142 + $0x10a] sm:$0xff]
      %v2776 = vld [vmem:[%s2142 + $0x112] sm:$0xff]
      %v2777 = vld [vmem:[%s2142 + $0x122] sm:$0xff]
      %v2778 = vld [vmem:[%s2142 + $0x12a] sm:$0xff]
      %v2779 = vld [vmem:[%s2142 + $0x13a] sm:$0xff]
      %v2780 = vld [vmem:[%s2142 + $0x142] sm:$0xff]
      %v2781 = vld [vmem:[%s2142 + $0x152] sm:$0xff]
      %v2782 = vld [vmem:[%s2142 + $0x15a] sm:$0xff]
      %v2783 = vld [vmem:[%s2142 + $0x16a] sm:$0xff]
      %v2784 = vld [vmem:[%s2142 + $0x172] sm:$0xff]
      %v2785 = vpack.c.bf16 %v2754, %v2753
      %v2786 = vpack.c.bf16 %v2756, %v2755
      %v2787 = vpack.c.bf16 %v2758, %v2757
      %v2788 = vpack.c.bf16 %v2760, %v2759
      %v2789 = vpack.c.bf16 %v2762, %v2761
      %v2790 = vpack.c.bf16 %v2764, %v2763
      %v2791 = vpack.c.bf16 %v2766, %v2765
      %v2792 = vpack.c.bf16 %v2768, %v2767
      %v2793 = vpack.c.bf16 %v2770, %v2769
      %v2794 = vpack.c.bf16 %v2772, %v2771
      %v2795 = vpack.c.bf16 %v2774, %v2773
      %v2796 = vpack.c.bf16 %v2776, %v2775
      %v2797 = vpack.c.bf16 %v2778, %v2777
      %v2798 = vpack.c.bf16 %v2780, %v2779
      %v2799 = vpack.c.bf16 %v2782, %v2781
      %v2800 = vpack.c.bf16 %v2784, %v2783
      %v2801 = vld [vmem:[%s1 + $0x200] sm:$0xf]
      %v2802 = vld [vmem:[%s1 + $0x204] sm:$0xf]
      %v2803 = vld [vmem:[%s1 + $0x208] sm:$0xf]
      %v2804 = vld [vmem:[%s1 + $0x20c] sm:$0xf]
      %v2805 = vld [vmem:[%s1 + $0x210] sm:$0xf]
      %v2806 = vld [vmem:[%s1 + $0x214] sm:$0xf]
      %v2807 = vld [vmem:[%s1 + $0x218] sm:$0xf]
      %v2808 = vld [vmem:[%s1 + $0x21c] sm:$0xf]
      %v2809 = vld [vmem:[%s1 + $0x220] sm:$0xf]
      %v2810 = vld [vmem:[%s1 + $0x224] sm:$0xf]
      %v2811 = vld [vmem:[%s1 + $0x228] sm:$0xf]
      %v2812 = vld [vmem:[%s1 + $0x22c] sm:$0xf]
      %v2813 = vld [vmem:[%s1 + $0x230] sm:$0xf]
      %v2814 = vld [vmem:[%s1 + $0x234] sm:$0xf]
      %v2815 = vld [vmem:[%s1 + $0x238] sm:$0xf]
      %v2816 = vld [vmem:[%s1 + $0x23c] sm:$0xf]
      %v2833 = vunpack.c.l.b16 %v2801
      %v2834 = vunpack.c.l.b16 %v2802
      %v2835 = vunpack.c.l.b16 %v2803
      %v2836 = vunpack.c.l.b16 %v2804
      %v2837 = vunpack.c.l.b16 %v2805
      %v2838 = vunpack.c.l.b16 %v2806
      %v2839 = vunpack.c.l.b16 %v2807
      %v2840 = vunpack.c.l.b16 %v2808
      %v2841 = vunpack.c.l.b16 %v2809
      %v2842 = vunpack.c.l.b16 %v2810
      %v2843 = vunpack.c.l.b16 %v2811
      %v2844 = vunpack.c.l.b16 %v2812
      %v2845 = vunpack.c.l.b16 %v2813
      %v2846 = vunpack.c.l.b16 %v2814
      %v2847 = vunpack.c.l.b16 %v2815
      %v2848 = vunpack.c.l.b16 %v2816
      %v2849 = vpack.c.b16 %v2834, %v2833
      %v2850 = vpack.c.b16 %v2836, %v2835
      %v2851 = vpack.c.b16 %v2838, %v2837
      %v2852 = vpack.c.b16 %v2840, %v2839
      %v2853 = vpack.c.b16 %v2842, %v2841
      %v2854 = vpack.c.b16 %v2844, %v2843
      %v2855 = vpack.c.b16 %v2846, %v2845
      %v2856 = vpack.c.b16 %v2848, %v2847
      %2865 = vmatprep.subr.bf16.mxu0 0
      %2866 = vmatpush1.bf16.msra.mxu0 %v2856
      %2867 = vmatprep.subr.bf16.mxu0 0
      %2868 = vmatpush1.bf16.msra.mxu0 %v2855
      %2869 = vmatprep.subr.bf16.mxu0 0
      %2870 = vmatpush1.bf16.msra.mxu0 %v2854
      %2871 = vmatprep.subr.bf16.mxu0 0
      %2872 = vmatpush1.bf16.msra.mxu0 %v2853
      %2873 = vmatprep.subr.bf16.mxu0 0
      %2874 = vmatpush1.bf16.msra.mxu0 %v2852
      %2875 = vmatprep.subr.bf16.mxu0 0
      %2876 = vmatpush1.bf16.msra.mxu0 %v2851
      %2877 = vmatprep.subr.bf16.mxu0 0
      %2878 = vmatpush1.bf16.msra.mxu0 %v2850
      %2879 = vmatprep.subr.bf16.mxu0 0
      %2880 = vmatpush1.bf16.msra.mxu0 %v2849
      %2881 = vmatprep.subr.bf16.mxu0 0
      %2882 = vmatpush2.bf16.msra.mxu0 0
      %2883 = vmatprep.subr.bf16.mxu0 0
      %2884 = vmatpush2.bf16.msra.mxu0 0
      %2885 = vmatprep.subr.bf16.mxu0 0
      %2886 = vmatpush2.bf16.msra.mxu0 0
      %2887 = vmatprep.subr.bf16.mxu0 0
      %2888 = vmatpush2.bf16.msra.mxu0 0
      %2889 = vmatprep.subr.bf16.mxu0 0
      %2890 = vmatpush2.bf16.msra.mxu0 0
      %2891 = vmatprep.subr.bf16.mxu0 0
      %2892 = vmatpush2.bf16.msra.mxu0 0
      %2893 = vmatprep.subr.bf16.mxu0 0
      %2894 = vmatpush2.bf16.msra.mxu0 0
      %2895 = vmatprep.subr.bf16.mxu0 0
      %2896 = vmatpush2.bf16.msra.mxu0 0
      %2897 = vmatprep.mubr.bf16.mxu0 0
      %2898 = vmatmul.mubr.bf16.gmra.mxu0 %v2785
      %v2899 = vpop.f32.mrf.mxu0
      %v2900 = vadd.f32 0.0, %v2899
      %v2901 = vpop.f32.mrf.mxu0
      %v2902 = vpop.f32.mrf.mxu0
      %v2903 = vadd.f32 0.0, %v2902
      %v2904 = vpop.f32.mrf.mxu0
      %2905 = vmatprep.mubr.bf16.mxu0 0
      %2906 = vmatmul.mubr.bf16.gmra.mxu0 %v2786
      %v2907 = vpop.f32.mrf.mxu0
      %v2908 = vadd.f32 0.0, %v2907
      %v2909 = vpop.f32.mrf.mxu0
      %v2910 = vpop.f32.mrf.mxu0
      %v2911 = vadd.f32 0.0, %v2910
      %v2912 = vpop.f32.mrf.mxu0
      %2913 = vmatprep.mubr.bf16.mxu0 0
      %2914 = vmatmul.mubr.bf16.gmra.mxu0 %v2787
      %v2915 = vpop.f32.mrf.mxu0
      %v2916 = vadd.f32 0.0, %v2915
      %v2917 = vpop.f32.mrf.mxu0
      %v2918 = vpop.f32.mrf.mxu0
      %v2919 = vadd.f32 0.0, %v2918
      %v2920 = vpop.f32.mrf.mxu0
      %2921 = vmatprep.mubr.bf16.mxu0 0
      %2922 = vmatmul.mubr.bf16.gmra.mxu0 %v2788
      %v2923 = vpop.f32.mrf.mxu0
      %v2924 = vadd.f32 0.0, %v2923
      %v2925 = vpop.f32.mrf.mxu0
      %v2926 = vpop.f32.mrf.mxu0
      %v2927 = vadd.f32 0.0, %v2926
      %v2928 = vpop.f32.mrf.mxu0
      %2929 = vmatprep.mubr.bf16.mxu0 0
      %2930 = vmatmul.mubr.bf16.gmra.mxu0 %v2789
      %v2931 = vpop.f32.mrf.mxu0
      %v2932 = vadd.f32 0.0, %v2931
      %v2933 = vpop.f32.mrf.mxu0
      %v2934 = vpop.f32.mrf.mxu0
      %v2935 = vadd.f32 0.0, %v2934
      %v2936 = vpop.f32.mrf.mxu0
      %2937 = vmatprep.mubr.bf16.mxu0 0
      %2938 = vmatmul.mubr.bf16.gmra.mxu0 %v2790
      %v2939 = vpop.f32.mrf.mxu0
      %v2940 = vadd.f32 0.0, %v2939
      %v2941 = vpop.f32.mrf.mxu0
      %v2942 = vpop.f32.mrf.mxu0
      %v2943 = vadd.f32 0.0, %v2942
      %v2944 = vpop.f32.mrf.mxu0
      %2945 = vmatprep.mubr.bf16.mxu0 0
      %2946 = vmatmul.mubr.bf16.gmra.mxu0 %v2791
      %v2947 = vpop.f32.mrf.mxu0
      %v2948 = vadd.f32 0.0, %v2947
      %v2949 = vpop.f32.mrf.mxu0
      %v2950 = vpop.f32.mrf.mxu0
      %v2951 = vadd.f32 0.0, %v2950
      %v2952 = vpop.f32.mrf.mxu0
      %2953 = vmatprep.mubr.bf16.mxu0 0
      %2954 = vmatmul.mubr.bf16.gmra.mxu0 %v2792
      %v2955 = vpop.f32.mrf.mxu0
      %v2956 = vadd.f32 0.0, %v2955
      %v2957 = vpop.f32.mrf.mxu0
      %v2958 = vpop.f32.mrf.mxu0
      %v2959 = vadd.f32 0.0, %v2958
      %v2960 = vpop.f32.mrf.mxu0
      %2961 = vmatprep.mubr.bf16.mxu0 0
      %2962 = vmatmul.mubr.bf16.gmra.mxu0 %v2793
      %v2963 = vpop.f32.mrf.mxu0
      %v2964 = vadd.f32 0.0, %v2963
      %v2965 = vpop.f32.mrf.mxu0
      %v2966 = vpop.f32.mrf.mxu0
      %v2967 = vadd.f32 0.0, %v2966
      %v2968 = vpop.f32.mrf.mxu0
      %2969 = vmatprep.mubr.bf16.mxu0 0
      %2970 = vmatmul.mubr.bf16.gmra.mxu0 %v2794
      %v2971 = vpop.f32.mrf.mxu0
      %v2972 = vadd.f32 0.0, %v2971
      %v2973 = vpop.f32.mrf.mxu0
      %v2974 = vpop.f32.mrf.mxu0
      %v2975 = vadd.f32 0.0, %v2974
      %v2976 = vpop.f32.mrf.mxu0
      %2977 = vmatprep.mubr.bf16.mxu0 0
      %2978 = vmatmul.mubr.bf16.gmra.mxu0 %v2795
      %v2979 = vpop.f32.mrf.mxu0
      %v2980 = vadd.f32 0.0, %v2979
      %v2981 = vpop.f32.mrf.mxu0
      %v2982 = vpop.f32.mrf.mxu0
      %v2983 = vadd.f32 0.0, %v2982
      %v2984 = vpop.f32.mrf.mxu0
      %2985 = vmatprep.mubr.bf16.mxu0 0
      %2986 = vmatmul.mubr.bf16.gmra.mxu0 %v2796
      %v2987 = vpop.f32.mrf.mxu0
      %v2988 = vadd.f32 0.0, %v2987
      %v2989 = vpop.f32.mrf.mxu0
      %v2990 = vpop.f32.mrf.mxu0
      %v2991 = vadd.f32 0.0, %v2990
      %v2992 = vpop.f32.mrf.mxu0
      %2993 = vmatprep.mubr.bf16.mxu0 0
      %2994 = vmatmul.mubr.bf16.gmra.mxu0 %v2797
      %v2995 = vpop.f32.mrf.mxu0
      %v2996 = vadd.f32 0.0, %v2995
      %v2997 = vpop.f32.mrf.mxu0
      %v2998 = vpop.f32.mrf.mxu0
      %v2999 = vadd.f32 0.0, %v2998
      %v3000 = vpop.f32.mrf.mxu0
      %3001 = vmatprep.mubr.bf16.mxu0 0
      %3002 = vmatmul.mubr.bf16.gmra.mxu0 %v2798
      %v3003 = vpop.f32.mrf.mxu0
      %v3004 = vadd.f32 0.0, %v3003
      %v3005 = vpop.f32.mrf.mxu0
      %v3006 = vpop.f32.mrf.mxu0
      %v3007 = vadd.f32 0.0, %v3006
      %v3008 = vpop.f32.mrf.mxu0
      %3009 = vmatprep.mubr.bf16.mxu0 0
      %3010 = vmatmul.mubr.bf16.gmra.mxu0 %v2799
      %v3011 = vpop.f32.mrf.mxu0
      %v3012 = vadd.f32 0.0, %v3011
      %v3013 = vpop.f32.mrf.mxu0
      %v3014 = vpop.f32.mrf.mxu0
      %v3015 = vadd.f32 0.0, %v3014
      %v3016 = vpop.f32.mrf.mxu0
      %3017 = vmatprep.mubr.bf16.mxu0 0
      %3018 = vmatmul.mubr.bf16.gmra.mxu0 %v2800
      %v3019 = vpop.f32.mrf.mxu0
      %v3020 = vadd.f32 0.0, %v3019
      %v3021 = vpop.f32.mrf.mxu0
      %v3022 = vpop.f32.mrf.mxu0
      %v3023 = vadd.f32 0.0, %v3022
      %v3024 = vpop.f32.mrf.mxu0
      %3025 = vdwg.mxu0
      %v3026 = vadd.f32 %v2721, %v2900
      %v3027 = vadd.f32 %v2722, %v2903
      %v3028 = vadd.f32 %v2723, %v2908
      %v3029 = vadd.f32 %v2724, %v2911
      %v3030 = vadd.f32 %v2725, %v2916
      %v3031 = vadd.f32 %v2726, %v2919
      %v3032 = vadd.f32 %v2727, %v2924
      %v3033 = vadd.f32 %v2728, %v2927
      %v3034 = vadd.f32 %v2729, %v2932
      %v3035 = vadd.f32 %v2730, %v2935
      %v3036 = vadd.f32 %v2731, %v2940
      %v3037 = vadd.f32 %v2732, %v2943
      %v3038 = vadd.f32 %v2733, %v2948
      %v3039 = vadd.f32 %v2734, %v2951
      %v3040 = vadd.f32 %v2735, %v2956
      %v3041 = vadd.f32 %v2736, %v2959
      %v3042 = vadd.f32 %v2737, %v2964
      %v3043 = vadd.f32 %v2738, %v2967
      %v3044 = vadd.f32 %v2739, %v2972
      %v3045 = vadd.f32 %v2740, %v2975
      %v3046 = vadd.f32 %v2741, %v2980
      %v3047 = vadd.f32 %v2742, %v2983
      %v3048 = vadd.f32 %v2743, %v2988
      %v3049 = vadd.f32 %v2744, %v2991
      %v3050 = vadd.f32 %v2745, %v2996
      %v3051 = vadd.f32 %v2746, %v2999
      %v3052 = vadd.f32 %v2747, %v3004
      %v3053 = vadd.f32 %v2748, %v3007
      %v3054 = vadd.f32 %v2749, %v3012
      %v3055 = vadd.f32 %v2750, %v3015
      %v3056 = vadd.f32 %v2751, %v3020
      %v3057 = vadd.f32 %v2752, %v3023
      %v3058 = vld [vmem:[%s2] sm:$0x1]
      %v3060 = vlaneseq
      %v3061 = vshrl.u32 %v3060, 7
      %v3062 = vsub.s32 0, %v3061
      %v3063 = vrot.slane %v3058, %v3062
      %v3065 = vadd.f32 %v3026, %v3063
      %v3066 = vadd.f32 %v3027, %v3063
      %v3067 = vadd.f32 %v3028, %v3063
      %v3068 = vadd.f32 %v3029, %v3063
      %v3069 = vadd.f32 %v3030, %v3063
      %v3070 = vadd.f32 %v3031, %v3063
      %v3071 = vadd.f32 %v3032, %v3063
      %v3072 = vadd.f32 %v3033, %v3063
      %v3073 = vadd.f32 %v3034, %v3063
      %v3074 = vadd.f32 %v3035, %v3063
      %v3075 = vadd.f32 %v3036, %v3063
      %v3076 = vadd.f32 %v3037, %v3063
      %v3077 = vadd.f32 %v3038, %v3063
      %v3078 = vadd.f32 %v3039, %v3063
      %v3079 = vadd.f32 %v3040, %v3063
      %v3080 = vadd.f32 %v3041, %v3063
      %v3081 = vadd.f32 %v3042, %v3063
      %v3082 = vadd.f32 %v3043, %v3063
      %v3083 = vadd.f32 %v3044, %v3063
      %v3084 = vadd.f32 %v3045, %v3063
      %v3085 = vadd.f32 %v3046, %v3063
      %v3086 = vadd.f32 %v3047, %v3063
      %v3087 = vadd.f32 %v3048, %v3063
      %v3088 = vadd.f32 %v3049, %v3063
      %v3089 = vadd.f32 %v3050, %v3063
      %v3090 = vadd.f32 %v3051, %v3063
      %v3091 = vadd.f32 %v3052, %v3063
      %v3092 = vadd.f32 %v3053, %v3063
      %v3093 = vadd.f32 %v3054, %v3063
      %v3094 = vadd.f32 %v3055, %v3063
      %v3095 = vadd.f32 %v3056, %v3063
      %v3096 = vadd.f32 %v3057, %v3063
      %3097 = vst [vmem:[%s170] sm:$0xff] %v3065
      %3098 = vst [vmem:[%s170 + $0x8] sm:$0xff] %v3066
      %3099 = vst [vmem:[%s170 + $0x10] sm:$0xff] %v3067
      %3100 = vst [vmem:[%s170 + $0x18] sm:$0xff] %v3068
      %3101 = vst [vmem:[%s170 + $0x20] sm:$0xff] %v3069
      %3102 = vst [vmem:[%s170 + $0x28] sm:$0xff] %v3070
      %3103 = vst [vmem:[%s170 + $0x30] sm:$0xff] %v3071
      %3104 = vst [vmem:[%s170 + $0x38] sm:$0xff] %v3072
      %3105 = vst [vmem:[%s170 + $0x40] sm:$0xff] %v3073
      %3106 = vst [vmem:[%s170 + $0x48] sm:$0xff] %v3074
      %3107 = vst [vmem:[%s170 + $0x50] sm:$0xff] %v3075
      %3108 = vst [vmem:[%s170 + $0x58] sm:$0xff] %v3076
      %3109 = vst [vmem:[%s170 + $0x60] sm:$0xff] %v3077
      %3110 = vst [vmem:[%s170 + $0x68] sm:$0xff] %v3078
      %3111 = vst [vmem:[%s170 + $0x70] sm:$0xff] %v3079
      %3112 = vst [vmem:[%s170 + $0x78] sm:$0xff] %v3080
      %3113 = vst [vmem:[%s170 + $0x80] sm:$0xff] %v3081
      %3114 = vst [vmem:[%s170 + $0x88] sm:$0xff] %v3082
      %3115 = vst [vmem:[%s170 + $0x90] sm:$0xff] %v3083
      %3116 = vst [vmem:[%s170 + $0x98] sm:$0xff] %v3084
      %3117 = vst [vmem:[%s170 + $0xa0] sm:$0xff] %v3085
      %3118 = vst [vmem:[%s170 + $0xa8] sm:$0xff] %v3086
      %3119 = vst [vmem:[%s170 + $0xb0] sm:$0xff] %v3087
      %3120 = vst [vmem:[%s170 + $0xb8] sm:$0xff] %v3088
      %3121 = vst [vmem:[%s170 + $0xc0] sm:$0xff] %v3089
      %3122 = vst [vmem:[%s170 + $0xc8] sm:$0xff] %v3090
      %3123 = vst [vmem:[%s170 + $0xd0] sm:$0xff] %v3091
      %3124 = vst [vmem:[%s170 + $0xd8] sm:$0xff] %v3092
      %3125 = vst [vmem:[%s170 + $0xe0] sm:$0xff] %v3093
      %3126 = vst [vmem:[%s170 + $0xe8] sm:$0xff] %v3094
      %3127 = vst [vmem:[%s170 + $0xf0] sm:$0xff] %v3095
      %3128 = vst [vmem:[%s170 + $0xf8] sm:$0xff] %v3096
      %p3129 = scmp.lt.s32.totalorder %s14, 1
      %s3130 = scalar_select %p3129, %s14, 1
      %s3131 = smul.addr %s3130, 32
      %s3132 = smul.addr %s3131, 8
      %s3133 = scalar_lea.vmem %s3, %s3132
      // Predicated region
      $region33: #{multi_spade3_forward.7} parent=31 // pred_check
        %p3134 = pneg %p100
      $region34: #{multi_spade3_forward.7} parent=31 // pred_check_branch
        %3136 = sbr.rel (%p3134) target = $region36
      $region35: #{multi_spade3_forward.7} parent=31 // pred_region
        _
      $region36: #{multi_spade3_forward.7} parent=31 // pred_fallthru
        _
    $region32: #{multi_spade3_forward.7} parent=5 // pred_fallthru
      _
    %p3137 = scmp.le.s32.totalorder 2, %s9
    // Predicated region
    $region37: #{multi_spade3_forward.7} parent=5 // pred_check
      %p3138 = pneg %p3137
    $region38: #{multi_spade3_forward.7} parent=5 // pred_check_branch
      %3140 = sbr.rel (%p3138) target = $region40
    $region39: #{multi_spade3_forward.7} parent=5 // pred_region
      %s3141 = ssub.s32 %s9, 2
      // Predicated region
      $region41: #{multi_spade3_forward.7} parent=39 // pred_check
        %p3142 = pneg %p106
      $region42: #{multi_spade3_forward.7} parent=39 // pred_check_branch
        %3144 = sbr.rel (%p3142) target = $region44
      $region43: #{multi_spade3_forward.7} parent=39 // pred_region
        %p3145 = scmp.lt.s32.totalorder %s15, 1
        %s3146 = scalar_select %p3145, %s15, 1
        %s3147 = smul.addr %s3146, 32
        %s3148 = smul.addr %s3147, 8
        %s3149 = scalar_lea.vmem %s3, %s3148
      $region44: #{multi_spade3_forward.7} parent=39 // pred_fallthru
        _
    $region40: #{multi_spade3_forward.7} parent=5 // pred_fallthru
      _
  $region6: #{multi_spade3_forward.7} parent=0 // loop_footer
    %s13 = sadd.s32 1, %s9
  $region7: #{multi_spade3_forward.7} parent=0 // loop_footer_branch
    %8 = sbr.rel target = $region3
  $region8: #{multi_spade3_forward.7} parent=0 // loop_exit
    _

// kernel: multi_spade3_forward.4
$region0: #{multi_spade3_forward.4}
  #allocation0 [shape = 'u32[]', space=smem, size = 0x4, offset = 0x4, fixed_abs, tag = 'smem constant byte address 0x4 - core index']
  #allocation1 [shape = 'u32[144,128]{1,0:T(1,128)}', space=vmem, size = 0x12000, scoped, tag = 'internal scratch']
  #allocation2 [shape = 'f32[18,18,128]{2,1,0:T(8,128)}', space=vmem, size = 0x36000, scoped, tag = 'scratch operand']
  #allocation3 [shape = 'f32[18,18,128]{2,1,0:T(8,128)}', space=vmem, size = 0x36000, scoped, tag = 'scratch operand']
  %s0 = inlined_call_operand.vmem [shape: f32[2,16,16,128], index: 0, kind: input, shape index: {}]
  %s1 = inlined_call_operand.vmem [shape: f32[2,16,16,128], index: 1, kind: input, shape index: {}]
  %s2 = inlined_call_operand.vmem [shape: bf16[1152,128], index: 2, kind: input, shape index: {}]
  %s3 = inlined_call_operand.vmem [shape: f32[1,128], index: 3, kind: input, shape index: {}]
  %s4 = inlined_call_operand.vmem [shape: bf16[1152,256], index: 4, kind: input, shape index: {}]
  %s5 = inlined_call_operand.vmem [shape: f32[1,256], index: 5, kind: input, shape index: {}]
  %s6 = inlined_call_operand.vmem [shape: f32[1,128], index: 6, kind: input, shape index: {}]
  %s7 = inlined_call_operand.vmem [shape: f32[1,128], index: 7, kind: input, shape index: {}]
  %s8 = inlined_call_operand.vmem [shape: f32[2,16,16,128], index: 8, kind: output, shape index: {}]
  %s9 = sld [smem:[#allocation0]]
  $region65: #{multi_spade3_forward.4} parent=0
    _
  %s11 = ssub.s32 1, %s9
  %s12 = scalar_select 0, %s11, %s9
  loop: start=0, step=1, limit=4
  $region2: #{multi_spade3_forward.4} parent=0 // loop_pre_header
    _
  $region3: #{multi_spade3_forward.4} parent=0 // loop_header
    %s14 = sphi 0, %s18
    %p15 = scmp.ge.s32.totalorder %s14, 4
    %s24 = sphi 0, %s26
    %s27 = sphi 0, %s24
    %s28 = sphi 0, %s27
    %s44 = sphi 0, %s28
    %s50 = sphi 0, %s52
    %s53 = sphi 0, %s50
    %s54 = sphi 0, %s53
    %s70 = sphi 0, %s54
    %s74 = sphi 0, %s74
    %s76 = sphi 0, %s74
    %s77 = sphi 0, %s76
    %s91 = sphi 0, %s77
    %s95 = sphi 0, %s95
    %s97 = sphi 0, %s95
    %s98 = sphi 0, %s97
    %s112 = sphi 0, %s98
    %s116 = sphi 0, %s116
    %s118 = sphi 0, %s116
    %s119 = sphi 0, %s118
    %s133 = sphi 0, %s119
    %s137 = sphi 0, %s137
    %s139 = sphi 0, %s137
    %s140 = sphi 0, %s139
    %s154 = sphi 0, %s140
    %s158 = sphi 0, %s158
    %s160 = sphi 0, %s158
    %s161 = sphi 0, %s160
    %s175 = sphi 0, %s161
    %s179 = sphi 0, %s179
    %s181 = sphi 0, %s179
    %s182 = sphi 0, %s181
    %s196 = sphi 0, %s182
    %s202 = sphi 0, %s204
    %s205 = sphi 0, %s202
    %s206 = sphi 0, %s205
    %s222 = sphi 0, %s206
  $region4: #{multi_spade3_forward.4} parent=0 // loop_header_branch
    %17 = sbr.rel (%p15) target = $region8
  $region5: #{multi_spade3_forward.4} parent=0 // loop_body
    %s19 = ssub.s32 %s14, 1
    %s20 = ssub.s32 %s14, 2
    %s21 = sadd.s32 %s14, 1
    %s22 = ssub.s32 %s14, %s21
    %p23 = scmp.eq.s32.totalorder %s22, 0
    %s25 = sadd.s32 %s24, 1
    %s26 = scalar_select %p23, %s24, %s25
    %p29 = pneg %p23
    %p30 = scmp.eq.s32.totalorder %s14, 1
    %p31 = por %p29, %p30
    %p32 = scmp.ne.s32.totalorder %s24, %s27
    %p33 = scmp.eq.s32.totalorder %s14, 0
    %p34 = por %p32, %p33
    %p35 = scmp.ne.s32.totalorder %s24, %s27
    %p36 = scmp.eq.s32.totalorder %s19, 1
    %p37 = por %p35, %p36
    %p38 = scmp.ne.s32.totalorder %s27, %s28
    %p39 = scmp.eq.s32.totalorder %s19, 0
    %p40 = por %p38, %p39
    %p41 = scmp.ne.s32.totalorder %s27, %s28
    %p42 = scmp.eq.s32.totalorder %s20, 1
    %p43 = por %p41, %p42
    %p45 = scmp.ne.s32.totalorder %s28, %s44
    %p46 = scmp.eq.s32.totalorder %s20, 0
    %p47 = por %p45, %p46
    %s48 = ssub.s32 %s14, %s21
    %p49 = scmp.eq.s32.totalorder %s48, 0
    %s51 = sadd.s32 %s50, 1
    %s52 = scalar_select %p49, %s50, %s51
    %p55 = pneg %p49
    %p56 = scmp.eq.s32.totalorder %s14, 1
    %p57 = por %p55, %p56
    %p58 = scmp.ne.s32.totalorder %s50, %s53
    %p59 = scmp.eq.s32.totalorder %s14, 0
    %p60 = por %p58, %p59
    %p61 = scmp.ne.s32.totalorder %s50, %s53
    %p62 = scmp.eq.s32.totalorder %s19, 1
    %p63 = por %p61, %p62
    %p64 = scmp.ne.s32.totalorder %s53, %s54
    %p65 = scmp.eq.s32.totalorder %s19, 0
    %p66 = por %p64, %p65
    %p67 = scmp.ne.s32.totalorder %s53, %s54
    %p68 = scmp.eq.s32.totalorder %s20, 1
    %p69 = por %p67, %p68
    %p71 = scmp.ne.s32.totalorder %s54, %s70
    %p72 = scmp.eq.s32.totalorder %s20, 0
    %p73 = por %p71, %p72
    %s75 = sadd.s32 %s74, 1
    %p78 = scmp.eq.s32.totalorder %s14, 1
    %p79 = scmp.ne.s32.totalorder %s74, %s76
    %p80 = scmp.eq.s32.totalorder %s14, 0
    %p81 = por %p79, %p80
    %p82 = scmp.ne.s32.totalorder %s74, %s76
    %p83 = scmp.eq.s32.totalorder %s19, 1
    %p84 = por %p82, %p83
    %p85 = scmp.ne.s32.totalorder %s76, %s77
    %p86 = scmp.eq.s32.totalorder %s19, 0
    %p87 = por %p85, %p86
    %p88 = scmp.ne.s32.totalorder %s76, %s77
    %p89 = scmp.eq.s32.totalorder %s20, 1
    %p90 = por %p88, %p89
    %p92 = scmp.ne.s32.totalorder %s77, %s91
    %p93 = scmp.eq.s32.totalorder %s20, 0
    %p94 = por %p92, %p93
    %s96 = sadd.s32 %s95, 1
    %p99 = scmp.eq.s32.totalorder %s14, 1
    %p100 = scmp.ne.s32.totalorder %s95, %s97
    %p101 = scmp.eq.s32.totalorder %s14, 0
    %p102 = por %p100, %p101
    %p103 = scmp.ne.s32.totalorder %s95, %s97
    %p104 = scmp.eq.s32.totalorder %s19, 1
    %p105 = por %p103, %p104
    %p106 = scmp.ne.s32.totalorder %s97, %s98
    %p107 = scmp.eq.s32.totalorder %s19, 0
    %p108 = por %p106, %p107
    %p109 = scmp.ne.s32.totalorder %s97, %s98
    %p110 = scmp.eq.s32.totalorder %s20, 1
    %p111 = por %p109, %p110
    %p113 = scmp.ne.s32.totalorder %s98, %s112
    %p114 = scmp.eq.s32.totalorder %s20, 0
    %p115 = por %p113, %p114
    %s117 = sadd.s32 %s116, 1
    %p120 = scmp.eq.s32.totalorder %s14, 1
    %p121 = scmp.ne.s32.totalorder %s116, %s118
    %p122 = scmp.eq.s32.totalorder %s14, 0
    %p123 = por %p121, %p122
    %p124 = scmp.ne.s32.totalorder %s116, %s118
    %p125 = scmp.eq.s32.totalorder %s19, 1
    %p126 = por %p124, %p125
    %p127 = scmp.ne.s32.totalorder %s118, %s119
    %p128 = scmp.eq.s32.totalorder %s19, 0
    %p129 = por %p127, %p128
    %p130 = scmp.ne.s32.totalorder %s118, %s119
    %p131 = scmp.eq.s32.totalorder %s20, 1
    %p132 = por %p130, %p131
    %p134 = scmp.ne.s32.totalorder %s119, %s133
    %p135 = scmp.eq.s32.totalorder %s20, 0
    %p136 = por %p134, %p135
    %s138 = sadd.s32 %s137, 1
    %p141 = scmp.eq.s32.totalorder %s14, 1
    %p142 = scmp.ne.s32.totalorder %s137, %s139
    %p143 = scmp.eq.s32.totalorder %s14, 0
    %p144 = por %p142, %p143
    %p145 = scmp.ne.s32.totalorder %s137, %s139
    %p146 = scmp.eq.s32.totalorder %s19, 1
    %p147 = por %p145, %p146
    %p148 = scmp.ne.s32.totalorder %s139, %s140
    %p149 = scmp.eq.s32.totalorder %s19, 0
    %p150 = por %p148, %p149
    %p151 = scmp.ne.s32.totalorder %s139, %s140
    %p152 = scmp.eq.s32.totalorder %s20, 1
    %p153 = por %p151, %p152
    %p155 = scmp.ne.s32.totalorder %s140, %s154
    %p156 = scmp.eq.s32.totalorder %s20, 0
    %p157 = por %p155, %p156
    %s159 = sadd.s32 %s158, 1
    %p162 = scmp.eq.s32.totalorder %s14, 1
    %p163 = scmp.ne.s32.totalorder %s158, %s160
    %p164 = scmp.eq.s32.totalorder %s14, 0
    %p165 = por %p163, %p164
    %p166 = scmp.ne.s32.totalorder %s158, %s160
    %p167 = scmp.eq.s32.totalorder %s19, 1
    %p168 = por %p166, %p167
    %p169 = scmp.ne.s32.totalorder %s160, %s161
    %p170 = scmp.eq.s32.totalorder %s19, 0
    %p171 = por %p169, %p170
    %p172 = scmp.ne.s32.totalorder %s160, %s161
    %p173 = scmp.eq.s32.totalorder %s20, 1
    %p174 = por %p172, %p173
    %p176 = scmp.ne.s32.totalorder %s161, %s175
    %p177 = scmp.eq.s32.totalorder %s20, 0
    %p178 = por %p176, %p177
    %s180 = sadd.s32 %s179, 1
    %p183 = scmp.eq.s32.totalorder %s14, 1
    %p184 = scmp.ne.s32.totalorder %s179, %s181
    %p185 = scmp.eq.s32.totalorder %s14, 0
    %p186 = por %p184, %p185
    %p187 = scmp.ne.s32.totalorder %s179, %s181
    %p188 = scmp.eq.s32.totalorder %s19, 1
    %p189 = por %p187, %p188
    %p190 = scmp.ne.s32.totalorder %s181, %s182
    %p191 = scmp.eq.s32.totalorder %s19, 0
    %p192 = por %p190, %p191
    %p193 = scmp.ne.s32.totalorder %s181, %s182
    %p194 = scmp.eq.s32.totalorder %s20, 1
    %p195 = por %p193, %p194
    %p197 = scmp.ne.s32.totalorder %s182, %s196
    %p198 = scmp.eq.s32.totalorder %s20, 0
    %p199 = por %p197, %p198
    %s200 = ssub.s32 %s14, %s21
    %p201 = scmp.eq.s32.totalorder %s200, 0
    %s203 = sadd.s32 %s202, 1
    %s204 = scalar_select %p201, %s202, %s203
    %p207 = pneg %p201
    %p208 = scmp.eq.s32.totalorder %s14, 1
    %p209 = por %p207, %p208
    %p210 = scmp.ne.s32.totalorder %s202, %s205
    %p211 = scmp.eq.s32.totalorder %s14, 0
    %p212 = por %p210, %p211
    %p213 = scmp.ne.s32.totalorder %s202, %s205
    %p214 = scmp.eq.s32.totalorder %s19, 1
    %p215 = por %p213, %p214
    %p216 = scmp.ne.s32.totalorder %s205, %s206
    %p217 = scmp.eq.s32.totalorder %s19, 0
    %p218 = por %p216, %p217
    %p219 = scmp.ne.s32.totalorder %s205, %s206
    %p220 = scmp.eq.s32.totalorder %s20, 1
    %p221 = por %p219, %p220
    %p223 = scmp.ne.s32.totalorder %s206, %s222
    %p224 = scmp.eq.s32.totalorder %s20, 0
    %p225 = por %p223, %p224
    %p226 = scmp.le.s32.totalorder 1, %s14
    %p227 = scmp.lt.s32.totalorder %s14, 3
    %p228 = pnand %p226, %p227
    %p229 = pneg %p228
    // Predicated region
    $region9: #{multi_spade3_forward.4} parent=5 // pred_check
      _
    $region10: #{multi_spade3_forward.4} parent=5 // pred_check_branch
      %231 = sbr.rel (%p228) target = $region12
    $region11: #{multi_spade3_forward.4} parent=5 // pred_region
      %s232 = ssub.s32 %s14, 1
      // Predicated region
      $region13: #{multi_spade3_forward.4} parent=11 // pred_check
        %p233 = pneg %p87
      $region14: #{multi_spade3_forward.4} parent=11 // pred_check_branch
        %235 = sbr.rel (%p233) target = $region16
      $region15: #{multi_spade3_forward.4} parent=11 // pred_region
        _
      $region16: #{multi_spade3_forward.4} parent=11 // pred_fallthru
        _
      // Predicated region
      $region17: #{multi_spade3_forward.4} parent=11 // pred_check
        %p236 = pneg %p108
      $region18: #{multi_spade3_forward.4} parent=11 // pred_check_branch
        %238 = sbr.rel (%p236) target = $region20
      $region19: #{multi_spade3_forward.4} parent=11 // pred_region
        _
      $region20: #{multi_spade3_forward.4} parent=11 // pred_fallthru
        _
      // Predicated region
      $region21: #{multi_spade3_forward.4} parent=11 // pred_check
        %p239 = pneg %p129
      $region22: #{multi_spade3_forward.4} parent=11 // pred_check_branch
        %241 = sbr.rel (%p239) target = $region24
      $region23: #{multi_spade3_forward.4} parent=11 // pred_region
        _
      $region24: #{multi_spade3_forward.4} parent=11 // pred_fallthru
        _
      // Predicated region
      $region25: #{multi_spade3_forward.4} parent=11 // pred_check
        %p242 = pneg %p150
      $region26: #{multi_spade3_forward.4} parent=11 // pred_check_branch
        %244 = sbr.rel (%p242) target = $region28
      $region27: #{multi_spade3_forward.4} parent=11 // pred_region
        _
      $region28: #{multi_spade3_forward.4} parent=11 // pred_fallthru
        _
      // Predicated region
      $region29: #{multi_spade3_forward.4} parent=11 // pred_check
        %p245 = pneg %p171
      $region30: #{multi_spade3_forward.4} parent=11 // pred_check_branch
        %247 = sbr.rel (%p245) target = $region32
      $region31: #{multi_spade3_forward.4} parent=11 // pred_region
        _
      $region32: #{multi_spade3_forward.4} parent=11 // pred_fallthru
        _
      // Predicated region
      $region33: #{multi_spade3_forward.4} parent=11 // pred_check
        %p248 = pneg %p192
      $region34: #{multi_spade3_forward.4} parent=11 // pred_check_branch
        %250 = sbr.rel (%p248) target = $region36
      $region35: #{multi_spade3_forward.4} parent=11 // pred_region
        _
      $region36: #{multi_spade3_forward.4} parent=11 // pred_fallthru
        _
    $region12: #{multi_spade3_forward.4} parent=5 // pred_fallthru
      _
    %p251 = scmp.lt.s32.totalorder %s14, 2
    // Predicated region
    $region37: #{multi_spade3_forward.4} parent=5 // pred_check
      %p252 = pneg %p251
    $region38: #{multi_spade3_forward.4} parent=5 // pred_check_branch
      %254 = sbr.rel (%p252) target = $region40
    $region39: #{multi_spade3_forward.4} parent=5 // pred_region
      // Predicated region
      $region41: #{multi_spade3_forward.4} parent=39 // pred_check
        %p255 = pneg %p34
      $region42: #{multi_spade3_forward.4} parent=39 // pred_check_branch
        %257 = sbr.rel (%p255) target = $region44
      $region43: #{multi_spade3_forward.4} parent=39 // pred_region
        %p258 = scmp.lt.s32.totalorder %s14, 1
        %s259 = scalar_select %p258, %s14, 1
        %s260 = smul.addr %s259, 32
        %s261 = smul.addr %s260, 8
        %s262 = scalar_lea.vmem %s0, %s261
      $region44: #{multi_spade3_forward.4} parent=39 // pred_fallthru
        _
      // Predicated region
      $region45: #{multi_spade3_forward.4} parent=39 // pred_check
        %p263 = pneg %p60
      $region46: #{multi_spade3_forward.4} parent=39 // pred_check_branch
        %265 = sbr.rel (%p263) target = $region48
      $region47: #{multi_spade3_forward.4} parent=39 // pred_region
        %p266 = scmp.lt.s32.totalorder %s14, 1
        %s267 = scalar_select %p266, %s14, 1
        %s268 = smul.addr %s267, 32
        %s269 = smul.addr %s268, 8
        %s270 = scalar_lea.vmem %s1, %s269
      $region48: #{multi_spade3_forward.4} parent=39 // pred_fallthru
        _
    $region40: #{multi_spade3_forward.4} parent=5 // pred_fallthru
      _
    %p271 = scmp.le.s32.totalorder 1, %s14
    %p272 = scmp.lt.s32.totalorder %s14, 3
    %p273 = pnand %p271, %p272
    %p274 = pneg %p273
    // Predicated region
    $region49: #{multi_spade3_forward.4} parent=5 // pred_check
      _
    $region50: #{multi_spade3_forward.4} parent=5 // pred_check_branch
      %276 = sbr.rel (%p273) target = $region52
    $region51: #{multi_spade3_forward.4} parent=5 // pred_region
      %s277 = ssub.s32 %s14, 1
      %p278 = scmp.lt.s32.totalorder %s19, 1
      %s279 = scalar_select %p278, %s19, 1
      %s280 = smul.addr %s279, 32
      %s281 = smul.addr %s280, 8
      %s282 = scalar_lea.vmem %s0, %s281
      %p283 = pneg %p40
      %p284 = pneg %p37
      %p285 = scmp.lt.s32.totalorder %s19, 1
      %s286 = scalar_select %p285, %s19, 1
      %s287 = smul.addr %s286, 32
      %s288 = smul.addr %s287, 8
      %s289 = scalar_lea.vmem %s1, %s288
      %p290 = pneg %p66
      %p291 = pneg %p63
      %p292 = pneg %p87
      %p293 = pneg %p84
      %p294 = pneg %p108
      %p295 = pneg %p105
      %p296 = pneg %p129
      %p297 = pneg %p126
      %p298 = pneg %p150
      %p299 = pneg %p147
      %p300 = pneg %p171
      %p301 = pneg %p168
      %p302 = pneg %p192
      %p303 = pneg %p189
      %p304 = pneg %p218
      %p305 = pneg %p215
      %p306 = scmp.lt.s32.totalorder %s19, 1
      %s307 = scalar_select %p306, %s19, 1
      %s308 = smul.addr %s307, 32
      %s309 = smul.addr %s308, 8
      %s310 = scalar_lea.vmem %s8, %s309
      %p311 = scmp.lt.s32.totalorder %s19, 1
      %s312 = scalar_select %p311, %s19, 1
      %s313 = smul.addr %s312, 32
      %s314 = smul.addr %s313, 8
      %s315 = scalar_lea.vmem %s0, %s314
      %p316 = scmp.lt.s32.totalorder %s19, 1
      %s317 = scalar_select %p316, %s19, 1
      %s318 = smul.addr %s317, 32
      %s319 = smul.addr %s318, 8
      %s320 = scalar_lea.vmem %s1, %s319
      %p321 = scmp.lt.s32.totalorder %s19, 1
      %s322 = scalar_select %p321, %s19, 1
      %s323 = smul.addr %s322, 32
      %s324 = smul.addr %s323, 8
      %s325 = scalar_lea.vmem %s8, %s324
      %327 = vst [vmem:[#allocation2] sm:$0xff] 0.0
      %328 = vst [vmem:[#allocation2 + $0x8] sm:$0xff] 0.0
      %329 = vst [vmem:[#allocation2 + $0x10] sm:$0x3] 0.0
      %s330 = scalar_lea.vmem [#allocation2], 408
      %331 = vst [vmem:[%s330] sm:$0xff] 0.0
      %332 = vst [vmem:[%s330 + $0x8] sm:$0xff] 0.0
      %333 = vst [vmem:[%s330 + $0x10] sm:$0x3] 0.0
      %334 = vst [vmem:[#allocation2] sm:$0x1] 0.0
      %335 = vst [vmem:[#allocation2 + $0x18] sm:$0x1] 0.0
      %336 = vst [vmem:[#allocation2 + $0x30] sm:$0x1] 0.0
      %337 = vst [vmem:[#allocation2 + $0x48] sm:$0x1] 0.0
      %338 = vst [vmem:[#allocation2 + $0x60] sm:$0x1] 0.0
      %339 = vst [vmem:[#allocation2 + $0x78] sm:$0x1] 0.0
      %340 = vst [vmem:[#allocation2 + $0x90] sm:$0x1] 0.0
      %341 = vst [vmem:[#allocation2 + $0xa8] sm:$0x1] 0.0
      %342 = vst [vmem:[#allocation2 + $0xc0] sm:$0x1] 0.0
      %343 = vst [vmem:[#allocation2 + $0xd8] sm:$0x1] 0.0
      %344 = vst [vmem:[#allocation2 + $0xf0] sm:$0x1] 0.0
      %345 = vst [vmem:[#allocation2 + $0x108] sm:$0x1] 0.0
      %346 = vst [vmem:[#allocation2 + $0x120] sm:$0x1] 0.0
      %347 = vst [vmem:[#allocation2 + $0x138] sm:$0x1] 0.0
      %348 = vst [vmem:[#allocation2 + $0x150] sm:$0x1] 0.0
      %349 = vst [vmem:[#allocation2 + $0x168] sm:$0x1] 0.0
      %350 = vst [vmem:[#allocation2 + $0x180] sm:$0x1] 0.0
      %351 = vst [vmem:[#allocation2 + $0x198] sm:$0x1] 0.0
      %352 = vst [vmem:[#allocation2 + $0x11] sm:$0x1] 0.0
      %353 = vst [vmem:[#allocation2 + $0x29] sm:$0x1] 0.0
      %354 = vst [vmem:[#allocation2 + $0x41] sm:$0x1] 0.0
      %355 = vst [vmem:[#allocation2 + $0x59] sm:$0x1] 0.0
      %356 = vst [vmem:[#allocation2 + $0x71] sm:$0x1] 0.0
      %357 = vst [vmem:[#allocation2 + $0x89] sm:$0x1] 0.0
      %358 = vst [vmem:[#allocation2 + $0xa1] sm:$0x1] 0.0
      %359 = vst [vmem:[#allocation2 + $0xb9] sm:$0x1] 0.0
      %360 = vst [vmem:[#allocation2 + $0xd1] sm:$0x1] 0.0
      %361 = vst [vmem:[#allocation2 + $0xe9] sm:$0x1] 0.0
      %362 = vst [vmem:[#allocation2 + $0x101] sm:$0x1] 0.0
      %363 = vst [vmem:[#allocation2 + $0x119] sm:$0x1] 0.0
      %364 = vst [vmem:[#allocation2 + $0x131] sm:$0x1] 0.0
      %365 = vst [vmem:[#allocation2 + $0x149] sm:$0x1] 0.0
      %366 = vst [vmem:[#allocation2 + $0x161] sm:$0x1] 0.0
      %367 = vst [vmem:[#allocation2 + $0x179] sm:$0x1] 0.0
      %368 = vst [vmem:[#allocation2 + $0x191] sm:$0x1] 0.0
      %369 = vst [vmem:[#allocation2 + $0x1a9] sm:$0x1] 0.0
      %v370 = vld [vmem:[%s320] sm:$0xff]
      %v371 = vld [vmem:[%s320 + $0x8] sm:$0xff]
      %v372 = vld [vmem:[%s320 + $0x10] sm:$0xff]
      %v373 = vld [vmem:[%s320 + $0x18] sm:$0xff]
      %v374 = vld [vmem:[%s320 + $0x20] sm:$0xff]
      %v375 = vld [vmem:[%s320 + $0x28] sm:$0xff]
      %v376 = vld [vmem:[%s320 + $0x30] sm:$0xff]
      %v377 = vld [vmem:[%s320 + $0x38] sm:$0xff]
      %v378 = vld [vmem:[%s320 + $0x40] sm:$0xff]
      %v379 = vld [vmem:[%s320 + $0x48] sm:$0xff]
      %v380 = vld [vmem:[%s320 + $0x50] sm:$0xff]
      %v381 = vld [vmem:[%s320 + $0x58] sm:$0xff]
      %v382 = vld [vmem:[%s320 + $0x60] sm:$0xff]
      %v383 = vld [vmem:[%s320 + $0x68] sm:$0xff]
      %v384 = vld [vmem:[%s320 + $0x70] sm:$0xff]
      %v385 = vld [vmem:[%s320 + $0x78] sm:$0xff]
      %v386 = vld [vmem:[%s320 + $0x80] sm:$0xff]
      %v387 = vld [vmem:[%s320 + $0x88] sm:$0xff]
      %v388 = vld [vmem:[%s320 + $0x90] sm:$0xff]
      %v389 = vld [vmem:[%s320 + $0x98] sm:$0xff]
      %v390 = vld [vmem:[%s320 + $0xa0] sm:$0xff]
      %v391 = vld [vmem:[%s320 + $0xa8] sm:$0xff]
      %v392 = vld [vmem:[%s320 + $0xb0] sm:$0xff]
      %v393 = vld [vmem:[%s320 + $0xb8] sm:$0xff]
      %v394 = vld [vmem:[%s320 + $0xc0] sm:$0xff]
      %v395 = vld [vmem:[%s320 + $0xc8] sm:$0xff]
      %v396 = vld [vmem:[%s320 + $0xd0] sm:$0xff]
      %v397 = vld [vmem:[%s320 + $0xd8] sm:$0xff]
      %v398 = vld [vmem:[%s320 + $0xe0] sm:$0xff]
      %v399 = vld [vmem:[%s320 + $0xe8] sm:$0xff]
      %v400 = vld [vmem:[%s320 + $0xf0] sm:$0xff]
      %v401 = vld [vmem:[%s320 + $0xf8] sm:$0xff]
      %s402 = scalar_lea.vmem [#allocation2], 24
      %403 = vst [vmem:[%s402 + $0x1] sm:$0xff] %v370
      %404 = vst [vmem:[%s402 + $0x9] sm:$0xff] %v371
      %405 = vst [vmem:[%s402 + $0x19] sm:$0xff] %v372
      %406 = vst [vmem:[%s402 + $0x21] sm:$0xff] %v373
      %407 = vst [vmem:[%s402 + $0x31] sm:$0xff] %v374
      %408 = vst [vmem:[%s402 + $0x39] sm:$0xff] %v375
      %409 = vst [vmem:[%s402 + $0x49] sm:$0xff] %v376
      %410 = vst [vmem:[%s402 + $0x51] sm:$0xff] %v377
      %411 = vst [vmem:[%s402 + $0x61] sm:$0xff] %v378
      %412 = vst [vmem:[%s402 + $0x69] sm:$0xff] %v379
      %413 = vst [vmem:[%s402 + $0x79] sm:$0xff] %v380
      %414 = vst [vmem:[%s402 + $0x81] sm:$0xff] %v381
      %415 = vst [vmem:[%s402 + $0x91] sm:$0xff] %v382
      %416 = vst [vmem:[%s402 + $0x99] sm:$0xff] %v383
      %417 = vst [vmem:[%s402 + $0xa9] sm:$0xff] %v384
      %418 = vst [vmem:[%s402 + $0xb1] sm:$0xff] %v385
      %419 = vst [vmem:[%s402 + $0xc1] sm:$0xff] %v386
      %420 = vst [vmem:[%s402 + $0xc9] sm:$0xff] %v387
      %421 = vst [vmem:[%s402 + $0xd9] sm:$0xff] %v388
      %422 = vst [vmem:[%s402 + $0xe1] sm:$0xff] %v389
      %423 = vst [vmem:[%s402 + $0xf1] sm:$0xff] %v390
      %424 = vst [vmem:[%s402 + $0xf9] sm:$0xff] %v391
      %425 = vst [vmem:[%s402 + $0x109] sm:$0xff] %v392
      %426 = vst [vmem:[%s402 + $0x111] sm:$0xff] %v393
      %427 = vst [vmem:[%s402 + $0x121] sm:$0xff] %v394
      %428 = vst [vmem:[%s402 + $0x129] sm:$0xff] %v395
      %429 = vst [vmem:[%s402 + $0x139] sm:$0xff] %v396
      %430 = vst [vmem:[%s402 + $0x141] sm:$0xff] %v397
      %431 = vst [vmem:[%s402 + $0x151] sm:$0xff] %v398
      %432 = vst [vmem:[%s402 + $0x159] sm:$0xff] %v399
      %433 = vst [vmem:[%s402 + $0x169] sm:$0xff] %v400
      %434 = vst [vmem:[%s402 + $0x171] sm:$0xff] %v401
      %v435 = vld [vmem:[#allocation2] sm:$0xff]
      %v436 = vld [vmem:[#allocation2 + $0x8] sm:$0xff]
      %v437 = vld [vmem:[#allocation2 + $0x18] sm:$0xff]
      %v438 = vld [vmem:[#allocation2 + $0x20] sm:$0xff]
      %v439 = vld [vmem:[#allocation2 + $0x30] sm:$0xff]
      %v440 = vld [vmem:[#allocation2 + $0x38] sm:$0xff]
      %v441 = vld [vmem:[#allocation2 + $0x48] sm:$0xff]
      %v442 = vld [vmem:[#allocation2 + $0x50] sm:$0xff]
      %v443 = vld [vmem:[#allocation2 + $0x60] sm:$0xff]
      %v444 = vld [vmem:[#allocation2 + $0x68] sm:$0xff]
      %v445 = vld [vmem:[#allocation2 + $0x78] sm:$0xff]
      %v446 = vld [vmem:[#allocation2 + $0x80] sm:$0xff]
      %v447 = vld [vmem:[#allocation2 + $0x90] sm:$0xff]
      %v448 = vld [vmem:[#allocation2 + $0x98] sm:$0xff]
      %v449 = vld [vmem:[#allocation2 + $0xa8] sm:$0xff]
      %v450 = vld [vmem:[#allocation2 + $0xb0] sm:$0xff]
      %v451 = vld [vmem:[#allocation2 + $0xc0] sm:$0xff]
      %v452 = vld [vmem:[#allocation2 + $0xc8] sm:$0xff]
      %v453 = vld [vmem:[#allocation2 + $0xd8] sm:$0xff]
      %v454 = vld [vmem:[#allocation2 + $0xe0] sm:$0xff]
      %v455 = vld [vmem:[#allocation2 + $0xf0] sm:$0xff]
      %v456 = vld [vmem:[#allocation2 + $0xf8] sm:$0xff]
      %v457 = vld [vmem:[#allocation2 + $0x108] sm:$0xff]
      %v458 = vld [vmem:[#allocation2 + $0x110] sm:$0xff]
      %v459 = vld [vmem:[#allocation2 + $0x120] sm:$0xff]
      %v460 = vld [vmem:[#allocation2 + $0x128] sm:$0xff]
      %v461 = vld [vmem:[#allocation2 + $0x138] sm:$0xff]
      %v462 = vld [vmem:[#allocation2 + $0x140] sm:$0xff]
      %v463 = vld [vmem:[#allocation2 + $0x150] sm:$0xff]
      %v464 = vld [vmem:[#allocation2 + $0x158] sm:$0xff]
      %v465 = vld [vmem:[#allocation2 + $0x168] sm:$0xff]
      %v466 = vld [vmem:[#allocation2 + $0x170] sm:$0xff]
      %v467 = vpack.c.bf16 %v436, %v435
      %v468 = vpack.c.bf16 %v438, %v437
      %v469 = vpack.c.bf16 %v440, %v439
      %v470 = vpack.c.bf16 %v442, %v441
      %v471 = vpack.c.bf16 %v444, %v443
      %v472 = vpack.c.bf16 %v446, %v445
      %v473 = vpack.c.bf16 %v448, %v447
      %v474 = vpack.c.bf16 %v450, %v449
      %v475 = vpack.c.bf16 %v452, %v451
      %v476 = vpack.c.bf16 %v454, %v453
      %v477 = vpack.c.bf16 %v456, %v455
      %v478 = vpack.c.bf16 %v458, %v457
      %v479 = vpack.c.bf16 %v460, %v459
      %v480 = vpack.c.bf16 %v462, %v461
      %v481 = vpack.c.bf16 %v464, %v463
      %v482 = vpack.c.bf16 %v466, %v465
      %v483 = vld [vmem:[%s2] sm:$0xf]
      %v484 = vld [vmem:[%s2 + $0x4] sm:$0xf]
      %v485 = vld [vmem:[%s2 + $0x8] sm:$0xf]
      %v486 = vld [vmem:[%s2 + $0xc] sm:$0xf]
      %v487 = vld [vmem:[%s2 + $0x10] sm:$0xf]
      %v488 = vld [vmem:[%s2 + $0x14] sm:$0xf]
      %v489 = vld [vmem:[%s2 + $0x18] sm:$0xf]
      %v490 = vld [vmem:[%s2 + $0x1c] sm:$0xf]
      %v491 = vld [vmem:[%s2 + $0x20] sm:$0xf]
      %v492 = vld [vmem:[%s2 + $0x24] sm:$0xf]
      %v493 = vld [vmem:[%s2 + $0x28] sm:$0xf]
      %v494 = vld [vmem:[%s2 + $0x2c] sm:$0xf]
      %v495 = vld [vmem:[%s2 + $0x30] sm:$0xf]
      %v496 = vld [vmem:[%s2 + $0x34] sm:$0xf]
      %v497 = vld [vmem:[%s2 + $0x38] sm:$0xf]
      %v498 = vld [vmem:[%s2 + $0x3c] sm:$0xf]
      %v499 = vld [vmem:[#allocation2 + $0x1] sm:$0xff]
      %v500 = vld [vmem:[#allocation2 + $0x9] sm:$0xff]
      %v501 = vld [vmem:[#allocation2 + $0x19] sm:$0xff]
      %v502 = vld [vmem:[#allocation2 + $0x21] sm:$0xff]
      %v503 = vld [vmem:[#allocation2 + $0x31] sm:$0xff]
      %v504 = vld [vmem:[#allocation2 + $0x39] sm:$0xff]
      %v505 = vld [vmem:[#allocation2 + $0x49] sm:$0xff]
      %v506 = vld [vmem:[#allocation2 + $0x51] sm:$0xff]
      %v507 = vld [vmem:[#allocation2 + $0x61] sm:$0xff]
      %v508 = vld [vmem:[#allocation2 + $0x69] sm:$0xff]
      %v509 = vld [vmem:[#allocation2 + $0x79] sm:$0xff]
      %v510 = vld [vmem:[#allocation2 + $0x81] sm:$0xff]
      %v511 = vld [vmem:[#allocation2 + $0x91] sm:$0xff]
      %v512 = vld [vmem:[#allocation2 + $0x99] sm:$0xff]
      %v513 = vld [vmem:[#allocation2 + $0xa9] sm:$0xff]
      %v514 = vld [vmem:[#allocation2 + $0xb1] sm:$0xff]
      %v515 = vld [vmem:[#allocation2 + $0xc1] sm:$0xff]
      %v516 = vld [vmem:[#allocation2 + $0xc9] sm:$0xff]
      %v517 = vld [vmem:[#allocation2 + $0xd9] sm:$0xff]
      %v518 = vld [vmem:[#allocation2 + $0xe1] sm:$0xff]
      %v519 = vld [vmem:[#allocation2 + $0xf1] sm:$0xff]
      %v520 = vld [vmem:[#allocation2 + $0xf9] sm:$0xff]
      %v521 = vld [vmem:[#allocation2 + $0x109] sm:$0xff]
      %v522 = vld [vmem:[#allocation2 + $0x111] sm:$0xff]
      %v523 = vld [vmem:[#allocation2 + $0x121] sm:$0xff]
      %v524 = vld [vmem:[#allocation2 + $0x129] sm:$0xff]
      %v525 = vld [vmem:[#allocation2 + $0x139] sm:$0xff]
      %v526 = vld [vmem:[#allocation2 + $0x141] sm:$0xff]
      %v527 = vld [vmem:[#allocation2 + $0x151] sm:$0xff]
      %v528 = vld [vmem:[#allocation2 + $0x159] sm:$0xff]
      %v529 = vld [vmem:[#allocation2 + $0x169] sm:$0xff]
      %v530 = vld [vmem:[#allocation2 + $0x171] sm:$0xff]
      %v531 = vpack.c.bf16 %v500, %v499
      %v532 = vpack.c.bf16 %v502, %v501
      %v533 = vpack.c.bf16 %v504, %v503
      %v534 = vpack.c.bf16 %v506, %v505
      %v535 = vpack.c.bf16 %v508, %v507
      %v536 = vpack.c.bf16 %v510, %v509
      %v537 = vpack.c.bf16 %v512, %v511
      %v538 = vpack.c.bf16 %v514, %v513
      %v539 = vpack.c.bf16 %v516, %v515
      %v540 = vpack.c.bf16 %v518, %v517
      %v541 = vpack.c.bf16 %v520, %v519
      %v542 = vpack.c.bf16 %v522, %v521
      %v543 = vpack.c.bf16 %v524, %v523
      %v544 = vpack.c.bf16 %v526, %v525
      %v545 = vpack.c.bf16 %v528, %v527
      %v546 = vpack.c.bf16 %v530, %v529
      %v547 = vld [vmem:[%s2 + $0x40] sm:$0xf]
      %v548 = vld [vmem:[%s2 + $0x44] sm:$0xf]
      %v549 = vld [vmem:[%s2 + $0x48] sm:$0xf]
      %v550 = vld [vmem:[%s2 + $0x4c] sm:$0xf]
      %v551 = vld [vmem:[%s2 + $0x50] sm:$0xf]
      %v552 = vld [vmem:[%s2 + $0x54] sm:$0xf]
      %v553 = vld [vmem:[%s2 + $0x58] sm:$0xf]
      %v554 = vld [vmem:[%s2 + $0x5c] sm:$0xf]
      %v555 = vld [vmem:[%s2 + $0x60] sm:$0xf]
      %v556 = vld [vmem:[%s2 + $0x64] sm:$0xf]
      %v557 = vld [vmem:[%s2 + $0x68] sm:$0xf]
      %v558 = vld [vmem:[%s2 + $0x6c] sm:$0xf]
      %v559 = vld [vmem:[%s2 + $0x70] sm:$0xf]
      %v560 = vld [vmem:[%s2 + $0x74] sm:$0xf]
      %v561 = vld [vmem:[%s2 + $0x78] sm:$0xf]
      %v562 = vld [vmem:[%s2 + $0x7c] sm:$0xf]
      %v579 = vunpack.c.l.b16 %v547
      %v580 = vunpack.c.l.b16 %v548
      %v581 = vunpack.c.l.b16 %v549
      %v582 = vunpack.c.l.b16 %v550
      %v583 = vunpack.c.l.b16 %v551
      %v584 = vunpack.c.l.b16 %v552
      %v585 = vunpack.c.l.b16 %v553
      %v586 = vunpack.c.l.b16 %v554
      %v587 = vunpack.c.l.b16 %v555
      %v588 = vunpack.c.l.b16 %v556
      %v589 = vunpack.c.l.b16 %v557
      %v590 = vunpack.c.l.b16 %v558
      %v591 = vunpack.c.l.b16 %v559
      %v592 = vunpack.c.l.b16 %v560
      %v593 = vunpack.c.l.b16 %v561
      %v594 = vunpack.c.l.b16 %v562
      %v595 = vpack.c.b16 %v580, %v579
      %v596 = vpack.c.b16 %v582, %v581
      %v597 = vpack.c.b16 %v584, %v583
      %v598 = vpack.c.b16 %v586, %v585
      %v599 = vpack.c.b16 %v588, %v587
      %v600 = vpack.c.b16 %v590, %v589
      %v601 = vpack.c.b16 %v592, %v591
      %v602 = vpack.c.b16 %v594, %v593
      %611 = vmatprep.subr.bf16.mxu0 0
      %612 = vmatpush1.bf16.msra.mxu0 %v602
      %613 = vmatprep.subr.bf16.mxu0 0
      %614 = vmatpush1.bf16.msra.mxu0 %v601
      %615 = vmatprep.subr.bf16.mxu0 0
      %616 = vmatpush1.bf16.msra.mxu0 %v600
      %617 = vmatprep.subr.bf16.mxu0 0
      %618 = vmatpush1.bf16.msra.mxu0 %v599
      %619 = vmatprep.subr.bf16.mxu0 0
      %620 = vmatpush1.bf16.msra.mxu0 %v598
      %621 = vmatprep.subr.bf16.mxu0 0
      %622 = vmatpush1.bf16.msra.mxu0 %v597
      %623 = vmatprep.subr.bf16.mxu0 0
      %624 = vmatpush1.bf16.msra.mxu0 %v596
      %625 = vmatprep.subr.bf16.mxu0 0
      %626 = vmatpush1.bf16.msra.mxu0 %v595
      %627 = vmatprep.subr.bf16.mxu0 0
      %628 = vmatpush2.bf16.msra.mxu0 0
      %629 = vmatprep.subr.bf16.mxu0 0
      %630 = vmatpush2.bf16.msra.mxu0 0
      %631 = vmatprep.subr.bf16.mxu0 0
      %632 = vmatpush2.bf16.msra.mxu0 0
      %633 = vmatprep.subr.bf16.mxu0 0
      %634 = vmatpush2.bf16.msra.mxu0 0
      %635 = vmatprep.subr.bf16.mxu0 0
      %636 = vmatpush2.bf16.msra.mxu0 0
      %637 = vmatprep.subr.bf16.mxu0 0
      %638 = vmatpush2.bf16.msra.mxu0 0
      %639 = vmatprep.subr.bf16.mxu0 0
      %640 = vmatpush2.bf16.msra.mxu0 0
      %641 = vmatprep.subr.bf16.mxu0 0
      %642 = vmatpush2.bf16.msra.mxu0 0
      %643 = vmatprep.mubr.bf16.mxu0 0
      %644 = vmatmul.mubr.bf16.gmra.mxu0 %v531
      %v645 = vpop.f32.mrf.mxu0
      %v646 = vadd.f32 0.0, %v645
      %v647 = vpop.f32.mrf.mxu0
      %v648 = vpop.f32.mrf.mxu0
      %v649 = vadd.f32 0.0, %v648
      %v650 = vpop.f32.mrf.mxu0
      %651 = vmatprep.mubr.bf16.mxu0 0
      %652 = vmatmul.mubr.bf16.gmra.mxu0 %v532
      %v653 = vpop.f32.mrf.mxu0
      %v654 = vadd.f32 0.0, %v653
      %v655 = vpop.f32.mrf.mxu0
      %v656 = vpop.f32.mrf.mxu0
      %v657 = vadd.f32 0.0, %v656
      %v658 = vpop.f32.mrf.mxu0
      %659 = vmatprep.mubr.bf16.mxu0 0
      %660 = vmatmul.mubr.bf16.gmra.mxu0 %v533
      %v661 = vpop.f32.mrf.mxu0
      %v662 = vadd.f32 0.0, %v661
      %v663 = vpop.f32.mrf.mxu0
      %v664 = vpop.f32.mrf.mxu0
      %v665 = vadd.f32 0.0, %v664
      %v666 = vpop.f32.mrf.mxu0
      %667 = vmatprep.mubr.bf16.mxu0 0
      %668 = vmatmul.mubr.bf16.gmra.mxu0 %v534
      %v669 = vpop.f32.mrf.mxu0
      %v670 = vadd.f32 0.0, %v669
      %v671 = vpop.f32.mrf.mxu0
      %v672 = vpop.f32.mrf.mxu0
      %v673 = vadd.f32 0.0, %v672
      %v674 = vpop.f32.mrf.mxu0
      %675 = vmatprep.mubr.bf16.mxu0 0
      %676 = vmatmul.mubr.bf16.gmra.mxu0 %v535
      %v677 = vpop.f32.mrf.mxu0
      %v678 = vadd.f32 0.0, %v677
      %v679 = vpop.f32.mrf.mxu0
      %v680 = vpop.f32.mrf.mxu0
      %v681 = vadd.f32 0.0, %v680
      %v682 = vpop.f32.mrf.mxu0
      %683 = vmatprep.mubr.bf16.mxu0 0
      %684 = vmatmul.mubr.bf16.gmra.mxu0 %v536
      %v685 = vpop.f32.mrf.mxu0
      %v686 = vadd.f32 0.0, %v685
      %v687 = vpop.f32.mrf.mxu0
      %v688 = vpop.f32.mrf.mxu0
      %v689 = vadd.f32 0.0, %v688
      %v690 = vpop.f32.mrf.mxu0
      %691 = vmatprep.mubr.bf16.mxu0 0
      %692 = vmatmul.mubr.bf16.gmra.mxu0 %v537
      %v693 = vpop.f32.mrf.mxu0
      %v694 = vadd.f32 0.0, %v693
      %v695 = vpop.f32.mrf.mxu0
      %v696 = vpop.f32.mrf.mxu0
      %v697 = vadd.f32 0.0, %v696
      %v698 = vpop.f32.mrf.mxu0
      %699 = vmatprep.mubr.bf16.mxu0 0
      %700 = vmatmul.mubr.bf16.gmra.mxu0 %v538
      %v701 = vpop.f32.mrf.mxu0
      %v702 = vadd.f32 0.0, %v701
      %v703 = vpop.f32.mrf.mxu0
      %v704 = vpop.f32.mrf.mxu0
      %v705 = vadd.f32 0.0, %v704
      %v706 = vpop.f32.mrf.mxu0
      %707 = vmatprep.mubr.bf16.mxu0 0
      %708 = vmatmul.mubr.bf16.gmra.mxu0 %v539
      %v709 = vpop.f32.mrf.mxu0
      %v710 = vadd.f32 0.0, %v709
      %v711 = vpop.f32.mrf.mxu0
      %v712 = vpop.f32.mrf.mxu0
      %v713 = vadd.f32 0.0, %v712
      %v714 = vpop.f32.mrf.mxu0
      %715 = vmatprep.mubr.bf16.mxu0 0
      %716 = vmatmul.mubr.bf16.gmra.mxu0 %v540
      %v717 = vpop.f32.mrf.mxu0
      %v718 = vadd.f32 0.0, %v717
      %v719 = vpop.f32.mrf.mxu0
      %v720 = vpop.f32.mrf.mxu0
      %v721 = vadd.f32 0.0, %v720
      %v722 = vpop.f32.mrf.mxu0
      %723 = vmatprep.mubr.bf16.mxu0 0
      %724 = vmatmul.mubr.bf16.gmra.mxu0 %v541
      %v725 = vpop.f32.mrf.mxu0
      %v726 = vadd.f32 0.0, %v725
      %v727 = vpop.f32.mrf.mxu0
      %v728 = vpop.f32.mrf.mxu0
      %v729 = vadd.f32 0.0, %v728
      %v730 = vpop.f32.mrf.mxu0
      %731 = vmatprep.mubr.bf16.mxu0 0
      %732 = vmatmul.mubr.bf16.gmra.mxu0 %v542
      %v733 = vpop.f32.mrf.mxu0
      %v734 = vadd.f32 0.0, %v733
      %v735 = vpop.f32.mrf.mxu0
      %v736 = vpop.f32.mrf.mxu0
      %v737 = vadd.f32 0.0, %v736
      %v738 = vpop.f32.mrf.mxu0
      %739 = vmatprep.mubr.bf16.mxu0 0
      %740 = vmatmul.mubr.bf16.gmra.mxu0 %v543
      %v741 = vpop.f32.mrf.mxu0
      %v742 = vadd.f32 0.0, %v741
      %v743 = vpop.f32.mrf.mxu0
      %v744 = vpop.f32.mrf.mxu0
      %v745 = vadd.f32 0.0, %v744
      %v746 = vpop.f32.mrf.mxu0
      %747 = vmatprep.mubr.bf16.mxu0 0
      %748 = vmatmul.mubr.bf16.gmra.mxu0 %v544
      %v749 = vpop.f32.mrf.mxu0
      %v750 = vadd.f32 0.0, %v749
      %v751 = vpop.f32.mrf.mxu0
      %v752 = vpop.f32.mrf.mxu0
      %v753 = vadd.f32 0.0, %v752
      %v754 = vpop.f32.mrf.mxu0
      %755 = vmatprep.mubr.bf16.mxu0 0
      %756 = vmatmul.mubr.bf16.gmra.mxu0 %v545
      %v757 = vpop.f32.mrf.mxu0
      %v758 = vadd.f32 0.0, %v757
      %v759 = vpop.f32.mrf.mxu0
      %v760 = vpop.f32.mrf.mxu0
      %v761 = vadd.f32 0.0, %v760
      %v762 = vpop.f32.mrf.mxu0
      %763 = vmatprep.mubr.bf16.mxu0 0
      %764 = vmatmul.mubr.bf16.gmra.mxu0 %v546
      %v765 = vpop.f32.mrf.mxu0
      %v766 = vadd.f32 0.0, %v765
      %v767 = vpop.f32.mrf.mxu0
      %v768 = vpop.f32.mrf.mxu0
      %v769 = vadd.f32 0.0, %v768
      %v770 = vpop.f32.mrf.mxu0
      %771 = vdwg.mxu0
      %v788 = vunpack.c.l.b16 %v483
      %v789 = vunpack.c.l.b16 %v484
      %v790 = vunpack.c.l.b16 %v485
      %v791 = vunpack.c.l.b16 %v486
      %v792 = vunpack.c.l.b16 %v487
      %v793 = vunpack.c.l.b16 %v488
      %v794 = vunpack.c.l.b16 %v489
      %v795 = vunpack.c.l.b16 %v490
      %v796 = vunpack.c.l.b16 %v491
      %v797 = vunpack.c.l.b16 %v492
      %v798 = vunpack.c.l.b16 %v493
      %v799 = vunpack.c.l.b16 %v494
      %v800 = vunpack.c.l.b16 %v495
      %v801 = vunpack.c.l.b16 %v496
      %v802 = vunpack.c.l.b16 %v497
      %v803 = vunpack.c.l.b16 %v498
      %v804 = vpack.c.b16 %v789, %v788
      %v805 = vpack.c.b16 %v791, %v790
      %v806 = vpack.c.b16 %v793, %v792
      %v807 = vpack.c.b16 %v795, %v794
      %v808 = vpack.c.b16 %v797, %v796
      %v809 = vpack.c.b16 %v799, %v798
      %v810 = vpack.c.b16 %v801, %v800
      %v811 = vpack.c.b16 %v803, %v802
      %820 = vmatprep.subr.bf16.mxu0 0
      %821 = vmatpush1.bf16.msra.mxu0 %v811
      %822 = vmatprep.subr.bf16.mxu0 0
      %823 = vmatpush1.bf16.msra.mxu0 %v810
      %824 = vmatprep.subr.bf16.mxu0 0
      %825 = vmatpush1.bf16.msra.mxu0 %v809
      %826 = vmatprep.subr.bf16.mxu0 0
      %827 = vmatpush1.bf16.msra.mxu0 %v808
      %828 = vmatprep.subr.bf16.mxu0 0
      %829 = vmatpush1.bf16.msra.mxu0 %v807
      %830 = vmatprep.subr.bf16.mxu0 0
      %831 = vmatpush1.bf16.msra.mxu0 %v806
      %832 = vmatprep.subr.bf16.mxu0 0
      %833 = vmatpush1.bf16.msra.mxu0 %v805
      %834 = vmatprep.subr.bf16.mxu0 0
      %835 = vmatpush1.bf16.msra.mxu0 %v804
      %836 = vmatprep.subr.bf16.mxu0 0
      %837 = vmatpush2.bf16.msra.mxu0 0
      %838 = vmatprep.subr.bf16.mxu0 0
      %839 = vmatpush2.bf16.msra.mxu0 0
      %840 = vmatprep.subr.bf16.mxu0 0
      %841 = vmatpush2.bf16.msra.mxu0 0
      %842 = vmatprep.subr.bf16.mxu0 0
      %843 = vmatpush2.bf16.msra.mxu0 0
      %844 = vmatprep.subr.bf16.mxu0 0
      %845 = vmatpush2.bf16.msra.mxu0 0
      %846 = vmatprep.subr.bf16.mxu0 0
      %847 = vmatpush2.bf16.msra.mxu0 0
      %848 = vmatprep.subr.bf16.mxu0 0
      %849 = vmatpush2.bf16.msra.mxu0 0
      %850 = vmatprep.subr.bf16.mxu0 0
      %851 = vmatpush2.bf16.msra.mxu0 0
      %852 = vmatprep.mubr.bf16.mxu0 0
      %853 = vmatmul.mubr.bf16.gmra.mxu0 %v467
      %v854 = vpop.f32.mrf.mxu0
      %v855 = vadd.f32 %v646, %v854
      %v856 = vpop.f32.mrf.mxu0
      %v857 = vpop.f32.mrf.mxu0
      %v858 = vadd.f32 %v649, %v857
      %v859 = vpop.f32.mrf.mxu0
      %860 = vmatprep.mubr.bf16.mxu0 0
      %861 = vmatmul.mubr.bf16.gmra.mxu0 %v468
      %v862 = vpop.f32.mrf.mxu0
      %v863 = vadd.f32 %v654, %v862
      %v864 = vpop.f32.mrf.mxu0
      %v865 = vpop.f32.mrf.mxu0
      %v866 = vadd.f32 %v657, %v865
      %v867 = vpop.f32.mrf.mxu0
      %868 = vmatprep.mubr.bf16.mxu0 0
      %869 = vmatmul.mubr.bf16.gmra.mxu0 %v469
      %v870 = vpop.f32.mrf.mxu0
      %v871 = vadd.f32 %v662, %v870
      %v872 = vpop.f32.mrf.mxu0
      %v873 = vpop.f32.mrf.mxu0
      %v874 = vadd.f32 %v665, %v873
      %v875 = vpop.f32.mrf.mxu0
      %876 = vmatprep.mubr.bf16.mxu0 0
      %877 = vmatmul.mubr.bf16.gmra.mxu0 %v470
      %v878 = vpop.f32.mrf.mxu0
      %v879 = vadd.f32 %v670, %v878
      %v880 = vpop.f32.mrf.mxu0
      %v881 = vpop.f32.mrf.mxu0
      %v882 = vadd.f32 %v673, %v881
      %v883 = vpop.f32.mrf.mxu0
      %884 = vmatprep.mubr.bf16.mxu0 0
      %885 = vmatmul.mubr.bf16.gmra.mxu0 %v471
      %v886 = vpop.f32.mrf.mxu0
      %v887 = vadd.f32 %v678, %v886
      %v888 = vpop.f32.mrf.mxu0
      %v889 = vpop.f32.mrf.mxu0
      %v890 = vadd.f32 %v681, %v889
      %v891 = vpop.f32.mrf.mxu0
      %892 = vmatprep.mubr.bf16.mxu0 0
      %893 = vmatmul.mubr.bf16.gmra.mxu0 %v472
      %v894 = vpop.f32.mrf.mxu0
      %v895 = vadd.f32 %v686, %v894
      %v896 = vpop.f32.mrf.mxu0
      %v897 = vpop.f32.mrf.mxu0
      %v898 = vadd.f32 %v689, %v897
      %v899 = vpop.f32.mrf.mxu0
      %900 = vmatprep.mubr.bf16.mxu0 0
      %901 = vmatmul.mubr.bf16.gmra.mxu0 %v473
      %v902 = vpop.f32.mrf.mxu0
      %v903 = vadd.f32 %v694, %v902
      %v904 = vpop.f32.mrf.mxu0
      %v905 = vpop.f32.mrf.mxu0
      %v906 = vadd.f32 %v697, %v905
      %v907 = vpop.f32.mrf.mxu0
      %908 = vmatprep.mubr.bf16.mxu0 0
      %909 = vmatmul.mubr.bf16.gmra.mxu0 %v474
      %v910 = vpop.f32.mrf.mxu0
      %v911 = vadd.f32 %v702, %v910
      %v912 = vpop.f32.mrf.mxu0
      %v913 = vpop.f32.mrf.mxu0
      %v914 = vadd.f32 %v705, %v913
      %v915 = vpop.f32.mrf.mxu0
      %916 = vmatprep.mubr.bf16.mxu0 0
      %917 = vmatmul.mubr.bf16.gmra.mxu0 %v475
      %v918 = vpop.f32.mrf.mxu0
      %v919 = vadd.f32 %v710, %v918
      %v920 = vpop.f32.mrf.mxu0
      %v921 = vpop.f32.mrf.mxu0
      %v922 = vadd.f32 %v713, %v921
      %v923 = vpop.f32.mrf.mxu0
      %924 = vmatprep.mubr.bf16.mxu0 0
      %925 = vmatmul.mubr.bf16.gmra.mxu0 %v476
      %v926 = vpop.f32.mrf.mxu0
      %v927 = vadd.f32 %v718, %v926
      %v928 = vpop.f32.mrf.mxu0
      %v929 = vpop.f32.mrf.mxu0
      %v930 = vadd.f32 %v721, %v929
      %v931 = vpop.f32.mrf.mxu0
      %932 = vmatprep.mubr.bf16.mxu0 0
      %933 = vmatmul.mubr.bf16.gmra.mxu0 %v477
      %v934 = vpop.f32.mrf.mxu0
      %v935 = vadd.f32 %v726, %v934
      %v936 = vpop.f32.mrf.mxu0
      %v937 = vpop.f32.mrf.mxu0
      %v938 = vadd.f32 %v729, %v937
      %v939 = vpop.f32.mrf.mxu0
      %940 = vmatprep.mubr.bf16.mxu0 0
      %941 = vmatmul.mubr.bf16.gmra.mxu0 %v478
      %v942 = vpop.f32.mrf.mxu0
      %v943 = vadd.f32 %v734, %v942
      %v944 = vpop.f32.mrf.mxu0
      %v945 = vpop.f32.mrf.mxu0
      %v946 = vadd.f32 %v737, %v945
      %v947 = vpop.f32.mrf.mxu0
      %948 = vmatprep.mubr.bf16.mxu0 0
      %949 = vmatmul.mubr.bf16.gmra.mxu0 %v479
      %v950 = vpop.f32.mrf.mxu0
      %v951 = vadd.f32 %v742, %v950
      %v952 = vpop.f32.mrf.mxu0
      %v953 = vpop.f32.mrf.mxu0
      %v954 = vadd.f32 %v745, %v953
      %v955 = vpop.f32.mrf.mxu0
      %956 = vmatprep.mubr.bf16.mxu0 0
      %957 = vmatmul.mubr.bf16.gmra.mxu0 %v480
      %v958 = vpop.f32.mrf.mxu0
      %v959 = vadd.f32 %v750, %v958
      %v960 = vpop.f32.mrf.mxu0
      %v961 = vpop.f32.mrf.mxu0
      %v962 = vadd.f32 %v753, %v961
      %v963 = vpop.f32.mrf.mxu0
      %964 = vmatprep.mubr.bf16.mxu0 0
      %965 = vmatmul.mubr.bf16.gmra.mxu0 %v481
      %v966 = vpop.f32.mrf.mxu0
      %v967 = vadd.f32 %v758, %v966
      %v968 = vpop.f32.mrf.mxu0
      %v969 = vpop.f32.mrf.mxu0
      %v970 = vadd.f32 %v761, %v969
      %v971 = vpop.f32.mrf.mxu0
      %972 = vmatprep.mubr.bf16.mxu0 0
      %973 = vmatmul.mubr.bf16.gmra.mxu0 %v482
      %v974 = vpop.f32.mrf.mxu0
      %v975 = vadd.f32 %v766, %v974
      %v976 = vpop.f32.mrf.mxu0
      %v977 = vpop.f32.mrf.mxu0
      %v978 = vadd.f32 %v769, %v977
      %v979 = vpop.f32.mrf.mxu0
      %980 = vdwg.mxu0
      %v981 = vld [vmem:[#allocation2 + $0x2] sm:$0xff]
      %v982 = vld [vmem:[#allocation2 + $0xa] sm:$0xff]
      %v983 = vld [vmem:[#allocation2 + $0x1a] sm:$0xff]
      %v984 = vld [vmem:[#allocation2 + $0x22] sm:$0xff]
      %v985 = vld [vmem:[#allocation2 + $0x32] sm:$0xff]
      %v986 = vld [vmem:[#allocation2 + $0x3a] sm:$0xff]
      %v987 = vld [vmem:[#allocation2 + $0x4a] sm:$0xff]
      %v988 = vld [vmem:[#allocation2 + $0x52] sm:$0xff]
      %v989 = vld [vmem:[#allocation2 + $0x62] sm:$0xff]
      %v990 = vld [vmem:[#allocation2 + $0x6a] sm:$0xff]
      %v991 = vld [vmem:[#allocation2 + $0x7a] sm:$0xff]
      %v992 = vld [vmem:[#allocation2 + $0x82] sm:$0xff]
      %v993 = vld [vmem:[#allocation2 + $0x92] sm:$0xff]
      %v994 = vld [vmem:[#allocation2 + $0x9a] sm:$0xff]
      %v995 = vld [vmem:[#allocation2 + $0xaa] sm:$0xff]
      %v996 = vld [vmem:[#allocation2 + $0xb2] sm:$0xff]
      %v997 = vld [vmem:[#allocation2 + $0xc2] sm:$0xff]
      %v998 = vld [vmem:[#allocation2 + $0xca] sm:$0xff]
      %v999 = vld [vmem:[#allocation2 + $0xda] sm:$0xff]
      %v1000 = vld [vmem:[#allocation2 + $0xe2] sm:$0xff]
      %v1001 = vld [vmem:[#allocation2 + $0xf2] sm:$0xff]
      %v1002 = vld [vmem:[#allocation2 + $0xfa] sm:$0xff]
      %v1003 = vld [vmem:[#allocation2 + $0x10a] sm:$0xff]
      %v1004 = vld [vmem:[#allocation2 + $0x112] sm:$0xff]
      %v1005 = vld [vmem:[#allocation2 + $0x122] sm:$0xff]
      %v1006 = vld [vmem:[#allocation2 + $0x12a] sm:$0xff]
      %v1007 = vld [vmem:[#allocation2 + $0x13a] sm:$0xff]
      %v1008 = vld [vmem:[#allocation2 + $0x142] sm:$0xff]
      %v1009 = vld [vmem:[#allocation2 + $0x152] sm:$0xff]
      %v1010 = vld [vmem:[#allocation2 + $0x15a] sm:$0xff]
      %v1011 = vld [vmem:[#allocation2 + $0x16a] sm:$0xff]
      %v1012 = vld [vmem:[#allocation2 + $0x172] sm:$0xff]
      %v1013 = vpack.c.bf16 %v982, %v981
      %v1014 = vpack.c.bf16 %v984, %v983
      %v1015 = vpack.c.bf16 %v986, %v985
      %v1016 = vpack.c.bf16 %v988, %v987
      %v1017 = vpack.c.bf16 %v990, %v989
      %v1018 = vpack.c.bf16 %v992, %v991
      %v1019 = vpack.c.bf16 %v994, %v993
      %v1020 = vpack.c.bf16 %v996, %v995
      %v1021 = vpack.c.bf16 %v998, %v997
      %v1022 = vpack.c.bf16 %v1000, %v999
      %v1023 = vpack.c.bf16 %v1002, %v1001
      %v1024 = vpack.c.bf16 %v1004, %v1003
      %v1025 = vpack.c.bf16 %v1006, %v1005
      %v1026 = vpack.c.bf16 %v1008, %v1007
      %v1027 = vpack.c.bf16 %v1010, %v1009
      %v1028 = vpack.c.bf16 %v1012, %v1011
      %v1029 = vld [vmem:[%s2 + $0x80] sm:$0xf]
      %v1030 = vld [vmem:[%s2 + $0x84] sm:$0xf]
      %v1031 = vld [vmem:[%s2 + $0x88] sm:$0xf]
      %v1032 = vld [vmem:[%s2 + $0x8c] sm:$0xf]
      %v1033 = vld [vmem:[%s2 + $0x90] sm:$0xf]
      %v1034 = vld [vmem:[%s2 + $0x94] sm:$0xf]
      %v1035 = vld [vmem:[%s2 + $0x98] sm:$0xf]
      %v1036 = vld [vmem:[%s2 + $0x9c] sm:$0xf]
      %v1037 = vld [vmem:[%s2 + $0xa0] sm:$0xf]
      %v1038 = vld [vmem:[%s2 + $0xa4] sm:$0xf]
      %v1039 = vld [vmem:[%s2 + $0xa8] sm:$0xf]
      %v1040 = vld [vmem:[%s2 + $0xac] sm:$0xf]
      %v1041 = vld [vmem:[%s2 + $0xb0] sm:$0xf]
      %v1042 = vld [vmem:[%s2 + $0xb4] sm:$0xf]
      %v1043 = vld [vmem:[%s2 + $0xb8] sm:$0xf]
      %v1044 = vld [vmem:[%s2 + $0xbc] sm:$0xf]
      %v1061 = vunpack.c.l.b16 %v1029
      %v1062 = vunpack.c.l.b16 %v1030
      %v1063 = vunpack.c.l.b16 %v1031
      %v1064 = vunpack.c.l.b16 %v1032
      %v1065 = vunpack.c.l.b16 %v1033
      %v1066 = vunpack.c.l.b16 %v1034
      %v1067 = vunpack.c.l.b16 %v1035
      %v1068 = vunpack.c.l.b16 %v1036
      %v1069 = vunpack.c.l.b16 %v1037
      %v1070 = vunpack.c.l.b16 %v1038
      %v1071 = vunpack.c.l.b16 %v1039
      %v1072 = vunpack.c.l.b16 %v1040
      %v1073 = vunpack.c.l.b16 %v1041
      %v1074 = vunpack.c.l.b16 %v1042
      %v1075 = vunpack.c.l.b16 %v1043
      %v1076 = vunpack.c.l.b16 %v1044
      %v1077 = vpack.c.b16 %v1062, %v1061
      %v1078 = vpack.c.b16 %v1064, %v1063
      %v1079 = vpack.c.b16 %v1066, %v1065
      %v1080 = vpack.c.b16 %v1068, %v1067
      %v1081 = vpack.c.b16 %v1070, %v1069
      %v1082 = vpack.c.b16 %v1072, %v1071
      %v1083 = vpack.c.b16 %v1074, %v1073
      %v1084 = vpack.c.b16 %v1076, %v1075
      %1093 = vmatprep.subr.bf16.mxu0 0
      %1094 = vmatpush1.bf16.msra.mxu0 %v1084
      %1095 = vmatprep.subr.bf16.mxu0 0
      %1096 = vmatpush1.bf16.msra.mxu0 %v1083
      %1097 = vmatprep.subr.bf16.mxu0 0
      %1098 = vmatpush1.bf16.msra.mxu0 %v1082
      %1099 = vmatprep.subr.bf16.mxu0 0
      %1100 = vmatpush1.bf16.msra.mxu0 %v1081
      %1101 = vmatprep.subr.bf16.mxu0 0
      %1102 = vmatpush1.bf16.msra.mxu0 %v1080
      %1103 = vmatprep.subr.bf16.mxu0 0
      %1104 = vmatpush1.bf16.msra.mxu0 %v1079
      %1105 = vmatprep.subr.bf16.mxu0 0
      %1106 = vmatpush1.bf16.msra.mxu0 %v1078
      %1107 = vmatprep.subr.bf16.mxu0 0
      %1108 = vmatpush1.bf16.msra.mxu0 %v1077
      %1109 = vmatprep.subr.bf16.mxu0 0
      %1110 = vmatpush2.bf16.msra.mxu0 0
      %1111 = vmatprep.subr.bf16.mxu0 0
      %1112 = vmatpush2.bf16.msra.mxu0 0
      %1113 = vmatprep.subr.bf16.mxu0 0
      %1114 = vmatpush2.bf16.msra.mxu0 0
      %1115 = vmatprep.subr.bf16.mxu0 0
      %1116 = vmatpush2.bf16.msra.mxu0 0
      %1117 = vmatprep.subr.bf16.mxu0 0
      %1118 = vmatpush2.bf16.msra.mxu0 0
      %1119 = vmatprep.subr.bf16.mxu0 0
      %1120 = vmatpush2.bf16.msra.mxu0 0
      %1121 = vmatprep.subr.bf16.mxu0 0
      %1122 = vmatpush2.bf16.msra.mxu0 0
      %1123 = vmatprep.subr.bf16.mxu0 0
      %1124 = vmatpush2.bf16.msra.mxu0 0
      %1125 = vmatprep.mubr.bf16.mxu0 0
      %1126 = vmatmul.mubr.bf16.gmra.mxu0 %v1013
      %v1127 = vpop.f32.mrf.mxu0
      %v1128 = vadd.f32 0.0, %v1127
      %v1129 = vpop.f32.mrf.mxu0
      %v1130 = vpop.f32.mrf.mxu0
      %v1131 = vadd.f32 0.0, %v1130
      %v1132 = vpop.f32.mrf.mxu0
      %1133 = vmatprep.mubr.bf16.mxu0 0
      %1134 = vmatmul.mubr.bf16.gmra.mxu0 %v1014
      %v1135 = vpop.f32.mrf.mxu0
      %v1136 = vadd.f32 0.0, %v1135
      %v1137 = vpop.f32.mrf.mxu0
      %v1138 = vpop.f32.mrf.mxu0
      %v1139 = vadd.f32 0.0, %v1138
      %v1140 = vpop.f32.mrf.mxu0
      %1141 = vmatprep.mubr.bf16.mxu0 0
      %1142 = vmatmul.mubr.bf16.gmra.mxu0 %v1015
      %v1143 = vpop.f32.mrf.mxu0
      %v1144 = vadd.f32 0.0, %v1143
      %v1145 = vpop.f32.mrf.mxu0
      %v1146 = vpop.f32.mrf.mxu0
      %v1147 = vadd.f32 0.0, %v1146
      %v1148 = vpop.f32.mrf.mxu0
      %1149 = vmatprep.mubr.bf16.mxu0 0
      %1150 = vmatmul.mubr.bf16.gmra.mxu0 %v1016
      %v1151 = vpop.f32.mrf.mxu0
      %v1152 = vadd.f32 0.0, %v1151
      %v1153 = vpop.f32.mrf.mxu0
      %v1154 = vpop.f32.mrf.mxu0
      %v1155 = vadd.f32 0.0, %v1154
      %v1156 = vpop.f32.mrf.mxu0
      %1157 = vmatprep.mubr.bf16.mxu0 0
      %1158 = vmatmul.mubr.bf16.gmra.mxu0 %v1017
      %v1159 = vpop.f32.mrf.mxu0
      %v1160 = vadd.f32 0.0, %v1159
      %v1161 = vpop.f32.mrf.mxu0
      %v1162 = vpop.f32.mrf.mxu0
      %v1163 = vadd.f32 0.0, %v1162
      %v1164 = vpop.f32.mrf.mxu0
      %1165 = vmatprep.mubr.bf16.mxu0 0
      %1166 = vmatmul.mubr.bf16.gmra.mxu0 %v1018
      %v1167 = vpop.f32.mrf.mxu0
      %v1168 = vadd.f32 0.0, %v1167
      %v1169 = vpop.f32.mrf.mxu0
      %v1170 = vpop.f32.mrf.mxu0
      %v1171 = vadd.f32 0.0, %v1170
      %v1172 = vpop.f32.mrf.mxu0
      %1173 = vmatprep.mubr.bf16.mxu0 0
      %1174 = vmatmul.mubr.bf16.gmra.mxu0 %v1019
      %v1175 = vpop.f32.mrf.mxu0
      %v1176 = vadd.f32 0.0, %v1175
      %v1177 = vpop.f32.mrf.mxu0
      %v1178 = vpop.f32.mrf.mxu0
      %v1179 = vadd.f32 0.0, %v1178
      %v1180 = vpop.f32.mrf.mxu0
      %1181 = vmatprep.mubr.bf16.mxu0 0
      %1182 = vmatmul.mubr.bf16.gmra.mxu0 %v1020
      %v1183 = vpop.f32.mrf.mxu0
      %v1184 = vadd.f32 0.0, %v1183
      %v1185 = vpop.f32.mrf.mxu0
      %v1186 = vpop.f32.mrf.mxu0
      %v1187 = vadd.f32 0.0, %v1186
      %v1188 = vpop.f32.mrf.mxu0
      %1189 = vmatprep.mubr.bf16.mxu0 0
      %1190 = vmatmul.mubr.bf16.gmra.mxu0 %v1021
      %v1191 = vpop.f32.mrf.mxu0
      %v1192 = vadd.f32 0.0, %v1191
      %v1193 = vpop.f32.mrf.mxu0
      %v1194 = vpop.f32.mrf.mxu0
      %v1195 = vadd.f32 0.0, %v1194
      %v1196 = vpop.f32.mrf.mxu0
      %1197 = vmatprep.mubr.bf16.mxu0 0
      %1198 = vmatmul.mubr.bf16.gmra.mxu0 %v1022
      %v1199 = vpop.f32.mrf.mxu0
      %v1200 = vadd.f32 0.0, %v1199
      %v1201 = vpop.f32.mrf.mxu0
      %v1202 = vpop.f32.mrf.mxu0
      %v1203 = vadd.f32 0.0, %v1202
      %v1204 = vpop.f32.mrf.mxu0
      %1205 = vmatprep.mubr.bf16.mxu0 0
      %1206 = vmatmul.mubr.bf16.gmra.mxu0 %v1023
      %v1207 = vpop.f32.mrf.mxu0
      %v1208 = vadd.f32 0.0, %v1207
      %v1209 = vpop.f32.mrf.mxu0
      %v1210 = vpop.f32.mrf.mxu0
      %v1211 = vadd.f32 0.0, %v1210
      %v1212 = vpop.f32.mrf.mxu0
      %1213 = vmatprep.mubr.bf16.mxu0 0
      %1214 = vmatmul.mubr.bf16.gmra.mxu0 %v1024
      %v1215 = vpop.f32.mrf.mxu0
      %v1216 = vadd.f32 0.0, %v1215
      %v1217 = vpop.f32.mrf.mxu0
      %v1218 = vpop.f32.mrf.mxu0
      %v1219 = vadd.f32 0.0, %v1218
      %v1220 = vpop.f32.mrf.mxu0
      %1221 = vmatprep.mubr.bf16.mxu0 0
      %1222 = vmatmul.mubr.bf16.gmra.mxu0 %v1025
      %v1223 = vpop.f32.mrf.mxu0
      %v1224 = vadd.f32 0.0, %v1223
      %v1225 = vpop.f32.mrf.mxu0
      %v1226 = vpop.f32.mrf.mxu0
      %v1227 = vadd.f32 0.0, %v1226
      %v1228 = vpop.f32.mrf.mxu0
      %1229 = vmatprep.mubr.bf16.mxu0 0
      %1230 = vmatmul.mubr.bf16.gmra.mxu0 %v1026
      %v1231 = vpop.f32.mrf.mxu0
      %v1232 = vadd.f32 0.0, %v1231
      %v1233 = vpop.f32.mrf.mxu0
      %v1234 = vpop.f32.mrf.mxu0
      %v1235 = vadd.f32 0.0, %v1234
      %v1236 = vpop.f32.mrf.mxu0
      %1237 = vmatprep.mubr.bf16.mxu0 0
      %1238 = vmatmul.mubr.bf16.gmra.mxu0 %v1027
      %v1239 = vpop.f32.mrf.mxu0
      %v1240 = vadd.f32 0.0, %v1239
      %v1241 = vpop.f32.mrf.mxu0
      %v1242 = vpop.f32.mrf.mxu0
      %v1243 = vadd.f32 0.0, %v1242
      %v1244 = vpop.f32.mrf.mxu0
      %1245 = vmatprep.mubr.bf16.mxu0 0
      %1246 = vmatmul.mubr.bf16.gmra.mxu0 %v1028
      %v1247 = vpop.f32.mrf.mxu0
      %v1248 = vadd.f32 0.0, %v1247
      %v1249 = vpop.f32.mrf.mxu0
      %v1250 = vpop.f32.mrf.mxu0
      %v1251 = vadd.f32 0.0, %v1250
      %v1252 = vpop.f32.mrf.mxu0
      %1253 = vdwg.mxu0
      %v1254 = vadd.f32 %v855, %v1128
      %v1255 = vadd.f32 %v858, %v1131
      %v1256 = vadd.f32 %v863, %v1136
      %v1257 = vadd.f32 %v866, %v1139
      %v1258 = vadd.f32 %v871, %v1144
      %v1259 = vadd.f32 %v874, %v1147
      %v1260 = vadd.f32 %v879, %v1152
      %v1261 = vadd.f32 %v882, %v1155
      %v1262 = vadd.f32 %v887, %v1160
      %v1263 = vadd.f32 %v890, %v1163
      %v1264 = vadd.f32 %v895, %v1168
      %v1265 = vadd.f32 %v898, %v1171
      %v1266 = vadd.f32 %v903, %v1176
      %v1267 = vadd.f32 %v906, %v1179
      %v1268 = vadd.f32 %v911, %v1184
      %v1269 = vadd.f32 %v914, %v1187
      %v1270 = vadd.f32 %v919, %v1192
      %v1271 = vadd.f32 %v922, %v1195
      %v1272 = vadd.f32 %v927, %v1200
      %v1273 = vadd.f32 %v930, %v1203
      %v1274 = vadd.f32 %v935, %v1208
      %v1275 = vadd.f32 %v938, %v1211
      %v1276 = vadd.f32 %v943, %v1216
      %v1277 = vadd.f32 %v946, %v1219
      %v1278 = vadd.f32 %v951, %v1224
      %v1279 = vadd.f32 %v954, %v1227
      %v1280 = vadd.f32 %v959, %v1232
      %v1281 = vadd.f32 %v962, %v1235
      %v1282 = vadd.f32 %v967, %v1240
      %v1283 = vadd.f32 %v970, %v1243
      %v1284 = vadd.f32 %v975, %v1248
      %v1285 = vadd.f32 %v978, %v1251
      %v1286 = vld [vmem:[%s402] sm:$0xff]
      %v1287 = vld [vmem:[%s402 + $0x8] sm:$0xff]
      %v1288 = vld [vmem:[%s402 + $0x18] sm:$0xff]
      %v1289 = vld [vmem:[%s402 + $0x20] sm:$0xff]
      %v1290 = vld [vmem:[%s402 + $0x30] sm:$0xff]
      %v1291 = vld [vmem:[%s402 + $0x38] sm:$0xff]
      %v1292 = vld [vmem:[%s402 + $0x48] sm:$0xff]
      %v1293 = vld [vmem:[%s402 + $0x50] sm:$0xff]
      %v1294 = vld [vmem:[%s402 + $0x60] sm:$0xff]
      %v1295 = vld [vmem:[%s402 + $0x68] sm:$0xff]
      %v1296 = vld [vmem:[%s402 + $0x78] sm:$0xff]
      %v1297 = vld [vmem:[%s402 + $0x80] sm:$0xff]
      %v1298 = vld [vmem:[%s402 + $0x90] sm:$0xff]
      %v1299 = vld [vmem:[%s402 + $0x98] sm:$0xff]
      %v1300 = vld [vmem:[%s402 + $0xa8] sm:$0xff]
      %v1301 = vld [vmem:[%s402 + $0xb0] sm:$0xff]
      %v1302 = vld [vmem:[%s402 + $0xc0] sm:$0xff]
      %v1303 = vld [vmem:[%s402 + $0xc8] sm:$0xff]
      %v1304 = vld [vmem:[%s402 + $0xd8] sm:$0xff]
      %v1305 = vld [vmem:[%s402 + $0xe0] sm:$0xff]
      %v1306 = vld [vmem:[%s402 + $0xf0] sm:$0xff]
      %v1307 = vld [vmem:[%s402 + $0xf8] sm:$0xff]
      %v1308 = vld [vmem:[%s402 + $0x108] sm:$0xff]
      %v1309 = vld [vmem:[%s402 + $0x110] sm:$0xff]
      %v1310 = vld [vmem:[%s402 + $0x120] sm:$0xff]
      %v1311 = vld [vmem:[%s402 + $0x128] sm:$0xff]
      %v1312 = vld [vmem:[%s402 + $0x138] sm:$0xff]
      %v1313 = vld [vmem:[%s402 + $0x140] sm:$0xff]
      %v1314 = vld [vmem:[%s402 + $0x150] sm:$0xff]
      %v1315 = vld [vmem:[%s402 + $0x158] sm:$0xff]
      %v1316 = vld [vmem:[%s402 + $0x168] sm:$0xff]
      %v1317 = vld [vmem:[%s402 + $0x170] sm:$0xff]
      %v1318 = vpack.c.bf16 %v1287, %v1286
      %v1319 = vpack.c.bf16 %v1289, %v1288
      %v1320 = vpack.c.bf16 %v1291, %v1290
      %v1321 = vpack.c.bf16 %v1293, %v1292
      %v1322 = vpack.c.bf16 %v1295, %v1294
      %v1323 = vpack.c.bf16 %v1297, %v1296
      %v1324 = vpack.c.bf16 %v1299, %v1298
      %v1325 = vpack.c.bf16 %v1301, %v1300
      %v1326 = vpack.c.bf16 %v1303, %v1302
      %v1327 = vpack.c.bf16 %v1305, %v1304
      %v1328 = vpack.c.bf16 %v1307, %v1306
      %v1329 = vpack.c.bf16 %v1309, %v1308
      %v1330 = vpack.c.bf16 %v1311, %v1310
      %v1331 = vpack.c.bf16 %v1313, %v1312
      %v1332 = vpack.c.bf16 %v1315, %v1314
      %v1333 = vpack.c.bf16 %v1317, %v1316
      %v1334 = vld [vmem:[%s2 + $0xc0] sm:$0xf]
      %v1335 = vld [vmem:[%s2 + $0xc4] sm:$0xf]
      %v1336 = vld [vmem:[%s2 + $0xc8] sm:$0xf]
      %v1337 = vld [vmem:[%s2 + $0xcc] sm:$0xf]
      %v1338 = vld [vmem:[%s2 + $0xd0] sm:$0xf]
      %v1339 = vld [vmem:[%s2 + $0xd4] sm:$0xf]
      %v1340 = vld [vmem:[%s2 + $0xd8] sm:$0xf]
      %v1341 = vld [vmem:[%s2 + $0xdc] sm:$0xf]
      %v1342 = vld [vmem:[%s2 + $0xe0] sm:$0xf]
      %v1343 = vld [vmem:[%s2 + $0xe4] sm:$0xf]
      %v1344 = vld [vmem:[%s2 + $0xe8] sm:$0xf]
      %v1345 = vld [vmem:[%s2 + $0xec] sm:$0xf]
      %v1346 = vld [vmem:[%s2 + $0xf0] sm:$0xf]
      %v1347 = vld [vmem:[%s2 + $0xf4] sm:$0xf]
      %v1348 = vld [vmem:[%s2 + $0xf8] sm:$0xf]
      %v1349 = vld [vmem:[%s2 + $0xfc] sm:$0xf]
      %v1366 = vunpack.c.l.b16 %v1334
      %v1367 = vunpack.c.l.b16 %v1335
      %v1368 = vunpack.c.l.b16 %v1336
      %v1369 = vunpack.c.l.b16 %v1337
      %v1370 = vunpack.c.l.b16 %v1338
      %v1371 = vunpack.c.l.b16 %v1339
      %v1372 = vunpack.c.l.b16 %v1340
      %v1373 = vunpack.c.l.b16 %v1341
      %v1374 = vunpack.c.l.b16 %v1342
      %v1375 = vunpack.c.l.b16 %v1343
      %v1376 = vunpack.c.l.b16 %v1344
      %v1377 = vunpack.c.l.b16 %v1345
      %v1378 = vunpack.c.l.b16 %v1346
      %v1379 = vunpack.c.l.b16 %v1347
      %v1380 = vunpack.c.l.b16 %v1348
      %v1381 = vunpack.c.l.b16 %v1349
      %v1382 = vpack.c.b16 %v1367, %v1366
      %v1383 = vpack.c.b16 %v1369, %v1368
      %v1384 = vpack.c.b16 %v1371, %v1370
      %v1385 = vpack.c.b16 %v1373, %v1372
      %v1386 = vpack.c.b16 %v1375, %v1374
      %v1387 = vpack.c.b16 %v1377, %v1376
      %v1388 = vpack.c.b16 %v1379, %v1378
      %v1389 = vpack.c.b16 %v1381, %v1380
      %1398 = vmatprep.subr.bf16.mxu0 0
      %1399 = vmatpush1.bf16.msra.mxu0 %v1389
      %1400 = vmatprep.subr.bf16.mxu0 0
      %1401 = vmatpush1.bf16.msra.mxu0 %v1388
      %1402 = vmatprep.subr.bf16.mxu0 0
      %1403 = vmatpush1.bf16.msra.mxu0 %v1387
      %1404 = vmatprep.subr.bf16.mxu0 0
      %1405 = vmatpush1.bf16.msra.mxu0 %v1386
      %1406 = vmatprep.subr.bf16.mxu0 0
      %1407 = vmatpush1.bf16.msra.mxu0 %v1385
      %1408 = vmatprep.subr.bf16.mxu0 0
      %1409 = vmatpush1.bf16.msra.mxu0 %v1384
      %1410 = vmatprep.subr.bf16.mxu0 0
      %1411 = vmatpush1.bf16.msra.mxu0 %v1383
      %1412 = vmatprep.subr.bf16.mxu0 0
      %1413 = vmatpush1.bf16.msra.mxu0 %v1382
      %1414 = vmatprep.subr.bf16.mxu0 0
      %1415 = vmatpush2.bf16.msra.mxu0 0
      %1416 = vmatprep.subr.bf16.mxu0 0
      %1417 = vmatpush2.bf16.msra.mxu0 0
      %1418 = vmatprep.subr.bf16.mxu0 0
      %1419 = vmatpush2.bf16.msra.mxu0 0
      %1420 = vmatprep.subr.bf16.mxu0 0
      %1421 = vmatpush2.bf16.msra.mxu0 0
      %1422 = vmatprep.subr.bf16.mxu0 0
      %1423 = vmatpush2.bf16.msra.mxu0 0
      %1424 = vmatprep.subr.bf16.mxu0 0
      %1425 = vmatpush2.bf16.msra.mxu0 0
      %1426 = vmatprep.subr.bf16.mxu0 0
      %1427 = vmatpush2.bf16.msra.mxu0 0
      %1428 = vmatprep.subr.bf16.mxu0 0
      %1429 = vmatpush2.bf16.msra.mxu0 0
      %1430 = vmatprep.mubr.bf16.mxu0 0
      %1431 = vmatmul.mubr.bf16.gmra.mxu0 %v1318
      %v1432 = vpop.f32.mrf.mxu0
      %v1433 = vadd.f32 0.0, %v1432
      %v1434 = vpop.f32.mrf.mxu0
      %v1435 = vpop.f32.mrf.mxu0
      %v1436 = vadd.f32 0.0, %v1435
      %v1437 = vpop.f32.mrf.mxu0
      %1438 = vmatprep.mubr.bf16.mxu0 0
      %1439 = vmatmul.mubr.bf16.gmra.mxu0 %v1319
      %v1440 = vpop.f32.mrf.mxu0
      %v1441 = vadd.f32 0.0, %v1440
      %v1442 = vpop.f32.mrf.mxu0
      %v1443 = vpop.f32.mrf.mxu0
      %v1444 = vadd.f32 0.0, %v1443
      %v1445 = vpop.f32.mrf.mxu0
      %1446 = vmatprep.mubr.bf16.mxu0 0
      %1447 = vmatmul.mubr.bf16.gmra.mxu0 %v1320
      %v1448 = vpop.f32.mrf.mxu0
      %v1449 = vadd.f32 0.0, %v1448
      %v1450 = vpop.f32.mrf.mxu0
      %v1451 = vpop.f32.mrf.mxu0
      %v1452 = vadd.f32 0.0, %v1451
      %v1453 = vpop.f32.mrf.mxu0
      %1454 = vmatprep.mubr.bf16.mxu0 0
      %1455 = vmatmul.mubr.bf16.gmra.mxu0 %v1321
      %v1456 = vpop.f32.mrf.mxu0
      %v1457 = vadd.f32 0.0, %v1456
      %v1458 = vpop.f32.mrf.mxu0
      %v1459 = vpop.f32.mrf.mxu0
      %v1460 = vadd.f32 0.0, %v1459
      %v1461 = vpop.f32.mrf.mxu0
      %1462 = vmatprep.mubr.bf16.mxu0 0
      %1463 = vmatmul.mubr.bf16.gmra.mxu0 %v1322
      %v1464 = vpop.f32.mrf.mxu0
      %v1465 = vadd.f32 0.0, %v1464
      %v1466 = vpop.f32.mrf.mxu0
      %v1467 = vpop.f32.mrf.mxu0
      %v1468 = vadd.f32 0.0, %v1467
      %v1469 = vpop.f32.mrf.mxu0
      %1470 = vmatprep.mubr.bf16.mxu0 0
      %1471 = vmatmul.mubr.bf16.gmra.mxu0 %v1323
      %v1472 = vpop.f32.mrf.mxu0
      %v1473 = vadd.f32 0.0, %v1472
      %v1474 = vpop.f32.mrf.mxu0
      %v1475 = vpop.f32.mrf.mxu0
      %v1476 = vadd.f32 0.0, %v1475
      %v1477 = vpop.f32.mrf.mxu0
      %1478 = vmatprep.mubr.bf16.mxu0 0
      %1479 = vmatmul.mubr.bf16.gmra.mxu0 %v1324
      %v1480 = vpop.f32.mrf.mxu0
      %v1481 = vadd.f32 0.0, %v1480
      %v1482 = vpop.f32.mrf.mxu0
      %v1483 = vpop.f32.mrf.mxu0
      %v1484 = vadd.f32 0.0, %v1483
      %v1485 = vpop.f32.mrf.mxu0
      %1486 = vmatprep.mubr.bf16.mxu0 0
      %1487 = vmatmul.mubr.bf16.gmra.mxu0 %v1325
      %v1488 = vpop.f32.mrf.mxu0
      %v1489 = vadd.f32 0.0, %v1488
      %v1490 = vpop.f32.mrf.mxu0
      %v1491 = vpop.f32.mrf.mxu0
      %v1492 = vadd.f32 0.0, %v1491
      %v1493 = vpop.f32.mrf.mxu0
      %1494 = vmatprep.mubr.bf16.mxu0 0
      %1495 = vmatmul.mubr.bf16.gmra.mxu0 %v1326
      %v1496 = vpop.f32.mrf.mxu0
      %v1497 = vadd.f32 0.0, %v1496
      %v1498 = vpop.f32.mrf.mxu0
      %v1499 = vpop.f32.mrf.mxu0
      %v1500 = vadd.f32 0.0, %v1499
      %v1501 = vpop.f32.mrf.mxu0
      %1502 = vmatprep.mubr.bf16.mxu0 0
      %1503 = vmatmul.mubr.bf16.gmra.mxu0 %v1327
      %v1504 = vpop.f32.mrf.mxu0
      %v1505 = vadd.f32 0.0, %v1504
      %v1506 = vpop.f32.mrf.mxu0
      %v1507 = vpop.f32.mrf.mxu0
      %v1508 = vadd.f32 0.0, %v1507
      %v1509 = vpop.f32.mrf.mxu0
      %1510 = vmatprep.mubr.bf16.mxu0 0
      %1511 = vmatmul.mubr.bf16.gmra.mxu0 %v1328
      %v1512 = vpop.f32.mrf.mxu0
      %v1513 = vadd.f32 0.0, %v1512
      %v1514 = vpop.f32.mrf.mxu0
      %v1515 = vpop.f32.mrf.mxu0
      %v1516 = vadd.f32 0.0, %v1515
      %v1517 = vpop.f32.mrf.mxu0
      %1518 = vmatprep.mubr.bf16.mxu0 0
      %1519 = vmatmul.mubr.bf16.gmra.mxu0 %v1329
      %v1520 = vpop.f32.mrf.mxu0
      %v1521 = vadd.f32 0.0, %v1520
      %v1522 = vpop.f32.mrf.mxu0
      %v1523 = vpop.f32.mrf.mxu0
      %v1524 = vadd.f32 0.0, %v1523
      %v1525 = vpop.f32.mrf.mxu0
      %1526 = vmatprep.mubr.bf16.mxu0 0
      %1527 = vmatmul.mubr.bf16.gmra.mxu0 %v1330
      %v1528 = vpop.f32.mrf.mxu0
      %v1529 = vadd.f32 0.0, %v1528
      %v1530 = vpop.f32.mrf.mxu0
      %v1531 = vpop.f32.mrf.mxu0
      %v1532 = vadd.f32 0.0, %v1531
      %v1533 = vpop.f32.mrf.mxu0
      %1534 = vmatprep.mubr.bf16.mxu0 0
      %1535 = vmatmul.mubr.bf16.gmra.mxu0 %v1331
      %v1536 = vpop.f32.mrf.mxu0
      %v1537 = vadd.f32 0.0, %v1536
      %v1538 = vpop.f32.mrf.mxu0
      %v1539 = vpop.f32.mrf.mxu0
      %v1540 = vadd.f32 0.0, %v1539
      %v1541 = vpop.f32.mrf.mxu0
      %1542 = vmatprep.mubr.bf16.mxu0 0
      %1543 = vmatmul.mubr.bf16.gmra.mxu0 %v1332
      %v1544 = vpop.f32.mrf.mxu0
      %v1545 = vadd.f32 0.0, %v1544
      %v1546 = vpop.f32.mrf.mxu0
      %v1547 = vpop.f32.mrf.mxu0
      %v1548 = vadd.f32 0.0, %v1547
      %v1549 = vpop.f32.mrf.mxu0
      %1550 = vmatprep.mubr.bf16.mxu0 0
      %1551 = vmatmul.mubr.bf16.gmra.mxu0 %v1333
      %v1552 = vpop.f32.mrf.mxu0
      %v1553 = vadd.f32 0.0, %v1552
      %v1554 = vpop.f32.mrf.mxu0
      %v1555 = vpop.f32.mrf.mxu0
      %v1556 = vadd.f32 0.0, %v1555
      %v1557 = vpop.f32.mrf.mxu0
      %1558 = vdwg.mxu0
      %v1559 = vadd.f32 %v1254, %v1433
      %v1560 = vadd.f32 %v1255, %v1436
      %v1561 = vadd.f32 %v1256, %v1441
      %v1562 = vadd.f32 %v1257, %v1444
      %v1563 = vadd.f32 %v1258, %v1449
      %v1564 = vadd.f32 %v1259, %v1452
      %v1565 = vadd.f32 %v1260, %v1457
      %v1566 = vadd.f32 %v1261, %v1460
      %v1567 = vadd.f32 %v1262, %v1465
      %v1568 = vadd.f32 %v1263, %v1468
      %v1569 = vadd.f32 %v1264, %v1473
      %v1570 = vadd.f32 %v1265, %v1476
      %v1571 = vadd.f32 %v1266, %v1481
      %v1572 = vadd.f32 %v1267, %v1484
      %v1573 = vadd.f32 %v1268, %v1489
      %v1574 = vadd.f32 %v1269, %v1492
      %v1575 = vadd.f32 %v1270, %v1497
      %v1576 = vadd.f32 %v1271, %v1500
      %v1577 = vadd.f32 %v1272, %v1505
      %v1578 = vadd.f32 %v1273, %v1508
      %v1579 = vadd.f32 %v1274, %v1513
      %v1580 = vadd.f32 %v1275, %v1516
      %v1581 = vadd.f32 %v1276, %v1521
      %v1582 = vadd.f32 %v1277, %v1524
      %v1583 = vadd.f32 %v1278, %v1529
      %v1584 = vadd.f32 %v1279, %v1532
      %v1585 = vadd.f32 %v1280, %v1537
      %v1586 = vadd.f32 %v1281, %v1540
      %v1587 = vadd.f32 %v1282, %v1545
      %v1588 = vadd.f32 %v1283, %v1548
      %v1589 = vadd.f32 %v1284, %v1553
      %v1590 = vadd.f32 %v1285, %v1556
      %v1591 = vld [vmem:[%s402 + $0x1] sm:$0xff]
      %v1592 = vld [vmem:[%s402 + $0x9] sm:$0xff]
      %v1593 = vld [vmem:[%s402 + $0x19] sm:$0xff]
      %v1594 = vld [vmem:[%s402 + $0x21] sm:$0xff]
      %v1595 = vld [vmem:[%s402 + $0x31] sm:$0xff]
      %v1596 = vld [vmem:[%s402 + $0x39] sm:$0xff]
      %v1597 = vld [vmem:[%s402 + $0x49] sm:$0xff]
      %v1598 = vld [vmem:[%s402 + $0x51] sm:$0xff]
      %v1599 = vld [vmem:[%s402 + $0x61] sm:$0xff]
      %v1600 = vld [vmem:[%s402 + $0x69] sm:$0xff]
      %v1601 = vld [vmem:[%s402 + $0x79] sm:$0xff]
      %v1602 = vld [vmem:[%s402 + $0x81] sm:$0xff]
      %v1603 = vld [vmem:[%s402 + $0x91] sm:$0xff]
      %v1604 = vld [vmem:[%s402 + $0x99] sm:$0xff]
      %v1605 = vld [vmem:[%s402 + $0xa9] sm:$0xff]
      %v1606 = vld [vmem:[%s402 + $0xb1] sm:$0xff]
      %v1607 = vld [vmem:[%s402 + $0xc1] sm:$0xff]
      %v1608 = vld [vmem:[%s402 + $0xc9] sm:$0xff]
      %v1609 = vld [vmem:[%s402 + $0xd9] sm:$0xff]
      %v1610 = vld [vmem:[%s402 + $0xe1] sm:$0xff]
      %v1611 = vld [vmem:[%s402 + $0xf1] sm:$0xff]
      %v1612 = vld [vmem:[%s402 + $0xf9] sm:$0xff]
      %v1613 = vld [vmem:[%s402 + $0x109] sm:$0xff]
      %v1614 = vld [vmem:[%s402 + $0x111] sm:$0xff]
      %v1615 = vld [vmem:[%s402 + $0x121] sm:$0xff]
      %v1616 = vld [vmem:[%s402 + $0x129] sm:$0xff]
      %v1617 = vld [vmem:[%s402 + $0x139] sm:$0xff]
      %v1618 = vld [vmem:[%s402 + $0x141] sm:$0xff]
      %v1619 = vld [vmem:[%s402 + $0x151] sm:$0xff]
      %v1620 = vld [vmem:[%s402 + $0x159] sm:$0xff]
      %v1621 = vld [vmem:[%s402 + $0x169] sm:$0xff]
      %v1622 = vld [vmem:[%s402 + $0x171] sm:$0xff]
      %v1623 = vpack.c.bf16 %v1592, %v1591
      %v1624 = vpack.c.bf16 %v1594, %v1593
      %v1625 = vpack.c.bf16 %v1596, %v1595
      %v1626 = vpack.c.bf16 %v1598, %v1597
      %v1627 = vpack.c.bf16 %v1600, %v1599
      %v1628 = vpack.c.bf16 %v1602, %v1601
      %v1629 = vpack.c.bf16 %v1604, %v1603
      %v1630 = vpack.c.bf16 %v1606, %v1605
      %v1631 = vpack.c.bf16 %v1608, %v1607
      %v1632 = vpack.c.bf16 %v1610, %v1609
      %v1633 = vpack.c.bf16 %v1612, %v1611
      %v1634 = vpack.c.bf16 %v1614, %v1613
      %v1635 = vpack.c.bf16 %v1616, %v1615
      %v1636 = vpack.c.bf16 %v1618, %v1617
      %v1637 = vpack.c.bf16 %v1620, %v1619
      %v1638 = vpack.c.bf16 %v1622, %v1621
      %v1639 = vld [vmem:[%s2 + $0x100] sm:$0xf]
      %v1640 = vld [vmem:[%s2 + $0x104] sm:$0xf]
      %v1641 = vld [vmem:[%s2 + $0x108] sm:$0xf]
      %v1642 = vld [vmem:[%s2 + $0x10c] sm:$0xf]
      %v1643 = vld [vmem:[%s2 + $0x110] sm:$0xf]
      %v1644 = vld [vmem:[%s2 + $0x114] sm:$0xf]
      %v1645 = vld [vmem:[%s2 + $0x118] sm:$0xf]
      %v1646 = vld [vmem:[%s2 + $0x11c] sm:$0xf]
      %v1647 = vld [vmem:[%s2 + $0x120] sm:$0xf]
      %v1648 = vld [vmem:[%s2 + $0x124] sm:$0xf]
      %v1649 = vld [vmem:[%s2 + $0x128] sm:$0xf]
      %v1650 = vld [vmem:[%s2 + $0x12c] sm:$0xf]
      %v1651 = vld [vmem:[%s2 + $0x130] sm:$0xf]
      %v1652 = vld [vmem:[%s2 + $0x134] sm:$0xf]
      %v1653 = vld [vmem:[%s2 + $0x138] sm:$0xf]
      %v1654 = vld [vmem:[%s2 + $0x13c] sm:$0xf]
      %v1671 = vunpack.c.l.b16 %v1639
      %v1672 = vunpack.c.l.b16 %v1640
      %v1673 = vunpack.c.l.b16 %v1641
      %v1674 = vunpack.c.l.b16 %v1642
      %v1675 = vunpack.c.l.b16 %v1643
      %v1676 = vunpack.c.l.b16 %v1644
      %v1677 = vunpack.c.l.b16 %v1645
      %v1678 = vunpack.c.l.b16 %v1646
      %v1679 = vunpack.c.l.b16 %v1647
      %v1680 = vunpack.c.l.b16 %v1648
      %v1681 = vunpack.c.l.b16 %v1649
      %v1682 = vunpack.c.l.b16 %v1650
      %v1683 = vunpack.c.l.b16 %v1651
      %v1684 = vunpack.c.l.b16 %v1652
      %v1685 = vunpack.c.l.b16 %v1653
      %v1686 = vunpack.c.l.b16 %v1654
      %v1687 = vpack.c.b16 %v1672, %v1671
      %v1688 = vpack.c.b16 %v1674, %v1673
      %v1689 = vpack.c.b16 %v1676, %v1675
      %v1690 = vpack.c.b16 %v1678, %v1677
      %v1691 = vpack.c.b16 %v1680, %v1679
      %v1692 = vpack.c.b16 %v1682, %v1681
      %v1693 = vpack.c.b16 %v1684, %v1683
      %v1694 = vpack.c.b16 %v1686, %v1685
      %1703 = vmatprep.subr.bf16.mxu0 0
      %1704 = vmatpush1.bf16.msra.mxu0 %v1694
      %1705 = vmatprep.subr.bf16.mxu0 0
      %1706 = vmatpush1.bf16.msra.mxu0 %v1693
      %1707 = vmatprep.subr.bf16.mxu0 0
      %1708 = vmatpush1.bf16.msra.mxu0 %v1692
      %1709 = vmatprep.subr.bf16.mxu0 0
      %1710 = vmatpush1.bf16.msra.mxu0 %v1691
      %1711 = vmatprep.subr.bf16.mxu0 0
      %1712 = vmatpush1.bf16.msra.mxu0 %v1690
      %1713 = vmatprep.subr.bf16.mxu0 0
      %1714 = vmatpush1.bf16.msra.mxu0 %v1689
      %1715 = vmatprep.subr.bf16.mxu0 0
      %1716 = vmatpush1.bf16.msra.mxu0 %v1688
      %1717 = vmatprep.subr.bf16.mxu0 0
      %1718 = vmatpush1.bf16.msra.mxu0 %v1687
      %1719 = vmatprep.subr.bf16.mxu0 0
      %1720 = vmatpush2.bf16.msra.mxu0 0
      %1721 = vmatprep.subr.bf16.mxu0 0
      %1722 = vmatpush2.bf16.msra.mxu0 0
      %1723 = vmatprep.subr.bf16.mxu0 0
      %1724 = vmatpush2.bf16.msra.mxu0 0
      %1725 = vmatprep.subr.bf16.mxu0 0
      %1726 = vmatpush2.bf16.msra.mxu0 0
      %1727 = vmatprep.subr.bf16.mxu0 0
      %1728 = vmatpush2.bf16.msra.mxu0 0
      %1729 = vmatprep.subr.bf16.mxu0 0
      %1730 = vmatpush2.bf16.msra.mxu0 0
      %1731 = vmatprep.subr.bf16.mxu0 0
      %1732 = vmatpush2.bf16.msra.mxu0 0
      %1733 = vmatprep.subr.bf16.mxu0 0
      %1734 = vmatpush2.bf16.msra.mxu0 0
      %1735 = vmatprep.mubr.bf16.mxu0 0
      %1736 = vmatmul.mubr.bf16.gmra.mxu0 %v1623
      %v1737 = vpop.f32.mrf.mxu0
      %v1738 = vadd.f32 0.0, %v1737
      %v1739 = vpop.f32.mrf.mxu0
      %v1740 = vpop.f32.mrf.mxu0
      %v1741 = vadd.f32 0.0, %v1740
      %v1742 = vpop.f32.mrf.mxu0
      %1743 = vmatprep.mubr.bf16.mxu0 0
      %1744 = vmatmul.mubr.bf16.gmra.mxu0 %v1624
      %v1745 = vpop.f32.mrf.mxu0
      %v1746 = vadd.f32 0.0, %v1745
      %v1747 = vpop.f32.mrf.mxu0
      %v1748 = vpop.f32.mrf.mxu0
      %v1749 = vadd.f32 0.0, %v1748
      %v1750 = vpop.f32.mrf.mxu0
      %1751 = vmatprep.mubr.bf16.mxu0 0
      %1752 = vmatmul.mubr.bf16.gmra.mxu0 %v1625
      %v1753 = vpop.f32.mrf.mxu0
      %v1754 = vadd.f32 0.0, %v1753
      %v1755 = vpop.f32.mrf.mxu0
      %v1756 = vpop.f32.mrf.mxu0
      %v1757 = vadd.f32 0.0, %v1756
      %v1758 = vpop.f32.mrf.mxu0
      %1759 = vmatprep.mubr.bf16.mxu0 0
      %1760 = vmatmul.mubr.bf16.gmra.mxu0 %v1626
      %v1761 = vpop.f32.mrf.mxu0
      %v1762 = vadd.f32 0.0, %v1761
      %v1763 = vpop.f32.mrf.mxu0
      %v1764 = vpop.f32.mrf.mxu0
      %v1765 = vadd.f32 0.0, %v1764
      %v1766 = vpop.f32.mrf.mxu0
      %1767 = vmatprep.mubr.bf16.mxu0 0
      %1768 = vmatmul.mubr.bf16.gmra.mxu0 %v1627
      %v1769 = vpop.f32.mrf.mxu0
      %v1770 = vadd.f32 0.0, %v1769
      %v1771 = vpop.f32.mrf.mxu0
      %v1772 = vpop.f32.mrf.mxu0
      %v1773 = vadd.f32 0.0, %v1772
      %v1774 = vpop.f32.mrf.mxu0
      %1775 = vmatprep.mubr.bf16.mxu0 0
      %1776 = vmatmul.mubr.bf16.gmra.mxu0 %v1628
      %v1777 = vpop.f32.mrf.mxu0
      %v1778 = vadd.f32 0.0, %v1777
      %v1779 = vpop.f32.mrf.mxu0
      %v1780 = vpop.f32.mrf.mxu0
      %v1781 = vadd.f32 0.0, %v1780
      %v1782 = vpop.f32.mrf.mxu0
      %1783 = vmatprep.mubr.bf16.mxu0 0
      %1784 = vmatmul.mubr.bf16.gmra.mxu0 %v1629
      %v1785 = vpop.f32.mrf.mxu0
      %v1786 = vadd.f32 0.0, %v1785
      %v1787 = vpop.f32.mrf.mxu0
      %v1788 = vpop.f32.mrf.mxu0
      %v1789 = vadd.f32 0.0, %v1788
      %v1790 = vpop.f32.mrf.mxu0
      %1791 = vmatprep.mubr.bf16.mxu0 0
      %1792 = vmatmul.mubr.bf16.gmra.mxu0 %v1630
      %v1793 = vpop.f32.mrf.mxu0
      %v1794 = vadd.f32 0.0, %v1793
      %v1795 = vpop.f32.mrf.mxu0
      %v1796 = vpop.f32.mrf.mxu0
      %v1797 = vadd.f32 0.0, %v1796
      %v1798 = vpop.f32.mrf.mxu0
      %1799 = vmatprep.mubr.bf16.mxu0 0
      %1800 = vmatmul.mubr.bf16.gmra.mxu0 %v1631
      %v1801 = vpop.f32.mrf.mxu0
      %v1802 = vadd.f32 0.0, %v1801
      %v1803 = vpop.f32.mrf.mxu0
      %v1804 = vpop.f32.mrf.mxu0
      %v1805 = vadd.f32 0.0, %v1804
      %v1806 = vpop.f32.mrf.mxu0
      %1807 = vmatprep.mubr.bf16.mxu0 0
      %1808 = vmatmul.mubr.bf16.gmra.mxu0 %v1632
      %v1809 = vpop.f32.mrf.mxu0
      %v1810 = vadd.f32 0.0, %v1809
      %v1811 = vpop.f32.mrf.mxu0
      %v1812 = vpop.f32.mrf.mxu0
      %v1813 = vadd.f32 0.0, %v1812
      %v1814 = vpop.f32.mrf.mxu0
      %1815 = vmatprep.mubr.bf16.mxu0 0
      %1816 = vmatmul.mubr.bf16.gmra.mxu0 %v1633
      %v1817 = vpop.f32.mrf.mxu0
      %v1818 = vadd.f32 0.0, %v1817
      %v1819 = vpop.f32.mrf.mxu0
      %v1820 = vpop.f32.mrf.mxu0
      %v1821 = vadd.f32 0.0, %v1820
      %v1822 = vpop.f32.mrf.mxu0
      %1823 = vmatprep.mubr.bf16.mxu0 0
      %1824 = vmatmul.mubr.bf16.gmra.mxu0 %v1634
      %v1825 = vpop.f32.mrf.mxu0
      %v1826 = vadd.f32 0.0, %v1825
      %v1827 = vpop.f32.mrf.mxu0
      %v1828 = vpop.f32.mrf.mxu0
      %v1829 = vadd.f32 0.0, %v1828
      %v1830 = vpop.f32.mrf.mxu0
      %1831 = vmatprep.mubr.bf16.mxu0 0
      %1832 = vmatmul.mubr.bf16.gmra.mxu0 %v1635
      %v1833 = vpop.f32.mrf.mxu0
      %v1834 = vadd.f32 0.0, %v1833
      %v1835 = vpop.f32.mrf.mxu0
      %v1836 = vpop.f32.mrf.mxu0
      %v1837 = vadd.f32 0.0, %v1836
      %v1838 = vpop.f32.mrf.mxu0
      %1839 = vmatprep.mubr.bf16.mxu0 0
      %1840 = vmatmul.mubr.bf16.gmra.mxu0 %v1636
      %v1841 = vpop.f32.mrf.mxu0
      %v1842 = vadd.f32 0.0, %v1841
      %v1843 = vpop.f32.mrf.mxu0
      %v1844 = vpop.f32.mrf.mxu0
      %v1845 = vadd.f32 0.0, %v1844
      %v1846 = vpop.f32.mrf.mxu0
      %1847 = vmatprep.mubr.bf16.mxu0 0
      %1848 = vmatmul.mubr.bf16.gmra.mxu0 %v1637
      %v1849 = vpop.f32.mrf.mxu0
      %v1850 = vadd.f32 0.0, %v1849
      %v1851 = vpop.f32.mrf.mxu0
      %v1852 = vpop.f32.mrf.mxu0
      %v1853 = vadd.f32 0.0, %v1852
      %v1854 = vpop.f32.mrf.mxu0
      %1855 = vmatprep.mubr.bf16.mxu0 0
      %1856 = vmatmul.mubr.bf16.gmra.mxu0 %v1638
      %v1857 = vpop.f32.mrf.mxu0
      %v1858 = vadd.f32 0.0, %v1857
      %v1859 = vpop.f32.mrf.mxu0
      %v1860 = vpop.f32.mrf.mxu0
      %v1861 = vadd.f32 0.0, %v1860
      %v1862 = vpop.f32.mrf.mxu0
      %1863 = vdwg.mxu0
      %v1864 = vadd.f32 %v1559, %v1738
      %v1865 = vadd.f32 %v1560, %v1741
      %v1866 = vadd.f32 %v1561, %v1746
      %v1867 = vadd.f32 %v1562, %v1749
      %v1868 = vadd.f32 %v1563, %v1754
      %v1869 = vadd.f32 %v1564, %v1757
      %v1870 = vadd.f32 %v1565, %v1762
      %v1871 = vadd.f32 %v1566, %v1765
      %v1872 = vadd.f32 %v1567, %v1770
      %v1873 = vadd.f32 %v1568, %v1773
      %v1874 = vadd.f32 %v1569, %v1778
      %v1875 = vadd.f32 %v1570, %v1781
      %v1876 = vadd.f32 %v1571, %v1786
      %v1877 = vadd.f32 %v1572, %v1789
      %v1878 = vadd.f32 %v1573, %v1794
      %v1879 = vadd.f32 %v1574, %v1797
      %v1880 = vadd.f32 %v1575, %v1802
      %v1881 = vadd.f32 %v1576, %v1805
      %v1882 = vadd.f32 %v1577, %v1810
      %v1883 = vadd.f32 %v1578, %v1813
      %v1884 = vadd.f32 %v1579, %v1818
      %v1885 = vadd.f32 %v1580, %v1821
      %v1886 = vadd.f32 %v1581, %v1826
      %v1887 = vadd.f32 %v1582, %v1829
      %v1888 = vadd.f32 %v1583, %v1834
      %v1889 = vadd.f32 %v1584, %v1837
      %v1890 = vadd.f32 %v1585, %v1842
      %v1891 = vadd.f32 %v1586, %v1845
      %v1892 = vadd.f32 %v1587, %v1850
      %v1893 = vadd.f32 %v1588, %v1853
      %v1894 = vadd.f32 %v1589, %v1858
      %v1895 = vadd.f32 %v1590, %v1861
      %v1896 = vld [vmem:[%s402 + $0x2] sm:$0xff]
      %v1897 = vld [vmem:[%s402 + $0xa] sm:$0xff]
      %v1898 = vld [vmem:[%s402 + $0x1a] sm:$0xff]
      %v1899 = vld [vmem:[%s402 + $0x22] sm:$0xff]
      %v1900 = vld [vmem:[%s402 + $0x32] sm:$0xff]
      %v1901 = vld [vmem:[%s402 + $0x3a] sm:$0xff]
      %v1902 = vld [vmem:[%s402 + $0x4a] sm:$0xff]
      %v1903 = vld [vmem:[%s402 + $0x52] sm:$0xff]
      %v1904 = vld [vmem:[%s402 + $0x62] sm:$0xff]
      %v1905 = vld [vmem:[%s402 + $0x6a] sm:$0xff]
      %v1906 = vld [vmem:[%s402 + $0x7a] sm:$0xff]
      %v1907 = vld [vmem:[%s402 + $0x82] sm:$0xff]
      %v1908 = vld [vmem:[%s402 + $0x92] sm:$0xff]
      %v1909 = vld [vmem:[%s402 + $0x9a] sm:$0xff]
      %v1910 = vld [vmem:[%s402 + $0xaa] sm:$0xff]
      %v1911 = vld [vmem:[%s402 + $0xb2] sm:$0xff]
      %v1912 = vld [vmem:[%s402 + $0xc2] sm:$0xff]
      %v1913 = vld [vmem:[%s402 + $0xca] sm:$0xff]
      %v1914 = vld [vmem:[%s402 + $0xda] sm:$0xff]
      %v1915 = vld [vmem:[%s402 + $0xe2] sm:$0xff]
      %v1916 = vld [vmem:[%s402 + $0xf2] sm:$0xff]
      %v1917 = vld [vmem:[%s402 + $0xfa] sm:$0xff]
      %v1918 = vld [vmem:[%s402 + $0x10a] sm:$0xff]
      %v1919 = vld [vmem:[%s402 + $0x112] sm:$0xff]
      %v1920 = vld [vmem:[%s402 + $0x122] sm:$0xff]
      %v1921 = vld [vmem:[%s402 + $0x12a] sm:$0xff]
      %v1922 = vld [vmem:[%s402 + $0x13a] sm:$0xff]
      %v1923 = vld [vmem:[%s402 + $0x142] sm:$0xff]
      %v1924 = vld [vmem:[%s402 + $0x152] sm:$0xff]
      %v1925 = vld [vmem:[%s402 + $0x15a] sm:$0xff]
      %v1926 = vld [vmem:[%s402 + $0x16a] sm:$0xff]
      %v1927 = vld [vmem:[%s402 + $0x172] sm:$0xff]
      %v1928 = vpack.c.bf16 %v1897, %v1896
      %v1929 = vpack.c.bf16 %v1899, %v1898
      %v1930 = vpack.c.bf16 %v1901, %v1900
      %v1931 = vpack.c.bf16 %v1903, %v1902
      %v1932 = vpack.c.bf16 %v1905, %v1904
      %v1933 = vpack.c.bf16 %v1907, %v1906
      %v1934 = vpack.c.bf16 %v1909, %v1908
      %v1935 = vpack.c.bf16 %v1911, %v1910
      %v1936 = vpack.c.bf16 %v1913, %v1912
      %v1937 = vpack.c.bf16 %v1915, %v1914
      %v1938 = vpack.c.bf16 %v1917, %v1916
      %v1939 = vpack.c.bf16 %v1919, %v1918
      %v1940 = vpack.c.bf16 %v1921, %v1920
      %v1941 = vpack.c.bf16 %v1923, %v1922
      %v1942 = vpack.c.bf16 %v1925, %v1924
      %v1943 = vpack.c.bf16 %v1927, %v1926
      %v1944 = vld [vmem:[%s2 + $0x140] sm:$0xf]
      %v1945 = vld [vmem:[%s2 + $0x144] sm:$0xf]
      %v1946 = vld [vmem:[%s2 + $0x148] sm:$0xf]
      %v1947 = vld [vmem:[%s2 + $0x14c] sm:$0xf]
      %v1948 = vld [vmem:[%s2 + $0x150] sm:$0xf]
      %v1949 = vld [vmem:[%s2 + $0x154] sm:$0xf]
      %v1950 = vld [vmem:[%s2 + $0x158] sm:$0xf]
      %v1951 = vld [vmem:[%s2 + $0x15c] sm:$0xf]
      %v1952 = vld [vmem:[%s2 + $0x160] sm:$0xf]
      %v1953 = vld [vmem:[%s2 + $0x164] sm:$0xf]
      %v1954 = vld [vmem:[%s2 + $0x168] sm:$0xf]
      %v1955 = vld [vmem:[%s2 + $0x16c] sm:$0xf]
      %v1956 = vld [vmem:[%s2 + $0x170] sm:$0xf]
      %v1957 = vld [vmem:[%s2 + $0x174] sm:$0xf]
      %v1958 = vld [vmem:[%s2 + $0x178] sm:$0xf]
      %v1959 = vld [vmem:[%s2 + $0x17c] sm:$0xf]
      %v1976 = vunpack.c.l.b16 %v1944
      %v1977 = vunpack.c.l.b16 %v1945
      %v1978 = vunpack.c.l.b16 %v1946
      %v1979 = vunpack.c.l.b16 %v1947
      %v1980 = vunpack.c.l.b16 %v1948
      %v1981 = vunpack.c.l.b16 %v1949
      %v1982 = vunpack.c.l.b16 %v1950
      %v1983 = vunpack.c.l.b16 %v1951
      %v1984 = vunpack.c.l.b16 %v1952
      %v1985 = vunpack.c.l.b16 %v1953
      %v1986 = vunpack.c.l.b16 %v1954
      %v1987 = vunpack.c.l.b16 %v1955
      %v1988 = vunpack.c.l.b16 %v1956
      %v1989 = vunpack.c.l.b16 %v1957
      %v1990 = vunpack.c.l.b16 %v1958
      %v1991 = vunpack.c.l.b16 %v1959
      %v1992 = vpack.c.b16 %v1977, %v1976
      %v1993 = vpack.c.b16 %v1979, %v1978
      %v1994 = vpack.c.b16 %v1981, %v1980
      %v1995 = vpack.c.b16 %v1983, %v1982
      %v1996 = vpack.c.b16 %v1985, %v1984
      %v1997 = vpack.c.b16 %v1987, %v1986
      %v1998 = vpack.c.b16 %v1989, %v1988
      %v1999 = vpack.c.b16 %v1991, %v1990
      %2008 = vmatprep.subr.bf16.mxu0 0
      %2009 = vmatpush1.bf16.msra.mxu0 %v1999
      %2010 = vmatprep.subr.bf16.mxu0 0
      %2011 = vmatpush1.bf16.msra.mxu0 %v1998
      %2012 = vmatprep.subr.bf16.mxu0 0
      %2013 = vmatpush1.bf16.msra.mxu0 %v1997
      %2014 = vmatprep.subr.bf16.mxu0 0
      %2015 = vmatpush1.bf16.msra.mxu0 %v1996
      %2016 = vmatprep.subr.bf16.mxu0 0
      %2017 = vmatpush1.bf16.msra.mxu0 %v1995
      %2018 = vmatprep.subr.bf16.mxu0 0
      %2019 = vmatpush1.bf16.msra.mxu0 %v1994
      %2020 = vmatprep.subr.bf16.mxu0 0
      %2021 = vmatpush1.bf16.msra.mxu0 %v1993
      %2022 = vmatprep.subr.bf16.mxu0 0
      %2023 = vmatpush1.bf16.msra.mxu0 %v1992
      %2024 = vmatprep.subr.bf16.mxu0 0
      %2025 = vmatpush2.bf16.msra.mxu0 0
      %2026 = vmatprep.subr.bf16.mxu0 0
      %2027 = vmatpush2.bf16.msra.mxu0 0
      %2028 = vmatprep.subr.bf16.mxu0 0
      %2029 = vmatpush2.bf16.msra.mxu0 0
      %2030 = vmatprep.subr.bf16.mxu0 0
      %2031 = vmatpush2.bf16.msra.mxu0 0
      %2032 = vmatprep.subr.bf16.mxu0 0
      %2033 = vmatpush2.bf16.msra.mxu0 0
      %2034 = vmatprep.subr.bf16.mxu0 0
      %2035 = vmatpush2.bf16.msra.mxu0 0
      %2036 = vmatprep.subr.bf16.mxu0 0
      %2037 = vmatpush2.bf16.msra.mxu0 0
      %2038 = vmatprep.subr.bf16.mxu0 0
      %2039 = vmatpush2.bf16.msra.mxu0 0
      %2040 = vmatprep.mubr.bf16.mxu0 0
      %2041 = vmatmul.mubr.bf16.gmra.mxu0 %v1928
      %v2042 = vpop.f32.mrf.mxu0
      %v2043 = vadd.f32 0.0, %v2042
      %v2044 = vpop.f32.mrf.mxu0
      %v2045 = vpop.f32.mrf.mxu0
      %v2046 = vadd.f32 0.0, %v2045
      %v2047 = vpop.f32.mrf.mxu0
      %2048 = vmatprep.mubr.bf16.mxu0 0
      %2049 = vmatmul.mubr.bf16.gmra.mxu0 %v1929
      %v2050 = vpop.f32.mrf.mxu0
      %v2051 = vadd.f32 0.0, %v2050
      %v2052 = vpop.f32.mrf.mxu0
      %v2053 = vpop.f32.mrf.mxu0
      %v2054 = vadd.f32 0.0, %v2053
      %v2055 = vpop.f32.mrf.mxu0
      %2056 = vmatprep.mubr.bf16.mxu0 0
      %2057 = vmatmul.mubr.bf16.gmra.mxu0 %v1930
      %v2058 = vpop.f32.mrf.mxu0
      %v2059 = vadd.f32 0.0, %v2058
      %v2060 = vpop.f32.mrf.mxu0
      %v2061 = vpop.f32.mrf.mxu0
      %v2062 = vadd.f32 0.0, %v2061
      %v2063 = vpop.f32.mrf.mxu0
      %2064 = vmatprep.mubr.bf16.mxu0 0
      %2065 = vmatmul.mubr.bf16.gmra.mxu0 %v1931
      %v2066 = vpop.f32.mrf.mxu0
      %v2067 = vadd.f32 0.0, %v2066
      %v2068 = vpop.f32.mrf.mxu0
      %v2069 = vpop.f32.mrf.mxu0
      %v2070 = vadd.f32 0.0, %v2069
      %v2071 = vpop.f32.mrf.mxu0
      %2072 = vmatprep.mubr.bf16.mxu0 0
      %2073 = vmatmul.mubr.bf16.gmra.mxu0 %v1932
      %v2074 = vpop.f32.mrf.mxu0
      %v2075 = vadd.f32 0.0, %v2074
      %v2076 = vpop.f32.mrf.mxu0
      %v2077 = vpop.f32.mrf.mxu0
      %v2078 = vadd.f32 0.0, %v2077
      %v2079 = vpop.f32.mrf.mxu0
      %2080 = vmatprep.mubr.bf16.mxu0 0
      %2081 = vmatmul.mubr.bf16.gmra.mxu0 %v1933
      %v2082 = vpop.f32.mrf.mxu0
      %v2083 = vadd.f32 0.0, %v2082
      %v2084 = vpop.f32.mrf.mxu0
      %v2085 = vpop.f32.mrf.mxu0
      %v2086 = vadd.f32 0.0, %v2085
      %v2087 = vpop.f32.mrf.mxu0
      %2088 = vmatprep.mubr.bf16.mxu0 0
      %2089 = vmatmul.mubr.bf16.gmra.mxu0 %v1934
      %v2090 = vpop.f32.mrf.mxu0
      %v2091 = vadd.f32 0.0, %v2090
      %v2092 = vpop.f32.mrf.mxu0
      %v2093 = vpop.f32.mrf.mxu0
      %v2094 = vadd.f32 0.0, %v2093
      %v2095 = vpop.f32.mrf.mxu0
      %2096 = vmatprep.mubr.bf16.mxu0 0
      %2097 = vmatmul.mubr.bf16.gmra.mxu0 %v1935
      %v2098 = vpop.f32.mrf.mxu0
      %v2099 = vadd.f32 0.0, %v2098
      %v2100 = vpop.f32.mrf.mxu0
      %v2101 = vpop.f32.mrf.mxu0
      %v2102 = vadd.f32 0.0, %v2101
      %v2103 = vpop.f32.mrf.mxu0
      %2104 = vmatprep.mubr.bf16.mxu0 0
      %2105 = vmatmul.mubr.bf16.gmra.mxu0 %v1936
      %v2106 = vpop.f32.mrf.mxu0
      %v2107 = vadd.f32 0.0, %v2106
      %v2108 = vpop.f32.mrf.mxu0
      %v2109 = vpop.f32.mrf.mxu0
      %v2110 = vadd.f32 0.0, %v2109
      %v2111 = vpop.f32.mrf.mxu0
      %2112 = vmatprep.mubr.bf16.mxu0 0
      %2113 = vmatmul.mubr.bf16.gmra.mxu0 %v1937
      %v2114 = vpop.f32.mrf.mxu0
      %v2115 = vadd.f32 0.0, %v2114
      %v2116 = vpop.f32.mrf.mxu0
      %v2117 = vpop.f32.mrf.mxu0
      %v2118 = vadd.f32 0.0, %v2117
      %v2119 = vpop.f32.mrf.mxu0
      %2120 = vmatprep.mubr.bf16.mxu0 0
      %2121 = vmatmul.mubr.bf16.gmra.mxu0 %v1938
      %v2122 = vpop.f32.mrf.mxu0
      %v2123 = vadd.f32 0.0, %v2122
      %v2124 = vpop.f32.mrf.mxu0
      %v2125 = vpop.f32.mrf.mxu0
      %v2126 = vadd.f32 0.0, %v2125
      %v2127 = vpop.f32.mrf.mxu0
      %2128 = vmatprep.mubr.bf16.mxu0 0
      %2129 = vmatmul.mubr.bf16.gmra.mxu0 %v1939
      %v2130 = vpop.f32.mrf.mxu0
      %v2131 = vadd.f32 0.0, %v2130
      %v2132 = vpop.f32.mrf.mxu0
      %v2133 = vpop.f32.mrf.mxu0
      %v2134 = vadd.f32 0.0, %v2133
      %v2135 = vpop.f32.mrf.mxu0
      %2136 = vmatprep.mubr.bf16.mxu0 0
      %2137 = vmatmul.mubr.bf16.gmra.mxu0 %v1940
      %v2138 = vpop.f32.mrf.mxu0
      %v2139 = vadd.f32 0.0, %v2138
      %v2140 = vpop.f32.mrf.mxu0
      %v2141 = vpop.f32.mrf.mxu0
      %v2142 = vadd.f32 0.0, %v2141
      %v2143 = vpop.f32.mrf.mxu0
      %2144 = vmatprep.mubr.bf16.mxu0 0
      %2145 = vmatmul.mubr.bf16.gmra.mxu0 %v1941
      %v2146 = vpop.f32.mrf.mxu0
      %v2147 = vadd.f32 0.0, %v2146
      %v2148 = vpop.f32.mrf.mxu0
      %v2149 = vpop.f32.mrf.mxu0
      %v2150 = vadd.f32 0.0, %v2149
      %v2151 = vpop.f32.mrf.mxu0
      %2152 = vmatprep.mubr.bf16.mxu0 0
      %2153 = vmatmul.mubr.bf16.gmra.mxu0 %v1942
      %v2154 = vpop.f32.mrf.mxu0
      %v2155 = vadd.f32 0.0, %v2154
      %v2156 = vpop.f32.mrf.mxu0
      %v2157 = vpop.f32.mrf.mxu0
      %v2158 = vadd.f32 0.0, %v2157
      %v2159 = vpop.f32.mrf.mxu0
      %2160 = vmatprep.mubr.bf16.mxu0 0
      %2161 = vmatmul.mubr.bf16.gmra.mxu0 %v1943
      %v2162 = vpop.f32.mrf.mxu0
      %v2163 = vadd.f32 0.0, %v2162
      %v2164 = vpop.f32.mrf.mxu0
      %v2165 = vpop.f32.mrf.mxu0
      %v2166 = vadd.f32 0.0, %v2165
      %v2167 = vpop.f32.mrf.mxu0
      %2168 = vdwg.mxu0
      %v2169 = vadd.f32 %v1864, %v2043
      %v2170 = vadd.f32 %v1865, %v2046
      %v2171 = vadd.f32 %v1866, %v2051
      %v2172 = vadd.f32 %v1867, %v2054
      %v2173 = vadd.f32 %v1868, %v2059
      %v2174 = vadd.f32 %v1869, %v2062
      %v2175 = vadd.f32 %v1870, %v2067
      %v2176 = vadd.f32 %v1871, %v2070
      %v2177 = vadd.f32 %v1872, %v2075
      %v2178 = vadd.f32 %v1873, %v2078
      %v2179 = vadd.f32 %v1874, %v2083
      %v2180 = vadd.f32 %v1875, %v2086
      %v2181 = vadd.f32 %v1876, %v2091
      %v2182 = vadd.f32 %v1877, %v2094
      %v2183 = vadd.f32 %v1878, %v2099
      %v2184 = vadd.f32 %v1879, %v2102
      %v2185 = vadd.f32 %v1880, %v2107
      %v2186 = vadd.f32 %v1881, %v2110
      %v2187 = vadd.f32 %v1882, %v2115
      %v2188 = vadd.f32 %v1883, %v2118
      %v2189 = vadd.f32 %v1884, %v2123
      %v2190 = vadd.f32 %v1885, %v2126
      %v2191 = vadd.f32 %v1886, %v2131
      %v2192 = vadd.f32 %v1887, %v2134
      %v2193 = vadd.f32 %v1888, %v2139
      %v2194 = vadd.f32 %v1889, %v2142
      %v2195 = vadd.f32 %v1890, %v2147
      %v2196 = vadd.f32 %v1891, %v2150
      %v2197 = vadd.f32 %v1892, %v2155
      %v2198 = vadd.f32 %v1893, %v2158
      %v2199 = vadd.f32 %v1894, %v2163
      %v2200 = vadd.f32 %v1895, %v2166
      %s2201 = scalar_lea.vmem [#allocation2], 48
      %v2202 = vld [vmem:[%s2201] sm:$0xff]
      %v2203 = vld [vmem:[%s2201 + $0x8] sm:$0xff]
      %v2204 = vld [vmem:[%s2201 + $0x18] sm:$0xff]
      %v2205 = vld [vmem:[%s2201 + $0x20] sm:$0xff]
      %v2206 = vld [vmem:[%s2201 + $0x30] sm:$0xff]
      %v2207 = vld [vmem:[%s2201 + $0x38] sm:$0xff]
      %v2208 = vld [vmem:[%s2201 + $0x48] sm:$0xff]
      %v2209 = vld [vmem:[%s2201 + $0x50] sm:$0xff]
      %v2210 = vld [vmem:[%s2201 + $0x60] sm:$0xff]
      %v2211 = vld [vmem:[%s2201 + $0x68] sm:$0xff]
      %v2212 = vld [vmem:[%s2201 + $0x78] sm:$0xff]
      %v2213 = vld [vmem:[%s2201 + $0x80] sm:$0xff]
      %v2214 = vld [vmem:[%s2201 + $0x90] sm:$0xff]
      %v2215 = vld [vmem:[%s2201 + $0x98] sm:$0xff]
      %v2216 = vld [vmem:[%s2201 + $0xa8] sm:$0xff]
      %v2217 = vld [vmem:[%s2201 + $0xb0] sm:$0xff]
      %v2218 = vld [vmem:[%s2201 + $0xc0] sm:$0xff]
      %v2219 = vld [vmem:[%s2201 + $0xc8] sm:$0xff]
      %v2220 = vld [vmem:[%s2201 + $0xd8] sm:$0xff]
      %v2221 = vld [vmem:[%s2201 + $0xe0] sm:$0xff]
      %v2222 = vld [vmem:[%s2201 + $0xf0] sm:$0xff]
      %v2223 = vld [vmem:[%s2201 + $0xf8] sm:$0xff]
      %v2224 = vld [vmem:[%s2201 + $0x108] sm:$0xff]
      %v2225 = vld [vmem:[%s2201 + $0x110] sm:$0xff]
      %v2226 = vld [vmem:[%s2201 + $0x120] sm:$0xff]
      %v2227 = vld [vmem:[%s2201 + $0x128] sm:$0xff]
      %v2228 = vld [vmem:[%s2201 + $0x138] sm:$0xff]
      %v2229 = vld [vmem:[%s2201 + $0x140] sm:$0xff]
      %v2230 = vld [vmem:[%s2201 + $0x150] sm:$0xff]
      %v2231 = vld [vmem:[%s2201 + $0x158] sm:$0xff]
      %v2232 = vld [vmem:[%s2201 + $0x168] sm:$0xff]
      %v2233 = vld [vmem:[%s2201 + $0x170] sm:$0xff]
      %v2234 = vpack.c.bf16 %v2203, %v2202
      %v2235 = vpack.c.bf16 %v2205, %v2204
      %v2236 = vpack.c.bf16 %v2207, %v2206
      %v2237 = vpack.c.bf16 %v2209, %v2208
      %v2238 = vpack.c.bf16 %v2211, %v2210
      %v2239 = vpack.c.bf16 %v2213, %v2212
      %v2240 = vpack.c.bf16 %v2215, %v2214
      %v2241 = vpack.c.bf16 %v2217, %v2216
      %v2242 = vpack.c.bf16 %v2219, %v2218
      %v2243 = vpack.c.bf16 %v2221, %v2220
      %v2244 = vpack.c.bf16 %v2223, %v2222
      %v2245 = vpack.c.bf16 %v2225, %v2224
      %v2246 = vpack.c.bf16 %v2227, %v2226
      %v2247 = vpack.c.bf16 %v2229, %v2228
      %v2248 = vpack.c.bf16 %v2231, %v2230
      %v2249 = vpack.c.bf16 %v2233, %v2232
      %v2250 = vld [vmem:[%s2 + $0x180] sm:$0xf]
      %v2251 = vld [vmem:[%s2 + $0x184] sm:$0xf]
      %v2252 = vld [vmem:[%s2 + $0x188] sm:$0xf]
      %v2253 = vld [vmem:[%s2 + $0x18c] sm:$0xf]
      %v2254 = vld [vmem:[%s2 + $0x190] sm:$0xf]
      %v2255 = vld [vmem:[%s2 + $0x194] sm:$0xf]
      %v2256 = vld [vmem:[%s2 + $0x198] sm:$0xf]
      %v2257 = vld [vmem:[%s2 + $0x19c] sm:$0xf]
      %v2258 = vld [vmem:[%s2 + $0x1a0] sm:$0xf]
      %v2259 = vld [vmem:[%s2 + $0x1a4] sm:$0xf]
      %v2260 = vld [vmem:[%s2 + $0x1a8] sm:$0xf]
      %v2261 = vld [vmem:[%s2 + $0x1ac] sm:$0xf]
      %v2262 = vld [vmem:[%s2 + $0x1b0] sm:$0xf]
      %v2263 = vld [vmem:[%s2 + $0x1b4] sm:$0xf]
      %v2264 = vld [vmem:[%s2 + $0x1b8] sm:$0xf]
      %v2265 = vld [vmem:[%s2 + $0x1bc] sm:$0xf]
      %v2282 = vunpack.c.l.b16 %v2250
      %v2283 = vunpack.c.l.b16 %v2251
      %v2284 = vunpack.c.l.b16 %v2252
      %v2285 = vunpack.c.l.b16 %v2253
      %v2286 = vunpack.c.l.b16 %v2254
      %v2287 = vunpack.c.l.b16 %v2255
      %v2288 = vunpack.c.l.b16 %v2256
      %v2289 = vunpack.c.l.b16 %v2257
      %v2290 = vunpack.c.l.b16 %v2258
      %v2291 = vunpack.c.l.b16 %v2259
      %v2292 = vunpack.c.l.b16 %v2260
      %v2293 = vunpack.c.l.b16 %v2261
      %v2294 = vunpack.c.l.b16 %v2262
      %v2295 = vunpack.c.l.b16 %v2263
      %v2296 = vunpack.c.l.b16 %v2264
      %v2297 = vunpack.c.l.b16 %v2265
      %v2298 = vpack.c.b16 %v2283, %v2282
      %v2299 = vpack.c.b16 %v2285, %v2284
      %v2300 = vpack.c.b16 %v2287, %v2286
      %v2301 = vpack.c.b16 %v2289, %v2288
      %v2302 = vpack.c.b16 %v2291, %v2290
      %v2303 = vpack.c.b16 %v2293, %v2292
      %v2304 = vpack.c.b16 %v2295, %v2294
      %v2305 = vpack.c.b16 %v2297, %v2296
      %2314 = vmatprep.subr.bf16.mxu0 0
      %2315 = vmatpush1.bf16.msra.mxu0 %v2305
      %2316 = vmatprep.subr.bf16.mxu0 0
      %2317 = vmatpush1.bf16.msra.mxu0 %v2304
      %2318 = vmatprep.subr.bf16.mxu0 0
      %2319 = vmatpush1.bf16.msra.mxu0 %v2303
      %2320 = vmatprep.subr.bf16.mxu0 0
      %2321 = vmatpush1.bf16.msra.mxu0 %v2302
      %2322 = vmatprep.subr.bf16.mxu0 0
      %2323 = vmatpush1.bf16.msra.mxu0 %v2301
      %2324 = vmatprep.subr.bf16.mxu0 0
      %2325 = vmatpush1.bf16.msra.mxu0 %v2300
      %2326 = vmatprep.subr.bf16.mxu0 0
      %2327 = vmatpush1.bf16.msra.mxu0 %v2299
      %2328 = vmatprep.subr.bf16.mxu0 0
      %2329 = vmatpush1.bf16.msra.mxu0 %v2298
      %2330 = vmatprep.subr.bf16.mxu0 0
      %2331 = vmatpush2.bf16.msra.mxu0 0
      %2332 = vmatprep.subr.bf16.mxu0 0
      %2333 = vmatpush2.bf16.msra.mxu0 0
      %2334 = vmatprep.subr.bf16.mxu0 0
      %2335 = vmatpush2.bf16.msra.mxu0 0
      %2336 = vmatprep.subr.bf16.mxu0 0
      %2337 = vmatpush2.bf16.msra.mxu0 0
      %2338 = vmatprep.subr.bf16.mxu0 0
      %2339 = vmatpush2.bf16.msra.mxu0 0
      %2340 = vmatprep.subr.bf16.mxu0 0
      %2341 = vmatpush2.bf16.msra.mxu0 0
      %2342 = vmatprep.subr.bf16.mxu0 0
      %2343 = vmatpush2.bf16.msra.mxu0 0
      %2344 = vmatprep.subr.bf16.mxu0 0
      %2345 = vmatpush2.bf16.msra.mxu0 0
      %2346 = vmatprep.mubr.bf16.mxu0 0
      %2347 = vmatmul.mubr.bf16.gmra.mxu0 %v2234
      %v2348 = vpop.f32.mrf.mxu0
      %v2349 = vadd.f32 0.0, %v2348
      %v2350 = vpop.f32.mrf.mxu0
      %v2351 = vpop.f32.mrf.mxu0
      %v2352 = vadd.f32 0.0, %v2351
      %v2353 = vpop.f32.mrf.mxu0
      %2354 = vmatprep.mubr.bf16.mxu0 0
      %2355 = vmatmul.mubr.bf16.gmra.mxu0 %v2235
      %v2356 = vpop.f32.mrf.mxu0
      %v2357 = vadd.f32 0.0, %v2356
      %v2358 = vpop.f32.mrf.mxu0
      %v2359 = vpop.f32.mrf.mxu0
      %v2360 = vadd.f32 0.0, %v2359
      %v2361 = vpop.f32.mrf.mxu0
      %2362 = vmatprep.mubr.bf16.mxu0 0
      %2363 = vmatmul.mubr.bf16.gmra.mxu0 %v2236
      %v2364 = vpop.f32.mrf.mxu0
      %v2365 = vadd.f32 0.0, %v2364
      %v2366 = vpop.f32.mrf.mxu0
      %v2367 = vpop.f32.mrf.mxu0
      %v2368 = vadd.f32 0.0, %v2367
      %v2369 = vpop.f32.mrf.mxu0
      %2370 = vmatprep.mubr.bf16.mxu0 0
      %2371 = vmatmul.mubr.bf16.gmra.mxu0 %v2237
      %v2372 = vpop.f32.mrf.mxu0
      %v2373 = vadd.f32 0.0, %v2372
      %v2374 = vpop.f32.mrf.mxu0
      %v2375 = vpop.f32.mrf.mxu0
      %v2376 = vadd.f32 0.0, %v2375
      %v2377 = vpop.f32.mrf.mxu0
      %2378 = vmatprep.mubr.bf16.mxu0 0
      %2379 = vmatmul.mubr.bf16.gmra.mxu0 %v2238
      %v2380 = vpop.f32.mrf.mxu0
      %v2381 = vadd.f32 0.0, %v2380
      %v2382 = vpop.f32.mrf.mxu0
      %v2383 = vpop.f32.mrf.mxu0
      %v2384 = vadd.f32 0.0, %v2383
      %v2385 = vpop.f32.mrf.mxu0
      %2386 = vmatprep.mubr.bf16.mxu0 0
      %2387 = vmatmul.mubr.bf16.gmra.mxu0 %v2239
      %v2388 = vpop.f32.mrf.mxu0
      %v2389 = vadd.f32 0.0, %v2388
      %v2390 = vpop.f32.mrf.mxu0
      %v2391 = vpop.f32.mrf.mxu0
      %v2392 = vadd.f32 0.0, %v2391
      %v2393 = vpop.f32.mrf.mxu0
      %2394 = vmatprep.mubr.bf16.mxu0 0
      %2395 = vmatmul.mubr.bf16.gmra.mxu0 %v2240
      %v2396 = vpop.f32.mrf.mxu0
      %v2397 = vadd.f32 0.0, %v2396
      %v2398 = vpop.f32.mrf.mxu0
      %v2399 = vpop.f32.mrf.mxu0
      %v2400 = vadd.f32 0.0, %v2399
      %v2401 = vpop.f32.mrf.mxu0
      %2402 = vmatprep.mubr.bf16.mxu0 0
      %2403 = vmatmul.mubr.bf16.gmra.mxu0 %v2241
      %v2404 = vpop.f32.mrf.mxu0
      %v2405 = vadd.f32 0.0, %v2404
      %v2406 = vpop.f32.mrf.mxu0
      %v2407 = vpop.f32.mrf.mxu0
      %v2408 = vadd.f32 0.0, %v2407
      %v2409 = vpop.f32.mrf.mxu0
      %2410 = vmatprep.mubr.bf16.mxu0 0
      %2411 = vmatmul.mubr.bf16.gmra.mxu0 %v2242
      %v2412 = vpop.f32.mrf.mxu0
      %v2413 = vadd.f32 0.0, %v2412
      %v2414 = vpop.f32.mrf.mxu0
      %v2415 = vpop.f32.mrf.mxu0
      %v2416 = vadd.f32 0.0, %v2415
      %v2417 = vpop.f32.mrf.mxu0
      %2418 = vmatprep.mubr.bf16.mxu0 0
      %2419 = vmatmul.mubr.bf16.gmra.mxu0 %v2243
      %v2420 = vpop.f32.mrf.mxu0
      %v2421 = vadd.f32 0.0, %v2420
      %v2422 = vpop.f32.mrf.mxu0
      %v2423 = vpop.f32.mrf.mxu0
      %v2424 = vadd.f32 0.0, %v2423
      %v2425 = vpop.f32.mrf.mxu0
      %2426 = vmatprep.mubr.bf16.mxu0 0
      %2427 = vmatmul.mubr.bf16.gmra.mxu0 %v2244
      %v2428 = vpop.f32.mrf.mxu0
      %v2429 = vadd.f32 0.0, %v2428
      %v2430 = vpop.f32.mrf.mxu0
      %v2431 = vpop.f32.mrf.mxu0
      %v2432 = vadd.f32 0.0, %v2431
      %v2433 = vpop.f32.mrf.mxu0
      %2434 = vmatprep.mubr.bf16.mxu0 0
      %2435 = vmatmul.mubr.bf16.gmra.mxu0 %v2245
      %v2436 = vpop.f32.mrf.mxu0
      %v2437 = vadd.f32 0.0, %v2436
      %v2438 = vpop.f32.mrf.mxu0
      %v2439 = vpop.f32.mrf.mxu0
      %v2440 = vadd.f32 0.0, %v2439
      %v2441 = vpop.f32.mrf.mxu0
      %2442 = vmatprep.mubr.bf16.mxu0 0
      %2443 = vmatmul.mubr.bf16.gmra.mxu0 %v2246
      %v2444 = vpop.f32.mrf.mxu0
      %v2445 = vadd.f32 0.0, %v2444
      %v2446 = vpop.f32.mrf.mxu0
      %v2447 = vpop.f32.mrf.mxu0
      %v2448 = vadd.f32 0.0, %v2447
      %v2449 = vpop.f32.mrf.mxu0
      %2450 = vmatprep.mubr.bf16.mxu0 0
      %2451 = vmatmul.mubr.bf16.gmra.mxu0 %v2247
      %v2452 = vpop.f32.mrf.mxu0
      %v2453 = vadd.f32 0.0, %v2452
      %v2454 = vpop.f32.mrf.mxu0
      %v2455 = vpop.f32.mrf.mxu0
      %v2456 = vadd.f32 0.0, %v2455
      %v2457 = vpop.f32.mrf.mxu0
      %2458 = vmatprep.mubr.bf16.mxu0 0
      %2459 = vmatmul.mubr.bf16.gmra.mxu0 %v2248
      %v2460 = vpop.f32.mrf.mxu0
      %v2461 = vadd.f32 0.0, %v2460
      %v2462 = vpop.f32.mrf.mxu0
      %v2463 = vpop.f32.mrf.mxu0
      %v2464 = vadd.f32 0.0, %v2463
      %v2465 = vpop.f32.mrf.mxu0
      %2466 = vmatprep.mubr.bf16.mxu0 0
      %2467 = vmatmul.mubr.bf16.gmra.mxu0 %v2249
      %v2468 = vpop.f32.mrf.mxu0
      %v2469 = vadd.f32 0.0, %v2468
      %v2470 = vpop.f32.mrf.mxu0
      %v2471 = vpop.f32.mrf.mxu0
      %v2472 = vadd.f32 0.0, %v2471
      %v2473 = vpop.f32.mrf.mxu0
      %2474 = vdwg.mxu0
      %v2475 = vadd.f32 %v2169, %v2349
      %v2476 = vadd.f32 %v2170, %v2352
      %v2477 = vadd.f32 %v2171, %v2357
      %v2478 = vadd.f32 %v2172, %v2360
      %v2479 = vadd.f32 %v2173, %v2365
      %v2480 = vadd.f32 %v2174, %v2368
      %v2481 = vadd.f32 %v2175, %v2373
      %v2482 = vadd.f32 %v2176, %v2376
      %v2483 = vadd.f32 %v2177, %v2381
      %v2484 = vadd.f32 %v2178, %v2384
      %v2485 = vadd.f32 %v2179, %v2389
      %v2486 = vadd.f32 %v2180, %v2392
      %v2487 = vadd.f32 %v2181, %v2397
      %v2488 = vadd.f32 %v2182, %v2400
      %v2489 = vadd.f32 %v2183, %v2405
      %v2490 = vadd.f32 %v2184, %v2408
      %v2491 = vadd.f32 %v2185, %v2413
      %v2492 = vadd.f32 %v2186, %v2416
      %v2493 = vadd.f32 %v2187, %v2421
      %v2494 = vadd.f32 %v2188, %v2424
      %v2495 = vadd.f32 %v2189, %v2429
      %v2496 = vadd.f32 %v2190, %v2432
      %v2497 = vadd.f32 %v2191, %v2437
      %v2498 = vadd.f32 %v2192, %v2440
      %v2499 = vadd.f32 %v2193, %v2445
      %v2500 = vadd.f32 %v2194, %v2448
      %v2501 = vadd.f32 %v2195, %v2453
      %v2502 = vadd.f32 %v2196, %v2456
      %v2503 = vadd.f32 %v2197, %v2461
      %v2504 = vadd.f32 %v2198, %v2464
      %v2505 = vadd.f32 %v2199, %v2469
      %v2506 = vadd.f32 %v2200, %v2472
      %v2507 = vld [vmem:[%s2201 + $0x1] sm:$0xff]
      %v2508 = vld [vmem:[%s2201 + $0x9] sm:$0xff]
      %v2509 = vld [vmem:[%s2201 + $0x19] sm:$0xff]
      %v2510 = vld [vmem:[%s2201 + $0x21] sm:$0xff]
      %v2511 = vld [vmem:[%s2201 + $0x31] sm:$0xff]
      %v2512 = vld [vmem:[%s2201 + $0x39] sm:$0xff]
      %v2513 = vld [vmem:[%s2201 + $0x49] sm:$0xff]
      %v2514 = vld [vmem:[%s2201 + $0x51] sm:$0xff]
      %v2515 = vld [vmem:[%s2201 + $0x61] sm:$0xff]
      %v2516 = vld [vmem:[%s2201 + $0x69] sm:$0xff]
      %v2517 = vld [vmem:[%s2201 + $0x79] sm:$0xff]
      %v2518 = vld [vmem:[%s2201 + $0x81] sm:$0xff]
      %v2519 = vld [vmem:[%s2201 + $0x91] sm:$0xff]
      %v2520 = vld [vmem:[%s2201 + $0x99] sm:$0xff]
      %v2521 = vld [vmem:[%s2201 + $0xa9] sm:$0xff]
      %v2522 = vld [vmem:[%s2201 + $0xb1] sm:$0xff]
      %v2523 = vld [vmem:[%s2201 + $0xc1] sm:$0xff]
      %v2524 = vld [vmem:[%s2201 + $0xc9] sm:$0xff]
      %v2525 = vld [vmem:[%s2201 + $0xd9] sm:$0xff]
      %v2526 = vld [vmem:[%s2201 + $0xe1] sm:$0xff]
      %v2527 = vld [vmem:[%s2201 + $0xf1] sm:$0xff]
      %v2528 = vld [vmem:[%s2201 + $0xf9] sm:$0xff]
      %v2529 = vld [vmem:[%s2201 + $0x109] sm:$0xff]
      %v2530 = vld [vmem:[%s2201 + $0x111] sm:$0xff]
      %v2531 = vld [vmem:[%s2201 + $0x121] sm:$0xff]
      %v2532 = vld [vmem:[%s2201 + $0x129] sm:$0xff]
      %v2533 = vld [vmem:[%s2201 + $0x139] sm:$0xff]
      %v2534 = vld [vmem:[%s2201 + $0x141] sm:$0xff]
      %v2535 = vld [vmem:[%s2201 + $0x151] sm:$0xff]
      %v2536 = vld [vmem:[%s2201 + $0x159] sm:$0xff]
      %v2537 = vld [vmem:[%s2201 + $0x169] sm:$0xff]
      %v2538 = vld [vmem:[%s2201 + $0x171] sm:$0xff]
      %v2539 = vpack.c.bf16 %v2508, %v2507
      %v2540 = vpack.c.bf16 %v2510, %v2509
      %v2541 = vpack.c.bf16 %v2512, %v2511
      %v2542 = vpack.c.bf16 %v2514, %v2513
      %v2543 = vpack.c.bf16 %v2516, %v2515
      %v2544 = vpack.c.bf16 %v2518, %v2517
      %v2545 = vpack.c.bf16 %v2520, %v2519
      %v2546 = vpack.c.bf16 %v2522, %v2521
      %v2547 = vpack.c.bf16 %v2524, %v2523
      %v2548 = vpack.c.bf16 %v2526, %v2525
      %v2549 = vpack.c.bf16 %v2528, %v2527
      %v2550 = vpack.c.bf16 %v2530, %v2529
      %v2551 = vpack.c.bf16 %v2532, %v2531
      %v2552 = vpack.c.bf16 %v2534, %v2533
      %v2553 = vpack.c.bf16 %v2536, %v2535
      %v2554 = vpack.c.bf16 %v2538, %v2537
      %v2555 = vld [vmem:[%s2 + $0x1c0] sm:$0xf]
      %v2556 = vld [vmem:[%s2 + $0x1c4] sm:$0xf]
      %v2557 = vld [vmem:[%s2 + $0x1c8] sm:$0xf]
      %v2558 = vld [vmem:[%s2 + $0x1cc] sm:$0xf]
      %v2559 = vld [vmem:[%s2 + $0x1d0] sm:$0xf]
      %v2560 = vld [vmem:[%s2 + $0x1d4] sm:$0xf]
      %v2561 = vld [vmem:[%s2 + $0x1d8] sm:$0xf]
      %v2562 = vld [vmem:[%s2 + $0x1dc] sm:$0xf]
      %v2563 = vld [vmem:[%s2 + $0x1e0] sm:$0xf]
      %v2564 = vld [vmem:[%s2 + $0x1e4] sm:$0xf]
      %v2565 = vld [vmem:[%s2 + $0x1e8] sm:$0xf]
      %v2566 = vld [vmem:[%s2 + $0x1ec] sm:$0xf]
      %v2567 = vld [vmem:[%s2 + $0x1f0] sm:$0xf]
      %v2568 = vld [vmem:[%s2 + $0x1f4] sm:$0xf]
      %v2569 = vld [vmem:[%s2 + $0x1f8] sm:$0xf]
      %v2570 = vld [vmem:[%s2 + $0x1fc] sm:$0xf]
      %v2587 = vunpack.c.l.b16 %v2555
      %v2588 = vunpack.c.l.b16 %v2556
      %v2589 = vunpack.c.l.b16 %v2557
      %v2590 = vunpack.c.l.b16 %v2558
      %v2591 = vunpack.c.l.b16 %v2559
      %v2592 = vunpack.c.l.b16 %v2560
      %v2593 = vunpack.c.l.b16 %v2561
      %v2594 = vunpack.c.l.b16 %v2562
      %v2595 = vunpack.c.l.b16 %v2563
      %v2596 = vunpack.c.l.b16 %v2564
      %v2597 = vunpack.c.l.b16 %v2565
      %v2598 = vunpack.c.l.b16 %v2566
      %v2599 = vunpack.c.l.b16 %v2567
      %v2600 = vunpack.c.l.b16 %v2568
      %v2601 = vunpack.c.l.b16 %v2569
      %v2602 = vunpack.c.l.b16 %v2570
      %v2603 = vpack.c.b16 %v2588, %v2587
      %v2604 = vpack.c.b16 %v2590, %v2589
      %v2605 = vpack.c.b16 %v2592, %v2591
      %v2606 = vpack.c.b16 %v2594, %v2593
      %v2607 = vpack.c.b16 %v2596, %v2595
      %v2608 = vpack.c.b16 %v2598, %v2597
      %v2609 = vpack.c.b16 %v2600, %v2599
      %v2610 = vpack.c.b16 %v2602, %v2601
      %2619 = vmatprep.subr.bf16.mxu0 0
      %2620 = vmatpush1.bf16.msra.mxu0 %v2610
      %2621 = vmatprep.subr.bf16.mxu0 0
      %2622 = vmatpush1.bf16.msra.mxu0 %v2609
      %2623 = vmatprep.subr.bf16.mxu0 0
      %2624 = vmatpush1.bf16.msra.mxu0 %v2608
      %2625 = vmatprep.subr.bf16.mxu0 0
      %2626 = vmatpush1.bf16.msra.mxu0 %v2607
      %2627 = vmatprep.subr.bf16.mxu0 0
      %2628 = vmatpush1.bf16.msra.mxu0 %v2606
      %2629 = vmatprep.subr.bf16.mxu0 0
      %2630 = vmatpush1.bf16.msra.mxu0 %v2605
      %2631 = vmatprep.subr.bf16.mxu0 0
      %2632 = vmatpush1.bf16.msra.mxu0 %v2604
      %2633 = vmatprep.subr.bf16.mxu0 0
      %2634 = vmatpush1.bf16.msra.mxu0 %v2603
      %2635 = vmatprep.subr.bf16.mxu0 0
      %2636 = vmatpush2.bf16.msra.mxu0 0
      %2637 = vmatprep.subr.bf16.mxu0 0
      %2638 = vmatpush2.bf16.msra.mxu0 0
      %2639 = vmatprep.subr.bf16.mxu0 0
      %2640 = vmatpush2.bf16.msra.mxu0 0
      %2641 = vmatprep.subr.bf16.mxu0 0
      %2642 = vmatpush2.bf16.msra.mxu0 0
      %2643 = vmatprep.subr.bf16.mxu0 0
      %2644 = vmatpush2.bf16.msra.mxu0 0
      %2645 = vmatprep.subr.bf16.mxu0 0
      %2646 = vmatpush2.bf16.msra.mxu0 0
      %2647 = vmatprep.subr.bf16.mxu0 0
      %2648 = vmatpush2.bf16.msra.mxu0 0
      %2649 = vmatprep.subr.bf16.mxu0 0
      %2650 = vmatpush2.bf16.msra.mxu0 0
      %2651 = vmatprep.mubr.bf16.mxu0 0
      %2652 = vmatmul.mubr.bf16.gmra.mxu0 %v2539
      %v2653 = vpop.f32.mrf.mxu0
      %v2654 = vadd.f32 0.0, %v2653
      %v2655 = vpop.f32.mrf.mxu0
      %v2656 = vpop.f32.mrf.mxu0
      %v2657 = vadd.f32 0.0, %v2656
      %v2658 = vpop.f32.mrf.mxu0
      %2659 = vmatprep.mubr.bf16.mxu0 0
      %2660 = vmatmul.mubr.bf16.gmra.mxu0 %v2540
      %v2661 = vpop.f32.mrf.mxu0
      %v2662 = vadd.f32 0.0, %v2661
      %v2663 = vpop.f32.mrf.mxu0
      %v2664 = vpop.f32.mrf.mxu0
      %v2665 = vadd.f32 0.0, %v2664
      %v2666 = vpop.f32.mrf.mxu0
      %2667 = vmatprep.mubr.bf16.mxu0 0
      %2668 = vmatmul.mubr.bf16.gmra.mxu0 %v2541
      %v2669 = vpop.f32.mrf.mxu0
      %v2670 = vadd.f32 0.0, %v2669
      %v2671 = vpop.f32.mrf.mxu0
      %v2672 = vpop.f32.mrf.mxu0
      %v2673 = vadd.f32 0.0, %v2672
      %v2674 = vpop.f32.mrf.mxu0
      %2675 = vmatprep.mubr.bf16.mxu0 0
      %2676 = vmatmul.mubr.bf16.gmra.mxu0 %v2542
      %v2677 = vpop.f32.mrf.mxu0
      %v2678 = vadd.f32 0.0, %v2677
      %v2679 = vpop.f32.mrf.mxu0
      %v2680 = vpop.f32.mrf.mxu0
      %v2681 = vadd.f32 0.0, %v2680
      %v2682 = vpop.f32.mrf.mxu0
      %2683 = vmatprep.mubr.bf16.mxu0 0
      %2684 = vmatmul.mubr.bf16.gmra.mxu0 %v2543
      %v2685 = vpop.f32.mrf.mxu0
      %v2686 = vadd.f32 0.0, %v2685
      %v2687 = vpop.f32.mrf.mxu0
      %v2688 = vpop.f32.mrf.mxu0
      %v2689 = vadd.f32 0.0, %v2688
      %v2690 = vpop.f32.mrf.mxu0
      %2691 = vmatprep.mubr.bf16.mxu0 0
      %2692 = vmatmul.mubr.bf16.gmra.mxu0 %v2544
      %v2693 = vpop.f32.mrf.mxu0
      %v2694 = vadd.f32 0.0, %v2693
      %v2695 = vpop.f32.mrf.mxu0
      %v2696 = vpop.f32.mrf.mxu0
      %v2697 = vadd.f32 0.0, %v2696
      %v2698 = vpop.f32.mrf.mxu0
      %2699 = vmatprep.mubr.bf16.mxu0 0
      %2700 = vmatmul.mubr.bf16.gmra.mxu0 %v2545
      %v2701 = vpop.f32.mrf.mxu0
      %v2702 = vadd.f32 0.0, %v2701
      %v2703 = vpop.f32.mrf.mxu0
      %v2704 = vpop.f32.mrf.mxu0
      %v2705 = vadd.f32 0.0, %v2704
      %v2706 = vpop.f32.mrf.mxu0
      %2707 = vmatprep.mubr.bf16.mxu0 0
      %2708 = vmatmul.mubr.bf16.gmra.mxu0 %v2546
      %v2709 = vpop.f32.mrf.mxu0
      %v2710 = vadd.f32 0.0, %v2709
      %v2711 = vpop.f32.mrf.mxu0
      %v2712 = vpop.f32.mrf.mxu0
      %v2713 = vadd.f32 0.0, %v2712
      %v2714 = vpop.f32.mrf.mxu0
      %2715 = vmatprep.mubr.bf16.mxu0 0
      %2716 = vmatmul.mubr.bf16.gmra.mxu0 %v2547
      %v2717 = vpop.f32.mrf.mxu0
      %v2718 = vadd.f32 0.0, %v2717
      %v2719 = vpop.f32.mrf.mxu0
      %v2720 = vpop.f32.mrf.mxu0
      %v2721 = vadd.f32 0.0, %v2720
      %v2722 = vpop.f32.mrf.mxu0
      %2723 = vmatprep.mubr.bf16.mxu0 0
      %2724 = vmatmul.mubr.bf16.gmra.mxu0 %v2548
      %v2725 = vpop.f32.mrf.mxu0
      %v2726 = vadd.f32 0.0, %v2725
      %v2727 = vpop.f32.mrf.mxu0
      %v2728 = vpop.f32.mrf.mxu0
      %v2729 = vadd.f32 0.0, %v2728
      %v2730 = vpop.f32.mrf.mxu0
      %2731 = vmatprep.mubr.bf16.mxu0 0
      %2732 = vmatmul.mubr.bf16.gmra.mxu0 %v2549
      %v2733 = vpop.f32.mrf.mxu0
      %v2734 = vadd.f32 0.0, %v2733
      %v2735 = vpop.f32.mrf.mxu0
      %v2736 = vpop.f32.mrf.mxu0
      %v2737 = vadd.f32 0.0, %v2736
      %v2738 = vpop.f32.mrf.mxu0
      %2739 = vmatprep.mubr.bf16.mxu0 0
      %2740 = vmatmul.mubr.bf16.gmra.mxu0 %v2550
      %v2741 = vpop.f32.mrf.mxu0
      %v2742 = vadd.f32 0.0, %v2741
      %v2743 = vpop.f32.mrf.mxu0
      %v2744 = vpop.f32.mrf.mxu0
      %v2745 = vadd.f32 0.0, %v2744
      %v2746 = vpop.f32.mrf.mxu0
      %2747 = vmatprep.mubr.bf16.mxu0 0
      %2748 = vmatmul.mubr.bf16.gmra.mxu0 %v2551
      %v2749 = vpop.f32.mrf.mxu0
      %v2750 = vadd.f32 0.0, %v2749
      %v2751 = vpop.f32.mrf.mxu0
      %v2752 = vpop.f32.mrf.mxu0
      %v2753 = vadd.f32 0.0, %v2752
      %v2754 = vpop.f32.mrf.mxu0
      %2755 = vmatprep.mubr.bf16.mxu0 0
      %2756 = vmatmul.mubr.bf16.gmra.mxu0 %v2552
      %v2757 = vpop.f32.mrf.mxu0
      %v2758 = vadd.f32 0.0, %v2757
      %v2759 = vpop.f32.mrf.mxu0
      %v2760 = vpop.f32.mrf.mxu0
      %v2761 = vadd.f32 0.0, %v2760
      %v2762 = vpop.f32.mrf.mxu0
      %2763 = vmatprep.mubr.bf16.mxu0 0
      %2764 = vmatmul.mubr.bf16.gmra.mxu0 %v2553
      %v2765 = vpop.f32.mrf.mxu0
      %v2766 = vadd.f32 0.0, %v2765
      %v2767 = vpop.f32.mrf.mxu0
      %v2768 = vpop.f32.mrf.mxu0
      %v2769 = vadd.f32 0.0, %v2768
      %v2770 = vpop.f32.mrf.mxu0
      %2771 = vmatprep.mubr.bf16.mxu0 0
      %2772 = vmatmul.mubr.bf16.gmra.mxu0 %v2554
      %v2773 = vpop.f32.mrf.mxu0
      %v2774 = vadd.f32 0.0, %v2773
      %v2775 = vpop.f32.mrf.mxu0
      %v2776 = vpop.f32.mrf.mxu0
      %v2777 = vadd.f32 0.0, %v2776
      %v2778 = vpop.f32.mrf.mxu0
      %2779 = vdwg.mxu0
      %v2780 = vadd.f32 %v2475, %v2654
      %v2781 = vadd.f32 %v2476, %v2657
      %v2782 = vadd.f32 %v2477, %v2662
      %v2783 = vadd.f32 %v2478, %v2665
      %v2784 = vadd.f32 %v2479, %v2670
      %v2785 = vadd.f32 %v2480, %v2673
      %v2786 = vadd.f32 %v2481, %v2678
      %v2787 = vadd.f32 %v2482, %v2681
      %v2788 = vadd.f32 %v2483, %v2686
      %v2789 = vadd.f32 %v2484, %v2689
      %v2790 = vadd.f32 %v2485, %v2694
      %v2791 = vadd.f32 %v2486, %v2697
      %v2792 = vadd.f32 %v2487, %v2702
      %v2793 = vadd.f32 %v2488, %v2705
      %v2794 = vadd.f32 %v2489, %v2710
      %v2795 = vadd.f32 %v2490, %v2713
      %v2796 = vadd.f32 %v2491, %v2718
      %v2797 = vadd.f32 %v2492, %v2721
      %v2798 = vadd.f32 %v2493, %v2726
      %v2799 = vadd.f32 %v2494, %v2729
      %v2800 = vadd.f32 %v2495, %v2734
      %v2801 = vadd.f32 %v2496, %v2737
      %v2802 = vadd.f32 %v2497, %v2742
      %v2803 = vadd.f32 %v2498, %v2745
      %v2804 = vadd.f32 %v2499, %v2750
      %v2805 = vadd.f32 %v2500, %v2753
      %v2806 = vadd.f32 %v2501, %v2758
      %v2807 = vadd.f32 %v2502, %v2761
      %v2808 = vadd.f32 %v2503, %v2766
      %v2809 = vadd.f32 %v2504, %v2769
      %v2810 = vadd.f32 %v2505, %v2774
      %v2811 = vadd.f32 %v2506, %v2777
      %v2812 = vld [vmem:[%s2201 + $0x2] sm:$0xff]
      %v2813 = vld [vmem:[%s2201 + $0xa] sm:$0xff]
      %v2814 = vld [vmem:[%s2201 + $0x1a] sm:$0xff]
      %v2815 = vld [vmem:[%s2201 + $0x22] sm:$0xff]
      %v2816 = vld [vmem:[%s2201 + $0x32] sm:$0xff]
      %v2817 = vld [vmem:[%s2201 + $0x3a] sm:$0xff]
      %v2818 = vld [vmem:[%s2201 + $0x4a] sm:$0xff]
      %v2819 = vld [vmem:[%s2201 + $0x52] sm:$0xff]
      %v2820 = vld [vmem:[%s2201 + $0x62] sm:$0xff]
      %v2821 = vld [vmem:[%s2201 + $0x6a] sm:$0xff]
      %v2822 = vld [vmem:[%s2201 + $0x7a] sm:$0xff]
      %v2823 = vld [vmem:[%s2201 + $0x82] sm:$0xff]
      %v2824 = vld [vmem:[%s2201 + $0x92] sm:$0xff]
      %v2825 = vld [vmem:[%s2201 + $0x9a] sm:$0xff]
      %v2826 = vld [vmem:[%s2201 + $0xaa] sm:$0xff]
      %v2827 = vld [vmem:[%s2201 + $0xb2] sm:$0xff]
      %v2828 = vld [vmem:[%s2201 + $0xc2] sm:$0xff]
      %v2829 = vld [vmem:[%s2201 + $0xca] sm:$0xff]
      %v2830 = vld [vmem:[%s2201 + $0xda] sm:$0xff]
      %v2831 = vld [vmem:[%s2201 + $0xe2] sm:$0xff]
      %v2832 = vld [vmem:[%s2201 + $0xf2] sm:$0xff]
      %v2833 = vld [vmem:[%s2201 + $0xfa] sm:$0xff]
      %v2834 = vld [vmem:[%s2201 + $0x10a] sm:$0xff]
      %v2835 = vld [vmem:[%s2201 + $0x112] sm:$0xff]
      %v2836 = vld [vmem:[%s2201 + $0x122] sm:$0xff]
      %v2837 = vld [vmem:[%s2201 + $0x12a] sm:$0xff]
      %v2838 = vld [vmem:[%s2201 + $0x13a] sm:$0xff]
      %v2839 = vld [vmem:[%s2201 + $0x142] sm:$0xff]
      %v2840 = vld [vmem:[%s2201 + $0x152] sm:$0xff]
      %v2841 = vld [vmem:[%s2201 + $0x15a] sm:$0xff]
      %v2842 = vld [vmem:[%s2201 + $0x16a] sm:$0xff]
      %v2843 = vld [vmem:[%s2201 + $0x172] sm:$0xff]
      %v2844 = vpack.c.bf16 %v2813, %v2812
      %v2845 = vpack.c.bf16 %v2815, %v2814
      %v2846 = vpack.c.bf16 %v2817, %v2816
      %v2847 = vpack.c.bf16 %v2819, %v2818
      %v2848 = vpack.c.bf16 %v2821, %v2820
      %v2849 = vpack.c.bf16 %v2823, %v2822
      %v2850 = vpack.c.bf16 %v2825, %v2824
      %v2851 = vpack.c.bf16 %v2827, %v2826
      %v2852 = vpack.c.bf16 %v2829, %v2828
      %v2853 = vpack.c.bf16 %v2831, %v2830
      %v2854 = vpack.c.bf16 %v2833, %v2832
      %v2855 = vpack.c.bf16 %v2835, %v2834
      %v2856 = vpack.c.bf16 %v2837, %v2836
      %v2857 = vpack.c.bf16 %v2839, %v2838
      %v2858 = vpack.c.bf16 %v2841, %v2840
      %v2859 = vpack.c.bf16 %v2843, %v2842
      %v2860 = vld [vmem:[%s2 + $0x200] sm:$0xf]
      %v2861 = vld [vmem:[%s2 + $0x204] sm:$0xf]
      %v2862 = vld [vmem:[%s2 + $0x208] sm:$0xf]
      %v2863 = vld [vmem:[%s2 + $0x20c] sm:$0xf]
      %v2864 = vld [vmem:[%s2 + $0x210] sm:$0xf]
      %v2865 = vld [vmem:[%s2 + $0x214] sm:$0xf]
      %v2866 = vld [vmem:[%s2 + $0x218] sm:$0xf]
      %v2867 = vld [vmem:[%s2 + $0x21c] sm:$0xf]
      %v2868 = vld [vmem:[%s2 + $0x220] sm:$0xf]
      %v2869 = vld [vmem:[%s2 + $0x224] sm:$0xf]
      %v2870 = vld [vmem:[%s2 + $0x228] sm:$0xf]
      %v2871 = vld [vmem:[%s2 + $0x22c] sm:$0xf]
      %v2872 = vld [vmem:[%s2 + $0x230] sm:$0xf]
      %v2873 = vld [vmem:[%s2 + $0x234] sm:$0xf]
      %v2874 = vld [vmem:[%s2 + $0x238] sm:$0xf]
      %v2875 = vld [vmem:[%s2 + $0x23c] sm:$0xf]
      %v2892 = vunpack.c.l.b16 %v2860
      %v2893 = vunpack.c.l.b16 %v2861
      %v2894 = vunpack.c.l.b16 %v2862
      %v2895 = vunpack.c.l.b16 %v2863
      %v2896 = vunpack.c.l.b16 %v2864
      %v2897 = vunpack.c.l.b16 %v2865
      %v2898 = vunpack.c.l.b16 %v2866
      %v2899 = vunpack.c.l.b16 %v2867
      %v2900 = vunpack.c.l.b16 %v2868
      %v2901 = vunpack.c.l.b16 %v2869
      %v2902 = vunpack.c.l.b16 %v2870
      %v2903 = vunpack.c.l.b16 %v2871
      %v2904 = vunpack.c.l.b16 %v2872
      %v2905 = vunpack.c.l.b16 %v2873
      %v2906 = vunpack.c.l.b16 %v2874
      %v2907 = vunpack.c.l.b16 %v2875
      %v2908 = vpack.c.b16 %v2893, %v2892
      %v2909 = vpack.c.b16 %v2895, %v2894
      %v2910 = vpack.c.b16 %v2897, %v2896
      %v2911 = vpack.c.b16 %v2899, %v2898
      %v2912 = vpack.c.b16 %v2901, %v2900
      %v2913 = vpack.c.b16 %v2903, %v2902
      %v2914 = vpack.c.b16 %v2905, %v2904
      %v2915 = vpack.c.b16 %v2907, %v2906
      %2924 = vmatprep.subr.bf16.mxu0 0
      %2925 = vmatpush1.bf16.msra.mxu0 %v2915
      %2926 = vmatprep.subr.bf16.mxu0 0
      %2927 = vmatpush1.bf16.msra.mxu0 %v2914
      %2928 = vmatprep.subr.bf16.mxu0 0
      %2929 = vmatpush1.bf16.msra.mxu0 %v2913
      %2930 = vmatprep.subr.bf16.mxu0 0
      %2931 = vmatpush1.bf16.msra.mxu0 %v2912
      %2932 = vmatprep.subr.bf16.mxu0 0
      %2933 = vmatpush1.bf16.msra.mxu0 %v2911
      %2934 = vmatprep.subr.bf16.mxu0 0
      %2935 = vmatpush1.bf16.msra.mxu0 %v2910
      %2936 = vmatprep.subr.bf16.mxu0 0
      %2937 = vmatpush1.bf16.msra.mxu0 %v2909
      %2938 = vmatprep.subr.bf16.mxu0 0
      %2939 = vmatpush1.bf16.msra.mxu0 %v2908
      %2940 = vmatprep.subr.bf16.mxu0 0
      %2941 = vmatpush2.bf16.msra.mxu0 0
      %2942 = vmatprep.subr.bf16.mxu0 0
      %2943 = vmatpush2.bf16.msra.mxu0 0
      %2944 = vmatprep.subr.bf16.mxu0 0
      %2945 = vmatpush2.bf16.msra.mxu0 0
      %2946 = vmatprep.subr.bf16.mxu0 0
      %2947 = vmatpush2.bf16.msra.mxu0 0
      %2948 = vmatprep.subr.bf16.mxu0 0
      %2949 = vmatpush2.bf16.msra.mxu0 0
      %2950 = vmatprep.subr.bf16.mxu0 0
      %2951 = vmatpush2.bf16.msra.mxu0 0
      %2952 = vmatprep.subr.bf16.mxu0 0
      %2953 = vmatpush2.bf16.msra.mxu0 0
      %2954 = vmatprep.subr.bf16.mxu0 0
      %2955 = vmatpush2.bf16.msra.mxu0 0
      %2956 = vmatprep.mubr.bf16.mxu0 0
      %2957 = vmatmul.mubr.bf16.gmra.mxu0 %v2844
      %v2958 = vpop.f32.mrf.mxu0
      %v2959 = vadd.f32 0.0, %v2958
      %v2960 = vpop.f32.mrf.mxu0
      %v2961 = vpop.f32.mrf.mxu0
      %v2962 = vadd.f32 0.0, %v2961
      %v2963 = vpop.f32.mrf.mxu0
      %2964 = vmatprep.mubr.bf16.mxu0 0
      %2965 = vmatmul.mubr.bf16.gmra.mxu0 %v2845
      %v2966 = vpop.f32.mrf.mxu0
      %v2967 = vadd.f32 0.0, %v2966
      %v2968 = vpop.f32.mrf.mxu0
      %v2969 = vpop.f32.mrf.mxu0
      %v2970 = vadd.f32 0.0, %v2969
      %v2971 = vpop.f32.mrf.mxu0
      %2972 = vmatprep.mubr.bf16.mxu0 0
      %2973 = vmatmul.mubr.bf16.gmra.mxu0 %v2846
      %v2974 = vpop.f32.mrf.mxu0
      %v2975 = vadd.f32 0.0, %v2974
      %v2976 = vpop.f32.mrf.mxu0
      %v2977 = vpop.f32.mrf.mxu0
      %v2978 = vadd.f32 0.0, %v2977
      %v2979 = vpop.f32.mrf.mxu0
      %2980 = vmatprep.mubr.bf16.mxu0 0
      %2981 = vmatmul.mubr.bf16.gmra.mxu0 %v2847
      %v2982 = vpop.f32.mrf.mxu0
      %v2983 = vadd.f32 0.0, %v2982
      %v2984 = vpop.f32.mrf.mxu0
      %v2985 = vpop.f32.mrf.mxu0
      %v2986 = vadd.f32 0.0, %v2985
      %v2987 = vpop.f32.mrf.mxu0
      %2988 = vmatprep.mubr.bf16.mxu0 0
      %2989 = vmatmul.mubr.bf16.gmra.mxu0 %v2848
      %v2990 = vpop.f32.mrf.mxu0
      %v2991 = vadd.f32 0.0, %v2990
      %v2992 = vpop.f32.mrf.mxu0
      %v2993 = vpop.f32.mrf.mxu0
      %v2994 = vadd.f32 0.0, %v2993
      %v2995 = vpop.f32.mrf.mxu0
      %2996 = vmatprep.mubr.bf16.mxu0 0
      %2997 = vmatmul.mubr.bf16.gmra.mxu0 %v2849
      %v2998 = vpop.f32.mrf.mxu0
      %v2999 = vadd.f32 0.0, %v2998
      %v3000 = vpop.f32.mrf.mxu0
      %v3001 = vpop.f32.mrf.mxu0
      %v3002 = vadd.f32 0.0, %v3001
      %v3003 = vpop.f32.mrf.mxu0
      %3004 = vmatprep.mubr.bf16.mxu0 0
      %3005 = vmatmul.mubr.bf16.gmra.mxu0 %v2850
      %v3006 = vpop.f32.mrf.mxu0
      %v3007 = vadd.f32 0.0, %v3006
      %v3008 = vpop.f32.mrf.mxu0
      %v3009 = vpop.f32.mrf.mxu0
      %v3010 = vadd.f32 0.0, %v3009
      %v3011 = vpop.f32.mrf.mxu0
      %3012 = vmatprep.mubr.bf16.mxu0 0
      %3013 = vmatmul.mubr.bf16.gmra.mxu0 %v2851
      %v3014 = vpop.f32.mrf.mxu0
      %v3015 = vadd.f32 0.0, %v3014
      %v3016 = vpop.f32.mrf.mxu0
      %v3017 = vpop.f32.mrf.mxu0
      %v3018 = vadd.f32 0.0, %v3017
      %v3019 = vpop.f32.mrf.mxu0
      %3020 = vmatprep.mubr.bf16.mxu0 0
      %3021 = vmatmul.mubr.bf16.gmra.mxu0 %v2852
      %v3022 = vpop.f32.mrf.mxu0
      %v3023 = vadd.f32 0.0, %v3022
      %v3024 = vpop.f32.mrf.mxu0
      %v3025 = vpop.f32.mrf.mxu0
      %v3026 = vadd.f32 0.0, %v3025
      %v3027 = vpop.f32.mrf.mxu0
      %3028 = vmatprep.mubr.bf16.mxu0 0
      %3029 = vmatmul.mubr.bf16.gmra.mxu0 %v2853
      %v3030 = vpop.f32.mrf.mxu0
      %v3031 = vadd.f32 0.0, %v3030
      %v3032 = vpop.f32.mrf.mxu0
      %v3033 = vpop.f32.mrf.mxu0
      %v3034 = vadd.f32 0.0, %v3033
      %v3035 = vpop.f32.mrf.mxu0
      %3036 = vmatprep.mubr.bf16.mxu0 0
      %3037 = vmatmul.mubr.bf16.gmra.mxu0 %v2854
      %v3038 = vpop.f32.mrf.mxu0
      %v3039 = vadd.f32 0.0, %v3038
      %v3040 = vpop.f32.mrf.mxu0
      %v3041 = vpop.f32.mrf.mxu0
      %v3042 = vadd.f32 0.0, %v3041
      %v3043 = vpop.f32.mrf.mxu0
      %3044 = vmatprep.mubr.bf16.mxu0 0
      %3045 = vmatmul.mubr.bf16.gmra.mxu0 %v2855
      %v3046 = vpop.f32.mrf.mxu0
      %v3047 = vadd.f32 0.0, %v3046
      %v3048 = vpop.f32.mrf.mxu0
      %v3049 = vpop.f32.mrf.mxu0
      %v3050 = vadd.f32 0.0, %v3049
      %v3051 = vpop.f32.mrf.mxu0
      %3052 = vmatprep.mubr.bf16.mxu0 0
      %3053 = vmatmul.mubr.bf16.gmra.mxu0 %v2856
      %v3054 = vpop.f32.mrf.mxu0
      %v3055 = vadd.f32 0.0, %v3054
      %v3056 = vpop.f32.mrf.mxu0
      %v3057 = vpop.f32.mrf.mxu0
      %v3058 = vadd.f32 0.0, %v3057
      %v3059 = vpop.f32.mrf.mxu0
      %3060 = vmatprep.mubr.bf16.mxu0 0
      %3061 = vmatmul.mubr.bf16.gmra.mxu0 %v2857
      %v3062 = vpop.f32.mrf.mxu0
      %v3063 = vadd.f32 0.0, %v3062
      %v3064 = vpop.f32.mrf.mxu0
      %v3065 = vpop.f32.mrf.mxu0
      %v3066 = vadd.f32 0.0, %v3065
      %v3067 = vpop.f32.mrf.mxu0
      %3068 = vmatprep.mubr.bf16.mxu0 0
      %3069 = vmatmul.mubr.bf16.gmra.mxu0 %v2858
      %v3070 = vpop.f32.mrf.mxu0
      %v3071 = vadd.f32 0.0, %v3070
      %v3072 = vpop.f32.mrf.mxu0
      %v3073 = vpop.f32.mrf.mxu0
      %v3074 = vadd.f32 0.0, %v3073
      %v3075 = vpop.f32.mrf.mxu0
      %3076 = vmatprep.mubr.bf16.mxu0 0
      %3077 = vmatmul.mubr.bf16.gmra.mxu0 %v2859
      %v3078 = vpop.f32.mrf.mxu0
      %v3079 = vadd.f32 0.0, %v3078
      %v3080 = vpop.f32.mrf.mxu0
      %v3081 = vpop.f32.mrf.mxu0
      %v3082 = vadd.f32 0.0, %v3081
      %v3083 = vpop.f32.mrf.mxu0
      %3084 = vdwg.mxu0
      %v3085 = vadd.f32 %v2780, %v2959
      %v3086 = vadd.f32 %v2781, %v2962
      %v3087 = vadd.f32 %v2782, %v2967
      %v3088 = vadd.f32 %v2783, %v2970
      %v3089 = vadd.f32 %v2784, %v2975
      %v3090 = vadd.f32 %v2785, %v2978
      %v3091 = vadd.f32 %v2786, %v2983
      %v3092 = vadd.f32 %v2787, %v2986
      %v3093 = vadd.f32 %v2788, %v2991
      %v3094 = vadd.f32 %v2789, %v2994
      %v3095 = vadd.f32 %v2790, %v2999
      %v3096 = vadd.f32 %v2791, %v3002
      %v3097 = vadd.f32 %v2792, %v3007
      %v3098 = vadd.f32 %v2793, %v3010
      %v3099 = vadd.f32 %v2794, %v3015
      %v3100 = vadd.f32 %v2795, %v3018
      %v3101 = vadd.f32 %v2796, %v3023
      %v3102 = vadd.f32 %v2797, %v3026
      %v3103 = vadd.f32 %v2798, %v3031
      %v3104 = vadd.f32 %v2799, %v3034
      %v3105 = vadd.f32 %v2800, %v3039
      %v3106 = vadd.f32 %v2801, %v3042
      %v3107 = vadd.f32 %v2802, %v3047
      %v3108 = vadd.f32 %v2803, %v3050
      %v3109 = vadd.f32 %v2804, %v3055
      %v3110 = vadd.f32 %v2805, %v3058
      %v3111 = vadd.f32 %v2806, %v3063
      %v3112 = vadd.f32 %v2807, %v3066
      %v3113 = vadd.f32 %v2808, %v3071
      %v3114 = vadd.f32 %v2809, %v3074
      %v3115 = vadd.f32 %v2810, %v3079
      %v3116 = vadd.f32 %v2811, %v3082
      %v3117 = vld [vmem:[%s3] sm:$0x1]
      %v3119 = vlaneseq
      %v3120 = vshrl.u32 %v3119, 7
      %v3121 = vsub.s32 0, %v3120
      %v3122 = vrot.slane %v3117, %v3121
      %v3124 = vadd.f32 %v3085, %v3122
      %v3125 = vadd.f32 %v3086, %v3122
      %v3126 = vadd.f32 %v3087, %v3122
      %v3127 = vadd.f32 %v3088, %v3122
      %v3128 = vadd.f32 %v3089, %v3122
      %v3129 = vadd.f32 %v3090, %v3122
      %v3130 = vadd.f32 %v3091, %v3122
      %v3131 = vadd.f32 %v3092, %v3122
      %v3132 = vadd.f32 %v3093, %v3122
      %v3133 = vadd.f32 %v3094, %v3122
      %v3134 = vadd.f32 %v3095, %v3122
      %v3135 = vadd.f32 %v3096, %v3122
      %v3136 = vadd.f32 %v3097, %v3122
      %v3137 = vadd.f32 %v3098, %v3122
      %v3138 = vadd.f32 %v3099, %v3122
      %v3139 = vadd.f32 %v3100, %v3122
      %v3140 = vadd.f32 %v3101, %v3122
      %v3141 = vadd.f32 %v3102, %v3122
      %v3142 = vadd.f32 %v3103, %v3122
      %v3143 = vadd.f32 %v3104, %v3122
      %v3144 = vadd.f32 %v3105, %v3122
      %v3145 = vadd.f32 %v3106, %v3122
      %v3146 = vadd.f32 %v3107, %v3122
      %v3147 = vadd.f32 %v3108, %v3122
      %v3148 = vadd.f32 %v3109, %v3122
      %v3149 = vadd.f32 %v3110, %v3122
      %v3150 = vadd.f32 %v3111, %v3122
      %v3151 = vadd.f32 %v3112, %v3122
      %v3152 = vadd.f32 %v3113, %v3122
      %v3153 = vadd.f32 %v3114, %v3122
      %v3154 = vadd.f32 %v3115, %v3122
      %v3155 = vadd.f32 %v3116, %v3122
      %vm3156 = vcmp.ge.f32.partialorder %v3124, 0.0
      %vm3157 = vcmp.ge.f32.partialorder %v3125, 0.0
      %vm3158 = vcmp.ge.f32.partialorder %v3126, 0.0
      %vm3159 = vcmp.ge.f32.partialorder %v3127, 0.0
      %vm3160 = vcmp.ge.f32.partialorder %v3128, 0.0
      %vm3161 = vcmp.ge.f32.partialorder %v3129, 0.0
      %vm3162 = vcmp.ge.f32.partialorder %v3130, 0.0
      %vm3163 = vcmp.ge.f32.partialorder %v3131, 0.0
      %vm3164 = vcmp.ge.f32.partialorder %v3132, 0.0
      %vm3165 = vcmp.ge.f32.partialorder %v3133, 0.0
      %vm3166 = vcmp.ge.f32.partialorder %v3134, 0.0
      %vm3167 = vcmp.ge.f32.partialorder %v3135, 0.0
      %vm3168 = vcmp.ge.f32.partialorder %v3136, 0.0
      %vm3169 = vcmp.ge.f32.partialorder %v3137, 0.0
      %vm3170 = vcmp.ge.f32.partialorder %v3138, 0.0
      %vm3171 = vcmp.ge.f32.partialorder %v3139, 0.0
      %vm3172 = vcmp.ge.f32.partialorder %v3140, 0.0
      %vm3173 = vcmp.ge.f32.partialorder %v3141, 0.0
      %vm3174 = vcmp.ge.f32.partialorder %v3142, 0.0
      %vm3175 = vcmp.ge.f32.partialorder %v3143, 0.0
      %vm3176 = vcmp.ge.f32.partialorder %v3144, 0.0
      %vm3177 = vcmp.ge.f32.partialorder %v3145, 0.0
      %vm3178 = vcmp.ge.f32.partialorder %v3146, 0.0
      %vm3179 = vcmp.ge.f32.partialorder %v3147, 0.0
      %vm3180 = vcmp.ge.f32.partialorder %v3148, 0.0
      %vm3181 = vcmp.ge.f32.partialorder %v3149, 0.0
      %vm3182 = vcmp.ge.f32.partialorder %v3150, 0.0
      %vm3183 = vcmp.ge.f32.partialorder %v3151, 0.0
      %vm3184 = vcmp.ge.f32.partialorder %v3152, 0.0
      %vm3185 = vcmp.ge.f32.partialorder %v3153, 0.0
      %vm3186 = vcmp.ge.f32.partialorder %v3154, 0.0
      %vm3187 = vcmp.ge.f32.partialorder %v3155, 0.0
      %v3188 = vmul.f32 %v3124, 0.2
      %v3189 = vmul.f32 %v3125, 0.2
      %v3190 = vmul.f32 %v3126, 0.2
      %v3191 = vmul.f32 %v3127, 0.2
      %v3192 = vmul.f32 %v3128, 0.2
      %v3193 = vmul.f32 %v3129, 0.2
      %v3194 = vmul.f32 %v3130, 0.2
      %v3195 = vmul.f32 %v3131, 0.2
      %v3196 = vmul.f32 %v3132, 0.2
      %v3197 = vmul.f32 %v3133, 0.2
      %v3198 = vmul.f32 %v3134, 0.2
      %v3199 = vmul.f32 %v3135, 0.2
      %v3200 = vmul.f32 %v3136, 0.2
      %v3201 = vmul.f32 %v3137, 0.2
      %v3202 = vmul.f32 %v3138, 0.2
      %v3203 = vmul.f32 %v3139, 0.2
      %v3204 = vmul.f32 %v3140, 0.2
      %v3205 = vmul.f32 %v3141, 0.2
      %v3206 = vmul.f32 %v3142, 0.2
      %v3207 = vmul.f32 %v3143, 0.2
      %v3208 = vmul.f32 %v3144, 0.2
      %v3209 = vmul.f32 %v3145, 0.2
      %v3210 = vmul.f32 %v3146, 0.2
      %v3211 = vmul.f32 %v3147, 0.2
      %v3212 = vmul.f32 %v3148, 0.2
      %v3213 = vmul.f32 %v3149, 0.2
      %v3214 = vmul.f32 %v3150, 0.2
      %v3215 = vmul.f32 %v3151, 0.2
      %v3216 = vmul.f32 %v3152, 0.2
      %v3217 = vmul.f32 %v3153, 0.2
      %v3218 = vmul.f32 %v3154, 0.2
      %v3219 = vmul.f32 %v3155, 0.2
      %v3220 = vsel %vm3156, %v3124, %v3188
      %v3221 = vsel %vm3157, %v3125, %v3189
      %v3222 = vsel %vm3158, %v3126, %v3190
      %v3223 = vsel %vm3159, %v3127, %v3191
      %v3224 = vsel %vm3160, %v3128, %v3192
      %v3225 = vsel %vm3161, %v3129, %v3193
      %v3226 = vsel %vm3162, %v3130, %v3194
      %v3227 = vsel %vm3163, %v3131, %v3195
      %v3228 = vsel %vm3164, %v3132, %v3196
      %v3229 = vsel %vm3165, %v3133, %v3197
      %v3230 = vsel %vm3166, %v3134, %v3198
      %v3231 = vsel %vm3167, %v3135, %v3199
      %v3232 = vsel %vm3168, %v3136, %v3200
      %v3233 = vsel %vm3169, %v3137, %v3201
      %v3234 = vsel %vm3170, %v3138, %v3202
      %v3235 = vsel %vm3171, %v3139, %v3203
      %v3236 = vsel %vm3172, %v3140, %v3204
      %v3237 = vsel %vm3173, %v3141, %v3205
      %v3238 = vsel %vm3174, %v3142, %v3206
      %v3239 = vsel %vm3175, %v3143, %v3207
      %v3240 = vsel %vm3176, %v3144, %v3208
      %v3241 = vsel %vm3177, %v3145, %v3209
      %v3242 = vsel %vm3178, %v3146, %v3210
      %v3243 = vsel %vm3179, %v3147, %v3211
      %v3244 = vsel %vm3180, %v3148, %v3212
      %v3245 = vsel %vm3181, %v3149, %v3213
      %v3246 = vsel %vm3182, %v3150, %v3214
      %v3247 = vsel %vm3183, %v3151, %v3215
      %v3248 = vsel %vm3184, %v3152, %v3216
      %v3249 = vsel %vm3185, %v3153, %v3217
      %v3250 = vsel %vm3186, %v3154, %v3218
      %v3251 = vsel %vm3187, %v3155, %v3219
      %3252 = vst [vmem:[#allocation3] sm:$0xff] 0.0
      %3253 = vst [vmem:[#allocation3 + $0x8] sm:$0xff] 0.0
      %3254 = vst [vmem:[#allocation3 + $0x10] sm:$0x3] 0.0
      %s3255 = scalar_lea.vmem [#allocation3], 408
      %3256 = vst [vmem:[%s3255] sm:$0xff] 0.0
      %3257 = vst [vmem:[%s3255 + $0x8] sm:$0xff] 0.0
      %3258 = vst [vmem:[%s3255 + $0x10] sm:$0x3] 0.0
      %3259 = vst [vmem:[#allocation3] sm:$0x1] 0.0
      %3260 = vst [vmem:[#allocation3 + $0x18] sm:$0x1] 0.0
      %3261 = vst [vmem:[#allocation3 + $0x30] sm:$0x1] 0.0
      %3262 = vst [vmem:[#allocation3 + $0x48] sm:$0x1] 0.0
      %3263 = vst [vmem:[#allocation3 + $0x60] sm:$0x1] 0.0
      %3264 = vst [vmem:[#allocation3 + $0x78] sm:$0x1] 0.0
      %3265 = vst [vmem:[#allocation3 + $0x90] sm:$0x1] 0.0
      %3266 = vst [vmem:[#allocation3 + $0xa8] sm:$0x1] 0.0
      %3267 = vst [vmem:[#allocation3 + $0xc0] sm:$0x1] 0.0
      %3268 = vst [vmem:[#allocation3 + $0xd8] sm:$0x1] 0.0
      %3269 = vst [vmem:[#allocation3 + $0xf0] sm:$0x1] 0.0
      %3270 = vst [vmem:[#allocation3 + $0x108] sm:$0x1] 0.0
      %3271 = vst [vmem:[#allocation3 + $0x120] sm:$0x1] 0.0
      %3272 = vst [vmem:[#allocation3 + $0x138] sm:$0x1] 0.0
      %3273 = vst [vmem:[#allocation3 + $0x150] sm:$0x1] 0.0
      %3274 = vst [vmem:[#allocation3 + $0x168] sm:$0x1] 0.0
      %3275 = vst [vmem:[#allocation3 + $0x180] sm:$0x1] 0.0
      %3276 = vst [vmem:[#allocation3 + $0x198] sm:$0x1] 0.0
      %3277 = vst [vmem:[#allocation3 + $0x11] sm:$0x1] 0.0
      %3278 = vst [vmem:[#allocation3 + $0x29] sm:$0x1] 0.0
      %3279 = vst [vmem:[#allocation3 + $0x41] sm:$0x1] 0.0
      %3280 = vst [vmem:[#allocation3 + $0x59] sm:$0x1] 0.0
      %3281 = vst [vmem:[#allocation3 + $0x71] sm:$0x1] 0.0
      %3282 = vst [vmem:[#allocation3 + $0x89] sm:$0x1] 0.0
      %3283 = vst [vmem:[#allocation3 + $0xa1] sm:$0x1] 0.0
      %3284 = vst [vmem:[#allocation3 + $0xb9] sm:$0x1] 0.0
      %3285 = vst [vmem:[#allocation3 + $0xd1] sm:$0x1] 0.0
      %3286 = vst [vmem:[#allocation3 + $0xe9] sm:$0x1] 0.0
      %3287 = vst [vmem:[#allocation3 + $0x101] sm:$0x1] 0.0
      %3288 = vst [vmem:[#allocation3 + $0x119] sm:$0x1] 0.0
      %3289 = vst [vmem:[#allocation3 + $0x131] sm:$0x1] 0.0
      %3290 = vst [vmem:[#allocation3 + $0x149] sm:$0x1] 0.0
      %3291 = vst [vmem:[#allocation3 + $0x161] sm:$0x1] 0.0
      %3292 = vst [vmem:[#allocation3 + $0x179] sm:$0x1] 0.0
      %3293 = vst [vmem:[#allocation3 + $0x191] sm:$0x1] 0.0
      %3294 = vst [vmem:[#allocation3 + $0x1a9] sm:$0x1] 0.0
      %s3295 = scalar_lea.vmem [#allocation3], 24
      %3296 = vst [vmem:[%s3295 + $0x1] sm:$0xff] %v3220
      %3297 = vst [vmem:[%s3295 + $0x9] sm:$0xff] %v3221
      %3298 = vst [vmem:[%s3295 + $0x19] sm:$0xff] %v3222
      %3299 = vst [vmem:[%s3295 + $0x21] sm:$0xff] %v3223
      %3300 = vst [vmem:[%s3295 + $0x31] sm:$0xff] %v3224
      %3301 = vst [vmem:[%s3295 + $0x39] sm:$0xff] %v3225
      %3302 = vst [vmem:[%s3295 + $0x49] sm:$0xff] %v3226
      %3303 = vst [vmem:[%s3295 + $0x51] sm:$0xff] %v3227
      %3304 = vst [vmem:[%s3295 + $0x61] sm:$0xff] %v3228
      %3305 = vst [vmem:[%s3295 + $0x69] sm:$0xff] %v3229
      %3306 = vst [vmem:[%s3295 + $0x79] sm:$0xff] %v3230
      %3307 = vst [vmem:[%s3295 + $0x81] sm:$0xff] %v3231
      %3308 = vst [vmem:[%s3295 + $0x91] sm:$0xff] %v3232
      %3309 = vst [vmem:[%s3295 + $0x99] sm:$0xff] %v3233
      %3310 = vst [vmem:[%s3295 + $0xa9] sm:$0xff] %v3234
      %3311 = vst [vmem:[%s3295 + $0xb1] sm:$0xff] %v3235
      %3312 = vst [vmem:[%s3295 + $0xc1] sm:$0xff] %v3236
      %3313 = vst [vmem:[%s3295 + $0xc9] sm:$0xff] %v3237
      %3314 = vst [vmem:[%s3295 + $0xd9] sm:$0xff] %v3238
      %3315 = vst [vmem:[%s3295 + $0xe1] sm:$0xff] %v3239
      %3316 = vst [vmem:[%s3295 + $0xf1] sm:$0xff] %v3240
      %3317 = vst [vmem:[%s3295 + $0xf9] sm:$0xff] %v3241
      %3318 = vst [vmem:[%s3295 + $0x109] sm:$0xff] %v3242
      %3319 = vst [vmem:[%s3295 + $0x111] sm:$0xff] %v3243
      %3320 = vst [vmem:[%s3295 + $0x121] sm:$0xff] %v3244
      %3321 = vst [vmem:[%s3295 + $0x129] sm:$0xff] %v3245
      %3322 = vst [vmem:[%s3295 + $0x139] sm:$0xff] %v3246
      %3323 = vst [vmem:[%s3295 + $0x141] sm:$0xff] %v3247
      %3324 = vst [vmem:[%s3295 + $0x151] sm:$0xff] %v3248
      %3325 = vst [vmem:[%s3295 + $0x159] sm:$0xff] %v3249
      %3326 = vst [vmem:[%s3295 + $0x169] sm:$0xff] %v3250
      %3327 = vst [vmem:[%s3295 + $0x171] sm:$0xff] %v3251
      %v3328 = vld [vmem:[#allocation3] sm:$0xff]
      %v3329 = vld [vmem:[#allocation3 + $0x8] sm:$0xff]
      %v3330 = vld [vmem:[#allocation3 + $0x18] sm:$0xff]
      %v3331 = vld [vmem:[#allocation3 + $0x20] sm:$0xff]
      %v3332 = vld [vmem:[#allocation3 + $0x30] sm:$0xff]
      %v3333 = vld [vmem:[#allocation3 + $0x38] sm:$0xff]
      %v3334 = vld [vmem:[#allocation3 + $0x48] sm:$0xff]
      %v3335 = vld [vmem:[#allocation3 + $0x50] sm:$0xff]
      %v3336 = vld [vmem:[#allocation3 + $0x60] sm:$0xff]
      %v3337 = vld [vmem:[#allocation3 + $0x68] sm:$0xff]
      %v3338 = vld [vmem:[#allocation3 + $0x78] sm:$0xff]
      %v3339 = vld [vmem:[#allocation3 + $0x80] sm:$0xff]
      %v3340 = vld [vmem:[#allocation3 + $0x90] sm:$0xff]
      %v3341 = vld [vmem:[#allocation3 + $0x98] sm:$0xff]
      %v3342 = vld [vmem:[#allocation3 + $0xa8] sm:$0xff]
      %v3343 = vld [vmem:[#allocation3 + $0xb0] sm:$0xff]
      %v3344 = vld [vmem:[#allocation3 + $0xc0] sm:$0xff]
      %v3345 = vld [vmem:[#allocation3 + $0xc8] sm:$0xff]
      %v3346 = vld [vmem:[#allocation3 + $0xd8] sm:$0xff]
      %v3347 = vld [vmem:[#allocation3 + $0xe0] sm:$0xff]
      %v3348 = vld [vmem:[#allocation3 + $0xf0] sm:$0xff]
      %v3349 = vld [vmem:[#allocation3 + $0xf8] sm:$0xff]
      %v3350 = vld [vmem:[#allocation3 + $0x108] sm:$0xff]
      %v3351 = vld [vmem:[#allocation3 + $0x110] sm:$0xff]
      %v3352 = vld [vmem:[#allocation3 + $0x120] sm:$0xff]
      %v3353 = vld [vmem:[#allocation3 + $0x128] sm:$0xff]
      %v3354 = vld [vmem:[#allocation3 + $0x138] sm:$0xff]
      %v3355 = vld [vmem:[#allocation3 + $0x140] sm:$0xff]
      %v3356 = vld [vmem:[#allocation3 + $0x150] sm:$0xff]
      %v3357 = vld [vmem:[#allocation3 + $0x158] sm:$0xff]
      %v3358 = vld [vmem:[#allocation3 + $0x168] sm:$0xff]
      %v3359 = vld [vmem:[#allocation3 + $0x170] sm:$0xff]
      %v3360 = vpack.c.bf16 %v3329, %v3328
      %v3361 = vpack.c.bf16 %v3331, %v3330
      %v3362 = vpack.c.bf16 %v3333, %v3332
      %v3363 = vpack.c.bf16 %v3335, %v3334
      %v3364 = vpack.c.bf16 %v3337, %v3336
      %v3365 = vpack.c.bf16 %v3339, %v3338
      %v3366 = vpack.c.bf16 %v3341, %v3340
      %v3367 = vpack.c.bf16 %v3343, %v3342
      %v3368 = vpack.c.bf16 %v3345, %v3344
      %v3369 = vpack.c.bf16 %v3347, %v3346
      %v3370 = vpack.c.bf16 %v3349, %v3348
      %v3371 = vpack.c.bf16 %v3351, %v3350
      %v3372 = vpack.c.bf16 %v3353, %v3352
      %v3373 = vpack.c.bf16 %v3355, %v3354
      %v3374 = vpack.c.bf16 %v3357, %v3356
      %v3375 = vpack.c.bf16 %v3359, %v3358
      %v3376 = vld [vmem:[%s4] sm:$0xff]
      %v3377 = vld [vmem:[%s4 + $0x8] sm:$0xff]
      %v3378 = vld [vmem:[%s4 + $0x10] sm:$0xff]
      %v3379 = vld [vmem:[%s4 + $0x18] sm:$0xff]
      %v3380 = vld [vmem:[%s4 + $0x20] sm:$0xff]
      %v3381 = vld [vmem:[%s4 + $0x28] sm:$0xff]
      %v3382 = vld [vmem:[%s4 + $0x30] sm:$0xff]
      %v3383 = vld [vmem:[%s4 + $0x38] sm:$0xff]
      %v3384 = vld [vmem:[%s4 + $0x40] sm:$0xff]
      %v3385 = vld [vmem:[%s4 + $0x48] sm:$0xff]
      %v3386 = vld [vmem:[%s4 + $0x50] sm:$0xff]
      %v3387 = vld [vmem:[%s4 + $0x58] sm:$0xff]
      %v3388 = vld [vmem:[%s4 + $0x60] sm:$0xff]
      %v3389 = vld [vmem:[%s4 + $0x68] sm:$0xff]
      %v3390 = vld [vmem:[%s4 + $0x70] sm:$0xff]
      %v3391 = vld [vmem:[%s4 + $0x78] sm:$0xff]
      %v3392 = vld [vmem:[#allocation3 + $0x1] sm:$0xff]
      %v3393 = vld [vmem:[#allocation3 + $0x9] sm:$0xff]
      %v3394 = vld [vmem:[#allocation3 + $0x19] sm:$0xff]
      %v3395 = vld [vmem:[#allocation3 + $0x21] sm:$0xff]
      %v3396 = vld [vmem:[#allocation3 + $0x31] sm:$0xff]
      %v3397 = vld [vmem:[#allocation3 + $0x39] sm:$0xff]
      %v3398 = vld [vmem:[#allocation3 + $0x49] sm:$0xff]
      %v3399 = vld [vmem:[#allocation3 + $0x51] sm:$0xff]
      %v3400 = vld [vmem:[#allocation3 + $0x61] sm:$0xff]
      %v3401 = vld [vmem:[#allocation3 + $0x69] sm:$0xff]
      %v3402 = vld [vmem:[#allocation3 + $0x79] sm:$0xff]
      %v3403 = vld [vmem:[#allocation3 + $0x81] sm:$0xff]
      %v3404 = vld [vmem:[#allocation3 + $0x91] sm:$0xff]
      %v3405 = vld [vmem:[#allocation3 + $0x99] sm:$0xff]
      %v3406 = vld [vmem:[#allocation3 + $0xa9] sm:$0xff]
      %v3407 = vld [vmem:[#allocation3 + $0xb1] sm:$0xff]
      %v3408 = vld [vmem:[#allocation3 + $0xc1] sm:$0xff]
      %v3409 = vld [vmem:[#allocation3 + $0xc9] sm:$0xff]
      %v3410 = vld [vmem:[#allocation3 + $0xd9] sm:$0xff]
      %v3411 = vld [vmem:[#allocation3 + $0xe1] sm:$0xff]
      %v3412 = vld [vmem:[#allocation3 + $0xf1] sm:$0xff]
      %v3413 = vld [vmem:[#allocation3 + $0xf9] sm:$0xff]
      %v3414 = vld [vmem:[#allocation3 + $0x109] sm:$0xff]
      %v3415 = vld [vmem:[#allocation3 + $0x111] sm:$0xff]
      %v3416 = vld [vmem:[#allocation3 + $0x121] sm:$0xff]
      %v3417 = vld [vmem:[#allocation3 + $0x129] sm:$0xff]
      %v3418 = vld [vmem:[#allocation3 + $0x139] sm:$0xff]
      %v3419 = vld [vmem:[#allocation3 + $0x141] sm:$0xff]
      %v3420 = vld [vmem:[#allocation3 + $0x151] sm:$0xff]
      %v3421 = vld [vmem:[#allocation3 + $0x159] sm:$0xff]
      %v3422 = vld [vmem:[#allocation3 + $0x169] sm:$0xff]
      %v3423 = vld [vmem:[#allocation3 + $0x171] sm:$0xff]
      %v3424 = vpack.c.bf16 %v3393, %v3392
      %v3425 = vpack.c.bf16 %v3395, %v3394
      %v3426 = vpack.c.bf16 %v3397, %v3396
      %v3427 = vpack.c.bf16 %v3399, %v3398
      %v3428 = vpack.c.bf16 %v3401, %v3400
      %v3429 = vpack.c.bf16 %v3403, %v3402
      %v3430 = vpack.c.bf16 %v3405, %v3404
      %v3431 = vpack.c.bf16 %v3407, %v3406
      %v3432 = vpack.c.bf16 %v3409, %v3408
      %v3433 = vpack.c.bf16 %v3411, %v3410
      %v3434 = vpack.c.bf16 %v3413, %v3412
      %v3435 = vpack.c.bf16 %v3415, %v3414
      %v3436 = vpack.c.bf16 %v3417, %v3416
      %v3437 = vpack.c.bf16 %v3419, %v3418
      %v3438 = vpack.c.bf16 %v3421, %v3420
      %v3439 = vpack.c.bf16 %v3423, %v3422
      %v3440 = vld [vmem:[%s4 + $0x80] sm:$0xff]
      %v3441 = vld [vmem:[%s4 + $0x88] sm:$0xff]
      %v3442 = vld [vmem:[%s4 + $0x90] sm:$0xff]
      %v3443 = vld [vmem:[%s4 + $0x98] sm:$0xff]
      %v3444 = vld [vmem:[%s4 + $0xa0] sm:$0xff]
      %v3445 = vld [vmem:[%s4 + $0xa8] sm:$0xff]
      %v3446 = vld [vmem:[%s4 + $0xb0] sm:$0xff]
      %v3447 = vld [vmem:[%s4 + $0xb8] sm:$0xff]
      %v3448 = vld [vmem:[%s4 + $0xc0] sm:$0xff]
      %v3449 = vld [vmem:[%s4 + $0xc8] sm:$0xff]
      %v3450 = vld [vmem:[%s4 + $0xd0] sm:$0xff]
      %v3451 = vld [vmem:[%s4 + $0xd8] sm:$0xff]
      %v3452 = vld [vmem:[%s4 + $0xe0] sm:$0xff]
      %v3453 = vld [vmem:[%s4 + $0xe8] sm:$0xff]
      %v3454 = vld [vmem:[%s4 + $0xf0] sm:$0xff]
      %v3455 = vld [vmem:[%s4 + $0xf8] sm:$0xff]
      %v3472 = vunpack.c.l.b16 %v3440
      %v3473 = vunpack.c.h.b16 %v3440
      %v3474 = vunpack.c.l.b16 %v3441
      %v3475 = vunpack.c.h.b16 %v3441
      %v3476 = vunpack.c.l.b16 %v3442
      %v3477 = vunpack.c.h.b16 %v3442
      %v3478 = vunpack.c.l.b16 %v3443
      %v3479 = vunpack.c.h.b16 %v3443
      %v3480 = vunpack.c.l.b16 %v3444
      %v3481 = vunpack.c.h.b16 %v3444
      %v3482 = vunpack.c.l.b16 %v3445
      %v3483 = vunpack.c.h.b16 %v3445
      %v3484 = vunpack.c.l.b16 %v3446
      %v3485 = vunpack.c.h.b16 %v3446
      %v3486 = vunpack.c.l.b16 %v3447
      %v3487 = vunpack.c.h.b16 %v3447
      %v3488 = vunpack.c.l.b16 %v3448
      %v3489 = vunpack.c.h.b16 %v3448
      %v3490 = vunpack.c.l.b16 %v3449
      %v3491 = vunpack.c.h.b16 %v3449
      %v3492 = vunpack.c.l.b16 %v3450
      %v3493 = vunpack.c.h.b16 %v3450
      %v3494 = vunpack.c.l.b16 %v3451
      %v3495 = vunpack.c.h.b16 %v3451
      %v3496 = vunpack.c.l.b16 %v3452
      %v3497 = vunpack.c.h.b16 %v3452
      %v3498 = vunpack.c.l.b16 %v3453
      %v3499 = vunpack.c.h.b16 %v3453
      %v3500 = vunpack.c.l.b16 %v3454
      %v3501 = vunpack.c.h.b16 %v3454
      %v3502 = vunpack.c.l.b16 %v3455
      %v3503 = vunpack.c.h.b16 %v3455
      %v3504 = vpack.c.b16 %v3474, %v3472
      %v3505 = vpack.c.b16 %v3475, %v3473
      %v3506 = vpack.c.b16 %v3478, %v3476
      %v3507 = vpack.c.b16 %v3479, %v3477
      %v3508 = vpack.c.b16 %v3482, %v3480
      %v3509 = vpack.c.b16 %v3483, %v3481
      %v3510 = vpack.c.b16 %v3486, %v3484
      %v3511 = vpack.c.b16 %v3487, %v3485
      %v3512 = vpack.c.b16 %v3490, %v3488
      %v3513 = vpack.c.b16 %v3491, %v3489
      %v3514 = vpack.c.b16 %v3494, %v3492
      %v3515 = vpack.c.b16 %v3495, %v3493
      %v3516 = vpack.c.b16 %v3498, %v3496
      %v3517 = vpack.c.b16 %v3499, %v3497
      %v3518 = vpack.c.b16 %v3502, %v3500
      %v3519 = vpack.c.b16 %v3503, %v3501
      %3536 = vmatprep.subr.bf16.mxu0 %v3519
      %3537 = vmatpush1.bf16.msra.mxu0 %v3518
      %3538 = vmatprep.subr.bf16.mxu0 %v3517
      %3539 = vmatpush1.bf16.msra.mxu0 %v3516
      %3540 = vmatprep.subr.bf16.mxu0 %v3515
      %3541 = vmatpush1.bf16.msra.mxu0 %v3514
      %3542 = vmatprep.subr.bf16.mxu0 %v3513
      %3543 = vmatpush1.bf16.msra.mxu0 %v3512
      %3544 = vmatprep.subr.bf16.mxu0 %v3511
      %3545 = vmatpush1.bf16.msra.mxu0 %v3510
      %3546 = vmatprep.subr.bf16.mxu0 %v3509
      %3547 = vmatpush1.bf16.msra.mxu0 %v3508
      %3548 = vmatprep.subr.bf16.mxu0 %v3507
      %3549 = vmatpush1.bf16.msra.mxu0 %v3506
      %3550 = vmatprep.subr.bf16.mxu0 %v3505
      %3551 = vmatpush1.bf16.msra.mxu0 %v3504
      %3552 = vmatprep.subr.bf16.mxu0 0
      %3553 = vmatpush2.bf16.msra.mxu0 0
      %3554 = vmatprep.subr.bf16.mxu0 0
      %3555 = vmatpush2.bf16.msra.mxu0 0
      %3556 = vmatprep.subr.bf16.mxu0 0
      %3557 = vmatpush2.bf16.msra.mxu0 0
      %3558 = vmatprep.subr.bf16.mxu0 0
      %3559 = vmatpush2.bf16.msra.mxu0 0
      %3560 = vmatprep.subr.bf16.mxu0 0
      %3561 = vmatpush2.bf16.msra.mxu0 0
      %3562 = vmatprep.subr.bf16.mxu0 0
      %3563 = vmatpush2.bf16.msra.mxu0 0
      %3564 = vmatprep.subr.bf16.mxu0 0
      %3565 = vmatpush2.bf16.msra.mxu0 0
      %3566 = vmatprep.subr.bf16.mxu0 0
      %3567 = vmatpush2.bf16.msra.mxu0 0
      %3568 = vmatprep.mubr.bf16.mxu0 0
      %3569 = vmatmul.mubr.bf16.gmra.mxu0 %v3424
      %v3570 = vpop.f32.mrf.mxu0
      %v3571 = vadd.f32 0.0, %v3570
      %v3572 = vpop.f32.mrf.mxu0
      %v3573 = vadd.f32 0.0, %v3572
      %v3574 = vpop.f32.mrf.mxu0
      %v3575 = vadd.f32 0.0, %v3574
      %v3576 = vpop.f32.mrf.mxu0
      %v3577 = vadd.f32 0.0, %v3576
      %3578 = vmatprep.mubr.bf16.mxu0 0
      %3579 = vmatmul.mubr.bf16.gmra.mxu0 %v3425
      %v3580 = vpop.f32.mrf.mxu0
      %v3581 = vadd.f32 0.0, %v3580
      %v3582 = vpop.f32.mrf.mxu0
      %v3583 = vadd.f32 0.0, %v3582
      %v3584 = vpop.f32.mrf.mxu0
      %v3585 = vadd.f32 0.0, %v3584
      %v3586 = vpop.f32.mrf.mxu0
      %v3587 = vadd.f32 0.0, %v3586
      %3588 = vmatprep.mubr.bf16.mxu0 0
      %3589 = vmatmul.mubr.bf16.gmra.mxu0 %v3426
      %v3590 = vpop.f32.mrf.mxu0
      %v3591 = vadd.f32 0.0, %v3590
      %v3592 = vpop.f32.mrf.mxu0
      %v3593 = vadd.f32 0.0, %v3592
      %v3594 = vpop.f32.mrf.mxu0
      %v3595 = vadd.f32 0.0, %v3594
      %v3596 = vpop.f32.mrf.mxu0
      %v3597 = vadd.f32 0.0, %v3596
      %3598 = vmatprep.mubr.bf16.mxu0 0
      %3599 = vmatmul.mubr.bf16.gmra.mxu0 %v3427
      %v3600 = vpop.f32.mrf.mxu0
      %v3601 = vadd.f32 0.0, %v3600
      %v3602 = vpop.f32.mrf.mxu0
      %v3603 = vadd.f32 0.0, %v3602
      %v3604 = vpop.f32.mrf.mxu0
      %v3605 = vadd.f32 0.0, %v3604
      %v3606 = vpop.f32.mrf.mxu0
      %v3607 = vadd.f32 0.0, %v3606
      %3608 = vmatprep.mubr.bf16.mxu0 0
      %3609 = vmatmul.mubr.bf16.gmra.mxu0 %v3428
      %v3610 = vpop.f32.mrf.mxu0
      %v3611 = vadd.f32 0.0, %v3610
      %v3612 = vpop.f32.mrf.mxu0
      %v3613 = vadd.f32 0.0, %v3612
      %v3614 = vpop.f32.mrf.mxu0
      %v3615 = vadd.f32 0.0, %v3614
      %v3616 = vpop.f32.mrf.mxu0
      %v3617 = vadd.f32 0.0, %v3616
      %3618 = vmatprep.mubr.bf16.mxu0 0
      %3619 = vmatmul.mubr.bf16.gmra.mxu0 %v3429
      %v3620 = vpop.f32.mrf.mxu0
      %v3621 = vadd.f32 0.0, %v3620
      %v3622 = vpop.f32.mrf.mxu0
      %v3623 = vadd.f32 0.0, %v3622
      %v3624 = vpop.f32.mrf.mxu0
      %v3625 = vadd.f32 0.0, %v3624
      %v3626 = vpop.f32.mrf.mxu0
      %v3627 = vadd.f32 0.0, %v3626
      %3628 = vmatprep.mubr.bf16.mxu0 0
      %3629 = vmatmul.mubr.bf16.gmra.mxu0 %v3430
      %v3630 = vpop.f32.mrf.mxu0
      %v3631 = vadd.f32 0.0, %v3630
      %v3632 = vpop.f32.mrf.mxu0
      %v3633 = vadd.f32 0.0, %v3632
      %v3634 = vpop.f32.mrf.mxu0
      %v3635 = vadd.f32 0.0, %v3634
      %v3636 = vpop.f32.mrf.mxu0
      %v3637 = vadd.f32 0.0, %v3636
      %3638 = vmatprep.mubr.bf16.mxu0 0
      %3639 = vmatmul.mubr.bf16.gmra.mxu0 %v3431
      %v3640 = vpop.f32.mrf.mxu0
      %v3641 = vadd.f32 0.0, %v3640
      %v3642 = vpop.f32.mrf.mxu0
      %v3643 = vadd.f32 0.0, %v3642
      %v3644 = vpop.f32.mrf.mxu0
      %v3645 = vadd.f32 0.0, %v3644
      %v3646 = vpop.f32.mrf.mxu0
      %v3647 = vadd.f32 0.0, %v3646
      %3648 = vmatprep.mubr.bf16.mxu0 0
      %3649 = vmatmul.mubr.bf16.gmra.mxu0 %v3432
      %v3650 = vpop.f32.mrf.mxu0
      %v3651 = vadd.f32 0.0, %v3650
      %v3652 = vpop.f32.mrf.mxu0
      %v3653 = vadd.f32 0.0, %v3652
      %v3654 = vpop.f32.mrf.mxu0
      %v3655 = vadd.f32 0.0, %v3654
      %v3656 = vpop.f32.mrf.mxu0
      %v3657 = vadd.f32 0.0, %v3656
      %3658 = vmatprep.mubr.bf16.mxu0 0
      %3659 = vmatmul.mubr.bf16.gmra.mxu0 %v3433
      %v3660 = vpop.f32.mrf.mxu0
      %v3661 = vadd.f32 0.0, %v3660
      %v3662 = vpop.f32.mrf.mxu0
      %v3663 = vadd.f32 0.0, %v3662
      %v3664 = vpop.f32.mrf.mxu0
      %v3665 = vadd.f32 0.0, %v3664
      %v3666 = vpop.f32.mrf.mxu0
      %v3667 = vadd.f32 0.0, %v3666
      %3668 = vmatprep.mubr.bf16.mxu0 0
      %3669 = vmatmul.mubr.bf16.gmra.mxu0 %v3434
      %v3670 = vpop.f32.mrf.mxu0
      %v3671 = vadd.f32 0.0, %v3670
      %v3672 = vpop.f32.mrf.mxu0
      %v3673 = vadd.f32 0.0, %v3672
      %v3674 = vpop.f32.mrf.mxu0
      %v3675 = vadd.f32 0.0, %v3674
      %v3676 = vpop.f32.mrf.mxu0
      %v3677 = vadd.f32 0.0, %v3676
      %3678 = vmatprep.mubr.bf16.mxu0 0
      %3679 = vmatmul.mubr.bf16.gmra.mxu0 %v3435
      %v3680 = vpop.f32.mrf.mxu0
      %v3681 = vadd.f32 0.0, %v3680
      %v3682 = vpop.f32.mrf.mxu0
      %v3683 = vadd.f32 0.0, %v3682
      %v3684 = vpop.f32.mrf.mxu0
      %v3685 = vadd.f32 0.0, %v3684
      %v3686 = vpop.f32.mrf.mxu0
      %v3687 = vadd.f32 0.0, %v3686
      %3688 = vmatprep.mubr.bf16.mxu0 0
      %3689 = vmatmul.mubr.bf16.gmra.mxu0 %v3436
      %v3690 = vpop.f32.mrf.mxu0
      %v3691 = vadd.f32 0.0, %v3690
      %v3692 = vpop.f32.mrf.mxu0
      %v3693 = vadd.f32 0.0, %v3692
      %v3694 = vpop.f32.mrf.mxu0
      %v3695 = vadd.f32 0.0, %v3694
      %v3696 = vpop.f32.mrf.mxu0
      %v3697 = vadd.f32 0.0, %v3696
      %3698 = vmatprep.mubr.bf16.mxu0 0
      %3699 = vmatmul.mubr.bf16.gmra.mxu0 %v3437
      %v3700 = vpop.f32.mrf.mxu0
      %v3701 = vadd.f32 0.0, %v3700
      %v3702 = vpop.f32.mrf.mxu0
      %v3703 = vadd.f32 0.0, %v3702
      %v3704 = vpop.f32.mrf.mxu0
      %v3705 = vadd.f32 0.0, %v3704
      %v3706 = vpop.f32.mrf.mxu0
      %v3707 = vadd.f32 0.0, %v3706
      %3708 = vmatprep.mubr.bf16.mxu0 0
      %3709 = vmatmul.mubr.bf16.gmra.mxu0 %v3438
      %v3710 = vpop.f32.mrf.mxu0
      %v3711 = vadd.f32 0.0, %v3710
      %v3712 = vpop.f32.mrf.mxu0
      %v3713 = vadd.f32 0.0, %v3712
      %v3714 = vpop.f32.mrf.mxu0
      %v3715 = vadd.f32 0.0, %v3714
      %v3716 = vpop.f32.mrf.mxu0
      %v3717 = vadd.f32 0.0, %v3716
      %3718 = vmatprep.mubr.bf16.mxu0 0
      %3719 = vmatmul.mubr.bf16.gmra.mxu0 %v3439
      %v3720 = vpop.f32.mrf.mxu0
      %v3721 = vadd.f32 0.0, %v3720
      %v3722 = vpop.f32.mrf.mxu0
      %v3723 = vadd.f32 0.0, %v3722
      %v3724 = vpop.f32.mrf.mxu0
      %v3725 = vadd.f32 0.0, %v3724
      %v3726 = vpop.f32.mrf.mxu0
      %v3727 = vadd.f32 0.0, %v3726
      %3728 = vdwg.mxu0
      %v3745 = vunpack.c.l.b16 %v3376
      %v3746 = vunpack.c.h.b16 %v3376
      %v3747 = vunpack.c.l.b16 %v3377
      %v3748 = vunpack.c.h.b16 %v3377
      %v3749 = vunpack.c.l.b16 %v3378
      %v3750 = vunpack.c.h.b16 %v3378
      %v3751 = vunpack.c.l.b16 %v3379
      %v3752 = vunpack.c.h.b16 %v3379
      %v3753 = vunpack.c.l.b16 %v3380
      %v3754 = vunpack.c.h.b16 %v3380
      %v3755 = vunpack.c.l.b16 %v3381
      %v3756 = vunpack.c.h.b16 %v3381
      %v3757 = vunpack.c.l.b16 %v3382
      %v3758 = vunpack.c.h.b16 %v3382
      %v3759 = vunpack.c.l.b16 %v3383
      %v3760 = vunpack.c.h.b16 %v3383
      %v3761 = vunpack.c.l.b16 %v3384
      %v3762 = vunpack.c.h.b16 %v3384
      %v3763 = vunpack.c.l.b16 %v3385
      %v3764 = vunpack.c.h.b16 %v3385
      %v3765 = vunpack.c.l.b16 %v3386
      %v3766 = vunpack.c.h.b16 %v3386
      %v3767 = vunpack.c.l.b16 %v3387
      %v3768 = vunpack.c.h.b16 %v3387
      %v3769 = vunpack.c.l.b16 %v3388
      %v3770 = vunpack.c.h.b16 %v3388
      %v3771 = vunpack.c.l.b16 %v3389
      %v3772 = vunpack.c.h.b16 %v3389
      %v3773 = vunpack.c.l.b16 %v3390
      %v3774 = vunpack.c.h.b16 %v3390
      %v3775 = vunpack.c.l.b16 %v3391
      %v3776 = vunpack.c.h.b16 %v3391
      %v3777 = vpack.c.b16 %v3747, %v3745
      %v3778 = vpack.c.b16 %v3748, %v3746
      %v3779 = vpack.c.b16 %v3751, %v3749
      %v3780 = vpack.c.b16 %v3752, %v3750
      %v3781 = vpack.c.b16 %v3755, %v3753
      %v3782 = vpack.c.b16 %v3756, %v3754
      %v3783 = vpack.c.b16 %v3759, %v3757
      %v3784 = vpack.c.b16 %v3760, %v3758
      %v3785 = vpack.c.b16 %v3763, %v3761
      %v3786 = vpack.c.b16 %v3764, %v3762
      %v3787 = vpack.c.b16 %v3767, %v3765
      %v3788 = vpack.c.b16 %v3768, %v3766
      %v3789 = vpack.c.b16 %v3771, %v3769
      %v3790 = vpack.c.b16 %v3772, %v3770
      %v3791 = vpack.c.b16 %v3775, %v3773
      %v3792 = vpack.c.b16 %v3776, %v3774
      %3809 = vmatprep.subr.bf16.mxu0 %v3792
      %3810 = vmatpush1.bf16.msra.mxu0 %v3791
      %3811 = vmatprep.subr.bf16.mxu0 %v3790
      %3812 = vmatpush1.bf16.msra.mxu0 %v3789
      %3813 = vmatprep.subr.bf16.mxu0 %v3788
      %3814 = vmatpush1.bf16.msra.mxu0 %v3787
      %3815 = vmatprep.subr.bf16.mxu0 %v3786
      %3816 = vmatpush1.bf16.msra.mxu0 %v3785
      %3817 = vmatprep.subr.bf16.mxu0 %v3784
      %3818 = vmatpush1.bf16.msra.mxu0 %v3783
      %3819 = vmatprep.subr.bf16.mxu0 %v3782
      %3820 = vmatpush1.bf16.msra.mxu0 %v3781
      %3821 = vmatprep.subr.bf16.mxu0 %v3780
      %3822 = vmatpush1.bf16.msra.mxu0 %v3779
      %3823 = vmatprep.subr.bf16.mxu0 %v3778
      %3824 = vmatpush1.bf16.msra.mxu0 %v3777
      %3825 = vmatprep.subr.bf16.mxu0 0
      %3826 = vmatpush2.bf16.msra.mxu0 0
      %3827 = vmatprep.subr.bf16.mxu0 0
      %3828 = vmatpush2.bf16.msra.mxu0 0
      %3829 = vmatprep.subr.bf16.mxu0 0
      %3830 = vmatpush2.bf16.msra.mxu0 0
      %3831 = vmatprep.subr.bf16.mxu0 0
      %3832 = vmatpush2.bf16.msra.mxu0 0
      %3833 = vmatprep.subr.bf16.mxu0 0
      %3834 = vmatpush2.bf16.msra.mxu0 0
      %3835 = vmatprep.subr.bf16.mxu0 0
      %3836 = vmatpush2.bf16.msra.mxu0 0
      %3837 = vmatprep.subr.bf16.mxu0 0
      %3838 = vmatpush2.bf16.msra.mxu0 0
      %3839 = vmatprep.subr.bf16.mxu0 0
      %3840 = vmatpush2.bf16.msra.mxu0 0
      %3841 = vmatprep.mubr.bf16.mxu0 0
      %3842 = vmatmul.mubr.bf16.gmra.mxu0 %v3360
      %v3843 = vpop.f32.mrf.mxu0
      %v3844 = vadd.f32 %v3571, %v3843
      %v3845 = vpop.f32.mrf.mxu0
      %v3846 = vadd.f32 %v3573, %v3845
      %v3847 = vpop.f32.mrf.mxu0
      %v3848 = vadd.f32 %v3575, %v3847
      %v3849 = vpop.f32.mrf.mxu0
      %v3850 = vadd.f32 %v3577, %v3849
      %3851 = vmatprep.mubr.bf16.mxu0 0
      %3852 = vmatmul.mubr.bf16.gmra.mxu0 %v3361
      %v3853 = vpop.f32.mrf.mxu0
      %v3854 = vadd.f32 %v3581, %v3853
      %v3855 = vpop.f32.mrf.mxu0
      %v3856 = vadd.f32 %v3583, %v3855
      %v3857 = vpop.f32.mrf.mxu0
      %v3858 = vadd.f32 %v3585, %v3857
      %v3859 = vpop.f32.mrf.mxu0
      %v3860 = vadd.f32 %v3587, %v3859
      %3861 = vmatprep.mubr.bf16.mxu0 0
      %3862 = vmatmul.mubr.bf16.gmra.mxu0 %v3362
      %v3863 = vpop.f32.mrf.mxu0
      %v3864 = vadd.f32 %v3591, %v3863
      %v3865 = vpop.f32.mrf.mxu0
      %v3866 = vadd.f32 %v3593, %v3865
      %v3867 = vpop.f32.mrf.mxu0
      %v3868 = vadd.f32 %v3595, %v3867
      %v3869 = vpop.f32.mrf.mxu0
      %v3870 = vadd.f32 %v3597, %v3869
      %3871 = vmatprep.mubr.bf16.mxu0 0
      %3872 = vmatmul.mubr.bf16.gmra.mxu0 %v3363
      %v3873 = vpop.f32.mrf.mxu0
      %v3874 = vadd.f32 %v3601, %v3873
      %v3875 = vpop.f32.mrf.mxu0
      %v3876 = vadd.f32 %v3603, %v3875
      %v3877 = vpop.f32.mrf.mxu0
      %v3878 = vadd.f32 %v3605, %v3877
      %v3879 = vpop.f32.mrf.mxu0
      %v3880 = vadd.f32 %v3607, %v3879
      %3881 = vmatprep.mubr.bf16.mxu0 0
      %3882 = vmatmul.mubr.bf16.gmra.mxu0 %v3364
      %v3883 = vpop.f32.mrf.mxu0
      %v3884 = vadd.f32 %v3611, %v3883
      %v3885 = vpop.f32.mrf.mxu0
      %v3886 = vadd.f32 %v3613, %v3885
      %v3887 = vpop.f32.mrf.mxu0
      %v3888 = vadd.f32 %v3615, %v3887
      %v3889 = vpop.f32.mrf.mxu0
      %v3890 = vadd.f32 %v3617, %v3889
      %3891 = vmatprep.mubr.bf16.mxu0 0
      %3892 = vmatmul.mubr.bf16.gmra.mxu0 %v3365
      %v3893 = vpop.f32.mrf.mxu0
      %v3894 = vadd.f32 %v3621, %v3893
      %v3895 = vpop.f32.mrf.mxu0
      %v3896 = vadd.f32 %v3623, %v3895
      %v3897 = vpop.f32.mrf.mxu0
      %v3898 = vadd.f32 %v3625, %v3897
      %v3899 = vpop.f32.mrf.mxu0
      %v3900 = vadd.f32 %v3627, %v3899
      %3901 = vmatprep.mubr.bf16.mxu0 0
      %3902 = vmatmul.mubr.bf16.gmra.mxu0 %v3366
      %v3903 = vpop.f32.mrf.mxu0
      %v3904 = vadd.f32 %v3631, %v3903
      %v3905 = vpop.f32.mrf.mxu0
      %v3906 = vadd.f32 %v3633, %v3905
      %v3907 = vpop.f32.mrf.mxu0
      %v3908 = vadd.f32 %v3635, %v3907
      %v3909 = vpop.f32.mrf.mxu0
      %v3910 = vadd.f32 %v3637, %v3909
      %3911 = vmatprep.mubr.bf16.mxu0 0
      %3912 = vmatmul.mubr.bf16.gmra.mxu0 %v3367
      %v3913 = vpop.f32.mrf.mxu0
      %v3914 = vadd.f32 %v3641, %v3913
      %v3915 = vpop.f32.mrf.mxu0
      %v3916 = vadd.f32 %v3643, %v3915
      %v3917 = vpop.f32.mrf.mxu0
      %v3918 = vadd.f32 %v3645, %v3917
      %v3919 = vpop.f32.mrf.mxu0
      %v3920 = vadd.f32 %v3647, %v3919
      %3921 = vmatprep.mubr.bf16.mxu0 0
      %3922 = vmatmul.mubr.bf16.gmra.mxu0 %v3368
      %v3923 = vpop.f32.mrf.mxu0
      %v3924 = vadd.f32 %v3651, %v3923
      %v3925 = vpop.f32.mrf.mxu0
      %v3926 = vadd.f32 %v3653, %v3925
      %v3927 = vpop.f32.mrf.mxu0
      %v3928 = vadd.f32 %v3655, %v3927
      %v3929 = vpop.f32.mrf.mxu0
      %v3930 = vadd.f32 %v3657, %v3929
      %3931 = vmatprep.mubr.bf16.mxu0 0
      %3932 = vmatmul.mubr.bf16.gmra.mxu0 %v3369
      %v3933 = vpop.f32.mrf.mxu0
      %v3934 = vadd.f32 %v3661, %v3933
      %v3935 = vpop.f32.mrf.mxu0
      %v3936 = vadd.f32 %v3663, %v3935
      %v3937 = vpop.f32.mrf.mxu0
      %v3938 = vadd.f32 %v3665, %v3937
      %v3939 = vpop.f32.mrf.mxu0
      %v3940 = vadd.f32 %v3667, %v3939
      %3941 = vmatprep.mubr.bf16.mxu0 0
      %3942 = vmatmul.mubr.bf16.gmra.mxu0 %v3370
      %v3943 = vpop.f32.mrf.mxu0
      %v3944 = vadd.f32 %v3671, %v3943
      %v3945 = vpop.f32.mrf.mxu0
      %v3946 = vadd.f32 %v3673, %v3945
      %v3947 = vpop.f32.mrf.mxu0
      %v3948 = vadd.f32 %v3675, %v3947
      %v3949 = vpop.f32.mrf.mxu0
      %v3950 = vadd.f32 %v3677, %v3949
      %3951 = vmatprep.mubr.bf16.mxu0 0
      %3952 = vmatmul.mubr.bf16.gmra.mxu0 %v3371
      %v3953 = vpop.f32.mrf.mxu0
      %v3954 = vadd.f32 %v3681, %v3953
      %v3955 = vpop.f32.mrf.mxu0
      %v3956 = vadd.f32 %v3683, %v3955
      %v3957 = vpop.f32.mrf.mxu0
      %v3958 = vadd.f32 %v3685, %v3957
      %v3959 = vpop.f32.mrf.mxu0
      %v3960 = vadd.f32 %v3687, %v3959
      %3961 = vmatprep.mubr.bf16.mxu0 0
      %3962 = vmatmul.mubr.bf16.gmra.mxu0 %v3372
      %v3963 = vpop.f32.mrf.mxu0
      %v3964 = vadd.f32 %v3691, %v3963
      %v3965 = vpop.f32.mrf.mxu0
      %v3966 = vadd.f32 %v3693, %v3965
      %v3967 = vpop.f32.mrf.mxu0
      %v3968 = vadd.f32 %v3695, %v3967
      %v3969 = vpop.f32.mrf.mxu0
      %v3970 = vadd.f32 %v3697, %v3969
      %3971 = vmatprep.mubr.bf16.mxu0 0
      %3972 = vmatmul.mubr.bf16.gmra.mxu0 %v3373
      %v3973 = vpop.f32.mrf.mxu0
      %v3974 = vadd.f32 %v3701, %v3973
      %v3975 = vpop.f32.mrf.mxu0
      %v3976 = vadd.f32 %v3703, %v3975
      %v3977 = vpop.f32.mrf.mxu0
      %v3978 = vadd.f32 %v3705, %v3977
      %v3979 = vpop.f32.mrf.mxu0
      %v3980 = vadd.f32 %v3707, %v3979
      %3981 = vmatprep.mubr.bf16.mxu0 0
      %3982 = vmatmul.mubr.bf16.gmra.mxu0 %v3374
      %v3983 = vpop.f32.mrf.mxu0
      %v3984 = vadd.f32 %v3711, %v3983
      %v3985 = vpop.f32.mrf.mxu0
      %v3986 = vadd.f32 %v3713, %v3985
      %v3987 = vpop.f32.mrf.mxu0
      %v3988 = vadd.f32 %v3715, %v3987
      %v3989 = vpop.f32.mrf.mxu0
      %v3990 = vadd.f32 %v3717, %v3989
      %3991 = vmatprep.mubr.bf16.mxu0 0
      %3992 = vmatmul.mubr.bf16.gmra.mxu0 %v3375
      %v3993 = vpop.f32.mrf.mxu0
      %v3994 = vadd.f32 %v3721, %v3993
      %v3995 = vpop.f32.mrf.mxu0
      %v3996 = vadd.f32 %v3723, %v3995
      %v3997 = vpop.f32.mrf.mxu0
      %v3998 = vadd.f32 %v3725, %v3997
      %v3999 = vpop.f32.mrf.mxu0
      %v4000 = vadd.f32 %v3727, %v3999
      %4001 = vdwg.mxu0
      %v4002 = vld [vmem:[#allocation3 + $0x2] sm:$0xff]
      %v4003 = vld [vmem:[#allocation3 + $0xa] sm:$0xff]
      %v4004 = vld [vmem:[#allocation3 + $0x1a] sm:$0xff]
      %v4005 = vld [vmem:[#allocation3 + $0x22] sm:$0xff]
      %v4006 = vld [vmem:[#allocation3 + $0x32] sm:$0xff]
      %v4007 = vld [vmem:[#allocation3 + $0x3a] sm:$0xff]
      %v4008 = vld [vmem:[#allocation3 + $0x4a] sm:$0xff]
      %v4009 = vld [vmem:[#allocation3 + $0x52] sm:$0xff]
      %v4010 = vld [vmem:[#allocation3 + $0x62] sm:$0xff]
      %v4011 = vld [vmem:[#allocation3 + $0x6a] sm:$0xff]
      %v4012 = vld [vmem:[#allocation3 + $0x7a] sm:$0xff]
      %v4013 = vld [vmem:[#allocation3 + $0x82] sm:$0xff]
      %v4014 = vld [vmem:[#allocation3 + $0x92] sm:$0xff]
      %v4015 = vld [vmem:[#allocation3 + $0x9a] sm:$0xff]
      %v4016 = vld [vmem:[#allocation3 + $0xaa] sm:$0xff]
      %v4017 = vld [vmem:[#allocation3 + $0xb2] sm:$0xff]
      %v4018 = vld [vmem:[#allocation3 + $0xc2] sm:$0xff]
      %v4019 = vld [vmem:[#allocation3 + $0xca] sm:$0xff]
      %v4020 = vld [vmem:[#allocation3 + $0xda] sm:$0xff]
      %v4021 = vld [vmem:[#allocation3 + $0xe2] sm:$0xff]
      %v4022 = vld [vmem:[#allocation3 + $0xf2] sm:$0xff]
      %v4023 = vld [vmem:[#allocation3 + $0xfa] sm:$0xff]
      %v4024 = vld [vmem:[#allocation3 + $0x10a] sm:$0xff]
      %v4025 = vld [vmem:[#allocation3 + $0x112] sm:$0xff]
      %v4026 = vld [vmem:[#allocation3 + $0x122] sm:$0xff]
      %v4027 = vld [vmem:[#allocation3 + $0x12a] sm:$0xff]
      %v4028 = vld [vmem:[#allocation3 + $0x13a] sm:$0xff]
      %v4029 = vld [vmem:[#allocation3 + $0x142] sm:$0xff]
      %v4030 = vld [vmem:[#allocation3 + $0x152] sm:$0xff]
      %v4031 = vld [vmem:[#allocation3 + $0x15a] sm:$0xff]
      %v4032 = vld [vmem:[#allocation3 + $0x16a] sm:$0xff]
      %v4033 = vld [vmem:[#allocation3 + $0x172] sm:$0xff]
      %v4034 = vpack.c.bf16 %v4003, %v4002
      %v4035 = vpack.c.bf16 %v4005, %v4004
      %v4036 = vpack.c.bf16 %v4007, %v4006
      %v4037 = vpack.c.bf16 %v4009, %v4008
      %v4038 = vpack.c.bf16 %v4011, %v4010
      %v4039 = vpack.c.bf16 %v4013, %v4012
      %v4040 = vpack.c.bf16 %v4015, %v4014
      %v4041 = vpack.c.bf16 %v4017, %v4016
      %v4042 = vpack.c.bf16 %v4019, %v4018
      %v4043 = vpack.c.bf16 %v4021, %v4020
      %v4044 = vpack.c.bf16 %v4023, %v4022
      %v4045 = vpack.c.bf16 %v4025, %v4024
      %v4046 = vpack.c.bf16 %v4027, %v4026
      %v4047 = vpack.c.bf16 %v4029, %v4028
      %v4048 = vpack.c.bf16 %v4031, %v4030
      %v4049 = vpack.c.bf16 %v4033, %v4032
      %v4050 = vld [vmem:[%s4 + $0x100] sm:$0xff]
      %v4051 = vld [vmem:[%s4 + $0x108] sm:$0xff]
      %v4052 = vld [vmem:[%s4 + $0x110] sm:$0xff]
      %v4053 = vld [vmem:[%s4 + $0x118] sm:$0xff]
      %v4054 = vld [vmem:[%s4 + $0x120] sm:$0xff]
      %v4055 = vld [vmem:[%s4 + $0x128] sm:$0xff]
      %v4056 = vld [vmem:[%s4 + $0x130] sm:$0xff]
      %v4057 = vld [vmem:[%s4 + $0x138] sm:$0xff]
      %v4058 = vld [vmem:[%s4 + $0x140] sm:$0xff]
      %v4059 = vld [vmem:[%s4 + $0x148] sm:$0xff]
      %v4060 = vld [vmem:[%s4 + $0x150] sm:$0xff]
      %v4061 = vld [vmem:[%s4 + $0x158] sm:$0xff]
      %v4062 = vld [vmem:[%s4 + $0x160] sm:$0xff]
      %v4063 = vld [vmem:[%s4 + $0x168] sm:$0xff]
      %v4064 = vld [vmem:[%s4 + $0x170] sm:$0xff]
      %v4065 = vld [vmem:[%s4 + $0x178] sm:$0xff]
      %v4082 = vunpack.c.l.b16 %v4050
      %v4083 = vunpack.c.h.b16 %v4050
      %v4084 = vunpack.c.l.b16 %v4051
      %v4085 = vunpack.c.h.b16 %v4051
      %v4086 = vunpack.c.l.b16 %v4052
      %v4087 = vunpack.c.h.b16 %v4052
      %v4088 = vunpack.c.l.b16 %v4053
      %v4089 = vunpack.c.h.b16 %v4053
      %v4090 = vunpack.c.l.b16 %v4054
      %v4091 = vunpack.c.h.b16 %v4054
      %v4092 = vunpack.c.l.b16 %v4055
      %v4093 = vunpack.c.h.b16 %v4055
      %v4094 = vunpack.c.l.b16 %v4056
      %v4095 = vunpack.c.h.b16 %v4056
      %v4096 = vunpack.c.l.b16 %v4057
      %v4097 = vunpack.c.h.b16 %v4057
      %v4098 = vunpack.c.l.b16 %v4058
      %v4099 = vunpack.c.h.b16 %v4058
      %v4100 = vunpack.c.l.b16 %v4059
      %v4101 = vunpack.c.h.b16 %v4059
      %v4102 = vunpack.c.l.b16 %v4060
      %v4103 = vunpack.c.h.b16 %v4060
      %v4104 = vunpack.c.l.b16 %v4061
      %v4105 = vunpack.c.h.b16 %v4061
      %v4106 = vunpack.c.l.b16 %v4062
      %v4107 = vunpack.c.h.b16 %v4062
      %v4108 = vunpack.c.l.b16 %v4063
      %v4109 = vunpack.c.h.b16 %v4063
      %v4110 = vunpack.c.l.b16 %v4064
      %v4111 = vunpack.c.h.b16 %v4064
      %v4112 = vunpack.c.l.b16 %v4065
      %v4113 = vunpack.c.h.b16 %v4065
      %v4114 = vpack.c.b16 %v4084, %v4082
      %v4115 = vpack.c.b16 %v4085, %v4083
      %v4116 = vpack.c.b16 %v4088, %v4086
      %v4117 = vpack.c.b16 %v4089, %v4087
      %v4118 = vpack.c.b16 %v4092, %v4090
      %v4119 = vpack.c.b16 %v4093, %v4091
      %v4120 = vpack.c.b16 %v4096, %v4094
      %v4121 = vpack.c.b16 %v4097, %v4095
      %v4122 = vpack.c.b16 %v4100, %v4098
      %v4123 = vpack.c.b16 %v4101, %v4099
      %v4124 = vpack.c.b16 %v4104, %v4102
      %v4125 = vpack.c.b16 %v4105, %v4103
      %v4126 = vpack.c.b16 %v4108, %v4106
      %v4127 = vpack.c.b16 %v4109, %v4107
      %v4128 = vpack.c.b16 %v4112, %v4110
      %v4129 = vpack.c.b16 %v4113, %v4111
      %4146 = vmatprep.subr.bf16.mxu0 %v4129
      %4147 = vmatpush1.bf16.msra.mxu0 %v4128
      %4148 = vmatprep.subr.bf16.mxu0 %v4127
      %4149 = vmatpush1.bf16.msra.mxu0 %v4126
      %4150 = vmatprep.subr.bf16.mxu0 %v4125
      %4151 = vmatpush1.bf16.msra.mxu0 %v4124
      %4152 = vmatprep.subr.bf16.mxu0 %v4123
      %4153 = vmatpush1.bf16.msra.mxu0 %v4122
      %4154 = vmatprep.subr.bf16.mxu0 %v4121
      %4155 = vmatpush1.bf16.msra.mxu0 %v4120
      %4156 = vmatprep.subr.bf16.mxu0 %v4119
      %4157 = vmatpush1.bf16.msra.mxu0 %v4118
      %4158 = vmatprep.subr.bf16.mxu0 %v4117
      %4159 = vmatpush1.bf16.msra.mxu0 %v4116
      %4160 = vmatprep.subr.bf16.mxu0 %v4115
      %4161 = vmatpush1.bf16.msra.mxu0 %v4114
      %4162 = vmatprep.subr.bf16.mxu0 0
      %4163 = vmatpush2.bf16.msra.mxu0 0
      %4164 = vmatprep.subr.bf16.mxu0 0
      %4165 = vmatpush2.bf16.msra.mxu0 0
      %4166 = vmatprep.subr.bf16.mxu0 0
      %4167 = vmatpush2.bf16.msra.mxu0 0
      %4168 = vmatprep.subr.bf16.mxu0 0
      %4169 = vmatpush2.bf16.msra.mxu0 0
      %4170 = vmatprep.subr.bf16.mxu0 0
      %4171 = vmatpush2.bf16.msra.mxu0 0
      %4172 = vmatprep.subr.bf16.mxu0 0
      %4173 = vmatpush2.bf16.msra.mxu0 0
      %4174 = vmatprep.subr.bf16.mxu0 0
      %4175 = vmatpush2.bf16.msra.mxu0 0
      %4176 = vmatprep.subr.bf16.mxu0 0
      %4177 = vmatpush2.bf16.msra.mxu0 0
      %4178 = vmatprep.mubr.bf16.mxu0 0
      %4179 = vmatmul.mubr.bf16.gmra.mxu0 %v4034
      %v4180 = vpop.f32.mrf.mxu0
      %v4181 = vadd.f32 0.0, %v4180
      %v4182 = vpop.f32.mrf.mxu0
      %v4183 = vadd.f32 0.0, %v4182
      %v4184 = vpop.f32.mrf.mxu0
      %v4185 = vadd.f32 0.0, %v4184
      %v4186 = vpop.f32.mrf.mxu0
      %v4187 = vadd.f32 0.0, %v4186
      %4188 = vmatprep.mubr.bf16.mxu0 0
      %4189 = vmatmul.mubr.bf16.gmra.mxu0 %v4035
      %v4190 = vpop.f32.mrf.mxu0
      %v4191 = vadd.f32 0.0, %v4190
      %v4192 = vpop.f32.mrf.mxu0
      %v4193 = vadd.f32 0.0, %v4192
      %v4194 = vpop.f32.mrf.mxu0
      %v4195 = vadd.f32 0.0, %v4194
      %v4196 = vpop.f32.mrf.mxu0
      %v4197 = vadd.f32 0.0, %v4196
      %4198 = vmatprep.mubr.bf16.mxu0 0
      %4199 = vmatmul.mubr.bf16.gmra.mxu0 %v4036
      %v4200 = vpop.f32.mrf.mxu0
      %v4201 = vadd.f32 0.0, %v4200
      %v4202 = vpop.f32.mrf.mxu0
      %v4203 = vadd.f32 0.0, %v4202
      %v4204 = vpop.f32.mrf.mxu0
      %v4205 = vadd.f32 0.0, %v4204
      %v4206 = vpop.f32.mrf.mxu0
      %v4207 = vadd.f32 0.0, %v4206
      %4208 = vmatprep.mubr.bf16.mxu0 0
      %4209 = vmatmul.mubr.bf16.gmra.mxu0 %v4037
      %v4210 = vpop.f32.mrf.mxu0
      %v4211 = vadd.f32 0.0, %v4210
      %v4212 = vpop.f32.mrf.mxu0
      %v4213 = vadd.f32 0.0, %v4212
      %v4214 = vpop.f32.mrf.mxu0
      %v4215 = vadd.f32 0.0, %v4214
      %v4216 = vpop.f32.mrf.mxu0
      %v4217 = vadd.f32 0.0, %v4216
      %4218 = vmatprep.mubr.bf16.mxu0 0
      %4219 = vmatmul.mubr.bf16.gmra.mxu0 %v4038
      %v4220 = vpop.f32.mrf.mxu0
      %v4221 = vadd.f32 0.0, %v4220
      %v4222 = vpop.f32.mrf.mxu0
      %v4223 = vadd.f32 0.0, %v4222
      %v4224 = vpop.f32.mrf.mxu0
      %v4225 = vadd.f32 0.0, %v4224
      %v4226 = vpop.f32.mrf.mxu0
      %v4227 = vadd.f32 0.0, %v4226
      %4228 = vmatprep.mubr.bf16.mxu0 0
      %4229 = vmatmul.mubr.bf16.gmra.mxu0 %v4039
      %v4230 = vpop.f32.mrf.mxu0
      %v4231 = vadd.f32 0.0, %v4230
      %v4232 = vpop.f32.mrf.mxu0
      %v4233 = vadd.f32 0.0, %v4232
      %v4234 = vpop.f32.mrf.mxu0
      %v4235 = vadd.f32 0.0, %v4234
      %v4236 = vpop.f32.mrf.mxu0
      %v4237 = vadd.f32 0.0, %v4236
      %4238 = vmatprep.mubr.bf16.mxu0 0
      %4239 = vmatmul.mubr.bf16.gmra.mxu0 %v4040
      %v4240 = vpop.f32.mrf.mxu0
      %v4241 = vadd.f32 0.0, %v4240
      %v4242 = vpop.f32.mrf.mxu0
      %v4243 = vadd.f32 0.0, %v4242
      %v4244 = vpop.f32.mrf.mxu0
      %v4245 = vadd.f32 0.0, %v4244
      %v4246 = vpop.f32.mrf.mxu0
      %v4247 = vadd.f32 0.0, %v4246
      %4248 = vmatprep.mubr.bf16.mxu0 0
      %4249 = vmatmul.mubr.bf16.gmra.mxu0 %v4041
      %v4250 = vpop.f32.mrf.mxu0
      %v4251 = vadd.f32 0.0, %v4250
      %v4252 = vpop.f32.mrf.mxu0
      %v4253 = vadd.f32 0.0, %v4252
      %v4254 = vpop.f32.mrf.mxu0
      %v4255 = vadd.f32 0.0, %v4254
      %v4256 = vpop.f32.mrf.mxu0
      %v4257 = vadd.f32 0.0, %v4256
      %4258 = vmatprep.mubr.bf16.mxu0 0
      %4259 = vmatmul.mubr.bf16.gmra.mxu0 %v4042
      %v4260 = vpop.f32.mrf.mxu0
      %v4261 = vadd.f32 0.0, %v4260
      %v4262 = vpop.f32.mrf.mxu0
      %v4263 = vadd.f32 0.0, %v4262
      %v4264 = vpop.f32.mrf.mxu0
      %v4265 = vadd.f32 0.0, %v4264
      %v4266 = vpop.f32.mrf.mxu0
      %v4267 = vadd.f32 0.0, %v4266
      %4268 = vmatprep.mubr.bf16.mxu0 0
      %4269 = vmatmul.mubr.bf16.gmra.mxu0 %v4043
      %v4270 = vpop.f32.mrf.mxu0
      %v4271 = vadd.f32 0.0, %v4270
      %v4272 = vpop.f32.mrf.mxu0
      %v4273 = vadd.f32 0.0, %v4272
      %v4274 = vpop.f32.mrf.mxu0
      %v4275 = vadd.f32 0.0, %v4274
      %v4276 = vpop.f32.mrf.mxu0
      %v4277 = vadd.f32 0.0, %v4276
      %4278 = vmatprep.mubr.bf16.mxu0 0
      %4279 = vmatmul.mubr.bf16.gmra.mxu0 %v4044
      %v4280 = vpop.f32.mrf.mxu0
      %v4281 = vadd.f32 0.0, %v4280
      %v4282 = vpop.f32.mrf.mxu0
      %v4283 = vadd.f32 0.0, %v4282
      %v4284 = vpop.f32.mrf.mxu0
      %v4285 = vadd.f32 0.0, %v4284
      %v4286 = vpop.f32.mrf.mxu0
      %v4287 = vadd.f32 0.0, %v4286
      %4288 = vmatprep.mubr.bf16.mxu0 0
      %4289 = vmatmul.mubr.bf16.gmra.mxu0 %v4045
      %v4290 = vpop.f32.mrf.mxu0
      %v4291 = vadd.f32 0.0, %v4290
      %v4292 = vpop.f32.mrf.mxu0
      %v4293 = vadd.f32 0.0, %v4292
      %v4294 = vpop.f32.mrf.mxu0
      %v4295 = vadd.f32 0.0, %v4294
      %v4296 = vpop.f32.mrf.mxu0
      %v4297 = vadd.f32 0.0, %v4296
      %4298 = vmatprep.mubr.bf16.mxu0 0
      %4299 = vmatmul.mubr.bf16.gmra.mxu0 %v4046
      %v4300 = vpop.f32.mrf.mxu0
      %v4301 = vadd.f32 0.0, %v4300
      %v4302 = vpop.f32.mrf.mxu0
      %v4303 = vadd.f32 0.0, %v4302
      %v4304 = vpop.f32.mrf.mxu0
      %v4305 = vadd.f32 0.0, %v4304
      %v4306 = vpop.f32.mrf.mxu0
      %v4307 = vadd.f32 0.0, %v4306
      %4308 = vmatprep.mubr.bf16.mxu0 0
      %4309 = vmatmul.mubr.bf16.gmra.mxu0 %v4047
      %v4310 = vpop.f32.mrf.mxu0
      %v4311 = vadd.f32 0.0, %v4310
      %v4312 = vpop.f32.mrf.mxu0
      %v4313 = vadd.f32 0.0, %v4312
      %v4314 = vpop.f32.mrf.mxu0
      %v4315 = vadd.f32 0.0, %v4314
      %v4316 = vpop.f32.mrf.mxu0
      %v4317 = vadd.f32 0.0, %v4316
      %4318 = vmatprep.mubr.bf16.mxu0 0
      %4319 = vmatmul.mubr.bf16.gmra.mxu0 %v4048
      %v4320 = vpop.f32.mrf.mxu0
      %v4321 = vadd.f32 0.0, %v4320
      %v4322 = vpop.f32.mrf.mxu0
      %v4323 = vadd.f32 0.0, %v4322
      %v4324 = vpop.f32.mrf.mxu0
      %v4325 = vadd.f32 0.0, %v4324
      %v4326 = vpop.f32.mrf.mxu0
      %v4327 = vadd.f32 0.0, %v4326
      %4328 = vmatprep.mubr.bf16.mxu0 0
      %4329 = vmatmul.mubr.bf16.gmra.mxu0 %v4049
      %v4330 = vpop.f32.mrf.mxu0
      %v4331 = vadd.f32 0.0, %v4330
      %v4332 = vpop.f32.mrf.mxu0
      %v4333 = vadd.f32 0.0, %v4332
      %v4334 = vpop.f32.mrf.mxu0
      %v4335 = vadd.f32 0.0, %v4334
      %v4336 = vpop.f32.mrf.mxu0
      %v4337 = vadd.f32 0.0, %v4336
      %4338 = vdwg.mxu0
      %v4339 = vadd.f32 %v3844, %v4181
      %v4340 = vadd.f32 %v3846, %v4183
      %v4341 = vadd.f32 %v3848, %v4185
      %v4342 = vadd.f32 %v3850, %v4187
      %v4343 = vadd.f32 %v3854, %v4191
      %v4344 = vadd.f32 %v3856, %v4193
      %v4345 = vadd.f32 %v3858, %v4195
      %v4346 = vadd.f32 %v3860, %v4197
      %v4347 = vadd.f32 %v3864, %v4201
      %v4348 = vadd.f32 %v3866, %v4203
      %v4349 = vadd.f32 %v3868, %v4205
      %v4350 = vadd.f32 %v3870, %v4207
      %v4351 = vadd.f32 %v3874, %v4211
      %v4352 = vadd.f32 %v3876, %v4213
      %v4353 = vadd.f32 %v3878, %v4215
      %v4354 = vadd.f32 %v3880, %v4217
      %v4355 = vadd.f32 %v3884, %v4221
      %v4356 = vadd.f32 %v3886, %v4223
      %v4357 = vadd.f32 %v3888, %v4225
      %v4358 = vadd.f32 %v3890, %v4227
      %v4359 = vadd.f32 %v3894, %v4231
      %v4360 = vadd.f32 %v3896, %v4233
      %v4361 = vadd.f32 %v3898, %v4235
      %v4362 = vadd.f32 %v3900, %v4237
      %v4363 = vadd.f32 %v3904, %v4241
      %v4364 = vadd.f32 %v3906, %v4243
      %v4365 = vadd.f32 %v3908, %v4245
      %v4366 = vadd.f32 %v3910, %v4247
      %v4367 = vadd.f32 %v3914, %v4251
      %v4368 = vadd.f32 %v3916, %v4253
      %v4369 = vadd.f32 %v3918, %v4255
      %v4370 = vadd.f32 %v3920, %v4257
      %v4371 = vadd.f32 %v3924, %v4261
      %v4372 = vadd.f32 %v3926, %v4263
      %v4373 = vadd.f32 %v3928, %v4265
      %v4374 = vadd.f32 %v3930, %v4267
      %v4375 = vadd.f32 %v3934, %v4271
      %v4376 = vadd.f32 %v3936, %v4273
      %v4377 = vadd.f32 %v3938, %v4275
      %v4378 = vadd.f32 %v3940, %v4277
      %v4379 = vadd.f32 %v3944, %v4281
      %v4380 = vadd.f32 %v3946, %v4283
      %v4381 = vadd.f32 %v3948, %v4285
      %v4382 = vadd.f32 %v3950, %v4287
      %v4383 = vadd.f32 %v3954, %v4291
      %v4384 = vadd.f32 %v3956, %v4293
      %v4385 = vadd.f32 %v3958, %v4295
      %v4386 = vadd.f32 %v3960, %v4297
      %v4387 = vadd.f32 %v3964, %v4301
      %v4388 = vadd.f32 %v3966, %v4303
      %v4389 = vadd.f32 %v3968, %v4305
      %v4390 = vadd.f32 %v3970, %v4307
      %v4391 = vadd.f32 %v3974, %v4311
      %v4392 = vadd.f32 %v3976, %v4313
      %v4393 = vadd.f32 %v3978, %v4315
      %v4394 = vadd.f32 %v3980, %v4317
      %v4395 = vadd.f32 %v3984, %v4321
      %v4396 = vadd.f32 %v3986, %v4323
      %v4397 = vadd.f32 %v3988, %v4325
      %v4398 = vadd.f32 %v3990, %v4327
      %v4399 = vadd.f32 %v3994, %v4331
      %v4400 = vadd.f32 %v3996, %v4333
      %v4401 = vadd.f32 %v3998, %v4335
      %v4402 = vadd.f32 %v4000, %v4337
      %v4403 = vld [vmem:[%s3295] sm:$0xff]
      %v4404 = vld [vmem:[%s3295 + $0x8] sm:$0xff]
      %v4405 = vld [vmem:[%s3295 + $0x18] sm:$0xff]
      %v4406 = vld [vmem:[%s3295 + $0x20] sm:$0xff]
      %v4407 = vld [vmem:[%s3295 + $0x30] sm:$0xff]
      %v4408 = vld [vmem:[%s3295 + $0x38] sm:$0xff]
      %v4409 = vld [vmem:[%s3295 + $0x48] sm:$0xff]
      %v4410 = vld [vmem:[%s3295 + $0x50] sm:$0xff]
      %v4411 = vld [vmem:[%s3295 + $0x60] sm:$0xff]
      %v4412 = vld [vmem:[%s3295 + $0x68] sm:$0xff]
      %v4413 = vld [vmem:[%s3295 + $0x78] sm:$0xff]
      %v4414 = vld [vmem:[%s3295 + $0x80] sm:$0xff]
      %v4415 = vld [vmem:[%s3295 + $0x90] sm:$0xff]
      %v4416 = vld [vmem:[%s3295 + $0x98] sm:$0xff]
      %v4417 = vld [vmem:[%s3295 + $0xa8] sm:$0xff]
      %v4418 = vld [vmem:[%s3295 + $0xb0] sm:$0xff]
      %v4419 = vld [vmem:[%s3295 + $0xc0] sm:$0xff]
      %v4420 = vld [vmem:[%s3295 + $0xc8] sm:$0xff]
      %v4421 = vld [vmem:[%s3295 + $0xd8] sm:$0xff]
      %v4422 = vld [vmem:[%s3295 + $0xe0] sm:$0xff]
      %v4423 = vld [vmem:[%s3295 + $0xf0] sm:$0xff]
      %v4424 = vld [vmem:[%s3295 + $0xf8] sm:$0xff]
      %v4425 = vld [vmem:[%s3295 + $0x108] sm:$0xff]
      %v4426 = vld [vmem:[%s3295 + $0x110] sm:$0xff]
      %v4427 = vld [vmem:[%s3295 + $0x120] sm:$0xff]
      %v4428 = vld [vmem:[%s3295 + $0x128] sm:$0xff]
      %v4429 = vld [vmem:[%s3295 + $0x138] sm:$0xff]
      %v4430 = vld [vmem:[%s3295 + $0x140] sm:$0xff]
      %v4431 = vld [vmem:[%s3295 + $0x150] sm:$0xff]
      %v4432 = vld [vmem:[%s3295 + $0x158] sm:$0xff]
      %v4433 = vld [vmem:[%s3295 + $0x168] sm:$0xff]
      %v4434 = vld [vmem:[%s3295 + $0x170] sm:$0xff]
      %v4435 = vpack.c.bf16 %v4404, %v4403
      %v4436 = vpack.c.bf16 %v4406, %v4405
      %v4437 = vpack.c.bf16 %v4408, %v4407
      %v4438 = vpack.c.bf16 %v4410, %v4409
      %v4439 = vpack.c.bf16 %v4412, %v4411
      %v4440 = vpack.c.bf16 %v4414, %v4413
      %v4441 = vpack.c.bf16 %v4416, %v4415
      %v4442 = vpack.c.bf16 %v4418, %v4417
      %v4443 = vpack.c.bf16 %v4420, %v4419
      %v4444 = vpack.c.bf16 %v4422, %v4421
      %v4445 = vpack.c.bf16 %v4424, %v4423
      %v4446 = vpack.c.bf16 %v4426, %v4425
      %v4447 = vpack.c.bf16 %v4428, %v4427
      %v4448 = vpack.c.bf16 %v4430, %v4429
      %v4449 = vpack.c.bf16 %v4432, %v4431
      %v4450 = vpack.c.bf16 %v4434, %v4433
      %v4451 = vld [vmem:[%s4 + $0x180] sm:$0xff]
      %v4452 = vld [vmem:[%s4 + $0x188] sm:$0xff]
      %v4453 = vld [vmem:[%s4 + $0x190] sm:$0xff]
      %v4454 = vld [vmem:[%s4 + $0x198] sm:$0xff]
      %v4455 = vld [vmem:[%s4 + $0x1a0] sm:$0xff]
      %v4456 = vld [vmem:[%s4 + $0x1a8] sm:$0xff]
      %v4457 = vld [vmem:[%s4 + $0x1b0] sm:$0xff]
      %v4458 = vld [vmem:[%s4 + $0x1b8] sm:$0xff]
      %v4459 = vld [vmem:[%s4 + $0x1c0] sm:$0xff]
      %v4460 = vld [vmem:[%s4 + $0x1c8] sm:$0xff]
      %v4461 = vld [vmem:[%s4 + $0x1d0] sm:$0xff]
      %v4462 = vld [vmem:[%s4 + $0x1d8] sm:$0xff]
      %v4463 = vld [vmem:[%s4 + $0x1e0] sm:$0xff]
      %v4464 = vld [vmem:[%s4 + $0x1e8] sm:$0xff]
      %v4465 = vld [vmem:[%s4 + $0x1f0] sm:$0xff]
      %v4466 = vld [vmem:[%s4 + $0x1f8] sm:$0xff]
      %v4483 = vunpack.c.l.b16 %v4451
      %v4484 = vunpack.c.h.b16 %v4451
      %v4485 = vunpack.c.l.b16 %v4452
      %v4486 = vunpack.c.h.b16 %v4452
      %v4487 = vunpack.c.l.b16 %v4453
      %v4488 = vunpack.c.h.b16 %v4453
      %v4489 = vunpack.c.l.b16 %v4454
      %v4490 = vunpack.c.h.b16 %v4454
      %v4491 = vunpack.c.l.b16 %v4455
      %v4492 = vunpack.c.h.b16 %v4455
      %v4493 = vunpack.c.l.b16 %v4456
      %v4494 = vunpack.c.h.b16 %v4456
      %v4495 = vunpack.c.l.b16 %v4457
      %v4496 = vunpack.c.h.b16 %v4457
      %v4497 = vunpack.c.l.b16 %v4458
      %v4498 = vunpack.c.h.b16 %v4458
      %v4499 = vunpack.c.l.b16 %v4459
      %v4500 = vunpack.c.h.b16 %v4459
      %v4501 = vunpack.c.l.b16 %v4460
      %v4502 = vunpack.c.h.b16 %v4460
      %v4503 = vunpack.c.l.b16 %v4461
      %v4504 = vunpack.c.h.b16 %v4461
      %v4505 = vunpack.c.l.b16 %v4462
      %v4506 = vunpack.c.h.b16 %v4462
      %v4507 = vunpack.c.l.b16 %v4463
      %v4508 = vunpack.c.h.b16 %v4463
      %v4509 = vunpack.c.l.b16 %v4464
      %v4510 = vunpack.c.h.b16 %v4464
      %v4511 = vunpack.c.l.b16 %v4465
      %v4512 = vunpack.c.h.b16 %v4465
      %v4513 = vunpack.c.l.b16 %v4466
      %v4514 = vunpack.c.h.b16 %v4466
      %v4515 = vpack.c.b16 %v4485, %v4483
      %v4516 = vpack.c.b16 %v4486, %v4484
      %v4517 = vpack.c.b16 %v4489, %v4487
      %v4518 = vpack.c.b16 %v4490, %v4488
      %v4519 = vpack.c.b16 %v4493, %v4491
      %v4520 = vpack.c.b16 %v4494, %v4492
      %v4521 = vpack.c.b16 %v4497, %v4495
      %v4522 = vpack.c.b16 %v4498, %v4496
      %v4523 = vpack.c.b16 %v4501, %v4499
      %v4524 = vpack.c.b16 %v4502, %v4500
      %v4525 = vpack.c.b16 %v4505, %v4503
      %v4526 = vpack.c.b16 %v4506, %v4504
      %v4527 = vpack.c.b16 %v4509, %v4507
      %v4528 = vpack.c.b16 %v4510, %v4508
      %v4529 = vpack.c.b16 %v4513, %v4511
      %v4530 = vpack.c.b16 %v4514, %v4512
      %4547 = vmatprep.subr.bf16.mxu0 %v4530
      %4548 = vmatpush1.bf16.msra.mxu0 %v4529
      %4549 = vmatprep.subr.bf16.mxu0 %v4528
      %4550 = vmatpush1.bf16.msra.mxu0 %v4527
      %4551 = vmatprep.subr.bf16.mxu0 %v4526
      %4552 = vmatpush1.bf16.msra.mxu0 %v4525
      %4553 = vmatprep.subr.bf16.mxu0 %v4524
      %4554 = vmatpush1.bf16.msra.mxu0 %v4523
      %4555 = vmatprep.subr.bf16.mxu0 %v4522
      %4556 = vmatpush1.bf16.msra.mxu0 %v4521
      %4557 = vmatprep.subr.bf16.mxu0 %v4520
      %4558 = vmatpush1.bf16.msra.mxu0 %v4519
      %4559 = vmatprep.subr.bf16.mxu0 %v4518
      %4560 = vmatpush1.bf16.msra.mxu0 %v4517
      %4561 = vmatprep.subr.bf16.mxu0 %v4516
      %4562 = vmatpush1.bf16.msra.mxu0 %v4515
      %4563 = vmatprep.subr.bf16.mxu0 0
      %4564 = vmatpush2.bf16.msra.mxu0 0
      %4565 = vmatprep.subr.bf16.mxu0 0
      %4566 = vmatpush2.bf16.msra.mxu0 0
      %4567 = vmatprep.subr.bf16.mxu0 0
      %4568 = vmatpush2.bf16.msra.mxu0 0
      %4569 = vmatprep.subr.bf16.mxu0 0
      %4570 = vmatpush2.bf16.msra.mxu0 0
      %4571 = vmatprep.subr.bf16.mxu0 0
      %4572 = vmatpush2.bf16.msra.mxu0 0
      %4573 = vmatprep.subr.bf16.mxu0 0
      %4574 = vmatpush2.bf16.msra.mxu0 0
      %4575 = vmatprep.subr.bf16.mxu0 0
      %4576 = vmatpush2.bf16.msra.mxu0 0
      %4577 = vmatprep.subr.bf16.mxu0 0
      %4578 = vmatpush2.bf16.msra.mxu0 0
      %4579 = vmatprep.mubr.bf16.mxu0 0
      %4580 = vmatmul.mubr.bf16.gmra.mxu0 %v4435
      %v4581 = vpop.f32.mrf.mxu0
      %v4582 = vadd.f32 0.0, %v4581
      %v4583 = vpop.f32.mrf.mxu0
      %v4584 = vadd.f32 0.0, %v4583
      %v4585 = vpop.f32.mrf.mxu0
      %v4586 = vadd.f32 0.0, %v4585
      %v4587 = vpop.f32.mrf.mxu0
      %v4588 = vadd.f32 0.0, %v4587
      %4589 = vmatprep.mubr.bf16.mxu0 0
      %4590 = vmatmul.mubr.bf16.gmra.mxu0 %v4436
      %v4591 = vpop.f32.mrf.mxu0
      %v4592 = vadd.f32 0.0, %v4591
      %v4593 = vpop.f32.mrf.mxu0
      %v4594 = vadd.f32 0.0, %v4593
      %v4595 = vpop.f32.mrf.mxu0
      %v4596 = vadd.f32 0.0, %v4595
      %v4597 = vpop.f32.mrf.mxu0
      %v4598 = vadd.f32 0.0, %v4597
      %4599 = vmatprep.mubr.bf16.mxu0 0
      %4600 = vmatmul.mubr.bf16.gmra.mxu0 %v4437
      %v4601 = vpop.f32.mrf.mxu0
      %v4602 = vadd.f32 0.0, %v4601
      %v4603 = vpop.f32.mrf.mxu0
      %v4604 = vadd.f32 0.0, %v4603
      %v4605 = vpop.f32.mrf.mxu0
      %v4606 = vadd.f32 0.0, %v4605
      %v4607 = vpop.f32.mrf.mxu0
      %v4608 = vadd.f32 0.0, %v4607
      %4609 = vmatprep.mubr.bf16.mxu0 0
      %4610 = vmatmul.mubr.bf16.gmra.mxu0 %v4438
      %v4611 = vpop.f32.mrf.mxu0
      %v4612 = vadd.f32 0.0, %v4611
      %v4613 = vpop.f32.mrf.mxu0
      %v4614 = vadd.f32 0.0, %v4613
      %v4615 = vpop.f32.mrf.mxu0
      %v4616 = vadd.f32 0.0, %v4615
      %v4617 = vpop.f32.mrf.mxu0
      %v4618 = vadd.f32 0.0, %v4617
      %4619 = vmatprep.mubr.bf16.mxu0 0
      %4620 = vmatmul.mubr.bf16.gmra.mxu0 %v4439
      %v4621 = vpop.f32.mrf.mxu0
      %v4622 = vadd.f32 0.0, %v4621
      %v4623 = vpop.f32.mrf.mxu0
      %v4624 = vadd.f32 0.0, %v4623
      %v4625 = vpop.f32.mrf.mxu0
      %v4626 = vadd.f32 0.0, %v4625
      %v4627 = vpop.f32.mrf.mxu0
      %v4628 = vadd.f32 0.0, %v4627
      %4629 = vmatprep.mubr.bf16.mxu0 0
      %4630 = vmatmul.mubr.bf16.gmra.mxu0 %v4440
      %v4631 = vpop.f32.mrf.mxu0
      %v4632 = vadd.f32 0.0, %v4631
      %v4633 = vpop.f32.mrf.mxu0
      %v4634 = vadd.f32 0.0, %v4633
      %v4635 = vpop.f32.mrf.mxu0
      %v4636 = vadd.f32 0.0, %v4635
      %v4637 = vpop.f32.mrf.mxu0
      %v4638 = vadd.f32 0.0, %v4637
      %4639 = vmatprep.mubr.bf16.mxu0 0
      %4640 = vmatmul.mubr.bf16.gmra.mxu0 %v4441
      %v4641 = vpop.f32.mrf.mxu0
      %v4642 = vadd.f32 0.0, %v4641
      %v4643 = vpop.f32.mrf.mxu0
      %v4644 = vadd.f32 0.0, %v4643
      %v4645 = vpop.f32.mrf.mxu0
      %v4646 = vadd.f32 0.0, %v4645
      %v4647 = vpop.f32.mrf.mxu0
      %v4648 = vadd.f32 0.0, %v4647
      %4649 = vmatprep.mubr.bf16.mxu0 0
      %4650 = vmatmul.mubr.bf16.gmra.mxu0 %v4442
      %v4651 = vpop.f32.mrf.mxu0
      %v4652 = vadd.f32 0.0, %v4651
      %v4653 = vpop.f32.mrf.mxu0
      %v4654 = vadd.f32 0.0, %v4653
      %v4655 = vpop.f32.mrf.mxu0
      %v4656 = vadd.f32 0.0, %v4655
      %v4657 = vpop.f32.mrf.mxu0
      %v4658 = vadd.f32 0.0, %v4657
      %4659 = vmatprep.mubr.bf16.mxu0 0
      %4660 = vmatmul.mubr.bf16.gmra.mxu0 %v4443
      %v4661 = vpop.f32.mrf.mxu0
      %v4662 = vadd.f32 0.0, %v4661
      %v4663 = vpop.f32.mrf.mxu0
      %v4664 = vadd.f32 0.0, %v4663
      %v4665 = vpop.f32.mrf.mxu0
      %v4666 = vadd.f32 0.0, %v4665
      %v4667 = vpop.f32.mrf.mxu0
      %v4668 = vadd.f32 0.0, %v4667
      %4669 = vmatprep.mubr.bf16.mxu0 0
      %4670 = vmatmul.mubr.bf16.gmra.mxu0 %v4444
      %v4671 = vpop.f32.mrf.mxu0
      %v4672 = vadd.f32 0.0, %v4671
      %v4673 = vpop.f32.mrf.mxu0
      %v4674 = vadd.f32 0.0, %v4673
      %v4675 = vpop.f32.mrf.mxu0
      %v4676 = vadd.f32 0.0, %v4675
      %v4677 = vpop.f32.mrf.mxu0
      %v4678 = vadd.f32 0.0, %v4677
      %4679 = vmatprep.mubr.bf16.mxu0 0
      %4680 = vmatmul.mubr.bf16.gmra.mxu0 %v4445
      %v4681 = vpop.f32.mrf.mxu0
      %v4682 = vadd.f32 0.0, %v4681
      %v4683 = vpop.f32.mrf.mxu0
      %v4684 = vadd.f32 0.0, %v4683
      %v4685 = vpop.f32.mrf.mxu0
      %v4686 = vadd.f32 0.0, %v4685
      %v4687 = vpop.f32.mrf.mxu0
      %v4688 = vadd.f32 0.0, %v4687
      %4689 = vmatprep.mubr.bf16.mxu0 0
      %4690 = vmatmul.mubr.bf16.gmra.mxu0 %v4446
      %v4691 = vpop.f32.mrf.mxu0
      %v4692 = vadd.f32 0.0, %v4691
      %v4693 = vpop.f32.mrf.mxu0
      %v4694 = vadd.f32 0.0, %v4693
      %v4695 = vpop.f32.mrf.mxu0
      %v4696 = vadd.f32 0.0, %v4695
      %v4697 = vpop.f32.mrf.mxu0
      %v4698 = vadd.f32 0.0, %v4697
      %4699 = vmatprep.mubr.bf16.mxu0 0
      %4700 = vmatmul.mubr.bf16.gmra.mxu0 %v4447
      %v4701 = vpop.f32.mrf.mxu0
      %v4702 = vadd.f32 0.0, %v4701
      %v4703 = vpop.f32.mrf.mxu0
      %v4704 = vadd.f32 0.0, %v4703
      %v4705 = vpop.f32.mrf.mxu0
      %v4706 = vadd.f32 0.0, %v4705
      %v4707 = vpop.f32.mrf.mxu0
      %v4708 = vadd.f32 0.0, %v4707
      %4709 = vmatprep.mubr.bf16.mxu0 0
      %4710 = vmatmul.mubr.bf16.gmra.mxu0 %v4448
      %v4711 = vpop.f32.mrf.mxu0
      %v4712 = vadd.f32 0.0, %v4711
      %v4713 = vpop.f32.mrf.mxu0
      %v4714 = vadd.f32 0.0, %v4713
      %v4715 = vpop.f32.mrf.mxu0
      %v4716 = vadd.f32 0.0, %v4715
      %v4717 = vpop.f32.mrf.mxu0
      %v4718 = vadd.f32 0.0, %v4717
      %4719 = vmatprep.mubr.bf16.mxu0 0
      %4720 = vmatmul.mubr.bf16.gmra.mxu0 %v4449
      %v4721 = vpop.f32.mrf.mxu0
      %v4722 = vadd.f32 0.0, %v4721
      %v4723 = vpop.f32.mrf.mxu0
      %v4724 = vadd.f32 0.0, %v4723
      %v4725 = vpop.f32.mrf.mxu0
      %v4726 = vadd.f32 0.0, %v4725
      %v4727 = vpop.f32.mrf.mxu0
      %v4728 = vadd.f32 0.0, %v4727
      %4729 = vmatprep.mubr.bf16.mxu0 0
      %4730 = vmatmul.mubr.bf16.gmra.mxu0 %v4450
      %v4731 = vpop.f32.mrf.mxu0
      %v4732 = vadd.f32 0.0, %v4731
      %v4733 = vpop.f32.mrf.mxu0
      %v4734 = vadd.f32 0.0, %v4733
      %v4735 = vpop.f32.mrf.mxu0
      %v4736 = vadd.f32 0.0, %v4735
      %v4737 = vpop.f32.mrf.mxu0
      %v4738 = vadd.f32 0.0, %v4737
      %4739 = vdwg.mxu0
      %v4740 = vadd.f32 %v4339, %v4582
      %v4741 = vadd.f32 %v4340, %v4584
      %v4742 = vadd.f32 %v4341, %v4586
      %v4743 = vadd.f32 %v4342, %v4588
      %v4744 = vadd.f32 %v4343, %v4592
      %v4745 = vadd.f32 %v4344, %v4594
      %v4746 = vadd.f32 %v4345, %v4596
      %v4747 = vadd.f32 %v4346, %v4598
      %v4748 = vadd.f32 %v4347, %v4602
      %v4749 = vadd.f32 %v4348, %v4604
      %v4750 = vadd.f32 %v4349, %v4606
      %v4751 = vadd.f32 %v4350, %v4608
      %v4752 = vadd.f32 %v4351, %v4612
      %v4753 = vadd.f32 %v4352, %v4614
      %v4754 = vadd.f32 %v4353, %v4616
      %v4755 = vadd.f32 %v4354, %v4618
      %v4756 = vadd.f32 %v4355, %v4622
      %v4757 = vadd.f32 %v4356, %v4624
      %v4758 = vadd.f32 %v4357, %v4626
      %v4759 = vadd.f32 %v4358, %v4628
      %v4760 = vadd.f32 %v4359, %v4632
      %v4761 = vadd.f32 %v4360, %v4634
      %v4762 = vadd.f32 %v4361, %v4636
      %v4763 = vadd.f32 %v4362, %v4638
      %v4764 = vadd.f32 %v4363, %v4642
      %v4765 = vadd.f32 %v4364, %v4644
      %v4766 = vadd.f32 %v4365, %v4646
      %v4767 = vadd.f32 %v4366, %v4648
      %v4768 = vadd.f32 %v4367, %v4652
      %v4769 = vadd.f32 %v4368, %v4654
      %v4770 = vadd.f32 %v4369, %v4656
      %v4771 = vadd.f32 %v4370, %v4658
      %v4772 = vadd.f32 %v4371, %v4662
      %v4773 = vadd.f32 %v4372, %v4664
      %v4774 = vadd.f32 %v4373, %v4666
      %v4775 = vadd.f32 %v4374, %v4668
      %v4776 = vadd.f32 %v4375, %v4672
      %v4777 = vadd.f32 %v4376, %v4674
      %v4778 = vadd.f32 %v4377, %v4676
      %v4779 = vadd.f32 %v4378, %v4678
      %v4780 = vadd.f32 %v4379, %v4682
      %v4781 = vadd.f32 %v4380, %v4684
      %v4782 = vadd.f32 %v4381, %v4686
      %v4783 = vadd.f32 %v4382, %v4688
      %v4784 = vadd.f32 %v4383, %v4692
      %v4785 = vadd.f32 %v4384, %v4694
      %v4786 = vadd.f32 %v4385, %v4696
      %v4787 = vadd.f32 %v4386, %v4698
      %v4788 = vadd.f32 %v4387, %v4702
      %v4789 = vadd.f32 %v4388, %v4704
      %v4790 = vadd.f32 %v4389, %v4706
      %v4791 = vadd.f32 %v4390, %v4708
      %v4792 = vadd.f32 %v4391, %v4712
      %v4793 = vadd.f32 %v4392, %v4714
      %v4794 = vadd.f32 %v4393, %v4716
      %v4795 = vadd.f32 %v4394, %v4718
      %v4796 = vadd.f32 %v4395, %v4722
      %v4797 = vadd.f32 %v4396, %v4724
      %v4798 = vadd.f32 %v4397, %v4726
      %v4799 = vadd.f32 %v4398, %v4728
      %v4800 = vadd.f32 %v4399, %v4732
      %v4801 = vadd.f32 %v4400, %v4734
      %v4802 = vadd.f32 %v4401, %v4736
      %v4803 = vadd.f32 %v4402, %v4738
      %v4804 = vld [vmem:[%s3295 + $0x1] sm:$0xff]
      %v4805 = vld [vmem:[%s3295 + $0x9] sm:$0xff]
      %v4806 = vld [vmem:[%s3295 + $0x19] sm:$0xff]
      %v4807 = vld [vmem:[%s3295 + $0x21] sm:$0xff]
      %v4808 = vld [vmem:[%s3295 + $0x31] sm:$0xff]
      %v4809 = vld [vmem:[%s3295 + $0x39] sm:$0xff]
      %v4810 = vld [vmem:[%s3295 + $0x49] sm:$0xff]
      %v4811 = vld [vmem:[%s3295 + $0x51] sm:$0xff]
      %v4812 = vld [vmem:[%s3295 + $0x61] sm:$0xff]
      %v4813 = vld [vmem:[%s3295 + $0x69] sm:$0xff]
      %v4814 = vld [vmem:[%s3295 + $0x79] sm:$0xff]
      %v4815 = vld [vmem:[%s3295 + $0x81] sm:$0xff]
      %v4816 = vld [vmem:[%s3295 + $0x91] sm:$0xff]
      %v4817 = vld [vmem:[%s3295 + $0x99] sm:$0xff]
      %v4818 = vld [vmem:[%s3295 + $0xa9] sm:$0xff]
      %v4819 = vld [vmem:[%s3295 + $0xb1] sm:$0xff]
      %v4820 = vld [vmem:[%s3295 + $0xc1] sm:$0xff]
      %v4821 = vld [vmem:[%s3295 + $0xc9] sm:$0xff]
      %v4822 = vld [vmem:[%s3295 + $0xd9] sm:$0xff]
      %v4823 = vld [vmem:[%s3295 + $0xe1] sm:$0xff]
      %v4824 = vld [vmem:[%s3295 + $0xf1] sm:$0xff]
      %v4825 = vld [vmem:[%s3295 + $0xf9] sm:$0xff]
      %v4826 = vld [vmem:[%s3295 + $0x109] sm:$0xff]
      %v4827 = vld [vmem:[%s3295 + $0x111] sm:$0xff]
      %v4828 = vld [vmem:[%s3295 + $0x121] sm:$0xff]
      %v4829 = vld [vmem:[%s3295 + $0x129] sm:$0xff]
      %v4830 = vld [vmem:[%s3295 + $0x139] sm:$0xff]
      %v4831 = vld [vmem:[%s3295 + $0x141] sm:$0xff]
      %v4832 = vld [vmem:[%s3295 + $0x151] sm:$0xff]
      %v4833 = vld [vmem:[%s3295 + $0x159] sm:$0xff]
      %v4834 = vld [vmem:[%s3295 + $0x169] sm:$0xff]
      %v4835 = vld [vmem:[%s3295 + $0x171] sm:$0xff]
      %v4836 = vpack.c.bf16 %v4805, %v4804
      %v4837 = vpack.c.bf16 %v4807, %v4806
      %v4838 = vpack.c.bf16 %v4809, %v4808
      %v4839 = vpack.c.bf16 %v4811, %v4810
      %v4840 = vpack.c.bf16 %v4813, %v4812
      %v4841 = vpack.c.bf16 %v4815, %v4814
      %v4842 = vpack.c.bf16 %v4817, %v4816
      %v4843 = vpack.c.bf16 %v4819, %v4818
      %v4844 = vpack.c.bf16 %v4821, %v4820
      %v4845 = vpack.c.bf16 %v4823, %v4822
      %v4846 = vpack.c.bf16 %v4825, %v4824
      %v4847 = vpack.c.bf16 %v4827, %v4826
      %v4848 = vpack.c.bf16 %v4829, %v4828
      %v4849 = vpack.c.bf16 %v4831, %v4830
      %v4850 = vpack.c.bf16 %v4833, %v4832
      %v4851 = vpack.c.bf16 %v4835, %v4834
      %v4852 = vld [vmem:[%s4 + $0x200] sm:$0xff]
      %v4853 = vld [vmem:[%s4 + $0x208] sm:$0xff]
      %v4854 = vld [vmem:[%s4 + $0x210] sm:$0xff]
      %v4855 = vld [vmem:[%s4 + $0x218] sm:$0xff]
      %v4856 = vld [vmem:[%s4 + $0x220] sm:$0xff]
      %v4857 = vld [vmem:[%s4 + $0x228] sm:$0xff]
      %v4858 = vld [vmem:[%s4 + $0x230] sm:$0xff]
      %v4859 = vld [vmem:[%s4 + $0x238] sm:$0xff]
      %v4860 = vld [vmem:[%s4 + $0x240] sm:$0xff]
      %v4861 = vld [vmem:[%s4 + $0x248] sm:$0xff]
      %v4862 = vld [vmem:[%s4 + $0x250] sm:$0xff]
      %v4863 = vld [vmem:[%s4 + $0x258] sm:$0xff]
      %v4864 = vld [vmem:[%s4 + $0x260] sm:$0xff]
      %v4865 = vld [vmem:[%s4 + $0x268] sm:$0xff]
      %v4866 = vld [vmem:[%s4 + $0x270] sm:$0xff]
      %v4867 = vld [vmem:[%s4 + $0x278] sm:$0xff]
      %v4884 = vunpack.c.l.b16 %v4852
      %v4885 = vunpack.c.h.b16 %v4852
      %v4886 = vunpack.c.l.b16 %v4853
      %v4887 = vunpack.c.h.b16 %v4853
      %v4888 = vunpack.c.l.b16 %v4854
      %v4889 = vunpack.c.h.b16 %v4854
      %v4890 = vunpack.c.l.b16 %v4855
      %v4891 = vunpack.c.h.b16 %v4855
      %v4892 = vunpack.c.l.b16 %v4856
      %v4893 = vunpack.c.h.b16 %v4856
      %v4894 = vunpack.c.l.b16 %v4857
      %v4895 = vunpack.c.h.b16 %v4857
      %v4896 = vunpack.c.l.b16 %v4858
      %v4897 = vunpack.c.h.b16 %v4858
      %v4898 = vunpack.c.l.b16 %v4859
      %v4899 = vunpack.c.h.b16 %v4859
      %v4900 = vunpack.c.l.b16 %v4860
      %v4901 = vunpack.c.h.b16 %v4860
      %v4902 = vunpack.c.l.b16 %v4861
      %v4903 = vunpack.c.h.b16 %v4861
      %v4904 = vunpack.c.l.b16 %v4862
      %v4905 = vunpack.c.h.b16 %v4862
      %v4906 = vunpack.c.l.b16 %v4863
      %v4907 = vunpack.c.h.b16 %v4863
      %v4908 = vunpack.c.l.b16 %v4864
      %v4909 = vunpack.c.h.b16 %v4864
      %v4910 = vunpack.c.l.b16 %v4865
      %v4911 = vunpack.c.h.b16 %v4865
      %v4912 = vunpack.c.l.b16 %v4866
      %v4913 = vunpack.c.h.b16 %v4866
      %v4914 = vunpack.c.l.b16 %v4867
      %v4915 = vunpack.c.h.b16 %v4867
      %v4916 = vpack.c.b16 %v4886, %v4884
      %v4917 = vpack.c.b16 %v4887, %v4885
      %v4918 = vpack.c.b16 %v4890, %v4888
      %v4919 = vpack.c.b16 %v4891, %v4889
      %v4920 = vpack.c.b16 %v4894, %v4892
      %v4921 = vpack.c.b16 %v4895, %v4893
      %v4922 = vpack.c.b16 %v4898, %v4896
      %v4923 = vpack.c.b16 %v4899, %v4897
      %v4924 = vpack.c.b16 %v4902, %v4900
      %v4925 = vpack.c.b16 %v4903, %v4901
      %v4926 = vpack.c.b16 %v4906, %v4904
      %v4927 = vpack.c.b16 %v4907, %v4905
      %v4928 = vpack.c.b16 %v4910, %v4908
      %v4929 = vpack.c.b16 %v4911, %v4909
      %v4930 = vpack.c.b16 %v4914, %v4912
      %v4931 = vpack.c.b16 %v4915, %v4913
      %4948 = vmatprep.subr.bf16.mxu0 %v4931
      %4949 = vmatpush1.bf16.msra.mxu0 %v4930
      %4950 = vmatprep.subr.bf16.mxu0 %v4929
      %4951 = vmatpush1.bf16.msra.mxu0 %v4928
      %4952 = vmatprep.subr.bf16.mxu0 %v4927
      %4953 = vmatpush1.bf16.msra.mxu0 %v4926
      %4954 = vmatprep.subr.bf16.mxu0 %v4925
      %4955 = vmatpush1.bf16.msra.mxu0 %v4924
      %4956 = vmatprep.subr.bf16.mxu0 %v4923
      %4957 = vmatpush1.bf16.msra.mxu0 %v4922
      %4958 = vmatprep.subr.bf16.mxu0 %v4921
      %4959 = vmatpush1.bf16.msra.mxu0 %v4920
      %4960 = vmatprep.subr.bf16.mxu0 %v4919
      %4961 = vmatpush1.bf16.msra.mxu0 %v4918
      %4962 = vmatprep.subr.bf16.mxu0 %v4917
      %4963 = vmatpush1.bf16.msra.mxu0 %v4916
      %4964 = vmatprep.subr.bf16.mxu0 0
      %4965 = vmatpush2.bf16.msra.mxu0 0
      %4966 = vmatprep.subr.bf16.mxu0 0
      %4967 = vmatpush2.bf16.msra.mxu0 0
      %4968 = vmatprep.subr.bf16.mxu0 0
      %4969 = vmatpush2.bf16.msra.mxu0 0
      %4970 = vmatprep.subr.bf16.mxu0 0
      %4971 = vmatpush2.bf16.msra.mxu0 0
      %4972 = vmatprep.subr.bf16.mxu0 0
      %4973 = vmatpush2.bf16.msra.mxu0 0
      %4974 = vmatprep.subr.bf16.mxu0 0
      %4975 = vmatpush2.bf16.msra.mxu0 0
      %4976 = vmatprep.subr.bf16.mxu0 0
      %4977 = vmatpush2.bf16.msra.mxu0 0
      %4978 = vmatprep.subr.bf16.mxu0 0
      %4979 = vmatpush2.bf16.msra.mxu0 0
      %4980 = vmatprep.mubr.bf16.mxu0 0
      %4981 = vmatmul.mubr.bf16.gmra.mxu0 %v4836
      %v4982 = vpop.f32.mrf.mxu0
      %v4983 = vadd.f32 0.0, %v4982
      %v4984 = vpop.f32.mrf.mxu0
      %v4985 = vadd.f32 0.0, %v4984
      %v4986 = vpop.f32.mrf.mxu0
      %v4987 = vadd.f32 0.0, %v4986
      %v4988 = vpop.f32.mrf.mxu0
      %v4989 = vadd.f32 0.0, %v4988
      %4990 = vmatprep.mubr.bf16.mxu0 0
      %4991 = vmatmul.mubr.bf16.gmra.mxu0 %v4837
      %v4992 = vpop.f32.mrf.mxu0
      %v4993 = vadd.f32 0.0, %v4992
      %v4994 = vpop.f32.mrf.mxu0
      %v4995 = vadd.f32 0.0, %v4994
      %v4996 = vpop.f32.mrf.mxu0
      %v4997 = vadd.f32 0.0, %v4996
      %v4998 = vpop.f32.mrf.mxu0
      %v4999 = vadd.f32 0.0, %v4998
      %5000 = vmatprep.mubr.bf16.mxu0 0
      %5001 = vmatmul.mubr.bf16.gmra.mxu0 %v4838
      %v5002 = vpop.f32.mrf.mxu0
      %v5003 = vadd.f32 0.0, %v5002
      %v5004 = vpop.f32.mrf.mxu0
      %v5005 = vadd.f32 0.0, %v5004
      %v5006 = vpop.f32.mrf.mxu0
      %v5007 = vadd.f32 0.0, %v5006
      %v5008 = vpop.f32.mrf.mxu0
      %v5009 = vadd.f32 0.0, %v5008
      %5010 = vmatprep.mubr.bf16.mxu0 0
      %5011 = vmatmul.mubr.bf16.gmra.mxu0 %v4839
      %v5012 = vpop.f32.mrf.mxu0
      %v5013 = vadd.f32 0.0, %v5012
      %v5014 = vpop.f32.mrf.mxu0
      %v5015 = vadd.f32 0.0, %v5014
      %v5016 = vpop.f32.mrf.mxu0
      %v5017 = vadd.f32 0.0, %v5016
      %v5018 = vpop.f32.mrf.mxu0
      %v5019 = vadd.f32 0.0, %v5018
      %5020 = vmatprep.mubr.bf16.mxu0 0
      %5021 = vmatmul.mubr.bf16.gmra.mxu0 %v4840
      %v5022 = vpop.f32.mrf.mxu0
      %v5023 = vadd.f32 0.0, %v5022
      %v5024 = vpop.f32.mrf.mxu0
      %v5025 = vadd.f32 0.0, %v5024
      %v5026 = vpop.f32.mrf.mxu0
      %v5027 = vadd.f32 0.0, %v5026
      %v5028 = vpop.f32.mrf.mxu0
      %v5029 = vadd.f32 0.0, %v5028
      %5030 = vmatprep.mubr.bf16.mxu0 0
      %5031 = vmatmul.mubr.bf16.gmra.mxu0 %v4841
      %v5032 = vpop.f32.mrf.mxu0
      %v5033 = vadd.f32 0.0, %v5032
      %v5034 = vpop.f32.mrf.mxu0
      %v5035 = vadd.f32 0.0, %v5034
      %v5036 = vpop.f32.mrf.mxu0
      %v5037 = vadd.f32 0.0, %v5036
      %v5038 = vpop.f32.mrf.mxu0
      %v5039 = vadd.f32 0.0, %v5038
      %5040 = vmatprep.mubr.bf16.mxu0 0
      %5041 = vmatmul.mubr.bf16.gmra.mxu0 %v4842
      %v5042 = vpop.f32.mrf.mxu0
      %v5043 = vadd.f32 0.0, %v5042
      %v5044 = vpop.f32.mrf.mxu0
      %v5045 = vadd.f32 0.0, %v5044
      %v5046 = vpop.f32.mrf.mxu0
      %v5047 = vadd.f32 0.0, %v5046
      %v5048 = vpop.f32.mrf.mxu0
      %v5049 = vadd.f32 0.0, %v5048
      %5050 = vmatprep.mubr.bf16.mxu0 0
      %5051 = vmatmul.mubr.bf16.gmra.mxu0 %v4843
      %v5052 = vpop.f32.mrf.mxu0
      %v5053 = vadd.f32 0.0, %v5052
      %v5054 = vpop.f32.mrf.mxu0
      %v5055 = vadd.f32 0.0, %v5054
      %v5056 = vpop.f32.mrf.mxu0
      %v5057 = vadd.f32 0.0, %v5056
      %v5058 = vpop.f32.mrf.mxu0
      %v5059 = vadd.f32 0.0, %v5058
      %5060 = vmatprep.mubr.bf16.mxu0 0
      %5061 = vmatmul.mubr.bf16.gmra.mxu0 %v4844
      %v5062 = vpop.f32.mrf.mxu0
      %v5063 = vadd.f32 0.0, %v5062
      %v5064 = vpop.f32.mrf.mxu0
      %v5065 = vadd.f32 0.0, %v5064
      %v5066 = vpop.f32.mrf.mxu0
      %v5067 = vadd.f32 0.0, %v5066
      %v5068 = vpop.f32.mrf.mxu0
      %v5069 = vadd.f32 0.0, %v5068
      %5070 = vmatprep.mubr.bf16.mxu0 0
      %5071 = vmatmul.mubr.bf16.gmra.mxu0 %v4845
      %v5072 = vpop.f32.mrf.mxu0
      %v5073 = vadd.f32 0.0, %v5072
      %v5074 = vpop.f32.mrf.mxu0
      %v5075 = vadd.f32 0.0, %v5074
      %v5076 = vpop.f32.mrf.mxu0
      %v5077 = vadd.f32 0.0, %v5076
      %v5078 = vpop.f32.mrf.mxu0
      %v5079 = vadd.f32 0.0, %v5078
      %5080 = vmatprep.mubr.bf16.mxu0 0
      %5081 = vmatmul.mubr.bf16.gmra.mxu0 %v4846
      %v5082 = vpop.f32.mrf.mxu0
      %v5083 = vadd.f32 0.0, %v5082
      %v5084 = vpop.f32.mrf.mxu0
      %v5085 = vadd.f32 0.0, %v5084
      %v5086 = vpop.f32.mrf.mxu0
      %v5087 = vadd.f32 0.0, %v5086
      %v5088 = vpop.f32.mrf.mxu0
      %v5089 = vadd.f32 0.0, %v5088
      %5090 = vmatprep.mubr.bf16.mxu0 0
      %5091 = vmatmul.mubr.bf16.gmra.mxu0 %v4847
      %v5092 = vpop.f32.mrf.mxu0
      %v5093 = vadd.f32 0.0, %v5092
      %v5094 = vpop.f32.mrf.mxu0
      %v5095 = vadd.f32 0.0, %v5094
      %v5096 = vpop.f32.mrf.mxu0
      %v5097 = vadd.f32 0.0, %v5096
      %v5098 = vpop.f32.mrf.mxu0
      %v5099 = vadd.f32 0.0, %v5098
      %5100 = vmatprep.mubr.bf16.mxu0 0
      %5101 = vmatmul.mubr.bf16.gmra.mxu0 %v4848
      %v5102 = vpop.f32.mrf.mxu0
      %v5103 = vadd.f32 0.0, %v5102
      %v5104 = vpop.f32.mrf.mxu0
      %v5105 = vadd.f32 0.0, %v5104
      %v5106 = vpop.f32.mrf.mxu0
      %v5107 = vadd.f32 0.0, %v5106
      %v5108 = vpop.f32.mrf.mxu0
      %v5109 = vadd.f32 0.0, %v5108
      %5110 = vmatprep.mubr.bf16.mxu0 0
      %5111 = vmatmul.mubr.bf16.gmra.mxu0 %v4849
      %v5112 = vpop.f32.mrf.mxu0
      %v5113 = vadd.f32 0.0, %v5112
      %v5114 = vpop.f32.mrf.mxu0
      %v5115 = vadd.f32 0.0, %v5114
      %v5116 = vpop.f32.mrf.mxu0
      %v5117 = vadd.f32 0.0, %v5116
      %v5118 = vpop.f32.mrf.mxu0
      %v5119 = vadd.f32 0.0, %v5118
      %5120 = vmatprep.mubr.bf16.mxu0 0
      %5121 = vmatmul.mubr.bf16.gmra.mxu0 %v4850
      %v5122 = vpop.f32.mrf.mxu0
      %v5123 = vadd.f32 0.0, %v5122
      %v5124 = vpop.f32.mrf.mxu0
      %v5125 = vadd.f32 0.0, %v5124
      %v5126 = vpop.f32.mrf.mxu0
      %v5127 = vadd.f32 0.0, %v5126
      %v5128 = vpop.f32.mrf.mxu0
      %v5129 = vadd.f32 0.0, %v5128
      %5130 = vmatprep.mubr.bf16.mxu0 0
      %5131 = vmatmul.mubr.bf16.gmra.mxu0 %v4851
      %v5132 = vpop.f32.mrf.mxu0
      %v5133 = vadd.f32 0.0, %v5132
      %v5134 = vpop.f32.mrf.mxu0
      %v5135 = vadd.f32 0.0, %v5134
      %v5136 = vpop.f32.mrf.mxu0
      %v5137 = vadd.f32 0.0, %v5136
      %v5138 = vpop.f32.mrf.mxu0
      %v5139 = vadd.f32 0.0, %v5138
      %5140 = vdwg.mxu0
      %v5141 = vadd.f32 %v4740, %v4983
      %v5142 = vadd.f32 %v4741, %v4985
      %v5143 = vadd.f32 %v4742, %v4987
      %v5144 = vadd.f32 %v4743, %v4989
      %v5145 = vadd.f32 %v4744, %v4993
      %v5146 = vadd.f32 %v4745, %v4995
      %v5147 = vadd.f32 %v4746, %v4997
      %v5148 = vadd.f32 %v4747, %v4999
      %v5149 = vadd.f32 %v4748, %v5003
      %v5150 = vadd.f32 %v4749, %v5005
      %v5151 = vadd.f32 %v4750, %v5007
      %v5152 = vadd.f32 %v4751, %v5009
      %v5153 = vadd.f32 %v4752, %v5013
      %v5154 = vadd.f32 %v4753, %v5015
      %v5155 = vadd.f32 %v4754, %v5017
      %v5156 = vadd.f32 %v4755, %v5019
      %v5157 = vadd.f32 %v4756, %v5023
      %v5158 = vadd.f32 %v4757, %v5025
      %v5159 = vadd.f32 %v4758, %v5027
      %v5160 = vadd.f32 %v4759, %v5029
      %v5161 = vadd.f32 %v4760, %v5033
      %v5162 = vadd.f32 %v4761, %v5035
      %v5163 = vadd.f32 %v4762, %v5037
      %v5164 = vadd.f32 %v4763, %v5039
      %v5165 = vadd.f32 %v4764, %v5043
      %v5166 = vadd.f32 %v4765, %v5045
      %v5167 = vadd.f32 %v4766, %v5047
      %v5168 = vadd.f32 %v4767, %v5049
      %v5169 = vadd.f32 %v4768, %v5053
      %v5170 = vadd.f32 %v4769, %v5055
      %v5171 = vadd.f32 %v4770, %v5057
      %v5172 = vadd.f32 %v4771, %v5059
      %v5173 = vadd.f32 %v4772, %v5063
      %v5174 = vadd.f32 %v4773, %v5065
      %v5175 = vadd.f32 %v4774, %v5067
      %v5176 = vadd.f32 %v4775, %v5069
      %v5177 = vadd.f32 %v4776, %v5073
      %v5178 = vadd.f32 %v4777, %v5075
      %v5179 = vadd.f32 %v4778, %v5077
      %v5180 = vadd.f32 %v4779, %v5079
      %v5181 = vadd.f32 %v4780, %v5083
      %v5182 = vadd.f32 %v4781, %v5085
      %v5183 = vadd.f32 %v4782, %v5087
      %v5184 = vadd.f32 %v4783, %v5089
      %v5185 = vadd.f32 %v4784, %v5093
      %v5186 = vadd.f32 %v4785, %v5095
      %v5187 = vadd.f32 %v4786, %v5097
      %v5188 = vadd.f32 %v4787, %v5099
      %v5189 = vadd.f32 %v4788, %v5103
      %v5190 = vadd.f32 %v4789, %v5105
      %v5191 = vadd.f32 %v4790, %v5107
      %v5192 = vadd.f32 %v4791, %v5109
      %v5193 = vadd.f32 %v4792, %v5113
      %v5194 = vadd.f32 %v4793, %v5115
      %v5195 = vadd.f32 %v4794, %v5117
      %v5196 = vadd.f32 %v4795, %v5119
      %v5197 = vadd.f32 %v4796, %v5123
      %v5198 = vadd.f32 %v4797, %v5125
      %v5199 = vadd.f32 %v4798, %v5127
      %v5200 = vadd.f32 %v4799, %v5129
      %v5201 = vadd.f32 %v4800, %v5133
      %v5202 = vadd.f32 %v4801, %v5135
      %v5203 = vadd.f32 %v4802, %v5137
      %v5204 = vadd.f32 %v4803, %v5139
      %v5205 = vld [vmem:[%s3295 + $0x2] sm:$0xff]
      %v5206 = vld [vmem:[%s3295 + $0xa] sm:$0xff]
      %v5207 = vld [vmem:[%s3295 + $0x1a] sm:$0xff]
      %v5208 = vld [vmem:[%s3295 + $0x22] sm:$0xff]
      %v5209 = vld [vmem:[%s3295 + $0x32] sm:$0xff]
      %v5210 = vld [vmem:[%s3295 + $0x3a] sm:$0xff]
      %v5211 = vld [vmem:[%s3295 + $0x4a] sm:$0xff]
      %v5212 = vld [vmem:[%s3295 + $0x52] sm:$0xff]
      %v5213 = vld [vmem:[%s3295 + $0x62] sm:$0xff]
      %v5214 = vld [vmem:[%s3295 + $0x6a] sm:$0xff]
      %v5215 = vld [vmem:[%s3295 + $0x7a] sm:$0xff]
      %v5216 = vld [vmem:[%s3295 + $0x82] sm:$0xff]
      %v5217 = vld [vmem:[%s3295 + $0x92] sm:$0xff]
      %v5218 = vld [vmem:[%s3295 + $0x9a] sm:$0xff]
      %v5219 = vld [vmem:[%s3295 + $0xaa] sm:$0xff]
      %v5220 = vld [vmem:[%s3295 + $0xb2] sm:$0xff]
      %v5221 = vld [vmem:[%s3295 + $0xc2] sm:$0xff]
      %v5222 = vld [vmem:[%s3295 + $0xca] sm:$0xff]
      %v5223 = vld [vmem:[%s3295 + $0xda] sm:$0xff]
      %v5224 = vld [vmem:[%s3295 + $0xe2] sm:$0xff]
      %v5225 = vld [vmem:[%s3295 + $0xf2] sm:$0xff]
      %v5226 = vld [vmem:[%s3295 + $0xfa] sm:$0xff]
      %v5227 = vld [vmem:[%s3295 + $0x10a] sm:$0xff]
      %v5228 = vld [vmem:[%s3295 + $0x112] sm:$0xff]
      %v5229 = vld [vmem:[%s3295 + $0x122] sm:$0xff]
      %v5230 = vld [vmem:[%s3295 + $0x12a] sm:$0xff]
      %v5231 = vld [vmem:[%s3295 + $0x13a] sm:$0xff]
      %v5232 = vld [vmem:[%s3295 + $0x142] sm:$0xff]
      %v5233 = vld [vmem:[%s3295 + $0x152] sm:$0xff]
      %v5234 = vld [vmem:[%s3295 + $0x15a] sm:$0xff]
      %v5235 = vld [vmem:[%s3295 + $0x16a] sm:$0xff]
      %v5236 = vld [vmem:[%s3295 + $0x172] sm:$0xff]
      %v5237 = vpack.c.bf16 %v5206, %v5205
      %v5238 = vpack.c.bf16 %v5208, %v5207
      %v5239 = vpack.c.bf16 %v5210, %v5209
      %v5240 = vpack.c.bf16 %v5212, %v5211
      %v5241 = vpack.c.bf16 %v5214, %v5213
      %v5242 = vpack.c.bf16 %v5216, %v5215
      %v5243 = vpack.c.bf16 %v5218, %v5217
      %v5244 = vpack.c.bf16 %v5220, %v5219
      %v5245 = vpack.c.bf16 %v5222, %v5221
      %v5246 = vpack.c.bf16 %v5224, %v5223
      %v5247 = vpack.c.bf16 %v5226, %v5225
      %v5248 = vpack.c.bf16 %v5228, %v5227
      %v5249 = vpack.c.bf16 %v5230, %v5229
      %v5250 = vpack.c.bf16 %v5232, %v5231
      %v5251 = vpack.c.bf16 %v5234, %v5233
      %v5252 = vpack.c.bf16 %v5236, %v5235
      %v5253 = vld [vmem:[%s4 + $0x280] sm:$0xff]
      %v5254 = vld [vmem:[%s4 + $0x288] sm:$0xff]
      %v5255 = vld [vmem:[%s4 + $0x290] sm:$0xff]
      %v5256 = vld [vmem:[%s4 + $0x298] sm:$0xff]
      %v5257 = vld [vmem:[%s4 + $0x2a0] sm:$0xff]
      %v5258 = vld [vmem:[%s4 + $0x2a8] sm:$0xff]
      %v5259 = vld [vmem:[%s4 + $0x2b0] sm:$0xff]
      %v5260 = vld [vmem:[%s4 + $0x2b8] sm:$0xff]
      %v5261 = vld [vmem:[%s4 + $0x2c0] sm:$0xff]
      %v5262 = vld [vmem:[%s4 + $0x2c8] sm:$0xff]
      %v5263 = vld [vmem:[%s4 + $0x2d0] sm:$0xff]
      %v5264 = vld [vmem:[%s4 + $0x2d8] sm:$0xff]
      %v5265 = vld [vmem:[%s4 + $0x2e0] sm:$0xff]
      %v5266 = vld [vmem:[%s4 + $0x2e8] sm:$0xff]
      %v5267 = vld [vmem:[%s4 + $0x2f0] sm:$0xff]
      %v5268 = vld [vmem:[%s4 + $0x2f8] sm:$0xff]
      %v5285 = vunpack.c.l.b16 %v5253
      %v5286 = vunpack.c.h.b16 %v5253
      %v5287 = vunpack.c.l.b16 %v5254
      %v5288 = vunpack.c.h.b16 %v5254
      %v5289 = vunpack.c.l.b16 %v5255
      %v5290 = vunpack.c.h.b16 %v5255
      %v5291 = vunpack.c.l.b16 %v5256
      %v5292 = vunpack.c.h.b16 %v5256
      %v5293 = vunpack.c.l.b16 %v5257
      %v5294 = vunpack.c.h.b16 %v5257
      %v5295 = vunpack.c.l.b16 %v5258
      %v5296 = vunpack.c.h.b16 %v5258
      %v5297 = vunpack.c.l.b16 %v5259
      %v5298 = vunpack.c.h.b16 %v5259
      %v5299 = vunpack.c.l.b16 %v5260
      %v5300 = vunpack.c.h.b16 %v5260
      %v5301 = vunpack.c.l.b16 %v5261
      %v5302 = vunpack.c.h.b16 %v5261
      %v5303 = vunpack.c.l.b16 %v5262
      %v5304 = vunpack.c.h.b16 %v5262
      %v5305 = vunpack.c.l.b16 %v5263
      %v5306 = vunpack.c.h.b16 %v5263
      %v5307 = vunpack.c.l.b16 %v5264
      %v5308 = vunpack.c.h.b16 %v5264
      %v5309 = vunpack.c.l.b16 %v5265
      %v5310 = vunpack.c.h.b16 %v5265
      %v5311 = vunpack.c.l.b16 %v5266
      %v5312 = vunpack.c.h.b16 %v5266
      %v5313 = vunpack.c.l.b16 %v5267
      %v5314 = vunpack.c.h.b16 %v5267
      %v5315 = vunpack.c.l.b16 %v5268
      %v5316 = vunpack.c.h.b16 %v5268
      %v5317 = vpack.c.b16 %v5287, %v5285
      %v5318 = vpack.c.b16 %v5288, %v5286
      %v5319 = vpack.c.b16 %v5291, %v5289
      %v5320 = vpack.c.b16 %v5292, %v5290
      %v5321 = vpack.c.b16 %v5295, %v5293
      %v5322 = vpack.c.b16 %v5296, %v5294
      %v5323 = vpack.c.b16 %v5299, %v5297
      %v5324 = vpack.c.b16 %v5300, %v5298
      %v5325 = vpack.c.b16 %v5303, %v5301
      %v5326 = vpack.c.b16 %v5304, %v5302
      %v5327 = vpack.c.b16 %v5307, %v5305
      %v5328 = vpack.c.b16 %v5308, %v5306
      %v5329 = vpack.c.b16 %v5311, %v5309
      %v5330 = vpack.c.b16 %v5312, %v5310
      %v5331 = vpack.c.b16 %v5315, %v5313
      %v5332 = vpack.c.b16 %v5316, %v5314
      %5349 = vmatprep.subr.bf16.mxu0 %v5332
      %5350 = vmatpush1.bf16.msra.mxu0 %v5331
      %5351 = vmatprep.subr.bf16.mxu0 %v5330
      %5352 = vmatpush1.bf16.msra.mxu0 %v5329
      %5353 = vmatprep.subr.bf16.mxu0 %v5328
      %5354 = vmatpush1.bf16.msra.mxu0 %v5327
      %5355 = vmatprep.subr.bf16.mxu0 %v5326
      %5356 = vmatpush1.bf16.msra.mxu0 %v5325
      %5357 = vmatprep.subr.bf16.mxu0 %v5324
      %5358 = vmatpush1.bf16.msra.mxu0 %v5323
      %5359 = vmatprep.subr.bf16.mxu0 %v5322
      %5360 = vmatpush1.bf16.msra.mxu0 %v5321
      %5361 = vmatprep.subr.bf16.mxu0 %v5320
      %5362 = vmatpush1.bf16.msra.mxu0 %v5319
      %5363 = vmatprep.subr.bf16.mxu0 %v5318
      %5364 = vmatpush1.bf16.msra.mxu0 %v5317
      %5365 = vmatprep.subr.bf16.mxu0 0
      %5366 = vmatpush2.bf16.msra.mxu0 0
      %5367 = vmatprep.subr.bf16.mxu0 0
      %5368 = vmatpush2.bf16.msra.mxu0 0
      %5369 = vmatprep.subr.bf16.mxu0 0
      %5370 = vmatpush2.bf16.msra.mxu0 0
      %5371 = vmatprep.subr.bf16.mxu0 0
      %5372 = vmatpush2.bf16.msra.mxu0 0
      %5373 = vmatprep.subr.bf16.mxu0 0
      %5374 = vmatpush2.bf16.msra.mxu0 0
      %5375 = vmatprep.subr.bf16.mxu0 0
      %5376 = vmatpush2.bf16.msra.mxu0 0
      %5377 = vmatprep.subr.bf16.mxu0 0
      %5378 = vmatpush2.bf16.msra.mxu0 0
      %5379 = vmatprep.subr.bf16.mxu0 0
      %5380 = vmatpush2.bf16.msra.mxu0 0
      %5381 = vmatprep.mubr.bf16.mxu0 0
      %5382 = vmatmul.mubr.bf16.gmra.mxu0 %v5237
      %v5383 = vpop.f32.mrf.mxu0
      %v5384 = vadd.f32 0.0, %v5383
      %v5385 = vpop.f32.mrf.mxu0
      %v5386 = vadd.f32 0.0, %v5385
      %v5387 = vpop.f32.mrf.mxu0
      %v5388 = vadd.f32 0.0, %v5387
      %v5389 = vpop.f32.mrf.mxu0
      %v5390 = vadd.f32 0.0, %v5389
      %5391 = vmatprep.mubr.bf16.mxu0 0
      %5392 = vmatmul.mubr.bf16.gmra.mxu0 %v5238
      %v5393 = vpop.f32.mrf.mxu0
      %v5394 = vadd.f32 0.0, %v5393
      %v5395 = vpop.f32.mrf.mxu0
      %v5396 = vadd.f32 0.0, %v5395
      %v5397 = vpop.f32.mrf.mxu0
      %v5398 = vadd.f32 0.0, %v5397
      %v5399 = vpop.f32.mrf.mxu0
      %v5400 = vadd.f32 0.0, %v5399
      %5401 = vmatprep.mubr.bf16.mxu0 0
      %5402 = vmatmul.mubr.bf16.gmra.mxu0 %v5239
      %v5403 = vpop.f32.mrf.mxu0
      %v5404 = vadd.f32 0.0, %v5403
      %v5405 = vpop.f32.mrf.mxu0
      %v5406 = vadd.f32 0.0, %v5405
      %v5407 = vpop.f32.mrf.mxu0
      %v5408 = vadd.f32 0.0, %v5407
      %v5409 = vpop.f32.mrf.mxu0
      %v5410 = vadd.f32 0.0, %v5409
      %5411 = vmatprep.mubr.bf16.mxu0 0
      %5412 = vmatmul.mubr.bf16.gmra.mxu0 %v5240
      %v5413 = vpop.f32.mrf.mxu0
      %v5414 = vadd.f32 0.0, %v5413
      %v5415 = vpop.f32.mrf.mxu0
      %v5416 = vadd.f32 0.0, %v5415
      %v5417 = vpop.f32.mrf.mxu0
      %v5418 = vadd.f32 0.0, %v5417
      %v5419 = vpop.f32.mrf.mxu0
      %v5420 = vadd.f32 0.0, %v5419
      %5421 = vmatprep.mubr.bf16.mxu0 0
      %5422 = vmatmul.mubr.bf16.gmra.mxu0 %v5241
      %v5423 = vpop.f32.mrf.mxu0
      %v5424 = vadd.f32 0.0, %v5423
      %v5425 = vpop.f32.mrf.mxu0
      %v5426 = vadd.f32 0.0, %v5425
      %v5427 = vpop.f32.mrf.mxu0
      %v5428 = vadd.f32 0.0, %v5427
      %v5429 = vpop.f32.mrf.mxu0
      %v5430 = vadd.f32 0.0, %v5429
      %5431 = vmatprep.mubr.bf16.mxu0 0
      %5432 = vmatmul.mubr.bf16.gmra.mxu0 %v5242
      %v5433 = vpop.f32.mrf.mxu0
      %v5434 = vadd.f32 0.0, %v5433
      %v5435 = vpop.f32.mrf.mxu0
      %v5436 = vadd.f32 0.0, %v5435
      %v5437 = vpop.f32.mrf.mxu0
      %v5438 = vadd.f32 0.0, %v5437
      %v5439 = vpop.f32.mrf.mxu0
      %v5440 = vadd.f32 0.0, %v5439
      %5441 = vmatprep.mubr.bf16.mxu0 0
      %5442 = vmatmul.mubr.bf16.gmra.mxu0 %v5243
      %v5443 = vpop.f32.mrf.mxu0
      %v5444 = vadd.f32 0.0, %v5443
      %v5445 = vpop.f32.mrf.mxu0
      %v5446 = vadd.f32 0.0, %v5445
      %v5447 = vpop.f32.mrf.mxu0
      %v5448 = vadd.f32 0.0, %v5447
      %v5449 = vpop.f32.mrf.mxu0
      %v5450 = vadd.f32 0.0, %v5449
      %5451 = vmatprep.mubr.bf16.mxu0 0
      %5452 = vmatmul.mubr.bf16.gmra.mxu0 %v5244
      %v5453 = vpop.f32.mrf.mxu0
      %v5454 = vadd.f32 0.0, %v5453
      %v5455 = vpop.f32.mrf.mxu0
      %v5456 = vadd.f32 0.0, %v5455
      %v5457 = vpop.f32.mrf.mxu0
      %v5458 = vadd.f32 0.0, %v5457
      %v5459 = vpop.f32.mrf.mxu0
      %v5460 = vadd.f32 0.0, %v5459
      %5461 = vmatprep.mubr.bf16.mxu0 0
      %5462 = vmatmul.mubr.bf16.gmra.mxu0 %v5245
      %v5463 = vpop.f32.mrf.mxu0
      %v5464 = vadd.f32 0.0, %v5463
      %v5465 = vpop.f32.mrf.mxu0
      %v5466 = vadd.f32 0.0, %v5465
      %v5467 = vpop.f32.mrf.mxu0
      %v5468 = vadd.f32 0.0, %v5467
      %v5469 = vpop.f32.mrf.mxu0
      %v5470 = vadd.f32 0.0, %v5469
      %5471 = vmatprep.mubr.bf16.mxu0 0
      %5472 = vmatmul.mubr.bf16.gmra.mxu0 %v5246
      %v5473 = vpop.f32.mrf.mxu0
      %v5474 = vadd.f32 0.0, %v5473
      %v5475 = vpop.f32.mrf.mxu0
      %v5476 = vadd.f32 0.0, %v5475
      %v5477 = vpop.f32.mrf.mxu0
      %v5478 = vadd.f32 0.0, %v5477
      %v5479 = vpop.f32.mrf.mxu0
      %v5480 = vadd.f32 0.0, %v5479
      %5481 = vmatprep.mubr.bf16.mxu0 0
      %5482 = vmatmul.mubr.bf16.gmra.mxu0 %v5247
      %v5483 = vpop.f32.mrf.mxu0
      %v5484 = vadd.f32 0.0, %v5483
      %v5485 = vpop.f32.mrf.mxu0
      %v5486 = vadd.f32 0.0, %v5485
      %v5487 = vpop.f32.mrf.mxu0
      %v5488 = vadd.f32 0.0, %v5487
      %v5489 = vpop.f32.mrf.mxu0
      %v5490 = vadd.f32 0.0, %v5489
      %5491 = vmatprep.mubr.bf16.mxu0 0
      %5492 = vmatmul.mubr.bf16.gmra.mxu0 %v5248
      %v5493 = vpop.f32.mrf.mxu0
      %v5494 = vadd.f32 0.0, %v5493
      %v5495 = vpop.f32.mrf.mxu0
      %v5496 = vadd.f32 0.0, %v5495
      %v5497 = vpop.f32.mrf.mxu0
      %v5498 = vadd.f32 0.0, %v5497
      %v5499 = vpop.f32.mrf.mxu0
      %v5500 = vadd.f32 0.0, %v5499
      %5501 = vmatprep.mubr.bf16.mxu0 0
      %5502 = vmatmul.mubr.bf16.gmra.mxu0 %v5249
      %v5503 = vpop.f32.mrf.mxu0
      %v5504 = vadd.f32 0.0, %v5503
      %v5505 = vpop.f32.mrf.mxu0
      %v5506 = vadd.f32 0.0, %v5505
      %v5507 = vpop.f32.mrf.mxu0
      %v5508 = vadd.f32 0.0, %v5507
      %v5509 = vpop.f32.mrf.mxu0
      %v5510 = vadd.f32 0.0, %v5509
      %5511 = vmatprep.mubr.bf16.mxu0 0
      %5512 = vmatmul.mubr.bf16.gmra.mxu0 %v5250
      %v5513 = vpop.f32.mrf.mxu0
      %v5514 = vadd.f32 0.0, %v5513
      %v5515 = vpop.f32.mrf.mxu0
      %v5516 = vadd.f32 0.0, %v5515
      %v5517 = vpop.f32.mrf.mxu0
      %v5518 = vadd.f32 0.0, %v5517
      %v5519 = vpop.f32.mrf.mxu0
      %v5520 = vadd.f32 0.0, %v5519
      %5521 = vmatprep.mubr.bf16.mxu0 0
      %5522 = vmatmul.mubr.bf16.gmra.mxu0 %v5251
      %v5523 = vpop.f32.mrf.mxu0
      %v5524 = vadd.f32 0.0, %v5523
      %v5525 = vpop.f32.mrf.mxu0
      %v5526 = vadd.f32 0.0, %v5525
      %v5527 = vpop.f32.mrf.mxu0
      %v5528 = vadd.f32 0.0, %v5527
      %v5529 = vpop.f32.mrf.mxu0
      %v5530 = vadd.f32 0.0, %v5529
      %5531 = vmatprep.mubr.bf16.mxu0 0
      %5532 = vmatmul.mubr.bf16.gmra.mxu0 %v5252
      %v5533 = vpop.f32.mrf.mxu0
      %v5534 = vadd.f32 0.0, %v5533
      %v5535 = vpop.f32.mrf.mxu0
      %v5536 = vadd.f32 0.0, %v5535
      %v5537 = vpop.f32.mrf.mxu0
      %v5538 = vadd.f32 0.0, %v5537
      %v5539 = vpop.f32.mrf.mxu0
      %v5540 = vadd.f32 0.0, %v5539
      %5541 = vdwg.mxu0
      %v5542 = vadd.f32 %v5141, %v5384
      %v5543 = vadd.f32 %v5142, %v5386
      %v5544 = vadd.f32 %v5143, %v5388
      %v5545 = vadd.f32 %v5144, %v5390
      %v5546 = vadd.f32 %v5145, %v5394
      %v5547 = vadd.f32 %v5146, %v5396
      %v5548 = vadd.f32 %v5147, %v5398
      %v5549 = vadd.f32 %v5148, %v5400
      %v5550 = vadd.f32 %v5149, %v5404
      %v5551 = vadd.f32 %v5150, %v5406
      %v5552 = vadd.f32 %v5151, %v5408
      %v5553 = vadd.f32 %v5152, %v5410
      %v5554 = vadd.f32 %v5153, %v5414
      %v5555 = vadd.f32 %v5154, %v5416
      %v5556 = vadd.f32 %v5155, %v5418
      %v5557 = vadd.f32 %v5156, %v5420
      %v5558 = vadd.f32 %v5157, %v5424
      %v5559 = vadd.f32 %v5158, %v5426
      %v5560 = vadd.f32 %v5159, %v5428
      %v5561 = vadd.f32 %v5160, %v5430
      %v5562 = vadd.f32 %v5161, %v5434
      %v5563 = vadd.f32 %v5162, %v5436
      %v5564 = vadd.f32 %v5163, %v5438
      %v5565 = vadd.f32 %v5164, %v5440
      %v5566 = vadd.f32 %v5165, %v5444
      %v5567 = vadd.f32 %v5166, %v5446
      %v5568 = vadd.f32 %v5167, %v5448
      %v5569 = vadd.f32 %v5168, %v5450
      %v5570 = vadd.f32 %v5169, %v5454
      %v5571 = vadd.f32 %v5170, %v5456
      %v5572 = vadd.f32 %v5171, %v5458
      %v5573 = vadd.f32 %v5172, %v5460
      %v5574 = vadd.f32 %v5173, %v5464
      %v5575 = vadd.f32 %v5174, %v5466
      %v5576 = vadd.f32 %v5175, %v5468
      %v5577 = vadd.f32 %v5176, %v5470
      %v5578 = vadd.f32 %v5177, %v5474
      %v5579 = vadd.f32 %v5178, %v5476
      %v5580 = vadd.f32 %v5179, %v5478
      %v5581 = vadd.f32 %v5180, %v5480
      %v5582 = vadd.f32 %v5181, %v5484
      %v5583 = vadd.f32 %v5182, %v5486
      %v5584 = vadd.f32 %v5183, %v5488
      %v5585 = vadd.f32 %v5184, %v5490
      %v5586 = vadd.f32 %v5185, %v5494
      %v5587 = vadd.f32 %v5186, %v5496
      %v5588 = vadd.f32 %v5187, %v5498
      %v5589 = vadd.f32 %v5188, %v5500
      %v5590 = vadd.f32 %v5189, %v5504
      %v5591 = vadd.f32 %v5190, %v5506
      %v5592 = vadd.f32 %v5191, %v5508
      %v5593 = vadd.f32 %v5192, %v5510
      %v5594 = vadd.f32 %v5193, %v5514
      %v5595 = vadd.f32 %v5194, %v5516
      %v5596 = vadd.f32 %v5195, %v5518
      %v5597 = vadd.f32 %v5196, %v5520
      %v5598 = vadd.f32 %v5197, %v5524
      %v5599 = vadd.f32 %v5198, %v5526
      %v5600 = vadd.f32 %v5199, %v5528
      %v5601 = vadd.f32 %v5200, %v5530
      %v5602 = vadd.f32 %v5201, %v5534
      %v5603 = vadd.f32 %v5202, %v5536
      %v5604 = vadd.f32 %v5203, %v5538
      %v5605 = vadd.f32 %v5204, %v5540
      %s5606 = scalar_lea.vmem [#allocation3], 48
      %v5607 = vld [vmem:[%s5606] sm:$0xff]
      %v5608 = vld [vmem:[%s5606 + $0x8] sm:$0xff]
      %v5609 = vld [vmem:[%s5606 + $0x18] sm:$0xff]
      %v5610 = vld [vmem:[%s5606 + $0x20] sm:$0xff]
      %v5611 = vld [vmem:[%s5606 + $0x30] sm:$0xff]
      %v5612 = vld [vmem:[%s5606 + $0x38] sm:$0xff]
      %v5613 = vld [vmem:[%s5606 + $0x48] sm:$0xff]
      %v5614 = vld [vmem:[%s5606 + $0x50] sm:$0xff]
      %v5615 = vld [vmem:[%s5606 + $0x60] sm:$0xff]
      %v5616 = vld [vmem:[%s5606 + $0x68] sm:$0xff]
      %v5617 = vld [vmem:[%s5606 + $0x78] sm:$0xff]
      %v5618 = vld [vmem:[%s5606 + $0x80] sm:$0xff]
      %v5619 = vld [vmem:[%s5606 + $0x90] sm:$0xff]
      %v5620 = vld [vmem:[%s5606 + $0x98] sm:$0xff]
      %v5621 = vld [vmem:[%s5606 + $0xa8] sm:$0xff]
      %v5622 = vld [vmem:[%s5606 + $0xb0] sm:$0xff]
      %v5623 = vld [vmem:[%s5606 + $0xc0] sm:$0xff]
      %v5624 = vld [vmem:[%s5606 + $0xc8] sm:$0xff]
      %v5625 = vld [vmem:[%s5606 + $0xd8] sm:$0xff]
      %v5626 = vld [vmem:[%s5606 + $0xe0] sm:$0xff]
      %v5627 = vld [vmem:[%s5606 + $0xf0] sm:$0xff]
      %v5628 = vld [vmem:[%s5606 + $0xf8] sm:$0xff]
      %v5629 = vld [vmem:[%s5606 + $0x108] sm:$0xff]
      %v5630 = vld [vmem:[%s5606 + $0x110] sm:$0xff]
      %v5631 = vld [vmem:[%s5606 + $0x120] sm:$0xff]
      %v5632 = vld [vmem:[%s5606 + $0x128] sm:$0xff]
      %v5633 = vld [vmem:[%s5606 + $0x138] sm:$0xff]
      %v5634 = vld [vmem:[%s5606 + $0x140] sm:$0xff]
      %v5635 = vld [vmem:[%s5606 + $0x150] sm:$0xff]
      %v5636 = vld [vmem:[%s5606 + $0x158] sm:$0xff]
      %v5637 = vld [vmem:[%s5606 + $0x168] sm:$0xff]
      %v5638 = vld [vmem:[%s5606 + $0x170] sm:$0xff]
      %v5639 = vpack.c.bf16 %v5608, %v5607
      %v5640 = vpack.c.bf16 %v5610, %v5609
      %v5641 = vpack.c.bf16 %v5612, %v5611
      %v5642 = vpack.c.bf16 %v5614, %v5613
      %v5643 = vpack.c.bf16 %v5616, %v5615
      %v5644 = vpack.c.bf16 %v5618, %v5617
      %v5645 = vpack.c.bf16 %v5620, %v5619
      %v5646 = vpack.c.bf16 %v5622, %v5621
      %v5647 = vpack.c.bf16 %v5624, %v5623
      %v5648 = vpack.c.bf16 %v5626, %v5625
      %v5649 = vpack.c.bf16 %v5628, %v5627
      %v5650 = vpack.c.bf16 %v5630, %v5629
      %v5651 = vpack.c.bf16 %v5632, %v5631
      %v5652 = vpack.c.bf16 %v5634, %v5633
      %v5653 = vpack.c.bf16 %v5636, %v5635
      %v5654 = vpack.c.bf16 %v5638, %v5637
      %v5655 = vld [vmem:[%s4 + $0x300] sm:$0xff]
      %v5656 = vld [vmem:[%s4 + $0x308] sm:$0xff]
      %v5657 = vld [vmem:[%s4 + $0x310] sm:$0xff]
      %v5658 = vld [vmem:[%s4 + $0x318] sm:$0xff]
      %v5659 = vld [vmem:[%s4 + $0x320] sm:$0xff]
      %v5660 = vld [vmem:[%s4 + $0x328] sm:$0xff]
      %v5661 = vld [vmem:[%s4 + $0x330] sm:$0xff]
      %v5662 = vld [vmem:[%s4 + $0x338] sm:$0xff]
      %v5663 = vld [vmem:[%s4 + $0x340] sm:$0xff]
      %v5664 = vld [vmem:[%s4 + $0x348] sm:$0xff]
      %v5665 = vld [vmem:[%s4 + $0x350] sm:$0xff]
      %v5666 = vld [vmem:[%s4 + $0x358] sm:$0xff]
      %v5667 = vld [vmem:[%s4 + $0x360] sm:$0xff]
      %v5668 = vld [vmem:[%s4 + $0x368] sm:$0xff]
      %v5669 = vld [vmem:[%s4 + $0x370] sm:$0xff]
      %v5670 = vld [vmem:[%s4 + $0x378] sm:$0xff]
      %v5687 = vunpack.c.l.b16 %v5655
      %v5688 = vunpack.c.h.b16 %v5655
      %v5689 = vunpack.c.l.b16 %v5656
      %v5690 = vunpack.c.h.b16 %v5656
      %v5691 = vunpack.c.l.b16 %v5657
      %v5692 = vunpack.c.h.b16 %v5657
      %v5693 = vunpack.c.l.b16 %v5658
      %v5694 = vunpack.c.h.b16 %v5658
      %v5695 = vunpack.c.l.b16 %v5659
      %v5696 = vunpack.c.h.b16 %v5659
      %v5697 = vunpack.c.l.b16 %v5660
      %v5698 = vunpack.c.h.b16 %v5660
      %v5699 = vunpack.c.l.b16 %v5661
      %v5700 = vunpack.c.h.b16 %v5661
      %v5701 = vunpack.c.l.b16 %v5662
      %v5702 = vunpack.c.h.b16 %v5662
      %v5703 = vunpack.c.l.b16 %v5663
      %v5704 = vunpack.c.h.b16 %v5663
      %v5705 = vunpack.c.l.b16 %v5664
      %v5706 = vunpack.c.h.b16 %v5664
      %v5707 = vunpack.c.l.b16 %v5665
      %v5708 = vunpack.c.h.b16 %v5665
      %v5709 = vunpack.c.l.b16 %v5666
      %v5710 = vunpack.c.h.b16 %v5666
      %v5711 = vunpack.c.l.b16 %v5667
      %v5712 = vunpack.c.h.b16 %v5667
      %v5713 = vunpack.c.l.b16 %v5668
      %v5714 = vunpack.c.h.b16 %v5668
      %v5715 = vunpack.c.l.b16 %v5669
      %v5716 = vunpack.c.h.b16 %v5669
      %v5717 = vunpack.c.l.b16 %v5670
      %v5718 = vunpack.c.h.b16 %v5670
      %v5719 = vpack.c.b16 %v5689, %v5687
      %v5720 = vpack.c.b16 %v5690, %v5688
      %v5721 = vpack.c.b16 %v5693, %v5691
      %v5722 = vpack.c.b16 %v5694, %v5692
      %v5723 = vpack.c.b16 %v5697, %v5695
      %v5724 = vpack.c.b16 %v5698, %v5696
      %v5725 = vpack.c.b16 %v5701, %v5699
      %v5726 = vpack.c.b16 %v5702, %v5700
      %v5727 = vpack.c.b16 %v5705, %v5703
      %v5728 = vpack.c.b16 %v5706, %v5704
      %v5729 = vpack.c.b16 %v5709, %v5707
      %v5730 = vpack.c.b16 %v5710, %v5708
      %v5731 = vpack.c.b16 %v5713, %v5711
      %v5732 = vpack.c.b16 %v5714, %v5712
      %v5733 = vpack.c.b16 %v5717, %v5715
      %v5734 = vpack.c.b16 %v5718, %v5716
      %5751 = vmatprep.subr.bf16.mxu0 %v5734
      %5752 = vmatpush1.bf16.msra.mxu0 %v5733
      %5753 = vmatprep.subr.bf16.mxu0 %v5732
      %5754 = vmatpush1.bf16.msra.mxu0 %v5731
      %5755 = vmatprep.subr.bf16.mxu0 %v5730
      %5756 = vmatpush1.bf16.msra.mxu0 %v5729
      %5757 = vmatprep.subr.bf16.mxu0 %v5728
      %5758 = vmatpush1.bf16.msra.mxu0 %v5727
      %5759 = vmatprep.subr.bf16.mxu0 %v5726
      %5760 = vmatpush1.bf16.msra.mxu0 %v5725
      %5761 = vmatprep.subr.bf16.mxu0 %v5724
      %5762 = vmatpush1.bf16.msra.mxu0 %v5723
      %5763 = vmatprep.subr.bf16.mxu0 %v5722
      %5764 = vmatpush1.bf16.msra.mxu0 %v5721
      %5765 = vmatprep.subr.bf16.mxu0 %v5720
      %5766 = vmatpush1.bf16.msra.mxu0 %v5719
      %5767 = vmatprep.subr.bf16.mxu0 0
      %5768 = vmatpush2.bf16.msra.mxu0 0
      %5769 = vmatprep.subr.bf16.mxu0 0
      %5770 = vmatpush2.bf16.msra.mxu0 0
      %5771 = vmatprep.subr.bf16.mxu0 0
      %5772 = vmatpush2.bf16.msra.mxu0 0
      %5773 = vmatprep.subr.bf16.mxu0 0
      %5774 = vmatpush2.bf16.msra.mxu0 0
      %5775 = vmatprep.subr.bf16.mxu0 0
      %5776 = vmatpush2.bf16.msra.mxu0 0
      %5777 = vmatprep.subr.bf16.mxu0 0
      %5778 = vmatpush2.bf16.msra.mxu0 0
      %5779 = vmatprep.subr.bf16.mxu0 0
      %5780 = vmatpush2.bf16.msra.mxu0 0
      %5781 = vmatprep.subr.bf16.mxu0 0
      %5782 = vmatpush2.bf16.msra.mxu0 0
      %5783 = vmatprep.mubr.bf16.mxu0 0
      %5784 = vmatmul.mubr.bf16.gmra.mxu0 %v5639
      %v5785 = vpop.f32.mrf.mxu0
      %v5786 = vadd.f32 0.0, %v5785
      %v5787 = vpop.f32.mrf.mxu0
      %v5788 = vadd.f32 0.0, %v5787
      %v5789 = vpop.f32.mrf.mxu0
      %v5790 = vadd.f32 0.0, %v5789
      %v5791 = vpop.f32.mrf.mxu0
      %v5792 = vadd.f32 0.0, %v5791
      %5793 = vmatprep.mubr.bf16.mxu0 0
      %5794 = vmatmul.mubr.bf16.gmra.mxu0 %v5640
      %v5795 = vpop.f32.mrf.mxu0
      %v5796 = vadd.f32 0.0, %v5795
      %v5797 = vpop.f32.mrf.mxu0
      %v5798 = vadd.f32 0.0, %v5797
      %v5799 = vpop.f32.mrf.mxu0
      %v5800 = vadd.f32 0.0, %v5799
      %v5801 = vpop.f32.mrf.mxu0
      %v5802 = vadd.f32 0.0, %v5801
      %5803 = vmatprep.mubr.bf16.mxu0 0
      %5804 = vmatmul.mubr.bf16.gmra.mxu0 %v5641
      %v5805 = vpop.f32.mrf.mxu0
      %v5806 = vadd.f32 0.0, %v5805
      %v5807 = vpop.f32.mrf.mxu0
      %v5808 = vadd.f32 0.0, %v5807
      %v5809 = vpop.f32.mrf.mxu0
      %v5810 = vadd.f32 0.0, %v5809
      %v5811 = vpop.f32.mrf.mxu0
      %v5812 = vadd.f32 0.0, %v5811
      %5813 = vmatprep.mubr.bf16.mxu0 0
      %5814 = vmatmul.mubr.bf16.gmra.mxu0 %v5642
      %v5815 = vpop.f32.mrf.mxu0
      %v5816 = vadd.f32 0.0, %v5815
      %v5817 = vpop.f32.mrf.mxu0
      %v5818 = vadd.f32 0.0, %v5817
      %v5819 = vpop.f32.mrf.mxu0
      %v5820 = vadd.f32 0.0, %v5819
      %v5821 = vpop.f32.mrf.mxu0
      %v5822 = vadd.f32 0.0, %v5821
      %5823 = vmatprep.mubr.bf16.mxu0 0
      %5824 = vmatmul.mubr.bf16.gmra.mxu0 %v5643
      %v5825 = vpop.f32.mrf.mxu0
      %v5826 = vadd.f32 0.0, %v5825
      %v5827 = vpop.f32.mrf.mxu0
      %v5828 = vadd.f32 0.0, %v5827
      %v5829 = vpop.f32.mrf.mxu0
      %v5830 = vadd.f32 0.0, %v5829
      %v5831 = vpop.f32.mrf.mxu0
      %v5832 = vadd.f32 0.0, %v5831
      %5833 = vmatprep.mubr.bf16.mxu0 0
      %5834 = vmatmul.mubr.bf16.gmra.mxu0 %v5644
      %v5835 = vpop.f32.mrf.mxu0
      %v5836 = vadd.f32 0.0, %v5835
      %v5837 = vpop.f32.mrf.mxu0
      %v5838 = vadd.f32 0.0, %v5837
      %v5839 = vpop.f32.mrf.mxu0
      %v5840 = vadd.f32 0.0, %v5839
      %v5841 = vpop.f32.mrf.mxu0
      %v5842 = vadd.f32 0.0, %v5841
      %5843 = vmatprep.mubr.bf16.mxu0 0
      %5844 = vmatmul.mubr.bf16.gmra.mxu0 %v5645
      %v5845 = vpop.f32.mrf.mxu0
      %v5846 = vadd.f32 0.0, %v5845
      %v5847 = vpop.f32.mrf.mxu0
      %v5848 = vadd.f32 0.0, %v5847
      %v5849 = vpop.f32.mrf.mxu0
      %v5850 = vadd.f32 0.0, %v5849
      %v5851 = vpop.f32.mrf.mxu0
      %v5852 = vadd.f32 0.0, %v5851
      %5853 = vmatprep.mubr.bf16.mxu0 0
      %5854 = vmatmul.mubr.bf16.gmra.mxu0 %v5646
      %v5855 = vpop.f32.mrf.mxu0
      %v5856 = vadd.f32 0.0, %v5855
      %v5857 = vpop.f32.mrf.mxu0
      %v5858 = vadd.f32 0.0, %v5857
      %v5859 = vpop.f32.mrf.mxu0
      %v5860 = vadd.f32 0.0, %v5859
      %v5861 = vpop.f32.mrf.mxu0
      %v5862 = vadd.f32 0.0, %v5861
      %5863 = vmatprep.mubr.bf16.mxu0 0
      %5864 = vmatmul.mubr.bf16.gmra.mxu0 %v5647
      %v5865 = vpop.f32.mrf.mxu0
      %v5866 = vadd.f32 0.0, %v5865
      %v5867 = vpop.f32.mrf.mxu0
      %v5868 = vadd.f32 0.0, %v5867
      %v5869 = vpop.f32.mrf.mxu0
      %v5870 = vadd.f32 0.0, %v5869
      %v5871 = vpop.f32.mrf.mxu0
      %v5872 = vadd.f32 0.0, %v5871
      %5873 = vmatprep.mubr.bf16.mxu0 0
      %5874 = vmatmul.mubr.bf16.gmra.mxu0 %v5648
      %v5875 = vpop.f32.mrf.mxu0
      %v5876 = vadd.f32 0.0, %v5875
      %v5877 = vpop.f32.mrf.mxu0
      %v5878 = vadd.f32 0.0, %v5877
      %v5879 = vpop.f32.mrf.mxu0
      %v5880 = vadd.f32 0.0, %v5879
      %v5881 = vpop.f32.mrf.mxu0
      %v5882 = vadd.f32 0.0, %v5881
      %5883 = vmatprep.mubr.bf16.mxu0 0
      %5884 = vmatmul.mubr.bf16.gmra.mxu0 %v5649
      %v5885 = vpop.f32.mrf.mxu0
      %v5886 = vadd.f32 0.0, %v5885
      %v5887 = vpop.f32.mrf.mxu0
      %v5888 = vadd.f32 0.0, %v5887
      %v5889 = vpop.f32.mrf.mxu0
      %v5890 = vadd.f32 0.0, %v5889
      %v5891 = vpop.f32.mrf.mxu0
      %v5892 = vadd.f32 0.0, %v5891
      %5893 = vmatprep.mubr.bf16.mxu0 0
      %5894 = vmatmul.mubr.bf16.gmra.mxu0 %v5650
      %v5895 = vpop.f32.mrf.mxu0
      %v5896 = vadd.f32 0.0, %v5895
      %v5897 = vpop.f32.mrf.mxu0
      %v5898 = vadd.f32 0.0, %v5897
      %v5899 = vpop.f32.mrf.mxu0
      %v5900 = vadd.f32 0.0, %v5899
      %v5901 = vpop.f32.mrf.mxu0
      %v5902 = vadd.f32 0.0, %v5901
      %5903 = vmatprep.mubr.bf16.mxu0 0
      %5904 = vmatmul.mubr.bf16.gmra.mxu0 %v5651
      %v5905 = vpop.f32.mrf.mxu0
      %v5906 = vadd.f32 0.0, %v5905
      %v5907 = vpop.f32.mrf.mxu0
      %v5908 = vadd.f32 0.0, %v5907
      %v5909 = vpop.f32.mrf.mxu0
      %v5910 = vadd.f32 0.0, %v5909
      %v5911 = vpop.f32.mrf.mxu0
      %v5912 = vadd.f32 0.0, %v5911
      %5913 = vmatprep.mubr.bf16.mxu0 0
      %5914 = vmatmul.mubr.bf16.gmra.mxu0 %v5652
      %v5915 = vpop.f32.mrf.mxu0
      %v5916 = vadd.f32 0.0, %v5915
      %v5917 = vpop.f32.mrf.mxu0
      %v5918 = vadd.f32 0.0, %v5917
      %v5919 = vpop.f32.mrf.mxu0
      %v5920 = vadd.f32 0.0, %v5919
      %v5921 = vpop.f32.mrf.mxu0
      %v5922 = vadd.f32 0.0, %v5921
      %5923 = vmatprep.mubr.bf16.mxu0 0
      %5924 = vmatmul.mubr.bf16.gmra.mxu0 %v5653
      %v5925 = vpop.f32.mrf.mxu0
      %v5926 = vadd.f32 0.0, %v5925
      %v5927 = vpop.f32.mrf.mxu0
      %v5928 = vadd.f32 0.0, %v5927
      %v5929 = vpop.f32.mrf.mxu0
      %v5930 = vadd.f32 0.0, %v5929
      %v5931 = vpop.f32.mrf.mxu0
      %v5932 = vadd.f32 0.0, %v5931
      %5933 = vmatprep.mubr.bf16.mxu0 0
      %5934 = vmatmul.mubr.bf16.gmra.mxu0 %v5654
      %v5935 = vpop.f32.mrf.mxu0
      %v5936 = vadd.f32 0.0, %v5935
      %v5937 = vpop.f32.mrf.mxu0
      %v5938 = vadd.f32 0.0, %v5937
      %v5939 = vpop.f32.mrf.mxu0
      %v5940 = vadd.f32 0.0, %v5939
      %v5941 = vpop.f32.mrf.mxu0
      %v5942 = vadd.f32 0.0, %v5941
      %5943 = vdwg.mxu0
      %v5944 = vadd.f32 %v5542, %v5786
      %v5945 = vadd.f32 %v5543, %v5788
      %v5946 = vadd.f32 %v5544, %v5790
      %v5947 = vadd.f32 %v5545, %v5792
      %v5948 = vadd.f32 %v5546, %v5796
      %v5949 = vadd.f32 %v5547, %v5798
      %v5950 = vadd.f32 %v5548, %v5800
      %v5951 = vadd.f32 %v5549, %v5802
      %v5952 = vadd.f32 %v5550, %v5806
      %v5953 = vadd.f32 %v5551, %v5808
      %v5954 = vadd.f32 %v5552, %v5810
      %v5955 = vadd.f32 %v5553, %v5812
      %v5956 = vadd.f32 %v5554, %v5816
      %v5957 = vadd.f32 %v5555, %v5818
      %v5958 = vadd.f32 %v5556, %v5820
      %v5959 = vadd.f32 %v5557, %v5822
      %v5960 = vadd.f32 %v5558, %v5826
      %v5961 = vadd.f32 %v5559, %v5828
      %v5962 = vadd.f32 %v5560, %v5830
      %v5963 = vadd.f32 %v5561, %v5832
      %v5964 = vadd.f32 %v5562, %v5836
      %v5965 = vadd.f32 %v5563, %v5838
      %v5966 = vadd.f32 %v5564, %v5840
      %v5967 = vadd.f32 %v5565, %v5842
      %v5968 = vadd.f32 %v5566, %v5846
      %v5969 = vadd.f32 %v5567, %v5848
      %v5970 = vadd.f32 %v5568, %v5850
      %v5971 = vadd.f32 %v5569, %v5852
      %v5972 = vadd.f32 %v5570, %v5856
      %v5973 = vadd.f32 %v5571, %v5858
      %v5974 = vadd.f32 %v5572, %v5860
      %v5975 = vadd.f32 %v5573, %v5862
      %v5976 = vadd.f32 %v5574, %v5866
      %v5977 = vadd.f32 %v5575, %v5868
      %v5978 = vadd.f32 %v5576, %v5870
      %v5979 = vadd.f32 %v5577, %v5872
      %v5980 = vadd.f32 %v5578, %v5876
      %v5981 = vadd.f32 %v5579, %v5878
      %v5982 = vadd.f32 %v5580, %v5880
      %v5983 = vadd.f32 %v5581, %v5882
      %v5984 = vadd.f32 %v5582, %v5886
      %v5985 = vadd.f32 %v5583, %v5888
      %v5986 = vadd.f32 %v5584, %v5890
      %v5987 = vadd.f32 %v5585, %v5892
      %v5988 = vadd.f32 %v5586, %v5896
      %v5989 = vadd.f32 %v5587, %v5898
      %v5990 = vadd.f32 %v5588, %v5900
      %v5991 = vadd.f32 %v5589, %v5902
      %v5992 = vadd.f32 %v5590, %v5906
      %v5993 = vadd.f32 %v5591, %v5908
      %v5994 = vadd.f32 %v5592, %v5910
      %v5995 = vadd.f32 %v5593, %v5912
      %v5996 = vadd.f32 %v5594, %v5916
      %v5997 = vadd.f32 %v5595, %v5918
      %v5998 = vadd.f32 %v5596, %v5920
      %v5999 = vadd.f32 %v5597, %v5922
      %v6000 = vadd.f32 %v5598, %v5926
      %v6001 = vadd.f32 %v5599, %v5928
      %v6002 = vadd.f32 %v5600, %v5930
      %v6003 = vadd.f32 %v5601, %v5932
      %v6004 = vadd.f32 %v5602, %v5936
      %v6005 = vadd.f32 %v5603, %v5938
      %v6006 = vadd.f32 %v5604, %v5940
      %v6007 = vadd.f32 %v5605, %v5942
      %v6008 = vld [vmem:[%s5606 + $0x1] sm:$0xff]
      %v6009 = vld [vmem:[%s5606 + $0x9] sm:$0xff]
      %v6010 = vld [vmem:[%s5606 + $0x19] sm:$0xff]
      %v6011 = vld [vmem:[%s5606 + $0x21] sm:$0xff]
      %v6012 = vld [vmem:[%s5606 + $0x31] sm:$0xff]
      %v6013 = vld [vmem:[%s5606 + $0x39] sm:$0xff]
      %v6014 = vld [vmem:[%s5606 + $0x49] sm:$0xff]
      %v6015 = vld [vmem:[%s5606 + $0x51] sm:$0xff]
      %v6016 = vld [vmem:[%s5606 + $0x61] sm:$0xff]
      %v6017 = vld [vmem:[%s5606 + $0x69] sm:$0xff]
      %v6018 = vld [vmem:[%s5606 + $0x79] sm:$0xff]
      %v6019 = vld [vmem:[%s5606 + $0x81] sm:$0xff]
      %v6020 = vld [vmem:[%s5606 + $0x91] sm:$0xff]
      %v6021 = vld [vmem:[%s5606 + $0x99] sm:$0xff]
      %v6022 = vld [vmem:[%s5606 + $0xa9] sm:$0xff]
      %v6023 = vld [vmem:[%s5606 + $0xb1] sm:$0xff]
      %v6024 = vld [vmem:[%s5606 + $0xc1] sm:$0xff]
      %v6025 = vld [vmem:[%s5606 + $0xc9] sm:$0xff]
      %v6026 = vld [vmem:[%s5606 + $0xd9] sm:$0xff]
      %v6027 = vld [vmem:[%s5606 + $0xe1] sm:$0xff]
      %v6028 = vld [vmem:[%s5606 + $0xf1] sm:$0xff]
      %v6029 = vld [vmem:[%s5606 + $0xf9] sm:$0xff]
      %v6030 = vld [vmem:[%s5606 + $0x109] sm:$0xff]
      %v6031 = vld [vmem:[%s5606 + $0x111] sm:$0xff]
      %v6032 = vld [vmem:[%s5606 + $0x121] sm:$0xff]
      %v6033 = vld [vmem:[%s5606 + $0x129] sm:$0xff]
      %v6034 = vld [vmem:[%s5606 + $0x139] sm:$0xff]
      %v6035 = vld [vmem:[%s5606 + $0x141] sm:$0xff]
      %v6036 = vld [vmem:[%s5606 + $0x151] sm:$0xff]
      %v6037 = vld [vmem:[%s5606 + $0x159] sm:$0xff]
      %v6038 = vld [vmem:[%s5606 + $0x169] sm:$0xff]
      %v6039 = vld [vmem:[%s5606 + $0x171] sm:$0xff]
      %v6040 = vpack.c.bf16 %v6009, %v6008
      %v6041 = vpack.c.bf16 %v6011, %v6010
      %v6042 = vpack.c.bf16 %v6013, %v6012
      %v6043 = vpack.c.bf16 %v6015, %v6014
      %v6044 = vpack.c.bf16 %v6017, %v6016
      %v6045 = vpack.c.bf16 %v6019, %v6018
      %v6046 = vpack.c.bf16 %v6021, %v6020
      %v6047 = vpack.c.bf16 %v6023, %v6022
      %v6048 = vpack.c.bf16 %v6025, %v6024
      %v6049 = vpack.c.bf16 %v6027, %v6026
      %v6050 = vpack.c.bf16 %v6029, %v6028
      %v6051 = vpack.c.bf16 %v6031, %v6030
      %v6052 = vpack.c.bf16 %v6033, %v6032
      %v6053 = vpack.c.bf16 %v6035, %v6034
      %v6054 = vpack.c.bf16 %v6037, %v6036
      %v6055 = vpack.c.bf16 %v6039, %v6038
      %v6056 = vld [vmem:[%s4 + $0x380] sm:$0xff]
      %v6057 = vld [vmem:[%s4 + $0x388] sm:$0xff]
      %v6058 = vld [vmem:[%s4 + $0x390] sm:$0xff]
      %v6059 = vld [vmem:[%s4 + $0x398] sm:$0xff]
      %v6060 = vld [vmem:[%s4 + $0x3a0] sm:$0xff]
      %v6061 = vld [vmem:[%s4 + $0x3a8] sm:$0xff]
      %v6062 = vld [vmem:[%s4 + $0x3b0] sm:$0xff]
      %v6063 = vld [vmem:[%s4 + $0x3b8] sm:$0xff]
      %v6064 = vld [vmem:[%s4 + $0x3c0] sm:$0xff]
      %v6065 = vld [vmem:[%s4 + $0x3c8] sm:$0xff]
      %v6066 = vld [vmem:[%s4 + $0x3d0] sm:$0xff]
      %v6067 = vld [vmem:[%s4 + $0x3d8] sm:$0xff]
      %v6068 = vld [vmem:[%s4 + $0x3e0] sm:$0xff]
      %v6069 = vld [vmem:[%s4 + $0x3e8] sm:$0xff]
      %v6070 = vld [vmem:[%s4 + $0x3f0] sm:$0xff]
      %v6071 = vld [vmem:[%s4 + $0x3f8] sm:$0xff]
      %v6088 = vunpack.c.l.b16 %v6056
      %v6089 = vunpack.c.h.b16 %v6056
      %v6090 = vunpack.c.l.b16 %v6057
      %v6091 = vunpack.c.h.b16 %v6057
      %v6092 = vunpack.c.l.b16 %v6058
      %v6093 = vunpack.c.h.b16 %v6058
      %v6094 = vunpack.c.l.b16 %v6059
      %v6095 = vunpack.c.h.b16 %v6059
      %v6096 = vunpack.c.l.b16 %v6060
      %v6097 = vunpack.c.h.b16 %v6060
      %v6098 = vunpack.c.l.b16 %v6061
      %v6099 = vunpack.c.h.b16 %v6061
      %v6100 = vunpack.c.l.b16 %v6062
      %v6101 = vunpack.c.h.b16 %v6062
      %v6102 = vunpack.c.l.b16 %v6063
      %v6103 = vunpack.c.h.b16 %v6063
      %v6104 = vunpack.c.l.b16 %v6064
      %v6105 = vunpack.c.h.b16 %v6064
      %v6106 = vunpack.c.l.b16 %v6065
      %v6107 = vunpack.c.h.b16 %v6065
      %v6108 = vunpack.c.l.b16 %v6066
      %v6109 = vunpack.c.h.b16 %v6066
      %v6110 = vunpack.c.l.b16 %v6067
      %v6111 = vunpack.c.h.b16 %v6067
      %v6112 = vunpack.c.l.b16 %v6068
      %v6113 = vunpack.c.h.b16 %v6068
      %v6114 = vunpack.c.l.b16 %v6069
      %v6115 = vunpack.c.h.b16 %v6069
      %v6116 = vunpack.c.l.b16 %v6070
      %v6117 = vunpack.c.h.b16 %v6070
      %v6118 = vunpack.c.l.b16 %v6071
      %v6119 = vunpack.c.h.b16 %v6071
      %v6120 = vpack.c.b16 %v6090, %v6088
      %v6121 = vpack.c.b16 %v6091, %v6089
      %v6122 = vpack.c.b16 %v6094, %v6092
      %v6123 = vpack.c.b16 %v6095, %v6093
      %v6124 = vpack.c.b16 %v6098, %v6096
      %v6125 = vpack.c.b16 %v6099, %v6097
      %v6126 = vpack.c.b16 %v6102, %v6100
      %v6127 = vpack.c.b16 %v6103, %v6101
      %v6128 = vpack.c.b16 %v6106, %v6104
      %v6129 = vpack.c.b16 %v6107, %v6105
      %v6130 = vpack.c.b16 %v6110, %v6108
      %v6131 = vpack.c.b16 %v6111, %v6109
      %v6132 = vpack.c.b16 %v6114, %v6112
      %v6133 = vpack.c.b16 %v6115, %v6113
      %v6134 = vpack.c.b16 %v6118, %v6116
      %v6135 = vpack.c.b16 %v6119, %v6117
      %6152 = vmatprep.subr.bf16.mxu0 %v6135
      %6153 = vmatpush1.bf16.msra.mxu0 %v6134
      %6154 = vmatprep.subr.bf16.mxu0 %v6133
      %6155 = vmatpush1.bf16.msra.mxu0 %v6132
      %6156 = vmatprep.subr.bf16.mxu0 %v6131
      %6157 = vmatpush1.bf16.msra.mxu0 %v6130
      %6158 = vmatprep.subr.bf16.mxu0 %v6129
      %6159 = vmatpush1.bf16.msra.mxu0 %v6128
      %6160 = vmatprep.subr.bf16.mxu0 %v6127
      %6161 = vmatpush1.bf16.msra.mxu0 %v6126
      %6162 = vmatprep.subr.bf16.mxu0 %v6125
      %6163 = vmatpush1.bf16.msra.mxu0 %v6124
      %6164 = vmatprep.subr.bf16.mxu0 %v6123
      %6165 = vmatpush1.bf16.msra.mxu0 %v6122
      %6166 = vmatprep.subr.bf16.mxu0 %v6121
      %6167 = vmatpush1.bf16.msra.mxu0 %v6120
      %6168 = vmatprep.subr.bf16.mxu0 0
      %6169 = vmatpush2.bf16.msra.mxu0 0
      %6170 = vmatprep.subr.bf16.mxu0 0
      %6171 = vmatpush2.bf16.msra.mxu0 0
      %6172 = vmatprep.subr.bf16.mxu0 0
      %6173 = vmatpush2.bf16.msra.mxu0 0
      %6174 = vmatprep.subr.bf16.mxu0 0
      %6175 = vmatpush2.bf16.msra.mxu0 0
      %6176 = vmatprep.subr.bf16.mxu0 0
      %6177 = vmatpush2.bf16.msra.mxu0 0
      %6178 = vmatprep.subr.bf16.mxu0 0
      %6179 = vmatpush2.bf16.msra.mxu0 0
      %6180 = vmatprep.subr.bf16.mxu0 0
      %6181 = vmatpush2.bf16.msra.mxu0 0
      %6182 = vmatprep.subr.bf16.mxu0 0
      %6183 = vmatpush2.bf16.msra.mxu0 0
      %6184 = vmatprep.mubr.bf16.mxu0 0
      %6185 = vmatmul.mubr.bf16.gmra.mxu0 %v6040
      %v6186 = vpop.f32.mrf.mxu0
      %v6187 = vadd.f32 0.0, %v6186
      %v6188 = vpop.f32.mrf.mxu0
      %v6189 = vadd.f32 0.0, %v6188
      %v6190 = vpop.f32.mrf.mxu0
      %v6191 = vadd.f32 0.0, %v6190
      %v6192 = vpop.f32.mrf.mxu0
      %v6193 = vadd.f32 0.0, %v6192
      %6194 = vmatprep.mubr.bf16.mxu0 0
      %6195 = vmatmul.mubr.bf16.gmra.mxu0 %v6041
      %v6196 = vpop.f32.mrf.mxu0
      %v6197 = vadd.f32 0.0, %v6196
      %v6198 = vpop.f32.mrf.mxu0
      %v6199 = vadd.f32 0.0, %v6198
      %v6200 = vpop.f32.mrf.mxu0
      %v6201 = vadd.f32 0.0, %v6200
      %v6202 = vpop.f32.mrf.mxu0
      %v6203 = vadd.f32 0.0, %v6202
      %6204 = vmatprep.mubr.bf16.mxu0 0
      %6205 = vmatmul.mubr.bf16.gmra.mxu0 %v6042
      %v6206 = vpop.f32.mrf.mxu0
      %v6207 = vadd.f32 0.0, %v6206
      %v6208 = vpop.f32.mrf.mxu0
      %v6209 = vadd.f32 0.0, %v6208
      %v6210 = vpop.f32.mrf.mxu0
      %v6211 = vadd.f32 0.0, %v6210
      %v6212 = vpop.f32.mrf.mxu0
      %v6213 = vadd.f32 0.0, %v6212
      %6214 = vmatprep.mubr.bf16.mxu0 0
      %6215 = vmatmul.mubr.bf16.gmra.mxu0 %v6043
      %v6216 = vpop.f32.mrf.mxu0
      %v6217 = vadd.f32 0.0, %v6216
      %v6218 = vpop.f32.mrf.mxu0
      %v6219 = vadd.f32 0.0, %v6218
      %v6220 = vpop.f32.mrf.mxu0
      %v6221 = vadd.f32 0.0, %v6220
      %v6222 = vpop.f32.mrf.mxu0
      %v6223 = vadd.f32 0.0, %v6222
      %6224 = vmatprep.mubr.bf16.mxu0 0
      %6225 = vmatmul.mubr.bf16.gmra.mxu0 %v6044
      %v6226 = vpop.f32.mrf.mxu0
      %v6227 = vadd.f32 0.0, %v6226
      %v6228 = vpop.f32.mrf.mxu0
      %v6229 = vadd.f32 0.0, %v6228
      %v6230 = vpop.f32.mrf.mxu0
      %v6231 = vadd.f32 0.0, %v6230
      %v6232 = vpop.f32.mrf.mxu0
      %v6233 = vadd.f32 0.0, %v6232
      %6234 = vmatprep.mubr.bf16.mxu0 0
      %6235 = vmatmul.mubr.bf16.gmra.mxu0 %v6045
      %v6236 = vpop.f32.mrf.mxu0
      %v6237 = vadd.f32 0.0, %v6236
      %v6238 = vpop.f32.mrf.mxu0
      %v6239 = vadd.f32 0.0, %v6238
      %v6240 = vpop.f32.mrf.mxu0
      %v6241 = vadd.f32 0.0, %v6240
      %v6242 = vpop.f32.mrf.mxu0
      %v6243 = vadd.f32 0.0, %v6242
      %6244 = vmatprep.mubr.bf16.mxu0 0
      %6245 = vmatmul.mubr.bf16.gmra.mxu0 %v6046
      %v6246 = vpop.f32.mrf.mxu0
      %v6247 = vadd.f32 0.0, %v6246
      %v6248 = vpop.f32.mrf.mxu0
      %v6249 = vadd.f32 0.0, %v6248
      %v6250 = vpop.f32.mrf.mxu0
      %v6251 = vadd.f32 0.0, %v6250
      %v6252 = vpop.f32.mrf.mxu0
      %v6253 = vadd.f32 0.0, %v6252
      %6254 = vmatprep.mubr.bf16.mxu0 0
      %6255 = vmatmul.mubr.bf16.gmra.mxu0 %v6047
      %v6256 = vpop.f32.mrf.mxu0
      %v6257 = vadd.f32 0.0, %v6256
      %v6258 = vpop.f32.mrf.mxu0
      %v6259 = vadd.f32 0.0, %v6258
      %v6260 = vpop.f32.mrf.mxu0
      %v6261 = vadd.f32 0.0, %v6260
      %v6262 = vpop.f32.mrf.mxu0
      %v6263 = vadd.f32 0.0, %v6262
      %6264 = vmatprep.mubr.bf16.mxu0 0
      %6265 = vmatmul.mubr.bf16.gmra.mxu0 %v6048
      %v6266 = vpop.f32.mrf.mxu0
      %v6267 = vadd.f32 0.0, %v6266
      %v6268 = vpop.f32.mrf.mxu0
      %v6269 = vadd.f32 0.0, %v6268
      %v6270 = vpop.f32.mrf.mxu0
      %v6271 = vadd.f32 0.0, %v6270
      %v6272 = vpop.f32.mrf.mxu0
      %v6273 = vadd.f32 0.0, %v6272
      %6274 = vmatprep.mubr.bf16.mxu0 0
      %6275 = vmatmul.mubr.bf16.gmra.mxu0 %v6049
      %v6276 = vpop.f32.mrf.mxu0
      %v6277 = vadd.f32 0.0, %v6276
      %v6278 = vpop.f32.mrf.mxu0
      %v6279 = vadd.f32 0.0, %v6278
      %v6280 = vpop.f32.mrf.mxu0
      %v6281 = vadd.f32 0.0, %v6280
      %v6282 = vpop.f32.mrf.mxu0
      %v6283 = vadd.f32 0.0, %v6282
      %6284 = vmatprep.mubr.bf16.mxu0 0
      %6285 = vmatmul.mubr.bf16.gmra.mxu0 %v6050
      %v6286 = vpop.f32.mrf.mxu0
      %v6287 = vadd.f32 0.0, %v6286
      %v6288 = vpop.f32.mrf.mxu0
      %v6289 = vadd.f32 0.0, %v6288
      %v6290 = vpop.f32.mrf.mxu0
      %v6291 = vadd.f32 0.0, %v6290
      %v6292 = vpop.f32.mrf.mxu0
      %v6293 = vadd.f32 0.0, %v6292
      %6294 = vmatprep.mubr.bf16.mxu0 0
      %6295 = vmatmul.mubr.bf16.gmra.mxu0 %v6051
      %v6296 = vpop.f32.mrf.mxu0
      %v6297 = vadd.f32 0.0, %v6296
      %v6298 = vpop.f32.mrf.mxu0
      %v6299 = vadd.f32 0.0, %v6298
      %v6300 = vpop.f32.mrf.mxu0
      %v6301 = vadd.f32 0.0, %v6300
      %v6302 = vpop.f32.mrf.mxu0
      %v6303 = vadd.f32 0.0, %v6302
      %6304 = vmatprep.mubr.bf16.mxu0 0
      %6305 = vmatmul.mubr.bf16.gmra.mxu0 %v6052
      %v6306 = vpop.f32.mrf.mxu0
      %v6307 = vadd.f32 0.0, %v6306
      %v6308 = vpop.f32.mrf.mxu0
      %v6309 = vadd.f32 0.0, %v6308
      %v6310 = vpop.f32.mrf.mxu0
      %v6311 = vadd.f32 0.0, %v6310
      %v6312 = vpop.f32.mrf.mxu0
      %v6313 = vadd.f32 0.0, %v6312
      %6314 = vmatprep.mubr.bf16.mxu0 0
      %6315 = vmatmul.mubr.bf16.gmra.mxu0 %v6053
      %v6316 = vpop.f32.mrf.mxu0
      %v6317 = vadd.f32 0.0, %v6316
      %v6318 = vpop.f32.mrf.mxu0
      %v6319 = vadd.f32 0.0, %v6318
      %v6320 = vpop.f32.mrf.mxu0
      %v6321 = vadd.f32 0.0, %v6320
      %v6322 = vpop.f32.mrf.mxu0
      %v6323 = vadd.f32 0.0, %v6322
      %6324 = vmatprep.mubr.bf16.mxu0 0
      %6325 = vmatmul.mubr.bf16.gmra.mxu0 %v6054
      %v6326 = vpop.f32.mrf.mxu0
      %v6327 = vadd.f32 0.0, %v6326
      %v6328 = vpop.f32.mrf.mxu0
      %v6329 = vadd.f32 0.0, %v6328
      %v6330 = vpop.f32.mrf.mxu0
      %v6331 = vadd.f32 0.0, %v6330
      %v6332 = vpop.f32.mrf.mxu0
      %v6333 = vadd.f32 0.0, %v6332
      %6334 = vmatprep.mubr.bf16.mxu0 0
      %6335 = vmatmul.mubr.bf16.gmra.mxu0 %v6055
      %v6336 = vpop.f32.mrf.mxu0
      %v6337 = vadd.f32 0.0, %v6336
      %v6338 = vpop.f32.mrf.mxu0
      %v6339 = vadd.f32 0.0, %v6338
      %v6340 = vpop.f32.mrf.mxu0
      %v6341 = vadd.f32 0.0, %v6340
      %v6342 = vpop.f32.mrf.mxu0
      %v6343 = vadd.f32 0.0, %v6342
      %6344 = vdwg.mxu0
      %v6345 = vadd.f32 %v5944, %v6187
      %v6346 = vadd.f32 %v5945, %v6189
      %v6347 = vadd.f32 %v5946, %v6191
      %v6348 = vadd.f32 %v5947, %v6193
      %v6349 = vadd.f32 %v5948, %v6197
      %v6350 = vadd.f32 %v5949, %v6199
      %v6351 = vadd.f32 %v5950, %v6201
      %v6352 = vadd.f32 %v5951, %v6203
      %v6353 = vadd.f32 %v5952, %v6207
      %v6354 = vadd.f32 %v5953, %v6209
      %v6355 = vadd.f32 %v5954, %v6211
      %v6356 = vadd.f32 %v5955, %v6213
      %v6357 = vadd.f32 %v5956, %v6217
      %v6358 = vadd.f32 %v5957, %v6219
      %v6359 = vadd.f32 %v5958, %v6221
      %v6360 = vadd.f32 %v5959, %v6223
      %v6361 = vadd.f32 %v5960, %v6227
      %v6362 = vadd.f32 %v5961, %v6229
      %v6363 = vadd.f32 %v5962, %v6231
      %v6364 = vadd.f32 %v5963, %v6233
      %v6365 = vadd.f32 %v5964, %v6237
      %v6366 = vadd.f32 %v5965, %v6239
      %v6367 = vadd.f32 %v5966, %v6241
      %v6368 = vadd.f32 %v5967, %v6243
      %v6369 = vadd.f32 %v5968, %v6247
      %v6370 = vadd.f32 %v5969, %v6249
      %v6371 = vadd.f32 %v5970, %v6251
      %v6372 = vadd.f32 %v5971, %v6253
      %v6373 = vadd.f32 %v5972, %v6257
      %v6374 = vadd.f32 %v5973, %v6259
      %v6375 = vadd.f32 %v5974, %v6261
      %v6376 = vadd.f32 %v5975, %v6263
      %v6377 = vadd.f32 %v5976, %v6267
      %v6378 = vadd.f32 %v5977, %v6269
      %v6379 = vadd.f32 %v5978, %v6271
      %v6380 = vadd.f32 %v5979, %v6273
      %v6381 = vadd.f32 %v5980, %v6277
      %v6382 = vadd.f32 %v5981, %v6279
      %v6383 = vadd.f32 %v5982, %v6281
      %v6384 = vadd.f32 %v5983, %v6283
      %v6385 = vadd.f32 %v5984, %v6287
      %v6386 = vadd.f32 %v5985, %v6289
      %v6387 = vadd.f32 %v5986, %v6291
      %v6388 = vadd.f32 %v5987, %v6293
      %v6389 = vadd.f32 %v5988, %v6297
      %v6390 = vadd.f32 %v5989, %v6299
      %v6391 = vadd.f32 %v5990, %v6301
      %v6392 = vadd.f32 %v5991, %v6303
      %v6393 = vadd.f32 %v5992, %v6307
      %v6394 = vadd.f32 %v5993, %v6309
      %v6395 = vadd.f32 %v5994, %v6311
      %v6396 = vadd.f32 %v5995, %v6313
      %v6397 = vadd.f32 %v5996, %v6317
      %v6398 = vadd.f32 %v5997, %v6319
      %v6399 = vadd.f32 %v5998, %v6321
      %v6400 = vadd.f32 %v5999, %v6323
      %v6401 = vadd.f32 %v6000, %v6327
      %v6402 = vadd.f32 %v6001, %v6329
      %v6403 = vadd.f32 %v6002, %v6331
      %v6404 = vadd.f32 %v6003, %v6333
      %v6405 = vadd.f32 %v6004, %v6337
      %v6406 = vadd.f32 %v6005, %v6339
      %v6407 = vadd.f32 %v6006, %v6341
      %v6408 = vadd.f32 %v6007, %v6343
      %v6409 = vld [vmem:[%s5606 + $0x2] sm:$0xff]
      %v6410 = vld [vmem:[%s5606 + $0xa] sm:$0xff]
      %v6411 = vld [vmem:[%s5606 + $0x1a] sm:$0xff]
      %v6412 = vld [vmem:[%s5606 + $0x22] sm:$0xff]
      %v6413 = vld [vmem:[%s5606 + $0x32] sm:$0xff]
      %v6414 = vld [vmem:[%s5606 + $0x3a] sm:$0xff]
      %v6415 = vld [vmem:[%s5606 + $0x4a] sm:$0xff]
      %v6416 = vld [vmem:[%s5606 + $0x52] sm:$0xff]
      %v6417 = vld [vmem:[%s5606 + $0x62] sm:$0xff]
      %v6418 = vld [vmem:[%s5606 + $0x6a] sm:$0xff]
      %v6419 = vld [vmem:[%s5606 + $0x7a] sm:$0xff]
      %v6420 = vld [vmem:[%s5606 + $0x82] sm:$0xff]
      %v6421 = vld [vmem:[%s5606 + $0x92] sm:$0xff]
      %v6422 = vld [vmem:[%s5606 + $0x9a] sm:$0xff]
      %v6423 = vld [vmem:[%s5606 + $0xaa] sm:$0xff]
      %v6424 = vld [vmem:[%s5606 + $0xb2] sm:$0xff]
      %v6425 = vld [vmem:[%s5606 + $0xc2] sm:$0xff]
      %v6426 = vld [vmem:[%s5606 + $0xca] sm:$0xff]
      %v6427 = vld [vmem:[%s5606 + $0xda] sm:$0xff]
      %v6428 = vld [vmem:[%s5606 + $0xe2] sm:$0xff]
      %v6429 = vld [vmem:[%s5606 + $0xf2] sm:$0xff]
      %v6430 = vld [vmem:[%s5606 + $0xfa] sm:$0xff]
      %v6431 = vld [vmem:[%s5606 + $0x10a] sm:$0xff]
      %v6432 = vld [vmem:[%s5606 + $0x112] sm:$0xff]
      %v6433 = vld [vmem:[%s5606 + $0x122] sm:$0xff]
      %v6434 = vld [vmem:[%s5606 + $0x12a] sm:$0xff]
      %v6435 = vld [vmem:[%s5606 + $0x13a] sm:$0xff]
      %v6436 = vld [vmem:[%s5606 + $0x142] sm:$0xff]
      %v6437 = vld [vmem:[%s5606 + $0x152] sm:$0xff]
      %v6438 = vld [vmem:[%s5606 + $0x15a] sm:$0xff]
      %v6439 = vld [vmem:[%s5606 + $0x16a] sm:$0xff]
      %v6440 = vld [vmem:[%s5606 + $0x172] sm:$0xff]
      %v6441 = vpack.c.bf16 %v6410, %v6409
      %v6442 = vpack.c.bf16 %v6412, %v6411
      %v6443 = vpack.c.bf16 %v6414, %v6413
      %v6444 = vpack.c.bf16 %v6416, %v6415
      %v6445 = vpack.c.bf16 %v6418, %v6417
      %v6446 = vpack.c.bf16 %v6420, %v6419
      %v6447 = vpack.c.bf16 %v6422, %v6421
      %v6448 = vpack.c.bf16 %v6424, %v6423
      %v6449 = vpack.c.bf16 %v6426, %v6425
      %v6450 = vpack.c.bf16 %v6428, %v6427
      %v6451 = vpack.c.bf16 %v6430, %v6429
      %v6452 = vpack.c.bf16 %v6432, %v6431
      %v6453 = vpack.c.bf16 %v6434, %v6433
      %v6454 = vpack.c.bf16 %v6436, %v6435
      %v6455 = vpack.c.bf16 %v6438, %v6437
      %v6456 = vpack.c.bf16 %v6440, %v6439
      %v6457 = vld [vmem:[%s4 + $0x400] sm:$0xff]
      %v6458 = vld [vmem:[%s4 + $0x408] sm:$0xff]
      %v6459 = vld [vmem:[%s4 + $0x410] sm:$0xff]
      %v6460 = vld [vmem:[%s4 + $0x418] sm:$0xff]
      %v6461 = vld [vmem:[%s4 + $0x420] sm:$0xff]
      %v6462 = vld [vmem:[%s4 + $0x428] sm:$0xff]
      %v6463 = vld [vmem:[%s4 + $0x430] sm:$0xff]
      %v6464 = vld [vmem:[%s4 + $0x438] sm:$0xff]
      %v6465 = vld [vmem:[%s4 + $0x440] sm:$0xff]
      %v6466 = vld [vmem:[%s4 + $0x448] sm:$0xff]
      %v6467 = vld [vmem:[%s4 + $0x450] sm:$0xff]
      %v6468 = vld [vmem:[%s4 + $0x458] sm:$0xff]
      %v6469 = vld [vmem:[%s4 + $0x460] sm:$0xff]
      %v6470 = vld [vmem:[%s4 + $0x468] sm:$0xff]
      %v6471 = vld [vmem:[%s4 + $0x470] sm:$0xff]
      %v6472 = vld [vmem:[%s4 + $0x478] sm:$0xff]
      %v6489 = vunpack.c.l.b16 %v6457
      %v6490 = vunpack.c.h.b16 %v6457
      %v6491 = vunpack.c.l.b16 %v6458
      %v6492 = vunpack.c.h.b16 %v6458
      %v6493 = vunpack.c.l.b16 %v6459
      %v6494 = vunpack.c.h.b16 %v6459
      %v6495 = vunpack.c.l.b16 %v6460
      %v6496 = vunpack.c.h.b16 %v6460
      %v6497 = vunpack.c.l.b16 %v6461
      %v6498 = vunpack.c.h.b16 %v6461
      %v6499 = vunpack.c.l.b16 %v6462
      %v6500 = vunpack.c.h.b16 %v6462
      %v6501 = vunpack.c.l.b16 %v6463
      %v6502 = vunpack.c.h.b16 %v6463
      %v6503 = vunpack.c.l.b16 %v6464
      %v6504 = vunpack.c.h.b16 %v6464
      %v6505 = vunpack.c.l.b16 %v6465
      %v6506 = vunpack.c.h.b16 %v6465
      %v6507 = vunpack.c.l.b16 %v6466
      %v6508 = vunpack.c.h.b16 %v6466
      %v6509 = vunpack.c.l.b16 %v6467
      %v6510 = vunpack.c.h.b16 %v6467
      %v6511 = vunpack.c.l.b16 %v6468
      %v6512 = vunpack.c.h.b16 %v6468
      %v6513 = vunpack.c.l.b16 %v6469
      %v6514 = vunpack.c.h.b16 %v6469
      %v6515 = vunpack.c.l.b16 %v6470
      %v6516 = vunpack.c.h.b16 %v6470
      %v6517 = vunpack.c.l.b16 %v6471
      %v6518 = vunpack.c.h.b16 %v6471
      %v6519 = vunpack.c.l.b16 %v6472
      %v6520 = vunpack.c.h.b16 %v6472
      %v6521 = vpack.c.b16 %v6491, %v6489
      %v6522 = vpack.c.b16 %v6492, %v6490
      %v6523 = vpack.c.b16 %v6495, %v6493
      %v6524 = vpack.c.b16 %v6496, %v6494
      %v6525 = vpack.c.b16 %v6499, %v6497
      %v6526 = vpack.c.b16 %v6500, %v6498
      %v6527 = vpack.c.b16 %v6503, %v6501
      %v6528 = vpack.c.b16 %v6504, %v6502
      %v6529 = vpack.c.b16 %v6507, %v6505
      %v6530 = vpack.c.b16 %v6508, %v6506
      %v6531 = vpack.c.b16 %v6511, %v6509
      %v6532 = vpack.c.b16 %v6512, %v6510
      %v6533 = vpack.c.b16 %v6515, %v6513
      %v6534 = vpack.c.b16 %v6516, %v6514
      %v6535 = vpack.c.b16 %v6519, %v6517
      %v6536 = vpack.c.b16 %v6520, %v6518
      %6553 = vmatprep.subr.bf16.mxu0 %v6536
      %6554 = vmatpush1.bf16.msra.mxu0 %v6535
      %6555 = vmatprep.subr.bf16.mxu0 %v6534
      %6556 = vmatpush1.bf16.msra.mxu0 %v6533
      %6557 = vmatprep.subr.bf16.mxu0 %v6532
      %6558 = vmatpush1.bf16.msra.mxu0 %v6531
      %6559 = vmatprep.subr.bf16.mxu0 %v6530
      %6560 = vmatpush1.bf16.msra.mxu0 %v6529
      %6561 = vmatprep.subr.bf16.mxu0 %v6528
      %6562 = vmatpush1.bf16.msra.mxu0 %v6527
      %6563 = vmatprep.subr.bf16.mxu0 %v6526
      %6564 = vmatpush1.bf16.msra.mxu0 %v6525
      %6565 = vmatprep.subr.bf16.mxu0 %v6524
      %6566 = vmatpush1.bf16.msra.mxu0 %v6523
      %6567 = vmatprep.subr.bf16.mxu0 %v6522
      %6568 = vmatpush1.bf16.msra.mxu0 %v6521
      %6569 = vmatprep.subr.bf16.mxu0 0
      %6570 = vmatpush2.bf16.msra.mxu0 0
      %6571 = vmatprep.subr.bf16.mxu0 0
      %6572 = vmatpush2.bf16.msra.mxu0 0
      %6573 = vmatprep.subr.bf16.mxu0 0
      %6574 = vmatpush2.bf16.msra.mxu0 0
      %6575 = vmatprep.subr.bf16.mxu0 0
      %6576 = vmatpush2.bf16.msra.mxu0 0
      %6577 = vmatprep.subr.bf16.mxu0 0
      %6578 = vmatpush2.bf16.msra.mxu0 0
      %6579 = vmatprep.subr.bf16.mxu0 0
      %6580 = vmatpush2.bf16.msra.mxu0 0
      %6581 = vmatprep.subr.bf16.mxu0 0
      %6582 = vmatpush2.bf16.msra.mxu0 0
      %6583 = vmatprep.subr.bf16.mxu0 0
      %6584 = vmatpush2.bf16.msra.mxu0 0
      %6585 = vmatprep.mubr.bf16.mxu0 0
      %6586 = vmatmul.mubr.bf16.gmra.mxu0 %v6441
      %v6587 = vpop.f32.mrf.mxu0
      %v6588 = vadd.f32 0.0, %v6587
      %v6589 = vpop.f32.mrf.mxu0
      %v6590 = vadd.f32 0.0, %v6589
      %v6591 = vpop.f32.mrf.mxu0
      %v6592 = vadd.f32 0.0, %v6591
      %v6593 = vpop.f32.mrf.mxu0
      %v6594 = vadd.f32 0.0, %v6593
      %6595 = vmatprep.mubr.bf16.mxu0 0
      %6596 = vmatmul.mubr.bf16.gmra.mxu0 %v6442
      %v6597 = vpop.f32.mrf.mxu0
      %v6598 = vadd.f32 0.0, %v6597
      %v6599 = vpop.f32.mrf.mxu0
      %v6600 = vadd.f32 0.0, %v6599
      %v6601 = vpop.f32.mrf.mxu0
      %v6602 = vadd.f32 0.0, %v6601
      %v6603 = vpop.f32.mrf.mxu0
      %v6604 = vadd.f32 0.0, %v6603
      %6605 = vmatprep.mubr.bf16.mxu0 0
      %6606 = vmatmul.mubr.bf16.gmra.mxu0 %v6443
      %v6607 = vpop.f32.mrf.mxu0
      %v6608 = vadd.f32 0.0, %v6607
      %v6609 = vpop.f32.mrf.mxu0
      %v6610 = vadd.f32 0.0, %v6609
      %v6611 = vpop.f32.mrf.mxu0
      %v6612 = vadd.f32 0.0, %v6611
      %v6613 = vpop.f32.mrf.mxu0
      %v6614 = vadd.f32 0.0, %v6613
      %6615 = vmatprep.mubr.bf16.mxu0 0
      %6616 = vmatmul.mubr.bf16.gmra.mxu0 %v6444
      %v6617 = vpop.f32.mrf.mxu0
      %v6618 = vadd.f32 0.0, %v6617
      %v6619 = vpop.f32.mrf.mxu0
      %v6620 = vadd.f32 0.0, %v6619
      %v6621 = vpop.f32.mrf.mxu0
      %v6622 = vadd.f32 0.0, %v6621
      %v6623 = vpop.f32.mrf.mxu0
      %v6624 = vadd.f32 0.0, %v6623
      %6625 = vmatprep.mubr.bf16.mxu0 0
      %6626 = vmatmul.mubr.bf16.gmra.mxu0 %v6445
      %v6627 = vpop.f32.mrf.mxu0
      %v6628 = vadd.f32 0.0, %v6627
      %v6629 = vpop.f32.mrf.mxu0
      %v6630 = vadd.f32 0.0, %v6629
      %v6631 = vpop.f32.mrf.mxu0
      %v6632 = vadd.f32 0.0, %v6631
      %v6633 = vpop.f32.mrf.mxu0
      %v6634 = vadd.f32 0.0, %v6633
      %6635 = vmatprep.mubr.bf16.mxu0 0
      %6636 = vmatmul.mubr.bf16.gmra.mxu0 %v6446
      %v6637 = vpop.f32.mrf.mxu0
      %v6638 = vadd.f32 0.0, %v6637
      %v6639 = vpop.f32.mrf.mxu0
      %v6640 = vadd.f32 0.0, %v6639
      %v6641 = vpop.f32.mrf.mxu0
      %v6642 = vadd.f32 0.0, %v6641
      %v6643 = vpop.f32.mrf.mxu0
      %v6644 = vadd.f32 0.0, %v6643
      %6645 = vmatprep.mubr.bf16.mxu0 0
      %6646 = vmatmul.mubr.bf16.gmra.mxu0 %v6447
      %v6647 = vpop.f32.mrf.mxu0
      %v6648 = vadd.f32 0.0, %v6647
      %v6649 = vpop.f32.mrf.mxu0
      %v6650 = vadd.f32 0.0, %v6649
      %v6651 = vpop.f32.mrf.mxu0
      %v6652 = vadd.f32 0.0, %v6651
      %v6653 = vpop.f32.mrf.mxu0
      %v6654 = vadd.f32 0.0, %v6653
      %6655 = vmatprep.mubr.bf16.mxu0 0
      %6656 = vmatmul.mubr.bf16.gmra.mxu0 %v6448
      %v6657 = vpop.f32.mrf.mxu0
      %v6658 = vadd.f32 0.0, %v6657
      %v6659 = vpop.f32.mrf.mxu0
      %v6660 = vadd.f32 0.0, %v6659
      %v6661 = vpop.f32.mrf.mxu0
      %v6662 = vadd.f32 0.0, %v6661
      %v6663 = vpop.f32.mrf.mxu0
      %v6664 = vadd.f32 0.0, %v6663
      %6665 = vmatprep.mubr.bf16.mxu0 0
      %6666 = vmatmul.mubr.bf16.gmra.mxu0 %v6449
      %v6667 = vpop.f32.mrf.mxu0
      %v6668 = vadd.f32 0.0, %v6667
      %v6669 = vpop.f32.mrf.mxu0
      %v6670 = vadd.f32 0.0, %v6669
      %v6671 = vpop.f32.mrf.mxu0
      %v6672 = vadd.f32 0.0, %v6671
      %v6673 = vpop.f32.mrf.mxu0
      %v6674 = vadd.f32 0.0, %v6673
      %6675 = vmatprep.mubr.bf16.mxu0 0
      %6676 = vmatmul.mubr.bf16.gmra.mxu0 %v6450
      %v6677 = vpop.f32.mrf.mxu0
      %v6678 = vadd.f32 0.0, %v6677
      %v6679 = vpop.f32.mrf.mxu0
      %v6680 = vadd.f32 0.0, %v6679
      %v6681 = vpop.f32.mrf.mxu0
      %v6682 = vadd.f32 0.0, %v6681
      %v6683 = vpop.f32.mrf.mxu0
      %v6684 = vadd.f32 0.0, %v6683
      %6685 = vmatprep.mubr.bf16.mxu0 0
      %6686 = vmatmul.mubr.bf16.gmra.mxu0 %v6451
      %v6687 = vpop.f32.mrf.mxu0
      %v6688 = vadd.f32 0.0, %v6687
      %v6689 = vpop.f32.mrf.mxu0
      %v6690 = vadd.f32 0.0, %v6689
      %v6691 = vpop.f32.mrf.mxu0
      %v6692 = vadd.f32 0.0, %v6691
      %v6693 = vpop.f32.mrf.mxu0
      %v6694 = vadd.f32 0.0, %v6693
      %6695 = vmatprep.mubr.bf16.mxu0 0
      %6696 = vmatmul.mubr.bf16.gmra.mxu0 %v6452
      %v6697 = vpop.f32.mrf.mxu0
      %v6698 = vadd.f32 0.0, %v6697
      %v6699 = vpop.f32.mrf.mxu0
      %v6700 = vadd.f32 0.0, %v6699
      %v6701 = vpop.f32.mrf.mxu0
      %v6702 = vadd.f32 0.0, %v6701
      %v6703 = vpop.f32.mrf.mxu0
      %v6704 = vadd.f32 0.0, %v6703
      %6705 = vmatprep.mubr.bf16.mxu0 0
      %6706 = vmatmul.mubr.bf16.gmra.mxu0 %v6453
      %v6707 = vpop.f32.mrf.mxu0
      %v6708 = vadd.f32 0.0, %v6707
      %v6709 = vpop.f32.mrf.mxu0
      %v6710 = vadd.f32 0.0, %v6709
      %v6711 = vpop.f32.mrf.mxu0
      %v6712 = vadd.f32 0.0, %v6711
      %v6713 = vpop.f32.mrf.mxu0
      %v6714 = vadd.f32 0.0, %v6713
      %6715 = vmatprep.mubr.bf16.mxu0 0
      %6716 = vmatmul.mubr.bf16.gmra.mxu0 %v6454
      %v6717 = vpop.f32.mrf.mxu0
      %v6718 = vadd.f32 0.0, %v6717
      %v6719 = vpop.f32.mrf.mxu0
      %v6720 = vadd.f32 0.0, %v6719
      %v6721 = vpop.f32.mrf.mxu0
      %v6722 = vadd.f32 0.0, %v6721
      %v6723 = vpop.f32.mrf.mxu0
      %v6724 = vadd.f32 0.0, %v6723
      %6725 = vmatprep.mubr.bf16.mxu0 0
      %6726 = vmatmul.mubr.bf16.gmra.mxu0 %v6455
      %v6727 = vpop.f32.mrf.mxu0
      %v6728 = vadd.f32 0.0, %v6727
      %v6729 = vpop.f32.mrf.mxu0
      %v6730 = vadd.f32 0.0, %v6729
      %v6731 = vpop.f32.mrf.mxu0
      %v6732 = vadd.f32 0.0, %v6731
      %v6733 = vpop.f32.mrf.mxu0
      %v6734 = vadd.f32 0.0, %v6733
      %6735 = vmatprep.mubr.bf16.mxu0 0
      %6736 = vmatmul.mubr.bf16.gmra.mxu0 %v6456
      %v6737 = vpop.f32.mrf.mxu0
      %v6738 = vadd.f32 0.0, %v6737
      %v6739 = vpop.f32.mrf.mxu0
      %v6740 = vadd.f32 0.0, %v6739
      %v6741 = vpop.f32.mrf.mxu0
      %v6742 = vadd.f32 0.0, %v6741
      %v6743 = vpop.f32.mrf.mxu0
      %v6744 = vadd.f32 0.0, %v6743
      %6745 = vdwg.mxu0
      %v6746 = vadd.f32 %v6345, %v6588
      %v6747 = vadd.f32 %v6346, %v6590
      %v6748 = vadd.f32 %v6347, %v6592
      %v6749 = vadd.f32 %v6348, %v6594
      %v6750 = vadd.f32 %v6349, %v6598
      %v6751 = vadd.f32 %v6350, %v6600
      %v6752 = vadd.f32 %v6351, %v6602
      %v6753 = vadd.f32 %v6352, %v6604
      %v6754 = vadd.f32 %v6353, %v6608
      %v6755 = vadd.f32 %v6354, %v6610
      %v6756 = vadd.f32 %v6355, %v6612
      %v6757 = vadd.f32 %v6356, %v6614
      %v6758 = vadd.f32 %v6357, %v6618
      %v6759 = vadd.f32 %v6358, %v6620
      %v6760 = vadd.f32 %v6359, %v6622
      %v6761 = vadd.f32 %v6360, %v6624
      %v6762 = vadd.f32 %v6361, %v6628
      %v6763 = vadd.f32 %v6362, %v6630
      %v6764 = vadd.f32 %v6363, %v6632
      %v6765 = vadd.f32 %v6364, %v6634
      %v6766 = vadd.f32 %v6365, %v6638
      %v6767 = vadd.f32 %v6366, %v6640
      %v6768 = vadd.f32 %v6367, %v6642
      %v6769 = vadd.f32 %v6368, %v6644
      %v6770 = vadd.f32 %v6369, %v6648
      %v6771 = vadd.f32 %v6370, %v6650
      %v6772 = vadd.f32 %v6371, %v6652
      %v6773 = vadd.f32 %v6372, %v6654
      %v6774 = vadd.f32 %v6373, %v6658
      %v6775 = vadd.f32 %v6374, %v6660
      %v6776 = vadd.f32 %v6375, %v6662
      %v6777 = vadd.f32 %v6376, %v6664
      %v6778 = vadd.f32 %v6377, %v6668
      %v6779 = vadd.f32 %v6378, %v6670
      %v6780 = vadd.f32 %v6379, %v6672
      %v6781 = vadd.f32 %v6380, %v6674
      %v6782 = vadd.f32 %v6381, %v6678
      %v6783 = vadd.f32 %v6382, %v6680
      %v6784 = vadd.f32 %v6383, %v6682
      %v6785 = vadd.f32 %v6384, %v6684
      %v6786 = vadd.f32 %v6385, %v6688
      %v6787 = vadd.f32 %v6386, %v6690
      %v6788 = vadd.f32 %v6387, %v6692
      %v6789 = vadd.f32 %v6388, %v6694
      %v6790 = vadd.f32 %v6389, %v6698
      %v6791 = vadd.f32 %v6390, %v6700
      %v6792 = vadd.f32 %v6391, %v6702
      %v6793 = vadd.f32 %v6392, %v6704
      %v6794 = vadd.f32 %v6393, %v6708
      %v6795 = vadd.f32 %v6394, %v6710
      %v6796 = vadd.f32 %v6395, %v6712
      %v6797 = vadd.f32 %v6396, %v6714
      %v6798 = vadd.f32 %v6397, %v6718
      %v6799 = vadd.f32 %v6398, %v6720
      %v6800 = vadd.f32 %v6399, %v6722
      %v6801 = vadd.f32 %v6400, %v6724
      %v6802 = vadd.f32 %v6401, %v6728
      %v6803 = vadd.f32 %v6402, %v6730
      %v6804 = vadd.f32 %v6403, %v6732
      %v6805 = vadd.f32 %v6404, %v6734
      %v6806 = vadd.f32 %v6405, %v6738
      %v6807 = vadd.f32 %v6406, %v6740
      %v6808 = vadd.f32 %v6407, %v6742
      %v6809 = vadd.f32 %v6408, %v6744
      %v6810 = vld [vmem:[%s5] sm:$0x3]
      %v6812 = vlaneseq
      %v6813 = vshrl.u32 %v6812, 7
      %v6814 = vsub.s32 0, %v6813
      %v6815 = vrot.slane %v6810, %v6814
      %v6816 = vlaneseq
      %v6817 = vshrl.u32 %v6816, 7
      %v6818 = vsub.s32 1, %v6817
      %v6819 = vrot.slane %v6810, %v6818
      %v6822 = vadd.f32 %v6746, %v6815
      %v6823 = vadd.f32 %v6747, %v6819
      %v6824 = vadd.f32 %v6748, %v6815
      %v6825 = vadd.f32 %v6749, %v6819
      %v6826 = vadd.f32 %v6750, %v6815
      %v6827 = vadd.f32 %v6751, %v6819
      %v6828 = vadd.f32 %v6752, %v6815
      %v6829 = vadd.f32 %v6753, %v6819
      %v6830 = vadd.f32 %v6754, %v6815
      %v6831 = vadd.f32 %v6755, %v6819
      %v6832 = vadd.f32 %v6756, %v6815
      %v6833 = vadd.f32 %v6757, %v6819
      %v6834 = vadd.f32 %v6758, %v6815
      %v6835 = vadd.f32 %v6759, %v6819
      %v6836 = vadd.f32 %v6760, %v6815
      %v6837 = vadd.f32 %v6761, %v6819
      %v6838 = vadd.f32 %v6762, %v6815
      %v6839 = vadd.f32 %v6763, %v6819
      %v6840 = vadd.f32 %v6764, %v6815
      %v6841 = vadd.f32 %v6765, %v6819
      %v6842 = vadd.f32 %v6766, %v6815
      %v6843 = vadd.f32 %v6767, %v6819
      %v6844 = vadd.f32 %v6768, %v6815
      %v6845 = vadd.f32 %v6769, %v6819
      %v6846 = vadd.f32 %v6770, %v6815
      %v6847 = vadd.f32 %v6771, %v6819
      %v6848 = vadd.f32 %v6772, %v6815
      %v6849 = vadd.f32 %v6773, %v6819
      %v6850 = vadd.f32 %v6774, %v6815
      %v6851 = vadd.f32 %v6775, %v6819
      %v6852 = vadd.f32 %v6776, %v6815
      %v6853 = vadd.f32 %v6777, %v6819
      %v6854 = vadd.f32 %v6778, %v6815
      %v6855 = vadd.f32 %v6779, %v6819
      %v6856 = vadd.f32 %v6780, %v6815
      %v6857 = vadd.f32 %v6781, %v6819
      %v6858 = vadd.f32 %v6782, %v6815
      %v6859 = vadd.f32 %v6783, %v6819
      %v6860 = vadd.f32 %v6784, %v6815
      %v6861 = vadd.f32 %v6785, %v6819
      %v6862 = vadd.f32 %v6786, %v6815
      %v6863 = vadd.f32 %v6787, %v6819
      %v6864 = vadd.f32 %v6788, %v6815
      %v6865 = vadd.f32 %v6789, %v6819
      %v6866 = vadd.f32 %v6790, %v6815
      %v6867 = vadd.f32 %v6791, %v6819
      %v6868 = vadd.f32 %v6792, %v6815
      %v6869 = vadd.f32 %v6793, %v6819
      %v6870 = vadd.f32 %v6794, %v6815
      %v6871 = vadd.f32 %v6795, %v6819
      %v6872 = vadd.f32 %v6796, %v6815
      %v6873 = vadd.f32 %v6797, %v6819
      %v6874 = vadd.f32 %v6798, %v6815
      %v6875 = vadd.f32 %v6799, %v6819
      %v6876 = vadd.f32 %v6800, %v6815
      %v6877 = vadd.f32 %v6801, %v6819
      %v6878 = vadd.f32 %v6802, %v6815
      %v6879 = vadd.f32 %v6803, %v6819
      %v6880 = vadd.f32 %v6804, %v6815
      %v6881 = vadd.f32 %v6805, %v6819
      %v6882 = vadd.f32 %v6806, %v6815
      %v6883 = vadd.f32 %v6807, %v6819
      %v6884 = vadd.f32 %v6808, %v6815
      %v6885 = vadd.f32 %v6809, %v6819
      %v6886 = vld [vmem:[%s315] sm:$0xff]
      %v6887 = vld [vmem:[%s315 + $0x8] sm:$0xff]
      %v6888 = vld [vmem:[%s315 + $0x10] sm:$0xff]
      %v6889 = vld [vmem:[%s315 + $0x18] sm:$0xff]
      %v6890 = vld [vmem:[%s315 + $0x20] sm:$0xff]
      %v6891 = vld [vmem:[%s315 + $0x28] sm:$0xff]
      %v6892 = vld [vmem:[%s315 + $0x30] sm:$0xff]
      %v6893 = vld [vmem:[%s315 + $0x38] sm:$0xff]
      %v6894 = vld [vmem:[%s315 + $0x40] sm:$0xff]
      %v6895 = vld [vmem:[%s315 + $0x48] sm:$0xff]
      %v6896 = vld [vmem:[%s315 + $0x50] sm:$0xff]
      %v6897 = vld [vmem:[%s315 + $0x58] sm:$0xff]
      %v6898 = vld [vmem:[%s315 + $0x60] sm:$0xff]
      %v6899 = vld [vmem:[%s315 + $0x68] sm:$0xff]
      %v6900 = vld [vmem:[%s315 + $0x70] sm:$0xff]
      %v6901 = vld [vmem:[%s315 + $0x78] sm:$0xff]
      %v6902 = vld [vmem:[%s315 + $0x80] sm:$0xff]
      %v6903 = vld [vmem:[%s315 + $0x88] sm:$0xff]
      %v6904 = vld [vmem:[%s315 + $0x90] sm:$0xff]
      %v6905 = vld [vmem:[%s315 + $0x98] sm:$0xff]
      %v6906 = vld [vmem:[%s315 + $0xa0] sm:$0xff]
      %v6907 = vld [vmem:[%s315 + $0xa8] sm:$0xff]
      %v6908 = vld [vmem:[%s315 + $0xb0] sm:$0xff]
      %v6909 = vld [vmem:[%s315 + $0xb8] sm:$0xff]
      %v6910 = vld [vmem:[%s315 + $0xc0] sm:$0xff]
      %v6911 = vld [vmem:[%s315 + $0xc8] sm:$0xff]
      %v6912 = vld [vmem:[%s315 + $0xd0] sm:$0xff]
      %v6913 = vld [vmem:[%s315 + $0xd8] sm:$0xff]
      %v6914 = vld [vmem:[%s315 + $0xe0] sm:$0xff]
      %v6915 = vld [vmem:[%s315 + $0xe8] sm:$0xff]
      %v6916 = vld [vmem:[%s315 + $0xf0] sm:$0xff]
      %v6917 = vld [vmem:[%s315 + $0xf8] sm:$0xff]
      %v6918 = vadd.f32 %v6886, %v6887
      %v6919 = vadd.f32 %v6918, %v6888
      %v6920 = vadd.f32 %v6919, %v6889
      %v6921 = vadd.f32 %v6920, %v6890
      %v6922 = vadd.f32 %v6921, %v6891
      %v6923 = vadd.f32 %v6922, %v6892
      %v6924 = vadd.f32 %v6923, %v6893
      %v6925 = vadd.f32 %v6924, %v6894
      %v6926 = vadd.f32 %v6925, %v6895
      %v6927 = vadd.f32 %v6926, %v6896
      %v6928 = vadd.f32 %v6927, %v6897
      %v6929 = vadd.f32 %v6928, %v6898
      %v6930 = vadd.f32 %v6929, %v6899
      %v6931 = vadd.f32 %v6930, %v6900
      %v6932 = vadd.f32 %v6931, %v6901
      %v6933 = vadd.f32 %v6932, %v6902
      %v6934 = vadd.f32 %v6933, %v6903
      %v6935 = vadd.f32 %v6934, %v6904
      %v6936 = vadd.f32 %v6935, %v6905
      %v6937 = vadd.f32 %v6936, %v6906
      %v6938 = vadd.f32 %v6937, %v6907
      %v6939 = vadd.f32 %v6938, %v6908
      %v6940 = vadd.f32 %v6939, %v6909
      %v6941 = vadd.f32 %v6940, %v6910
      %v6942 = vadd.f32 %v6941, %v6911
      %v6943 = vadd.f32 %v6942, %v6912
      %v6944 = vadd.f32 %v6943, %v6913
      %v6945 = vadd.f32 %v6944, %v6914
      %v6946 = vadd.f32 %v6945, %v6915
      %v6947 = vadd.f32 %v6946, %v6916
      %v6948 = vadd.f32 %v6947, %v6917
      %v6949 = vrot.slane %v6948, 4
      %v6950 = vadd.f32 %v6948, %v6949
      %v6951 = vrot.slane %v6950, 2
      %v6952 = vadd.f32 %v6950, %v6951
      %v6953 = vrot.slane %v6952, 1
      %v6954 = vadd.f32 %v6952, %v6953
      %v6955 = vrcp.pop 256.0
      %v6956 = vmul.f32 %v6954, %v6955
      %v6957 = vsub.f32 %v6886, %v6956
      %v6958 = vsub.f32 %v6887, %v6956
      %v6959 = vsub.f32 %v6888, %v6956
      %v6960 = vsub.f32 %v6889, %v6956
      %v6961 = vsub.f32 %v6890, %v6956
      %v6962 = vsub.f32 %v6891, %v6956
      %v6963 = vsub.f32 %v6892, %v6956
      %v6964 = vsub.f32 %v6893, %v6956
      %v6965 = vsub.f32 %v6894, %v6956
      %v6966 = vsub.f32 %v6895, %v6956
      %v6967 = vsub.f32 %v6896, %v6956
      %v6968 = vsub.f32 %v6897, %v6956
      %v6969 = vsub.f32 %v6898, %v6956
      %v6970 = vsub.f32 %v6899, %v6956
      %v6971 = vsub.f32 %v6900, %v6956
      %v6972 = vsub.f32 %v6901, %v6956
      %v6973 = vsub.f32 %v6902, %v6956
      %v6974 = vsub.f32 %v6903, %v6956
      %v6975 = vsub.f32 %v6904, %v6956
      %v6976 = vsub.f32 %v6905, %v6956
      %v6977 = vsub.f32 %v6906, %v6956
      %v6978 = vsub.f32 %v6907, %v6956
      %v6979 = vsub.f32 %v6908, %v6956
      %v6980 = vsub.f32 %v6909, %v6956
      %v6981 = vsub.f32 %v6910, %v6956
      %v6982 = vsub.f32 %v6911, %v6956
      %v6983 = vsub.f32 %v6912, %v6956
      %v6984 = vsub.f32 %v6913, %v6956
      %v6985 = vsub.f32 %v6914, %v6956
      %v6986 = vsub.f32 %v6915, %v6956
      %v6987 = vsub.f32 %v6916, %v6956
      %v6988 = vsub.f32 %v6917, %v6956
      %v6989 = vmul.f32 %v6957, %v6957
      %v6990 = vmul.f32 %v6958, %v6958
      %v6991 = vmul.f32 %v6959, %v6959
      %v6992 = vmul.f32 %v6960, %v6960
      %v6993 = vmul.f32 %v6961, %v6961
      %v6994 = vmul.f32 %v6962, %v6962
      %v6995 = vmul.f32 %v6963, %v6963
      %v6996 = vmul.f32 %v6964, %v6964
      %v6997 = vmul.f32 %v6965, %v6965
      %v6998 = vmul.f32 %v6966, %v6966
      %v6999 = vmul.f32 %v6967, %v6967
      %v7000 = vmul.f32 %v6968, %v6968
      %v7001 = vmul.f32 %v6969, %v6969
      %v7002 = vmul.f32 %v6970, %v6970
      %v7003 = vmul.f32 %v6971, %v6971
      %v7004 = vmul.f32 %v6972, %v6972
      %v7005 = vmul.f32 %v6973, %v6973
      %v7006 = vmul.f32 %v6974, %v6974
      %v7007 = vmul.f32 %v6975, %v6975
      %v7008 = vmul.f32 %v6976, %v6976
      %v7009 = vmul.f32 %v6977, %v6977
      %v7010 = vmul.f32 %v6978, %v6978
      %v7011 = vmul.f32 %v6979, %v6979
      %v7012 = vmul.f32 %v6980, %v6980
      %v7013 = vmul.f32 %v6981, %v6981
      %v7014 = vmul.f32 %v6982, %v6982
      %v7015 = vmul.f32 %v6983, %v6983
      %v7016 = vmul.f32 %v6984, %v6984
      %v7017 = vmul.f32 %v6985, %v6985
      %v7018 = vmul.f32 %v6986, %v6986
      %v7019 = vmul.f32 %v6987, %v6987
      %v7020 = vmul.f32 %v6988, %v6988
      %v7021 = vadd.f32 %v6989, %v6990
      %v7022 = vadd.f32 %v7021, %v6991
      %v7023 = vadd.f32 %v7022, %v6992
      %v7024 = vadd.f32 %v7023, %v6993
      %v7025 = vadd.f32 %v7024, %v6994
      %v7026 = vadd.f32 %v7025, %v6995
      %v7027 = vadd.f32 %v7026, %v6996
      %v7028 = vadd.f32 %v7027, %v6997
      %v7029 = vadd.f32 %v7028, %v6998
      %v7030 = vadd.f32 %v7029, %v6999
      %v7031 = vadd.f32 %v7030, %v7000
      %v7032 = vadd.f32 %v7031, %v7001
      %v7033 = vadd.f32 %v7032, %v7002
      %v7034 = vadd.f32 %v7033, %v7003
      %v7035 = vadd.f32 %v7034, %v7004
      %v7036 = vadd.f32 %v7035, %v7005
      %v7037 = vadd.f32 %v7036, %v7006
      %v7038 = vadd.f32 %v7037, %v7007
      %v7039 = vadd.f32 %v7038, %v7008
      %v7040 = vadd.f32 %v7039, %v7009
      %v7041 = vadd.f32 %v7040, %v7010
      %v7042 = vadd.f32 %v7041, %v7011
      %v7043 = vadd.f32 %v7042, %v7012
      %v7044 = vadd.f32 %v7043, %v7013
      %v7045 = vadd.f32 %v7044, %v7014
      %v7046 = vadd.f32 %v7045, %v7015
      %v7047 = vadd.f32 %v7046, %v7016
      %v7048 = vadd.f32 %v7047, %v7017
      %v7049 = vadd.f32 %v7048, %v7018
      %v7050 = vadd.f32 %v7049, %v7019
      %v7051 = vadd.f32 %v7050, %v7020
      %v7052 = vrot.slane %v7051, 4
      %v7053 = vadd.f32 %v7051, %v7052
      %v7054 = vrot.slane %v7053, 2
      %v7055 = vadd.f32 %v7053, %v7054
      %v7056 = vrot.slane %v7055, 1
      %v7057 = vadd.f32 %v7055, %v7056
      %v7058 = vmul.f32 %v7057, %v6955
      %v7059 = vadd.f32 %v7058, 1e-05
      %v7060 = vrsqrt.pop %v7059
      %v7061 = vmul.f32 %v6957, %v7060
      %v7062 = vmul.f32 %v6958, %v7060
      %v7063 = vmul.f32 %v6959, %v7060
      %v7064 = vmul.f32 %v6960, %v7060
      %v7065 = vmul.f32 %v6961, %v7060
      %v7066 = vmul.f32 %v6962, %v7060
      %v7067 = vmul.f32 %v6963, %v7060
      %v7068 = vmul.f32 %v6964, %v7060
      %v7069 = vmul.f32 %v6965, %v7060
      %v7070 = vmul.f32 %v6966, %v7060
      %v7071 = vmul.f32 %v6967, %v7060
      %v7072 = vmul.f32 %v6968, %v7060
      %v7073 = vmul.f32 %v6969, %v7060
      %v7074 = vmul.f32 %v6970, %v7060
      %v7075 = vmul.f32 %v6971, %v7060
      %v7076 = vmul.f32 %v6972, %v7060
      %v7077 = vmul.f32 %v6973, %v7060
      %v7078 = vmul.f32 %v6974, %v7060
      %v7079 = vmul.f32 %v6975, %v7060
      %v7080 = vmul.f32 %v6976, %v7060
      %v7081 = vmul.f32 %v6977, %v7060
      %v7082 = vmul.f32 %v6978, %v7060
      %v7083 = vmul.f32 %v6979, %v7060
      %v7084 = vmul.f32 %v6980, %v7060
      %v7085 = vmul.f32 %v6981, %v7060
      %v7086 = vmul.f32 %v6982, %v7060
      %v7087 = vmul.f32 %v6983, %v7060
      %v7088 = vmul.f32 %v6984, %v7060
      %v7089 = vmul.f32 %v6985, %v7060
      %v7090 = vmul.f32 %v6986, %v7060
      %v7091 = vmul.f32 %v6987, %v7060
      %v7092 = vmul.f32 %v6988, %v7060
      %v7093 = vld [vmem:[%s6] sm:$0x1]
      %v7095 = vlaneseq
      %v7096 = vshrl.u32 %v7095, 7
      %v7097 = vsub.s32 0, %v7096
      %v7098 = vrot.slane %v7093, %v7097
      %v7100 = vmul.f32 %v7061, %v7098
      %v7101 = vmul.f32 %v7062, %v7098
      %v7102 = vmul.f32 %v7063, %v7098
      %v7103 = vmul.f32 %v7064, %v7098
      %v7104 = vmul.f32 %v7065, %v7098
      %v7105 = vmul.f32 %v7066, %v7098
      %v7106 = vmul.f32 %v7067, %v7098
      %v7107 = vmul.f32 %v7068, %v7098
      %v7108 = vmul.f32 %v7069, %v7098
      %v7109 = vmul.f32 %v7070, %v7098
      %v7110 = vmul.f32 %v7071, %v7098
      %v7111 = vmul.f32 %v7072, %v7098
      %v7112 = vmul.f32 %v7073, %v7098
      %v7113 = vmul.f32 %v7074, %v7098
      %v7114 = vmul.f32 %v7075, %v7098
      %v7115 = vmul.f32 %v7076, %v7098
      %v7116 = vmul.f32 %v7077, %v7098
      %v7117 = vmul.f32 %v7078, %v7098
      %v7118 = vmul.f32 %v7079, %v7098
      %v7119 = vmul.f32 %v7080, %v7098
      %v7120 = vmul.f32 %v7081, %v7098
      %v7121 = vmul.f32 %v7082, %v7098
      %v7122 = vmul.f32 %v7083, %v7098
      %v7123 = vmul.f32 %v7084, %v7098
      %v7124 = vmul.f32 %v7085, %v7098
      %v7125 = vmul.f32 %v7086, %v7098
      %v7126 = vmul.f32 %v7087, %v7098
      %v7127 = vmul.f32 %v7088, %v7098
      %v7128 = vmul.f32 %v7089, %v7098
      %v7129 = vmul.f32 %v7090, %v7098
      %v7130 = vmul.f32 %v7091, %v7098
      %v7131 = vmul.f32 %v7092, %v7098
      %v7132 = vld [vmem:[%s7] sm:$0x1]
      %v7134 = vlaneseq
      %v7135 = vshrl.u32 %v7134, 7
      %v7136 = vsub.s32 0, %v7135
      %v7137 = vrot.slane %v7132, %v7136
      %v7139 = vadd.f32 %v7100, %v7137
      %v7140 = vadd.f32 %v7101, %v7137
      %v7141 = vadd.f32 %v7102, %v7137
      %v7142 = vadd.f32 %v7103, %v7137
      %v7143 = vadd.f32 %v7104, %v7137
      %v7144 = vadd.f32 %v7105, %v7137
      %v7145 = vadd.f32 %v7106, %v7137
      %v7146 = vadd.f32 %v7107, %v7137
      %v7147 = vadd.f32 %v7108, %v7137
      %v7148 = vadd.f32 %v7109, %v7137
      %v7149 = vadd.f32 %v7110, %v7137
      %v7150 = vadd.f32 %v7111, %v7137
      %v7151 = vadd.f32 %v7112, %v7137
      %v7152 = vadd.f32 %v7113, %v7137
      %v7153 = vadd.f32 %v7114, %v7137
      %v7154 = vadd.f32 %v7115, %v7137
      %v7155 = vadd.f32 %v7116, %v7137
      %v7156 = vadd.f32 %v7117, %v7137
      %v7157 = vadd.f32 %v7118, %v7137
      %v7158 = vadd.f32 %v7119, %v7137
      %v7159 = vadd.f32 %v7120, %v7137
      %v7160 = vadd.f32 %v7121, %v7137
      %v7161 = vadd.f32 %v7122, %v7137
      %v7162 = vadd.f32 %v7123, %v7137
      %v7163 = vadd.f32 %v7124, %v7137
      %v7164 = vadd.f32 %v7125, %v7137
      %v7165 = vadd.f32 %v7126, %v7137
      %v7166 = vadd.f32 %v7127, %v7137
      %v7167 = vadd.f32 %v7128, %v7137
      %v7168 = vadd.f32 %v7129, %v7137
      %v7169 = vadd.f32 %v7130, %v7137
      %v7170 = vadd.f32 %v7131, %v7137
      %v7171 = vadd.f32 %v6822, 1.0
      %v7172 = vadd.f32 %v6824, 1.0
      %v7173 = vadd.f32 %v6826, 1.0
      %v7174 = vadd.f32 %v6828, 1.0
      %v7175 = vadd.f32 %v6830, 1.0
      %v7176 = vadd.f32 %v6832, 1.0
      %v7177 = vadd.f32 %v6834, 1.0
      %v7178 = vadd.f32 %v6836, 1.0
      %v7179 = vadd.f32 %v6838, 1.0
      %v7180 = vadd.f32 %v6840, 1.0
      %v7181 = vadd.f32 %v6842, 1.0
      %v7182 = vadd.f32 %v6844, 1.0
      %v7183 = vadd.f32 %v6846, 1.0
      %v7184 = vadd.f32 %v6848, 1.0
      %v7185 = vadd.f32 %v6850, 1.0
      %v7186 = vadd.f32 %v6852, 1.0
      %v7187 = vadd.f32 %v6854, 1.0
      %v7188 = vadd.f32 %v6856, 1.0
      %v7189 = vadd.f32 %v6858, 1.0
      %v7190 = vadd.f32 %v6860, 1.0
      %v7191 = vadd.f32 %v6862, 1.0
      %v7192 = vadd.f32 %v6864, 1.0
      %v7193 = vadd.f32 %v6866, 1.0
      %v7194 = vadd.f32 %v6868, 1.0
      %v7195 = vadd.f32 %v6870, 1.0
      %v7196 = vadd.f32 %v6872, 1.0
      %v7197 = vadd.f32 %v6874, 1.0
      %v7198 = vadd.f32 %v6876, 1.0
      %v7199 = vadd.f32 %v6878, 1.0
      %v7200 = vadd.f32 %v6880, 1.0
      %v7201 = vadd.f32 %v6882, 1.0
      %v7202 = vadd.f32 %v6884, 1.0
      %v7203 = vmul.f32 %v7139, %v7171
      %v7204 = vmul.f32 %v7140, %v7172
      %v7205 = vmul.f32 %v7141, %v7173
      %v7206 = vmul.f32 %v7142, %v7174
      %v7207 = vmul.f32 %v7143, %v7175
      %v7208 = vmul.f32 %v7144, %v7176
      %v7209 = vmul.f32 %v7145, %v7177
      %v7210 = vmul.f32 %v7146, %v7178
      %v7211 = vmul.f32 %v7147, %v7179
      %v7212 = vmul.f32 %v7148, %v7180
      %v7213 = vmul.f32 %v7149, %v7181
      %v7214 = vmul.f32 %v7150, %v7182
      %v7215 = vmul.f32 %v7151, %v7183
      %v7216 = vmul.f32 %v7152, %v7184
      %v7217 = vmul.f32 %v7153, %v7185
      %v7218 = vmul.f32 %v7154, %v7186
      %v7219 = vmul.f32 %v7155, %v7187
      %v7220 = vmul.f32 %v7156, %v7188
      %v7221 = vmul.f32 %v7157, %v7189
      %v7222 = vmul.f32 %v7158, %v7190
      %v7223 = vmul.f32 %v7159, %v7191
      %v7224 = vmul.f32 %v7160, %v7192
      %v7225 = vmul.f32 %v7161, %v7193
      %v7226 = vmul.f32 %v7162, %v7194
      %v7227 = vmul.f32 %v7163, %v7195
      %v7228 = vmul.f32 %v7164, %v7196
      %v7229 = vmul.f32 %v7165, %v7197
      %v7230 = vmul.f32 %v7166, %v7198
      %v7231 = vmul.f32 %v7167, %v7199
      %v7232 = vmul.f32 %v7168, %v7200
      %v7233 = vmul.f32 %v7169, %v7201
      %v7234 = vmul.f32 %v7170, %v7202
      %v7235 = vadd.f32 %v7203, %v6823
      %v7236 = vadd.f32 %v7204, %v6825
      %v7237 = vadd.f32 %v7205, %v6827
      %v7238 = vadd.f32 %v7206, %v6829
      %v7239 = vadd.f32 %v7207, %v6831
      %v7240 = vadd.f32 %v7208, %v6833
      %v7241 = vadd.f32 %v7209, %v6835
      %v7242 = vadd.f32 %v7210, %v6837
      %v7243 = vadd.f32 %v7211, %v6839
      %v7244 = vadd.f32 %v7212, %v6841
      %v7245 = vadd.f32 %v7213, %v6843
      %v7246 = vadd.f32 %v7214, %v6845
      %v7247 = vadd.f32 %v7215, %v6847
      %v7248 = vadd.f32 %v7216, %v6849
      %v7249 = vadd.f32 %v7217, %v6851
      %v7250 = vadd.f32 %v7218, %v6853
      %v7251 = vadd.f32 %v7219, %v6855
      %v7252 = vadd.f32 %v7220, %v6857
      %v7253 = vadd.f32 %v7221, %v6859
      %v7254 = vadd.f32 %v7222, %v6861
      %v7255 = vadd.f32 %v7223, %v6863
      %v7256 = vadd.f32 %v7224, %v6865
      %v7257 = vadd.f32 %v7225, %v6867
      %v7258 = vadd.f32 %v7226, %v6869
      %v7259 = vadd.f32 %v7227, %v6871
      %v7260 = vadd.f32 %v7228, %v6873
      %v7261 = vadd.f32 %v7229, %v6875
      %v7262 = vadd.f32 %v7230, %v6877
      %v7263 = vadd.f32 %v7231, %v6879
      %v7264 = vadd.f32 %v7232, %v6881
      %v7265 = vadd.f32 %v7233, %v6883
      %v7266 = vadd.f32 %v7234, %v6885
      %7267 = vst [vmem:[%s325] sm:$0xff] %v7235
      %7268 = vst [vmem:[%s325 + $0x8] sm:$0xff] %v7236
      %7269 = vst [vmem:[%s325 + $0x10] sm:$0xff] %v7237
      %7270 = vst [vmem:[%s325 + $0x18] sm:$0xff] %v7238
      %7271 = vst [vmem:[%s325 + $0x20] sm:$0xff] %v7239
      %7272 = vst [vmem:[%s325 + $0x28] sm:$0xff] %v7240
      %7273 = vst [vmem:[%s325 + $0x30] sm:$0xff] %v7241
      %7274 = vst [vmem:[%s325 + $0x38] sm:$0xff] %v7242
      %7275 = vst [vmem:[%s325 + $0x40] sm:$0xff] %v7243
      %7276 = vst [vmem:[%s325 + $0x48] sm:$0xff] %v7244
      %7277 = vst [vmem:[%s325 + $0x50] sm:$0xff] %v7245
      %7278 = vst [vmem:[%s325 + $0x58] sm:$0xff] %v7246
      %7279 = vst [vmem:[%s325 + $0x60] sm:$0xff] %v7247
      %7280 = vst [vmem:[%s325 + $0x68] sm:$0xff] %v7248
      %7281 = vst [vmem:[%s325 + $0x70] sm:$0xff] %v7249
      %7282 = vst [vmem:[%s325 + $0x78] sm:$0xff] %v7250
      %7283 = vst [vmem:[%s325 + $0x80] sm:$0xff] %v7251
      %7284 = vst [vmem:[%s325 + $0x88] sm:$0xff] %v7252
      %7285 = vst [vmem:[%s325 + $0x90] sm:$0xff] %v7253
      %7286 = vst [vmem:[%s325 + $0x98] sm:$0xff] %v7254
      %7287 = vst [vmem:[%s325 + $0xa0] sm:$0xff] %v7255
      %7288 = vst [vmem:[%s325 + $0xa8] sm:$0xff] %v7256
      %7289 = vst [vmem:[%s325 + $0xb0] sm:$0xff] %v7257
      %7290 = vst [vmem:[%s325 + $0xb8] sm:$0xff] %v7258
      %7291 = vst [vmem:[%s325 + $0xc0] sm:$0xff] %v7259
      %7292 = vst [vmem:[%s325 + $0xc8] sm:$0xff] %v7260
      %7293 = vst [vmem:[%s325 + $0xd0] sm:$0xff] %v7261
      %7294 = vst [vmem:[%s325 + $0xd8] sm:$0xff] %v7262
      %7295 = vst [vmem:[%s325 + $0xe0] sm:$0xff] %v7263
      %7296 = vst [vmem:[%s325 + $0xe8] sm:$0xff] %v7264
      %7297 = vst [vmem:[%s325 + $0xf0] sm:$0xff] %v7265
      %7298 = vst [vmem:[%s325 + $0xf8] sm:$0xff] %v7266
      %p7299 = scmp.lt.s32.totalorder %s19, 1
      %s7300 = scalar_select %p7299, %s19, 1
      %s7301 = smul.addr %s7300, 32
      %s7302 = smul.addr %s7301, 8
      %s7303 = scalar_lea.vmem %s8, %s7302
      // Predicated region
      $region53: #{multi_spade3_forward.4} parent=51 // pred_check
        %p7304 = pneg %p215
      $region54: #{multi_spade3_forward.4} parent=51 // pred_check_branch
        %7306 = sbr.rel (%p7304) target = $region56
      $region55: #{multi_spade3_forward.4} parent=51 // pred_region
        _
      $region56: #{multi_spade3_forward.4} parent=51 // pred_fallthru
        _
    $region52: #{multi_spade3_forward.4} parent=5 // pred_fallthru
      _
    %p7307 = scmp.le.s32.totalorder 2, %s14
    // Predicated region
    $region57: #{multi_spade3_forward.4} parent=5 // pred_check
      %p7308 = pneg %p7307
    $region58: #{multi_spade3_forward.4} parent=5 // pred_check_branch
      %7310 = sbr.rel (%p7308) target = $region60
    $region59: #{multi_spade3_forward.4} parent=5 // pred_region
      %s7311 = ssub.s32 %s14, 2
      // Predicated region
      $region61: #{multi_spade3_forward.4} parent=59 // pred_check
        %p7312 = pneg %p221
      $region62: #{multi_spade3_forward.4} parent=59 // pred_check_branch
        %7314 = sbr.rel (%p7312) target = $region64
      $region63: #{multi_spade3_forward.4} parent=59 // pred_region
        %p7315 = scmp.lt.s32.totalorder %s20, 1
        %s7316 = scalar_select %p7315, %s20, 1
        %s7317 = smul.addr %s7316, 32
        %s7318 = smul.addr %s7317, 8
        %s7319 = scalar_lea.vmem %s8, %s7318
      $region64: #{multi_spade3_forward.4} parent=59 // pred_fallthru
        _
    $region60: #{multi_spade3_forward.4} parent=5 // pred_fallthru
      _
  $region6: #{multi_spade3_forward.4} parent=0 // loop_footer
    %s18 = sadd.s32 1, %s14
  $region7: #{multi_spade3_forward.4} parent=0 // loop_footer_branch
    %13 = sbr.rel target = $region3
  $region8: #{multi_spade3_forward.4} parent=0 // loop_exit
    _

</llo_original>
